<compile_context>
chip_gen: v7x
topology: tpu7x:2x2x1
jax: 0.10.0
libtpu: 0.0.40
codegen_flags: <defaults>
</compile_context>

<pallas_src>
import functools

import jax
import jax.numpy as jnp
from jax.experimental import pallas as pl
from jax.experimental.pallas import tpu as pltpu

VMEM_LIMIT = 48 * 1024 * 1024   # headroom under v7x's 64 MiB physical VMEM
MXU_DTYPE = jnp.bfloat16        # MXU operands; accumulation stays f32
ACT_DTYPE = jnp.bfloat16        # intermediate activation storage dtype


def _stable_sigmoid(x):
    # overflow-free sigmoid; tanh goes to the EUP (free slot vs. the VALU)
    return 0.5 * (jnp.tanh(0.5 * x) + 1.0)


# ----------------------------------------------------------------------------
# Pallas kernels
# ----------------------------------------------------------------------------
def _mm_kernel(*refs, act, has_bias):
    """(TM,K)@(K,N) [+ bias], fused activation; f32 accumulation on the MXU."""
    if has_bias:
        x_ref, w_ref, b_ref, o_ref = refs
    else:
        x_ref, w_ref, o_ref = refs
        b_ref = None
    acc = jnp.dot(x_ref[...], w_ref[...], preferred_element_type=jnp.float32)
    if b_ref is not None:
        acc = acc + b_ref[...]                       # f32 epilogue (v5e-safe)
    if act == "relu":
        acc = jnp.maximum(acc, 0.0)
    elif act == "sigmoid":
        acc = _stable_sigmoid(acc)
    o_ref[...] = acc.astype(o_ref.dtype)


def matmul_bias_act(x, w, b=None, act="none", out_dtype=jnp.float32, tile_m=512):
    """M-tiled matmul with fused (optional) bias + activation, pipelined over M."""
    M, K = x.shape
    K2, N = w.shape
    assert K == K2
    TM = M if M <= tile_m else tile_m                # full block if small, else 512-row tiles
    in_specs = [
        pl.BlockSpec((TM, K), lambda i: (i, 0)),     # x: streamed over M
        pl.BlockSpec((K, N), lambda i: (0, 0)),      # weights: resident
    ]
    args = [x, w]
    if b is not None:
        in_specs.append(pl.BlockSpec((1, N), lambda i: (0, 0)))
        args.append(b.reshape(1, N).astype(jnp.float32))
    return pl.pallas_call(
        functools.partial(_mm_kernel, act=act, has_bias=b is not None),
        out_shape=jax.ShapeDtypeStruct((M, N), out_dtype),
        grid=(pl.cdiv(M, TM),),
        in_specs=in_specs,
        out_specs=pl.BlockSpec((TM, N), lambda i: (i, 0)),
        compiler_params=pltpu.CompilerParams(
            dimension_semantics=("parallel",),       # shard M across v7x's 2 TCs
            vmem_limit_bytes=VMEM_LIMIT,
        ),
    )(*args)


def _head_kernel(x_ref, w0_ref, b0_ref, w1_ref, b1_ref, o_ref):
    """Fused DB head: 3x3-conv matmul + relu, then 1x1 conv (Cout=1) + sigmoid
    done as a VPU weighted sum in the epilogue (avoids an N=1 MXU matmul and an
    extra HBM round trip)."""
    h = jnp.dot(x_ref[...], w0_ref[...], preferred_element_type=jnp.float32)
    h = jnp.maximum(h + b0_ref[...], 0.0)                       # (TM, HEAD_MID) f32
    y = jnp.sum(h * w1_ref[...], axis=-1, keepdims=True) + b1_ref[...]
    o_ref[...] = _stable_sigmoid(y).astype(o_ref.dtype)


def _rowup_add_kernel(f_ref, c_ref, o_ref):
    """fine(T,2,W,C) + coarse_row(T,W,C) broadcast over the duplicated-row dim."""
    a = c_ref[...].astype(jnp.float32)[:, None, :, :]
    o_ref[...] = (f_ref[...].astype(jnp.float32) + a).astype(o_ref.dtype)


# ----------------------------------------------------------------------------
# Conv / FPN / resize wrappers (im2col + layout plumbing is JAX glue; matmuls,
# adds and the head all run in Pallas)
# ----------------------------------------------------------------------------
def _im2col(x_nhwc, k, stride, padding):
    # TODO(synk): fuse the k*k taps directly into the conv kernel (halo'd input
    # tiles + in-VMEM tap accumulation) to avoid materializing the k^2 x patches
    # tensor in HBM; kept as XLA glue here for robustness.
    B, H, W, C = x_nhwc.shape
    xp = jnp.pad(x_nhwc, ((0, 0), (padding, padding), (padding, padding), (0, 0)))
    Ho = (H + 2 * padding - k) // stride + 1
    Wo = (W + 2 * padding - k) // stride + 1
    patches = []
    for i in range(k):
        for j in range(k):
            patches.append(xp[:, i:i + stride * Ho:stride, j:j + stride * Wo:stride, :])
    patches = jnp.concatenate(patches, axis=-1)            # (B, Ho, Wo, k*k*C)
    return patches.reshape(B * Ho * Wo, k * k * C), Ho, Wo


def conv2d(x_nhwc, w_hwio, b, stride=1, padding=0, act="none", out_dtype=ACT_DTYPE):
    B = x_nhwc.shape[0]
    kh, kw, Cin, Cout = w_hwio.shape
    assert kh == kw
    xm, Ho, Wo = _im2col(x_nhwc, kh, stride, padding)
    wm = w_hwio.reshape(kh * kw * Cin, Cout)
    out = matmul_bias_act(xm.astype(MXU_DTYPE), wm.astype(MXU_DTYPE),
                          b, act=act, out_dtype=out_dtype)   # Pallas hot path
    return out.reshape(B, Ho, Wo, Cout)


def fused_up2x_add(fine, coarse):
    """fine + nearest_up2x(coarse) for the FPN top-down merge.
    Column duplication of the small coarse map is XLA glue; the expensive row
    duplication + add at full resolution is fused into one Pallas kernel, so the
    4x-upsampled tensor never round-trips HBM."""
    B, H2, W2, C = fine.shape
    h = H2 // 2
    up_w = jnp.repeat(coarse, 2, axis=2)                    # (B, h, W2, C)
    f2 = fine.reshape(B * h, 2, W2, C)                      # free reshape
    c2 = up_w.reshape(B * h, W2, C)
    BH = B * h
    T = BH if BH <= 256 else 256
    out = pl.pallas_call(
        _rowup_add_kernel,
        out_shape=jax.ShapeDtypeStruct((BH, 2, W2, C), fine.dtype),
        grid=(pl.cdiv(BH, T),),
        in_specs=[
            pl.BlockSpec((T, 2, W2, C), lambda i: (i, 0, 0, 0)),
            pl.BlockSpec((T, W2, C), lambda i: (i, 0, 0)),
        ],
        out_specs=pl.BlockSpec((T, 2, W2, C), lambda i: (i, 0, 0, 0)),
        compiler_params=pltpu.CompilerParams(
            dimension_semantics=("parallel",),
            vmem_limit_bytes=VMEM_LIMIT,
        ),
    )(f2, c2)
    return out.reshape(B, H2, W2, C)


def nearest_up2x(x_nhwc, factor=2):
    x = jnp.repeat(x_nhwc, factor, axis=1)
    return jnp.repeat(x, factor, axis=2)


def head_fused(x_nhwc, w0_hwio, b0, w1_hwio, b1):
    """Fused DB head: 3x3 conv + relu + 1x1 conv + sigmoid -> (B, H, W) prob map."""
    B, H, W, Cin = x_nhwc.shape
    head_mid = w0_hwio.shape[-1]
    xm, Ho, Wo = _im2col(x_nhwc, 3, 1, 1)                    # (M, 9*Cin) bf16
    M, K = xm.shape
    wm0 = w0_hwio.reshape(K, head_mid).astype(MXU_DTYPE)
    b0r = b0.reshape(1, head_mid).astype(jnp.float32)
    w1r = w1_hwio.reshape(1, head_mid).astype(jnp.float32)
    b1r = b1.reshape(1, 1).astype(jnp.float32)
    TM = M if M <= 512 else 512
    out = pl.pallas_call(
        _head_kernel,
        out_shape=jax.ShapeDtypeStruct((M, 1), jnp.float32),
        grid=(pl.cdiv(M, TM),),
        in_specs=[
            pl.BlockSpec((TM, K), lambda i: (i, 0)),
            pl.BlockSpec((K, head_mid), lambda i: (0, 0)),
            pl.BlockSpec((1, head_mid), lambda i: (0, 0)),
            pl.BlockSpec((1, head_mid), lambda i: (0, 0)),
            pl.BlockSpec((1, 1), lambda i: (0, 0)),
        ],
        out_specs=pl.BlockSpec((TM, 1), lambda i: (i, 0)),
        compiler_params=pltpu.CompilerParams(
            dimension_semantics=("parallel",),
            vmem_limit_bytes=VMEM_LIMIT,
        ),
    )(xm.astype(MXU_DTYPE), wm0, b0r, w1r, b1r)
    return out.reshape(B, Ho, Wo)


def _bilinear_matrix(n_in, n_out):
    """Interpolation matrix (n_out, n_in) matching torch bilinear align_corners=True."""
    if n_out == 1:
        src = jnp.zeros((1,), jnp.float32)
    else:
        src = jnp.arange(n_out, dtype=jnp.float32) * (n_in - 1) / (n_out - 1)
    low = jnp.clip(jnp.floor(src).astype(jnp.int32), 0, n_in - 1)
    high = jnp.clip(low + 1, 0, n_in - 1)
    frac = src - low.astype(jnp.float32)
    A = jnp.zeros((n_out, n_in), jnp.float32)
    A = A.at[jnp.arange(n_out), low].add(1.0 - frac)
    A = A.at[jnp.arange(n_out), high].add(frac)
    return A


def bilinear_resize_2d(y_bhw, H_out, W_out):
    """F.interpolate(..., 'bilinear', align_corners=True) on a single-channel map.
    Two Pallas matmuls, only two transposes, no dead bias arrays, and the second
    pass writes a lane-dense (B*H_out, W_out) output."""
    B, h, w = y_bhw.shape
    A_h = _bilinear_matrix(h, H_out)                         # (H_out, h)
    A_wT = _bilinear_matrix(w, W_out).T                      # (w, W_out)
    # rows pass: (H_out, h) @ (h, B*w)
    x1 = y_bhw.transpose(1, 0, 2).reshape(h, B * w)
    z = matmul_bias_act(A_h, x1, b=None, act="none", out_dtype=jnp.float32)
    # cols pass: (B*H_out, w) @ (w, W_out) -> lane-dense W_out
    z2 = z.reshape(H_out, B, w).transpose(1, 0, 2).reshape(B * H_out, w)
    o = matmul_bias_act(z2, A_wT, b=None, act="none", out_dtype=jnp.float32)
    return o.reshape(B, H_out, W_out)


# ----------------------------------------------------------------------------
# Deterministic parameter init (synthetic; shapes follow a small backbone/FPN/DBHead)
# ----------------------------------------------------------------------------
def _conv_init(key, kh, kw, cin, cout):
    k1, k2 = jax.random.split(key)
    fan_in = kh * kw * cin
    w = jax.random.normal(k1, (kh, kw, cin, cout), jnp.float32) / jnp.sqrt(float(fan_in))
    b = 0.01 * jax.random.normal(k2, (cout,), jnp.float32)
    return w, b


def build_params(key):
    C_IN = 3
    BACKBONE_CH = [8, 16, 32, 64]   # backbone.out_channels
    INNER = 16                      # neck inner channels -> neck.out_channels
    HEAD_MID = 4
    keys = jax.random.split(key, 16)
    p = {}
    cin = C_IN
    for s, cout in enumerate(BACKBONE_CH):      # 4 strided 3x3 stages (1/2 .. 1/16)
        p[f"bb{s}"] = _conv_init(keys[s], 3, 3, cin, cout)
        cin = cout
    for s, c in enumerate(BACKBONE_CH):         # FPN: 1x1 laterals, 3x3 smoothing
        p[f"lat{s}"] = _conv_init(keys[4 + s], 1, 1, c, INNER)
        p[f"smooth{s}"] = _conv_init(keys[8 + s], 3, 3, INNER, INNER // 4)
    p["head0"] = _conv_init(keys[12], 3, 3, INNER, HEAD_MID)
    p["head1"] = _conv_init(keys[13], 1, 1, HEAD_MID, 1)
    return p


# ----------------------------------------------------------------------------
# Model forward
# ----------------------------------------------------------------------------
def model_forward(params, x_nchw):
    _, _, H, W = x_nchw.shape
    x = jnp.transpose(x_nchw, (0, 2, 3, 1)).astype(jnp.float32)   # NCHW -> NHWC

    # ---- backbone (activations stored bf16) ----
    feats = []
    h = x
    for s in range(4):
        w_, b_ = params[f"bb{s}"]
        h = conv2d(h, w_, b_, stride=2, padding=1, act="relu")
        feats.append(h)                                   # scales 1/2 .. 1/16

    # ---- neck (FPN) ----
    ins = []
    for s in range(4):
        w_, b_ = params[f"lat{s}"]
        ins.append(conv2d(feats[s], w_, b_, stride=1, padding=0, act="none"))
    outs = [None] * 4
    outs[3] = ins[3]
    for s in (2, 1, 0):                                   # top-down merge (fused up+add)
        outs[s] = fused_up2x_add(ins[s], outs[s + 1])
    ps = []
    for s in range(4):
        w_, b_ = params[f"smooth{s}"]
        p_ = conv2d(outs[s], w_, b_, stride=1, padding=1, act="none")
        if s > 0:
            p_ = nearest_up2x(p_, factor=2 ** s)          # bring to finest scale
        ps.append(p_)
    neck_out = jnp.concatenate(ps, axis=-1)               # (B, H/2, W/2, INNER) bf16

    # ---- head (fused 3x3+relu -> 1x1+sigmoid) ----
    w0, b0 = params["head0"]
    w1, b1 = params["head1"]
    y = head_fused(neck_out, w0, b0, w1, b1)              # (B, H/2, W/2) f32

    # ---- F.interpolate(size=(H, W), mode='bilinear', align_corners=True) ----
    y = bilinear_resize_2d(y, H, W)                       # (B, H, W)
    return y[:, None, :, :]                               # back to NCHW (B, 1, H, W)


# TODO(synk): backbone/neck/head are config-driven builders in the original repo; this
# uses a fixed small ResNet-like backbone + FPN + DB head with synthetic weights.

if __name__ == "__main__":
    key = jax.random.PRNGKey(0)
    pkey, xkey = jax.random.split(key)
    params = build_params(pkey)
    x = jax.random.normal(xkey, (2, 3, 32, 32), jnp.float32)   # NCHW, like PyTorch

    fwd = jax.jit(model_forward)
    y = fwd(params, x)
    jax.block_until_ready(y)
    assert y.shape == (2, 1, 32, 32), y.shape
    assert bool(jnp.all(jnp.isfinite(y)))
    print("KERNEL_OK")
</pallas_src>

<mosaic_0001>
module attributes {stable_mosaic.version = 11 : i64} {
  func.func private @main(%arg0: i32) attributes {dimension_semantics = [#tpu.dimension_semantics<core_parallel>], iteration_bounds = array<i64: 2>, tpu.core_type = #tpu.core_type<sc_scalar_subcore>, window_params = []} {
    return
  }
}

module attributes {stable_mosaic.version = 11 : i64} {
  func.func private @main(%arg0: i32) attributes {dimension_semantics = [#tpu.dimension_semantics<core_parallel>], iteration_bounds = array<i64: 2>, tpu.core_type = #tpu.core_type<sc_scalar_subcore>, window_params = []} {
    return
  }
}

module attributes {stable_mosaic.version = 11 : i64} {
  func.func @_mm_kernel(%arg0: i32, %arg1: memref<512x27xbf16, #tpu.memory_space<vmem>>, %arg2: memref<27x8xbf16, #tpu.memory_space<vmem>>, %arg3: memref<1x8xf32, #tpu.memory_space<vmem>>, %arg4: memref<512x8xbf16, #tpu.memory_space<vmem>>) attributes {dimension_semantics = [#tpu.dimension_semantics<parallel>], iteration_bounds = array<i64: 1>, scalar_prefetch = 0 : i64, scratch_operands = 0 : i64, tpu.core_type = #tpu.core_type<tc>, window_params = [{transform_indices = @transform_0, window_bounds = array<i64: 512, 27>}, {pipeline_mode = #tpu.pipeline_mode<synchronous>, transform_indices = @transform_1, window_bounds = array<i64: 27, 8>}, {pipeline_mode = #tpu.pipeline_mode<synchronous>, transform_indices = @transform_2, window_bounds = array<i64: 1, 8>}, {transform_indices = @transform_3, window_bounds = array<i64: 512, 8>}]} {
    %c0 = arith.constant 0 : index
    %c0_0 = arith.constant 0 : index
    %0 = vector.load %arg1[%c0, %c0_0] : memref<512x27xbf16, #tpu.memory_space<vmem>>, vector<512x27xbf16>
    %c0_1 = arith.constant 0 : index
    %c0_2 = arith.constant 0 : index
    %1 = vector.load %arg2[%c0_1, %c0_2] : memref<27x8xbf16, #tpu.memory_space<vmem>>, vector<27x8xbf16>
    %cst = arith.constant dense<0.000000e+00> : vector<512x8xf32>
    %2 = tpu.matmul %0, %1, %cst {dimension_numbers = #tpu.dot_dimension_numbers<[1], [0], [0], [1], [0, 0, 1, 1], [], []>} : vector<512x27xbf16>, vector<27x8xbf16>, vector<512x8xf32> -> vector<512x8xf32>
    %c0_3 = arith.constant 0 : index
    %c0_4 = arith.constant 0 : index
    %3 = vector.load %arg3[%c0_3, %c0_4] : memref<1x8xf32, #tpu.memory_space<vmem>>, vector<1x8xf32>
    %4 = vector.broadcast %3 : vector<1x8xf32> to vector<512x8xf32>
    %5 = arith.addf %2, %4 : vector<512x8xf32>
    %cst_5 = arith.constant 0.000000e+00 : f32
    %6 = vector.broadcast %cst_5 : f32 to vector<512x8xf32>
    %7 = arith.maximumf %5, %6 : vector<512x8xf32>
    %8 = arith.truncf %7 : vector<512x8xf32> to vector<512x8xbf16>
    %c0_6 = arith.constant 0 : index
    %c0_7 = arith.constant 0 : index
    %9 = vector.load %arg4[%c0_6, %c0_7] : memref<512x8xbf16, #tpu.memory_space<vmem>>, vector<512x8xbf16>
    tpu.vector_store %arg4[%c0_6, %c0_7], %8 {strides = array<i32>} : memref<512x8xbf16, #tpu.memory_space<vmem>>, vector<512x8xbf16>,
    return
  }
  func.func @transform_0(%arg0: i32) -> (i32, i32) {
    %c0_i32 = arith.constant 0 : i32
    %c0_i32_0 = arith.constant 0 : i32
    return %arg0, %c0_i32 : i32, i32
  }
  func.func @transform_1(%arg0: i32) -> (i32, i32) {
    %c0_i32 = arith.constant 0 : i32
    %c0_i32_0 = arith.constant 0 : i32
    %c0_i32_1 = arith.constant 0 : i32
    return %c0_i32, %c0_i32_0 : i32, i32
  }
  func.func @transform_2(%arg0: i32) -> (i32, i32) {
    %c0_i32 = arith.constant 0 : i32
    %c0_i32_0 = arith.constant 0 : i32
    %c0_i32_1 = arith.constant 0 : i32
    return %c0_i32, %c0_i32_0 : i32, i32
  }
  func.func @transform_3(%arg0: i32) -> (i32, i32) {
    %c0_i32 = arith.constant 0 : i32
    %c0_i32_0 = arith.constant 0 : i32
    return %arg0, %c0_i32 : i32, i32
  }
}

module attributes {stable_mosaic.version = 11 : i64} {
  func.func @_mm_kernel(%arg0: i32, %arg1: memref<128x72xbf16, #tpu.memory_space<vmem>>, %arg2: memref<72x16xbf16, #tpu.memory_space<vmem>>, %arg3: memref<1x16xf32, #tpu.memory_space<vmem>>, %arg4: memref<128x16xbf16, #tpu.memory_space<vmem>>) attributes {dimension_semantics = [#tpu.dimension_semantics<parallel>], iteration_bounds = array<i64: 1>, scalar_prefetch = 0 : i64, scratch_operands = 0 : i64, tpu.core_type = #tpu.core_type<tc>, window_params = [{transform_indices = @transform_0, window_bounds = array<i64: 128, 72>}, {pipeline_mode = #tpu.pipeline_mode<synchronous>, transform_indices = @transform_1, window_bounds = array<i64: 72, 16>}, {pipeline_mode = #tpu.pipeline_mode<synchronous>, transform_indices = @transform_2, window_bounds = array<i64: 1, 16>}, {transform_indices = @transform_3, window_bounds = array<i64: 128, 16>}]} {
    %c0 = arith.constant 0 : index
    %c0_0 = arith.constant 0 : index
    %0 = vector.load %arg1[%c0, %c0_0] : memref<128x72xbf16, #tpu.memory_space<vmem>>, vector<128x72xbf16>
    %c0_1 = arith.constant 0 : index
    %c0_2 = arith.constant 0 : index
    %1 = vector.load %arg2[%c0_1, %c0_2] : memref<72x16xbf16, #tpu.memory_space<vmem>>, vector<72x16xbf16>
    %cst = arith.constant dense<0.000000e+00> : vector<128x16xf32>
    %2 = tpu.matmul %0, %1, %cst {dimension_numbers = #tpu.dot_dimension_numbers<[1], [0], [0], [1], [0, 0, 1, 1], [], []>} : vector<128x72xbf16>, vector<72x16xbf16>, vector<128x16xf32> -> vector<128x16xf32>
    %c0_3 = arith.constant 0 : index
    %c0_4 = arith.constant 0 : index
    %3 = vector.load %arg3[%c0_3, %c0_4] : memref<1x16xf32, #tpu.memory_space<vmem>>, vector<1x16xf32>
    %4 = vector.broadcast %3 : vector<1x16xf32> to vector<128x16xf32>
    %5 = arith.addf %2, %4 : vector<128x16xf32>
    %cst_5 = arith.constant 0.000000e+00 : f32
    %6 = vector.broadcast %cst_5 : f32 to vector<128x16xf32>
    %7 = arith.maximumf %5, %6 : vector<128x16xf32>
    %8 = arith.truncf %7 : vector<128x16xf32> to vector<128x16xbf16>
    %c0_6 = arith.constant 0 : index
    %c0_7 = arith.constant 0 : index
    %9 = vector.load %arg4[%c0_6, %c0_7] : memref<128x16xbf16, #tpu.memory_space<vmem>>, vector<128x16xbf16>
    tpu.vector_store %arg4[%c0_6, %c0_7], %8 {strides = array<i32>} : memref<128x16xbf16, #tpu.memory_space<vmem>>, vector<128x16xbf16>,
    return
  }
  func.func @transform_0(%arg0: i32) -> (i32, i32) {
    %c0_i32 = arith.constant 0 : i32
    %c0_i32_0 = arith.constant 0 : i32
    return %arg0, %c0_i32 : i32, i32
  }
  func.func @transform_1(%arg0: i32) -> (i32, i32) {
    %c0_i32 = arith.constant 0 : i32
    %c0_i32_0 = arith.constant 0 : i32
    %c0_i32_1 = arith.constant 0 : i32
    return %c0_i32, %c0_i32_0 : i32, i32
  }
  func.func @transform_2(%arg0: i32) -> (i32, i32) {
    %c0_i32 = arith.constant 0 : i32
    %c0_i32_0 = arith.constant 0 : i32
    %c0_i32_1 = arith.constant 0 : i32
    return %c0_i32, %c0_i32_0 : i32, i32
  }
  func.func @transform_3(%arg0: i32) -> (i32, i32) {
    %c0_i32 = arith.constant 0 : i32
    %c0_i32_0 = arith.constant 0 : i32
    return %arg0, %c0_i32 : i32, i32
  }
}

module attributes {stable_mosaic.version = 11 : i64} {
  func.func @_mm_kernel(%arg0: i32, %arg1: memref<32x144xbf16, #tpu.memory_space<vmem>>, %arg2: memref<144x32xbf16, #tpu.memory_space<vmem>>, %arg3: memref<1x32xf32, #tpu.memory_space<vmem>>, %arg4: memref<32x32xbf16, #tpu.memory_space<vmem>>) attributes {dimension_semantics = [#tpu.dimension_semantics<parallel>], iteration_bounds = array<i64: 1>, scalar_prefetch = 0 : i64, scratch_operands = 0 : i64, tpu.core_type = #tpu.core_type<tc>, window_params = [{transform_indices = @transform_0, window_bounds = array<i64: 32, 144>}, {pipeline_mode = #tpu.pipeline_mode<synchronous>, transform_indices = @transform_1, window_bounds = array<i64: 144, 32>}, {pipeline_mode = #tpu.pipeline_mode<synchronous>, transform_indices = @transform_2, window_bounds = array<i64: 1, 32>}, {transform_indices = @transform_3, window_bounds = array<i64: 32, 32>}]} {
    %c0 = arith.constant 0 : index
    %c0_0 = arith.constant 0 : index
    %0 = vector.load %arg1[%c0, %c0_0] : memref<32x144xbf16, #tpu.memory_space<vmem>>, vector<32x144xbf16>
    %c0_1 = arith.constant 0 : index
    %c0_2 = arith.constant 0 : index
    %1 = vector.load %arg2[%c0_1, %c0_2] : memref<144x32xbf16, #tpu.memory_space<vmem>>, vector<144x32xbf16>
    %cst = arith.constant dense<0.000000e+00> : vector<32x32xf32>
    %2 = tpu.matmul %0, %1, %cst {dimension_numbers = #tpu.dot_dimension_numbers<[1], [0], [0], [1], [0, 0, 1, 1], [], []>} : vector<32x144xbf16>, vector<144x32xbf16>, vector<32x32xf32> -> vector<32x32xf32>
    %c0_3 = arith.constant 0 : index
    %c0_4 = arith.constant 0 : index
    %3 = vector.load %arg3[%c0_3, %c0_4] : memref<1x32xf32, #tpu.memory_space<vmem>>, vector<1x32xf32>
    %4 = vector.broadcast %3 : vector<1x32xf32> to vector<32x32xf32>
    %5 = arith.addf %2, %4 : vector<32x32xf32>
    %cst_5 = arith.constant 0.000000e+00 : f32
    %6 = vector.broadcast %cst_5 : f32 to vector<32x32xf32>
    %7 = arith.maximumf %5, %6 : vector<32x32xf32>
    %8 = arith.truncf %7 : vector<32x32xf32> to vector<32x32xbf16>
    %c0_6 = arith.constant 0 : index
    %c0_7 = arith.constant 0 : index
    %9 = vector.load %arg4[%c0_6, %c0_7] : memref<32x32xbf16, #tpu.memory_space<vmem>>, vector<32x32xbf16>
    tpu.vector_store %arg4[%c0_6, %c0_7], %8 {strides = array<i32>} : memref<32x32xbf16, #tpu.memory_space<vmem>>, vector<32x32xbf16>,
    return
  }
  func.func @transform_0(%arg0: i32) -> (i32, i32) {
    %c0_i32 = arith.constant 0 : i32
    %c0_i32_0 = arith.constant 0 : i32
    return %arg0, %c0_i32 : i32, i32
  }
  func.func @transform_1(%arg0: i32) -> (i32, i32) {
    %c0_i32 = arith.constant 0 : i32
    %c0_i32_0 = arith.constant 0 : i32
    %c0_i32_1 = arith.constant 0 : i32
    return %c0_i32, %c0_i32_0 : i32, i32
  }
  func.func @transform_2(%arg0: i32) -> (i32, i32) {
    %c0_i32 = arith.constant 0 : i32
    %c0_i32_0 = arith.constant 0 : i32
    %c0_i32_1 = arith.constant 0 : i32
    return %c0_i32, %c0_i32_0 : i32, i32
  }
  func.func @transform_3(%arg0: i32) -> (i32, i32) {
    %c0_i32 = arith.constant 0 : i32
    %c0_i32_0 = arith.constant 0 : i32
    return %arg0, %c0_i32 : i32, i32
  }
}

module attributes {stable_mosaic.version = 11 : i64} {
  func.func @_mm_kernel(%arg0: i32, %arg1: memref<8x288xbf16, #tpu.memory_space<vmem>>, %arg2: memref<288x64xbf16, #tpu.memory_space<vmem>>, %arg3: memref<1x64xf32, #tpu.memory_space<vmem>>, %arg4: memref<8x64xbf16, #tpu.memory_space<vmem>>) attributes {dimension_semantics = [#tpu.dimension_semantics<parallel>], iteration_bounds = array<i64: 1>, scalar_prefetch = 0 : i64, scratch_operands = 0 : i64, tpu.core_type = #tpu.core_type<tc>, window_params = [{transform_indices = @transform_0, window_bounds = array<i64: 8, 288>}, {pipeline_mode = #tpu.pipeline_mode<synchronous>, transform_indices = @transform_1, window_bounds = array<i64: 288, 64>}, {pipeline_mode = #tpu.pipeline_mode<synchronous>, transform_indices = @transform_2, window_bounds = array<i64: 1, 64>}, {transform_indices = @transform_3, window_bounds = array<i64: 8, 64>}]} {
    %c0 = arith.constant 0 : index
    %c0_0 = arith.constant 0 : index
    %0 = vector.load %arg1[%c0, %c0_0] : memref<8x288xbf16, #tpu.memory_space<vmem>>, vector<8x288xbf16>
    %c0_1 = arith.constant 0 : index
    %c0_2 = arith.constant 0 : index
    %1 = vector.load %arg2[%c0_1, %c0_2] : memref<288x64xbf16, #tpu.memory_space<vmem>>, vector<288x64xbf16>
    %cst = arith.constant dense<0.000000e+00> : vector<8x64xf32>
    %2 = tpu.matmul %0, %1, %cst {dimension_numbers = #tpu.dot_dimension_numbers<[1], [0], [0], [1], [0, 0, 1, 1], [], []>} : vector<8x288xbf16>, vector<288x64xbf16>, vector<8x64xf32> -> vector<8x64xf32>
    %c0_3 = arith.constant 0 : index
    %c0_4 = arith.constant 0 : index
    %3 = vector.load %arg3[%c0_3, %c0_4] : memref<1x64xf32, #tpu.memory_space<vmem>>, vector<1x64xf32>
    %4 = vector.broadcast %3 : vector<1x64xf32> to vector<8x64xf32>
    %5 = arith.addf %2, %4 : vector<8x64xf32>
    %cst_5 = arith.constant 0.000000e+00 : f32
    %6 = vector.broadcast %cst_5 : f32 to vector<8x64xf32>
    %7 = arith.maximumf %5, %6 : vector<8x64xf32>
    %8 = arith.truncf %7 : vector<8x64xf32> to vector<8x64xbf16>
    %c0_6 = arith.constant 0 : index
    %c0_7 = arith.constant 0 : index
    %9 = vector.load %arg4[%c0_6, %c0_7] : memref<8x64xbf16, #tpu.memory_space<vmem>>, vector<8x64xbf16>
    tpu.vector_store %arg4[%c0_6, %c0_7], %8 {strides = array<i32>} : memref<8x64xbf16, #tpu.memory_space<vmem>>, vector<8x64xbf16>,
    return
  }
  func.func @transform_0(%arg0: i32) -> (i32, i32) {
    %c0_i32 = arith.constant 0 : i32
    %c0_i32_0 = arith.constant 0 : i32
    return %arg0, %c0_i32 : i32, i32
  }
  func.func @transform_1(%arg0: i32) -> (i32, i32) {
    %c0_i32 = arith.constant 0 : i32
    %c0_i32_0 = arith.constant 0 : i32
    %c0_i32_1 = arith.constant 0 : i32
    return %c0_i32, %c0_i32_0 : i32, i32
  }
  func.func @transform_2(%arg0: i32) -> (i32, i32) {
    %c0_i32 = arith.constant 0 : i32
    %c0_i32_0 = arith.constant 0 : i32
    %c0_i32_1 = arith.constant 0 : i32
    return %c0_i32, %c0_i32_0 : i32, i32
  }
  func.func @transform_3(%arg0: i32) -> (i32, i32) {
    %c0_i32 = arith.constant 0 : i32
    %c0_i32_0 = arith.constant 0 : i32
    return %arg0, %c0_i32 : i32, i32
  }
}

module attributes {stable_mosaic.version = 11 : i64} {
  func.func @_mm_kernel(%arg0: i32, %arg1: memref<32x32xbf16, #tpu.memory_space<vmem>>, %arg2: memref<32x16xbf16, #tpu.memory_space<vmem>>, %arg3: memref<1x16xf32, #tpu.memory_space<vmem>>, %arg4: memref<32x16xbf16, #tpu.memory_space<vmem>>) attributes {dimension_semantics = [#tpu.dimension_semantics<parallel>], iteration_bounds = array<i64: 1>, scalar_prefetch = 0 : i64, scratch_operands = 0 : i64, tpu.core_type = #tpu.core_type<tc>, window_params = [{transform_indices = @transform_0, window_bounds = array<i64: 32, 32>}, {pipeline_mode = #tpu.pipeline_mode<synchronous>, transform_indices = @transform_1, window_bounds = array<i64: 32, 16>}, {pipeline_mode = #tpu.pipeline_mode<synchronous>, transform_indices = @transform_2, window_bounds = array<i64: 1, 16>}, {transform_indices = @transform_3, window_bounds = array<i64: 32, 16>}]} {
    %c0 = arith.constant 0 : index
    %c0_0 = arith.constant 0 : index
    %0 = vector.load %arg1[%c0, %c0_0] : memref<32x32xbf16, #tpu.memory_space<vmem>>, vector<32x32xbf16>
    %c0_1 = arith.constant 0 : index
    %c0_2 = arith.constant 0 : index
    %1 = vector.load %arg2[%c0_1, %c0_2] : memref<32x16xbf16, #tpu.memory_space<vmem>>, vector<32x16xbf16>
    %cst = arith.constant dense<0.000000e+00> : vector<32x16xf32>
    %2 = tpu.matmul %0, %1, %cst {dimension_numbers = #tpu.dot_dimension_numbers<[1], [0], [0], [1], [0, 0, 1, 1], [], []>} : vector<32x32xbf16>, vector<32x16xbf16>, vector<32x16xf32> -> vector<32x16xf32>
    %c0_3 = arith.constant 0 : index
    %c0_4 = arith.constant 0 : index
    %3 = vector.load %arg3[%c0_3, %c0_4] : memref<1x16xf32, #tpu.memory_space<vmem>>, vector<1x16xf32>
    %4 = vector.broadcast %3 : vector<1x16xf32> to vector<32x16xf32>
    %5 = arith.addf %2, %4 : vector<32x16xf32>
    %6 = arith.truncf %5 : vector<32x16xf32> to vector<32x16xbf16>
    %c0_5 = arith.constant 0 : index
    %c0_6 = arith.constant 0 : index
    %7 = vector.load %arg4[%c0_5, %c0_6] : memref<32x16xbf16, #tpu.memory_space<vmem>>, vector<32x16xbf16>
    tpu.vector_store %arg4[%c0_5, %c0_6], %6 {strides = array<i32>} : memref<32x16xbf16, #tpu.memory_space<vmem>>, vector<32x16xbf16>,
    return
  }
  func.func @transform_0(%arg0: i32) -> (i32, i32) {
    %c0_i32 = arith.constant 0 : i32
    %c0_i32_0 = arith.constant 0 : i32
    return %arg0, %c0_i32 : i32, i32
  }
  func.func @transform_1(%arg0: i32) -> (i32, i32) {
    %c0_i32 = arith.constant 0 : i32
    %c0_i32_0 = arith.constant 0 : i32
    %c0_i32_1 = arith.constant 0 : i32
    return %c0_i32, %c0_i32_0 : i32, i32
  }
  func.func @transform_2(%arg0: i32) -> (i32, i32) {
    %c0_i32 = arith.constant 0 : i32
    %c0_i32_0 = arith.constant 0 : i32
    %c0_i32_1 = arith.constant 0 : i32
    return %c0_i32, %c0_i32_0 : i32, i32
  }
  func.func @transform_3(%arg0: i32) -> (i32, i32) {
    %c0_i32 = arith.constant 0 : i32
    %c0_i32_0 = arith.constant 0 : i32
    return %arg0, %c0_i32 : i32, i32
  }
}

module attributes {stable_mosaic.version = 11 : i64} {
  func.func @_mm_kernel(%arg0: i32, %arg1: memref<8x64xbf16, #tpu.memory_space<vmem>>, %arg2: memref<64x16xbf16, #tpu.memory_space<vmem>>, %arg3: memref<1x16xf32, #tpu.memory_space<vmem>>, %arg4: memref<8x16xbf16, #tpu.memory_space<vmem>>) attributes {dimension_semantics = [#tpu.dimension_semantics<parallel>], iteration_bounds = array<i64: 1>, scalar_prefetch = 0 : i64, scratch_operands = 0 : i64, tpu.core_type = #tpu.core_type<tc>, window_params = [{transform_indices = @transform_0, window_bounds = array<i64: 8, 64>}, {pipeline_mode = #tpu.pipeline_mode<synchronous>, transform_indices = @transform_1, window_bounds = array<i64: 64, 16>}, {pipeline_mode = #tpu.pipeline_mode<synchronous>, transform_indices = @transform_2, window_bounds = array<i64: 1, 16>}, {transform_indices = @transform_3, window_bounds = array<i64: 8, 16>}]} {
    %c0 = arith.constant 0 : index
    %c0_0 = arith.constant 0 : index
    %0 = vector.load %arg1[%c0, %c0_0] : memref<8x64xbf16, #tpu.memory_space<vmem>>, vector<8x64xbf16>
    %c0_1 = arith.constant 0 : index
    %c0_2 = arith.constant 0 : index
    %1 = vector.load %arg2[%c0_1, %c0_2] : memref<64x16xbf16, #tpu.memory_space<vmem>>, vector<64x16xbf16>
    %cst = arith.constant dense<0.000000e+00> : vector<8x16xf32>
    %2 = tpu.matmul %0, %1, %cst {dimension_numbers = #tpu.dot_dimension_numbers<[1], [0], [0], [1], [0, 0, 1, 1], [], []>} : vector<8x64xbf16>, vector<64x16xbf16>, vector<8x16xf32> -> vector<8x16xf32>
    %c0_3 = arith.constant 0 : index
    %c0_4 = arith.constant 0 : index
    %3 = vector.load %arg3[%c0_3, %c0_4] : memref<1x16xf32, #tpu.memory_space<vmem>>, vector<1x16xf32>
    %4 = vector.broadcast %3 : vector<1x16xf32> to vector<8x16xf32>
    %5 = arith.addf %2, %4 : vector<8x16xf32>
    %6 = arith.truncf %5 : vector<8x16xf32> to vector<8x16xbf16>
    %c0_5 = arith.constant 0 : index
    %c0_6 = arith.constant 0 : index
    %7 = vector.load %arg4[%c0_5, %c0_6] : memref<8x16xbf16, #tpu.memory_space<vmem>>, vector<8x16xbf16>
    tpu.vector_store %arg4[%c0_5, %c0_6], %6 {strides = array<i32>} : memref<8x16xbf16, #tpu.memory_space<vmem>>, vector<8x16xbf16>,
    return
  }
  func.func @transform_0(%arg0: i32) -> (i32, i32) {
    %c0_i32 = arith.constant 0 : i32
    %c0_i32_0 = arith.constant 0 : i32
    return %arg0, %c0_i32 : i32, i32
  }
  func.func @transform_1(%arg0: i32) -> (i32, i32) {
    %c0_i32 = arith.constant 0 : i32
    %c0_i32_0 = arith.constant 0 : i32
    %c0_i32_1 = arith.constant 0 : i32
    return %c0_i32, %c0_i32_0 : i32, i32
  }
  func.func @transform_2(%arg0: i32) -> (i32, i32) {
    %c0_i32 = arith.constant 0 : i32
    %c0_i32_0 = arith.constant 0 : i32
    %c0_i32_1 = arith.constant 0 : i32
    return %c0_i32, %c0_i32_0 : i32, i32
  }
  func.func @transform_3(%arg0: i32) -> (i32, i32) {
    %c0_i32 = arith.constant 0 : i32
    %c0_i32_0 = arith.constant 0 : i32
    return %arg0, %c0_i32 : i32, i32
  }
}

module attributes {stable_mosaic.version = 11 : i64} {
  func.func @_rowup_add_kernel(%arg0: i32, %arg1: memref<4x2x4x16xbf16, #tpu.memory_space<vmem>>, %arg2: memref<4x4x16xbf16, #tpu.memory_space<vmem>>, %arg3: memref<4x2x4x16xbf16, #tpu.memory_space<vmem>>) attributes {dimension_semantics = [#tpu.dimension_semantics<parallel>], iteration_bounds = array<i64: 1>, scalar_prefetch = 0 : i64, scratch_operands = 0 : i64, tpu.core_type = #tpu.core_type<tc>, window_params = [{transform_indices = @transform_0, window_bounds = array<i64: 4, 2, 4, 16>}, {transform_indices = @transform_1, window_bounds = array<i64: 4, 4, 16>}, {transform_indices = @transform_2, window_bounds = array<i64: 4, 2, 4, 16>}]} {
    %c0 = arith.constant 0 : index
    %c0_0 = arith.constant 0 : index
    %c0_1 = arith.constant 0 : index
    %0 = vector.load %arg2[%c0, %c0_0, %c0_1] : memref<4x4x16xbf16, #tpu.memory_space<vmem>>, vector<4x4x16xbf16>
    %1 = arith.extf %0 : vector<4x4x16xbf16> to vector<4x4x16xf32>
    %2 = vector.shape_cast %1 : vector<4x4x16xf32> to vector<4x1x4x16xf32>
    %c0_2 = arith.constant 0 : index
    %c0_3 = arith.constant 0 : index
    %c0_4 = arith.constant 0 : index
    %c0_5 = arith.constant 0 : index
    %3 = vector.load %arg1[%c0_2, %c0_3, %c0_4, %c0_5] : memref<4x2x4x16xbf16, #tpu.memory_space<vmem>>, vector<4x2x4x16xbf16>
    %4 = arith.extf %3 : vector<4x2x4x16xbf16> to vector<4x2x4x16xf32>
    %5 = vector.broadcast %2 : vector<4x1x4x16xf32> to vector<4x2x4x16xf32>
    %6 = arith.addf %4, %5 : vector<4x2x4x16xf32>
    %7 = arith.truncf %6 : vector<4x2x4x16xf32> to vector<4x2x4x16xbf16>
    %c0_6 = arith.constant 0 : index
    %c0_7 = arith.constant 0 : index
    %c0_8 = arith.constant 0 : index
    %c0_9 = arith.constant 0 : index
    %8 = vector.load %arg3[%c0_6, %c0_7, %c0_8, %c0_9] : memref<4x2x4x16xbf16, #tpu.memory_space<vmem>>, vector<4x2x4x16xbf16>
    tpu.vector_store %arg3[%c0_6, %c0_7, %c0_8, %c0_9], %7 {strides = array<i32>} : memref<4x2x4x16xbf16, #tpu.memory_space<vmem>>, vector<4x2x4x16xbf16>,
    return
  }
  func.func @transform_0(%arg0: i32) -> (i32, i32, i32, i32) {
    %c0_i32 = arith.constant 0 : i32
    %c0_i32_0 = arith.constant 0 : i32
    %c0_i32_1 = arith.constant 0 : i32
    %c0_i32_2 = arith.constant 0 : i32
    return %arg0, %c0_i32, %c0_i32_0, %c0_i32_1 : i32, i32, i32, i32
  }
  func.func @transform_1(%arg0: i32) -> (i32, i32, i32) {
    %c0_i32 = arith.constant 0 : i32
    %c0_i32_0 = arith.constant 0 : i32
    %c0_i32_1 = arith.constant 0 : i32
    return %arg0, %c0_i32, %c0_i32_0 : i32, i32, i32
  }
  func.func @transform_2(%arg0: i32) -> (i32, i32, i32, i32) {
    %c0_i32 = arith.constant 0 : i32
    %c0_i32_0 = arith.constant 0 : i32
    %c0_i32_1 = arith.constant 0 : i32
    %c0_i32_2 = arith.constant 0 : i32
    return %arg0, %c0_i32, %c0_i32_0, %c0_i32_1 : i32, i32, i32, i32
  }
}

module attributes {stable_mosaic.version = 11 : i64} {
  func.func @_rowup_add_kernel(%arg0: i32, %arg1: memref<8x2x8x16xbf16, #tpu.memory_space<vmem>>, %arg2: memref<8x8x16xbf16, #tpu.memory_space<vmem>>, %arg3: memref<8x2x8x16xbf16, #tpu.memory_space<vmem>>) attributes {dimension_semantics = [#tpu.dimension_semantics<parallel>], iteration_bounds = array<i64: 1>, scalar_prefetch = 0 : i64, scratch_operands = 0 : i64, tpu.core_type = #tpu.core_type<tc>, window_params = [{transform_indices = @transform_0, window_bounds = array<i64: 8, 2, 8, 16>}, {transform_indices = @transform_1, window_bounds = array<i64: 8, 8, 16>}, {transform_indices = @transform_2, window_bounds = array<i64: 8, 2, 8, 16>}]} {
    %c0 = arith.constant 0 : index
    %c0_0 = arith.constant 0 : index
    %c0_1 = arith.constant 0 : index
    %0 = vector.load %arg2[%c0, %c0_0, %c0_1] : memref<8x8x16xbf16, #tpu.memory_space<vmem>>, vector<8x8x16xbf16>
    %1 = arith.extf %0 : vector<8x8x16xbf16> to vector<8x8x16xf32>
    %2 = vector.shape_cast %1 : vector<8x8x16xf32> to vector<8x1x8x16xf32>
    %c0_2 = arith.constant 0 : index
    %c0_3 = arith.constant 0 : index
    %c0_4 = arith.constant 0 : index
    %c0_5 = arith.constant 0 : index
    %3 = vector.load %arg1[%c0_2, %c0_3, %c0_4, %c0_5] : memref<8x2x8x16xbf16, #tpu.memory_space<vmem>>, vector<8x2x8x16xbf16>
    %4 = arith.extf %3 : vector<8x2x8x16xbf16> to vector<8x2x8x16xf32>
    %5 = vector.broadcast %2 : vector<8x1x8x16xf32> to vector<8x2x8x16xf32>
    %6 = arith.addf %4, %5 : vector<8x2x8x16xf32>
    %7 = arith.truncf %6 : vector<8x2x8x16xf32> to vector<8x2x8x16xbf16>
    %c0_6 = arith.constant 0 : index
    %c0_7 = arith.constant 0 : index
    %c0_8 = arith.constant 0 : index
    %c0_9 = arith.constant 0 : index
    %8 = vector.load %arg3[%c0_6, %c0_7, %c0_8, %c0_9] : memref<8x2x8x16xbf16, #tpu.memory_space<vmem>>, vector<8x2x8x16xbf16>
    tpu.vector_store %arg3[%c0_6, %c0_7, %c0_8, %c0_9], %7 {strides = array<i32>} : memref<8x2x8x16xbf16, #tpu.memory_space<vmem>>, vector<8x2x8x16xbf16>,
    return
  }
  func.func @transform_0(%arg0: i32) -> (i32, i32, i32, i32) {
    %c0_i32 = arith.constant 0 : i32
    %c0_i32_0 = arith.constant 0 : i32
    %c0_i32_1 = arith.constant 0 : i32
    %c0_i32_2 = arith.constant 0 : i32
    return %arg0, %c0_i32, %c0_i32_0, %c0_i32_1 : i32, i32, i32, i32
  }
  func.func @transform_1(%arg0: i32) -> (i32, i32, i32) {
    %c0_i32 = arith.constant 0 : i32
    %c0_i32_0 = arith.constant 0 : i32
    %c0_i32_1 = arith.constant 0 : i32
    return %arg0, %c0_i32, %c0_i32_0 : i32, i32, i32
  }
  func.func @transform_2(%arg0: i32) -> (i32, i32, i32, i32) {
    %c0_i32 = arith.constant 0 : i32
    %c0_i32_0 = arith.constant 0 : i32
    %c0_i32_1 = arith.constant 0 : i32
    %c0_i32_2 = arith.constant 0 : i32
    return %arg0, %c0_i32, %c0_i32_0, %c0_i32_1 : i32, i32, i32, i32
  }
}

module attributes {stable_mosaic.version = 11 : i64} {
  func.func @_mm_kernel(%arg0: i32, %arg1: memref<128x16xbf16, #tpu.memory_space<vmem>>, %arg2: memref<16x16xbf16, #tpu.memory_space<vmem>>, %arg3: memref<1x16xf32, #tpu.memory_space<vmem>>, %arg4: memref<128x16xbf16, #tpu.memory_space<vmem>>) attributes {dimension_semantics = [#tpu.dimension_semantics<parallel>], iteration_bounds = array<i64: 1>, scalar_prefetch = 0 : i64, scratch_operands = 0 : i64, tpu.core_type = #tpu.core_type<tc>, window_params = [{transform_indices = @transform_0, window_bounds = array<i64: 128, 16>}, {pipeline_mode = #tpu.pipeline_mode<synchronous>, transform_indices = @transform_1, window_bounds = array<i64: 16, 16>}, {pipeline_mode = #tpu.pipeline_mode<synchronous>, transform_indices = @transform_2, window_bounds = array<i64: 1, 16>}, {transform_indices = @transform_3, window_bounds = array<i64: 128, 16>}]} {
    %c0 = arith.constant 0 : index
    %c0_0 = arith.constant 0 : index
    %0 = vector.load %arg1[%c0, %c0_0] : memref<128x16xbf16, #tpu.memory_space<vmem>>, vector<128x16xbf16>
    %c0_1 = arith.constant 0 : index
    %c0_2 = arith.constant 0 : index
    %1 = vector.load %arg2[%c0_1, %c0_2] : memref<16x16xbf16, #tpu.memory_space<vmem>>, vector<16x16xbf16>
    %cst = arith.constant dense<0.000000e+00> : vector<128x16xf32>
    %2 = tpu.matmul %0, %1, %cst {dimension_numbers = #tpu.dot_dimension_numbers<[1], [0], [0], [1], [0, 0, 1, 1], [], []>} : vector<128x16xbf16>, vector<16x16xbf16>, vector<128x16xf32> -> vector<128x16xf32>
    %c0_3 = arith.constant 0 : index
    %c0_4 = arith.constant 0 : index
    %3 = vector.load %arg3[%c0_3, %c0_4] : memref<1x16xf32, #tpu.memory_space<vmem>>, vector<1x16xf32>
    %4 = vector.broadcast %3 : vector<1x16xf32> to vector<128x16xf32>
    %5 = arith.addf %2, %4 : vector<128x16xf32>
    %6 = arith.truncf %5 : vector<128x16xf32> to vector<128x16xbf16>
    %c0_5 = arith.constant 0 : index
    %c0_6 = arith.constant 0 : index
    %7 = vector.load %arg4[%c0_5, %c0_6] : memref<128x16xbf16, #tpu.memory_space<vmem>>, vector<128x16xbf16>
    tpu.vector_store %arg4[%c0_5, %c0_6], %6 {strides = array<i32>} : memref<128x16xbf16, #tpu.memory_space<vmem>>, vector<128x16xbf16>,
    return
  }
  func.func @transform_0(%arg0: i32) -> (i32, i32) {
    %c0_i32 = arith.constant 0 : i32
    %c0_i32_0 = arith.constant 0 : i32
    return %arg0, %c0_i32 : i32, i32
  }
  func.func @transform_1(%arg0: i32) -> (i32, i32) {
    %c0_i32 = arith.constant 0 : i32
    %c0_i32_0 = arith.constant 0 : i32
    %c0_i32_1 = arith.constant 0 : i32
    return %c0_i32, %c0_i32_0 : i32, i32
  }
  func.func @transform_2(%arg0: i32) -> (i32, i32) {
    %c0_i32 = arith.constant 0 : i32
    %c0_i32_0 = arith.constant 0 : i32
    %c0_i32_1 = arith.constant 0 : i32
    return %c0_i32, %c0_i32_0 : i32, i32
  }
  func.func @transform_3(%arg0: i32) -> (i32, i32) {
    %c0_i32 = arith.constant 0 : i32
    %c0_i32_0 = arith.constant 0 : i32
    return %arg0, %c0_i32 : i32, i32
  }
}

module attributes {stable_mosaic.version = 11 : i64} {
  func.func @_mm_kernel(%arg0: i32, %arg1: memref<512x8xbf16, #tpu.memory_space<vmem>>, %arg2: memref<8x16xbf16, #tpu.memory_space<vmem>>, %arg3: memref<1x16xf32, #tpu.memory_space<vmem>>, %arg4: memref<512x16xbf16, #tpu.memory_space<vmem>>) attributes {dimension_semantics = [#tpu.dimension_semantics<parallel>], iteration_bounds = array<i64: 1>, scalar_prefetch = 0 : i64, scratch_operands = 0 : i64, tpu.core_type = #tpu.core_type<tc>, window_params = [{transform_indices = @transform_0, window_bounds = array<i64: 512, 8>}, {pipeline_mode = #tpu.pipeline_mode<synchronous>, transform_indices = @transform_1, window_bounds = array<i64: 8, 16>}, {pipeline_mode = #tpu.pipeline_mode<synchronous>, transform_indices = @transform_2, window_bounds = array<i64: 1, 16>}, {transform_indices = @transform_3, window_bounds = array<i64: 512, 16>}]} {
    %c0 = arith.constant 0 : index
    %c0_0 = arith.constant 0 : index
    %0 = vector.load %arg1[%c0, %c0_0] : memref<512x8xbf16, #tpu.memory_space<vmem>>, vector<512x8xbf16>
    %c0_1 = arith.constant 0 : index
    %c0_2 = arith.constant 0 : index
    %1 = vector.load %arg2[%c0_1, %c0_2] : memref<8x16xbf16, #tpu.memory_space<vmem>>, vector<8x16xbf16>
    %cst = arith.constant dense<0.000000e+00> : vector<512x16xf32>
    %2 = tpu.matmul %0, %1, %cst {dimension_numbers = #tpu.dot_dimension_numbers<[1], [0], [0], [1], [0, 0, 1, 1], [], []>} : vector<512x8xbf16>, vector<8x16xbf16>, vector<512x16xf32> -> vector<512x16xf32>
    %c0_3 = arith.constant 0 : index
    %c0_4 = arith.constant 0 : index
    %3 = vector.load %arg3[%c0_3, %c0_4] : memref<1x16xf32, #tpu.memory_space<vmem>>, vector<1x16xf32>
    %4 = vector.broadcast %3 : vector<1x16xf32> to vector<512x16xf32>
    %5 = arith.addf %2, %4 : vector<512x16xf32>
    %6 = arith.truncf %5 : vector<512x16xf32> to vector<512x16xbf16>
    %c0_5 = arith.constant 0 : index
    %c0_6 = arith.constant 0 : index
    %7 = vector.load %arg4[%c0_5, %c0_6] : memref<512x16xbf16, #tpu.memory_space<vmem>>, vector<512x16xbf16>
    tpu.vector_store %arg4[%c0_5, %c0_6], %6 {strides = array<i32>} : memref<512x16xbf16, #tpu.memory_space<vmem>>, vector<512x16xbf16>,
    return
  }
  func.func @transform_0(%arg0: i32) -> (i32, i32) {
    %c0_i32 = arith.constant 0 : i32
    %c0_i32_0 = arith.constant 0 : i32
    return %arg0, %c0_i32 : i32, i32
  }
  func.func @transform_1(%arg0: i32) -> (i32, i32) {
    %c0_i32 = arith.constant 0 : i32
    %c0_i32_0 = arith.constant 0 : i32
    %c0_i32_1 = arith.constant 0 : i32
    return %c0_i32, %c0_i32_0 : i32, i32
  }
  func.func @transform_2(%arg0: i32) -> (i32, i32) {
    %c0_i32 = arith.constant 0 : i32
    %c0_i32_0 = arith.constant 0 : i32
    %c0_i32_1 = arith.constant 0 : i32
    return %c0_i32, %c0_i32_0 : i32, i32
  }
  func.func @transform_3(%arg0: i32) -> (i32, i32) {
    %c0_i32 = arith.constant 0 : i32
    %c0_i32_0 = arith.constant 0 : i32
    return %arg0, %c0_i32 : i32, i32
  }
}

module attributes {stable_mosaic.version = 11 : i64} {
  func.func @_rowup_add_kernel(%arg0: i32, %arg1: memref<16x2x16x16xbf16, #tpu.memory_space<vmem>>, %arg2: memref<16x16x16xbf16, #tpu.memory_space<vmem>>, %arg3: memref<16x2x16x16xbf16, #tpu.memory_space<vmem>>) attributes {dimension_semantics = [#tpu.dimension_semantics<parallel>], iteration_bounds = array<i64: 1>, scalar_prefetch = 0 : i64, scratch_operands = 0 : i64, tpu.core_type = #tpu.core_type<tc>, window_params = [{transform_indices = @transform_0, window_bounds = array<i64: 16, 2, 16, 16>}, {transform_indices = @transform_1, window_bounds = array<i64: 16, 16, 16>}, {transform_indices = @transform_2, window_bounds = array<i64: 16, 2, 16, 16>}]} {
    %c0 = arith.constant 0 : index
    %c0_0 = arith.constant 0 : index
    %c0_1 = arith.constant 0 : index
    %0 = vector.load %arg2[%c0, %c0_0, %c0_1] : memref<16x16x16xbf16, #tpu.memory_space<vmem>>, vector<16x16x16xbf16>
    %1 = arith.extf %0 : vector<16x16x16xbf16> to vector<16x16x16xf32>
    %2 = vector.shape_cast %1 : vector<16x16x16xf32> to vector<16x1x16x16xf32>
    %c0_2 = arith.constant 0 : index
    %c0_3 = arith.constant 0 : index
    %c0_4 = arith.constant 0 : index
    %c0_5 = arith.constant 0 : index
    %3 = vector.load %arg1[%c0_2, %c0_3, %c0_4, %c0_5] : memref<16x2x16x16xbf16, #tpu.memory_space<vmem>>, vector<16x2x16x16xbf16>
    %4 = arith.extf %3 : vector<16x2x16x16xbf16> to vector<16x2x16x16xf32>
    %5 = vector.broadcast %2 : vector<16x1x16x16xf32> to vector<16x2x16x16xf32>
    %6 = arith.addf %4, %5 : vector<16x2x16x16xf32>
    %7 = arith.truncf %6 : vector<16x2x16x16xf32> to vector<16x2x16x16xbf16>
    %c0_6 = arith.constant 0 : index
    %c0_7 = arith.constant 0 : index
    %c0_8 = arith.constant 0 : index
    %c0_9 = arith.constant 0 : index
    %8 = vector.load %arg3[%c0_6, %c0_7, %c0_8, %c0_9] : memref<16x2x16x16xbf16, #tpu.memory_space<vmem>>, vector<16x2x16x16xbf16>
    tpu.vector_store %arg3[%c0_6, %c0_7, %c0_8, %c0_9], %7 {strides = array<i32>} : memref<16x2x16x16xbf16, #tpu.memory_space<vmem>>, vector<16x2x16x16xbf16>,
    return
  }
  func.func @transform_0(%arg0: i32) -> (i32, i32, i32, i32) {
    %c0_i32 = arith.constant 0 : i32
    %c0_i32_0 = arith.constant 0 : i32
    %c0_i32_1 = arith.constant 0 : i32
    %c0_i32_2 = arith.constant 0 : i32
    return %arg0, %c0_i32, %c0_i32_0, %c0_i32_1 : i32, i32, i32, i32
  }
  func.func @transform_1(%arg0: i32) -> (i32, i32, i32) {
    %c0_i32 = arith.constant 0 : i32
    %c0_i32_0 = arith.constant 0 : i32
    %c0_i32_1 = arith.constant 0 : i32
    return %arg0, %c0_i32, %c0_i32_0 : i32, i32, i32
  }
  func.func @transform_2(%arg0: i32) -> (i32, i32, i32, i32) {
    %c0_i32 = arith.constant 0 : i32
    %c0_i32_0 = arith.constant 0 : i32
    %c0_i32_1 = arith.constant 0 : i32
    %c0_i32_2 = arith.constant 0 : i32
    return %arg0, %c0_i32, %c0_i32_0, %c0_i32_1 : i32, i32, i32, i32
  }
}

module attributes {stable_mosaic.version = 11 : i64} {
  func.func @_mm_kernel(%arg0: i32, %arg1: memref<8x144xbf16, #tpu.memory_space<vmem>>, %arg2: memref<144x4xbf16, #tpu.memory_space<vmem>>, %arg3: memref<1x4xf32, #tpu.memory_space<vmem>>, %arg4: memref<8x4xbf16, #tpu.memory_space<vmem>>) attributes {dimension_semantics = [#tpu.dimension_semantics<parallel>], iteration_bounds = array<i64: 1>, scalar_prefetch = 0 : i64, scratch_operands = 0 : i64, tpu.core_type = #tpu.core_type<tc>, window_params = [{transform_indices = @transform_0, window_bounds = array<i64: 8, 144>}, {pipeline_mode = #tpu.pipeline_mode<synchronous>, transform_indices = @transform_1, window_bounds = array<i64: 144, 4>}, {pipeline_mode = #tpu.pipeline_mode<synchronous>, transform_indices = @transform_2, window_bounds = array<i64: 1, 4>}, {transform_indices = @transform_3, window_bounds = array<i64: 8, 4>}]} {
    %c0 = arith.constant 0 : index
    %c0_0 = arith.constant 0 : index
    %0 = vector.load %arg1[%c0, %c0_0] : memref<8x144xbf16, #tpu.memory_space<vmem>>, vector<8x144xbf16>
    %c0_1 = arith.constant 0 : index
    %c0_2 = arith.constant 0 : index
    %1 = vector.load %arg2[%c0_1, %c0_2] : memref<144x4xbf16, #tpu.memory_space<vmem>>, vector<144x4xbf16>
    %cst = arith.constant dense<0.000000e+00> : vector<8x4xf32>
    %2 = tpu.matmul %0, %1, %cst {dimension_numbers = #tpu.dot_dimension_numbers<[1], [0], [0], [1], [0, 0, 1, 1], [], []>} : vector<8x144xbf16>, vector<144x4xbf16>, vector<8x4xf32> -> vector<8x4xf32>
    %c0_3 = arith.constant 0 : index
    %c0_4 = arith.constant 0 : index
    %3 = vector.load %arg3[%c0_3, %c0_4] : memref<1x4xf32, #tpu.memory_space<vmem>>, vector<1x4xf32>
    %4 = vector.broadcast %3 : vector<1x4xf32> to vector<8x4xf32>
    %5 = arith.addf %2, %4 : vector<8x4xf32>
    %6 = arith.truncf %5 : vector<8x4xf32> to vector<8x4xbf16>
    %c0_5 = arith.constant 0 : index
    %c0_6 = arith.constant 0 : index
    %7 = vector.load %arg4[%c0_5, %c0_6] : memref<8x4xbf16, #tpu.memory_space<vmem>>, vector<8x4xbf16>
    tpu.vector_store %arg4[%c0_5, %c0_6], %6 {strides = array<i32>} : memref<8x4xbf16, #tpu.memory_space<vmem>>, vector<8x4xbf16>,
    return
  }
  func.func @transform_0(%arg0: i32) -> (i32, i32) {
    %c0_i32 = arith.constant 0 : i32
    %c0_i32_0 = arith.constant 0 : i32
    return %arg0, %c0_i32 : i32, i32
  }
  func.func @transform_1(%arg0: i32) -> (i32, i32) {
    %c0_i32 = arith.constant 0 : i32
    %c0_i32_0 = arith.constant 0 : i32
    %c0_i32_1 = arith.constant 0 : i32
    return %c0_i32, %c0_i32_0 : i32, i32
  }
  func.func @transform_2(%arg0: i32) -> (i32, i32) {
    %c0_i32 = arith.constant 0 : i32
    %c0_i32_0 = arith.constant 0 : i32
    %c0_i32_1 = arith.constant 0 : i32
    return %c0_i32, %c0_i32_0 : i32, i32
  }
  func.func @transform_3(%arg0: i32) -> (i32, i32) {
    %c0_i32 = arith.constant 0 : i32
    %c0_i32_0 = arith.constant 0 : i32
    return %arg0, %c0_i32 : i32, i32
  }
}

module attributes {stable_mosaic.version = 11 : i64} {
  func.func @_mm_kernel(%arg0: i32, %arg1: memref<512x144xbf16, #tpu.memory_space<vmem>>, %arg2: memref<144x4xbf16, #tpu.memory_space<vmem>>, %arg3: memref<1x4xf32, #tpu.memory_space<vmem>>, %arg4: memref<512x4xbf16, #tpu.memory_space<vmem>>) attributes {dimension_semantics = [#tpu.dimension_semantics<parallel>], iteration_bounds = array<i64: 1>, scalar_prefetch = 0 : i64, scratch_operands = 0 : i64, tpu.core_type = #tpu.core_type<tc>, window_params = [{transform_indices = @transform_0, window_bounds = array<i64: 512, 144>}, {pipeline_mode = #tpu.pipeline_mode<synchronous>, transform_indices = @transform_1, window_bounds = array<i64: 144, 4>}, {pipeline_mode = #tpu.pipeline_mode<synchronous>, transform_indices = @transform_2, window_bounds = array<i64: 1, 4>}, {transform_indices = @transform_3, window_bounds = array<i64: 512, 4>}]} {
    %c0 = arith.constant 0 : index
    %c0_0 = arith.constant 0 : index
    %0 = vector.load %arg1[%c0, %c0_0] : memref<512x144xbf16, #tpu.memory_space<vmem>>, vector<512x144xbf16>
    %c0_1 = arith.constant 0 : index
    %c0_2 = arith.constant 0 : index
    %1 = vector.load %arg2[%c0_1, %c0_2] : memref<144x4xbf16, #tpu.memory_space<vmem>>, vector<144x4xbf16>
    %cst = arith.constant dense<0.000000e+00> : vector<512x4xf32>
    %2 = tpu.matmul %0, %1, %cst {dimension_numbers = #tpu.dot_dimension_numbers<[1], [0], [0], [1], [0, 0, 1, 1], [], []>} : vector<512x144xbf16>, vector<144x4xbf16>, vector<512x4xf32> -> vector<512x4xf32>
    %c0_3 = arith.constant 0 : index
    %c0_4 = arith.constant 0 : index
    %3 = vector.load %arg3[%c0_3, %c0_4] : memref<1x4xf32, #tpu.memory_space<vmem>>, vector<1x4xf32>
    %4 = vector.broadcast %3 : vector<1x4xf32> to vector<512x4xf32>
    %5 = arith.addf %2, %4 : vector<512x4xf32>
    %6 = arith.truncf %5 : vector<512x4xf32> to vector<512x4xbf16>
    %c0_5 = arith.constant 0 : index
    %c0_6 = arith.constant 0 : index
    %7 = vector.load %arg4[%c0_5, %c0_6] : memref<512x4xbf16, #tpu.memory_space<vmem>>, vector<512x4xbf16>
    tpu.vector_store %arg4[%c0_5, %c0_6], %6 {strides = array<i32>} : memref<512x4xbf16, #tpu.memory_space<vmem>>, vector<512x4xbf16>,
    return
  }
  func.func @transform_0(%arg0: i32) -> (i32, i32) {
    %c0_i32 = arith.constant 0 : i32
    %c0_i32_0 = arith.constant 0 : i32
    return %arg0, %c0_i32 : i32, i32
  }
  func.func @transform_1(%arg0: i32) -> (i32, i32) {
    %c0_i32 = arith.constant 0 : i32
    %c0_i32_0 = arith.constant 0 : i32
    %c0_i32_1 = arith.constant 0 : i32
    return %c0_i32, %c0_i32_0 : i32, i32
  }
  func.func @transform_2(%arg0: i32) -> (i32, i32) {
    %c0_i32 = arith.constant 0 : i32
    %c0_i32_0 = arith.constant 0 : i32
    %c0_i32_1 = arith.constant 0 : i32
    return %c0_i32, %c0_i32_0 : i32, i32
  }
  func.func @transform_3(%arg0: i32) -> (i32, i32) {
    %c0_i32 = arith.constant 0 : i32
    %c0_i32_0 = arith.constant 0 : i32
    return %arg0, %c0_i32 : i32, i32
  }
}

module attributes {stable_mosaic.version = 11 : i64} {
  func.func @_mm_kernel(%arg0: i32, %arg1: memref<128x144xbf16, #tpu.memory_space<vmem>>, %arg2: memref<144x4xbf16, #tpu.memory_space<vmem>>, %arg3: memref<1x4xf32, #tpu.memory_space<vmem>>, %arg4: memref<128x4xbf16, #tpu.memory_space<vmem>>) attributes {dimension_semantics = [#tpu.dimension_semantics<parallel>], iteration_bounds = array<i64: 1>, scalar_prefetch = 0 : i64, scratch_operands = 0 : i64, tpu.core_type = #tpu.core_type<tc>, window_params = [{transform_indices = @transform_0, window_bounds = array<i64: 128, 144>}, {pipeline_mode = #tpu.pipeline_mode<synchronous>, transform_indices = @transform_1, window_bounds = array<i64: 144, 4>}, {pipeline_mode = #tpu.pipeline_mode<synchronous>, transform_indices = @transform_2, window_bounds = array<i64: 1, 4>}, {transform_indices = @transform_3, window_bounds = array<i64: 128, 4>}]} {
    %c0 = arith.constant 0 : index
    %c0_0 = arith.constant 0 : index
    %0 = vector.load %arg1[%c0, %c0_0] : memref<128x144xbf16, #tpu.memory_space<vmem>>, vector<128x144xbf16>
    %c0_1 = arith.constant 0 : index
    %c0_2 = arith.constant 0 : index
    %1 = vector.load %arg2[%c0_1, %c0_2] : memref<144x4xbf16, #tpu.memory_space<vmem>>, vector<144x4xbf16>
    %cst = arith.constant dense<0.000000e+00> : vector<128x4xf32>
    %2 = tpu.matmul %0, %1, %cst {dimension_numbers = #tpu.dot_dimension_numbers<[1], [0], [0], [1], [0, 0, 1, 1], [], []>} : vector<128x144xbf16>, vector<144x4xbf16>, vector<128x4xf32> -> vector<128x4xf32>
    %c0_3 = arith.constant 0 : index
    %c0_4 = arith.constant 0 : index
    %3 = vector.load %arg3[%c0_3, %c0_4] : memref<1x4xf32, #tpu.memory_space<vmem>>, vector<1x4xf32>
    %4 = vector.broadcast %3 : vector<1x4xf32> to vector<128x4xf32>
    %5 = arith.addf %2, %4 : vector<128x4xf32>
    %6 = arith.truncf %5 : vector<128x4xf32> to vector<128x4xbf16>
    %c0_5 = arith.constant 0 : index
    %c0_6 = arith.constant 0 : index
    %7 = vector.load %arg4[%c0_5, %c0_6] : memref<128x4xbf16, #tpu.memory_space<vmem>>, vector<128x4xbf16>
    tpu.vector_store %arg4[%c0_5, %c0_6], %6 {strides = array<i32>} : memref<128x4xbf16, #tpu.memory_space<vmem>>, vector<128x4xbf16>,
    return
  }
  func.func @transform_0(%arg0: i32) -> (i32, i32) {
    %c0_i32 = arith.constant 0 : i32
    %c0_i32_0 = arith.constant 0 : i32
    return %arg0, %c0_i32 : i32, i32
  }
  func.func @transform_1(%arg0: i32) -> (i32, i32) {
    %c0_i32 = arith.constant 0 : i32
    %c0_i32_0 = arith.constant 0 : i32
    %c0_i32_1 = arith.constant 0 : i32
    return %c0_i32, %c0_i32_0 : i32, i32
  }
  func.func @transform_2(%arg0: i32) -> (i32, i32) {
    %c0_i32 = arith.constant 0 : i32
    %c0_i32_0 = arith.constant 0 : i32
    %c0_i32_1 = arith.constant 0 : i32
    return %c0_i32, %c0_i32_0 : i32, i32
  }
  func.func @transform_3(%arg0: i32) -> (i32, i32) {
    %c0_i32 = arith.constant 0 : i32
    %c0_i32_0 = arith.constant 0 : i32
    return %arg0, %c0_i32 : i32, i32
  }
}

module attributes {stable_mosaic.version = 11 : i64} {
  func.func @_mm_kernel(%arg0: i32, %arg1: memref<32x144xbf16, #tpu.memory_space<vmem>>, %arg2: memref<144x4xbf16, #tpu.memory_space<vmem>>, %arg3: memref<1x4xf32, #tpu.memory_space<vmem>>, %arg4: memref<32x4xbf16, #tpu.memory_space<vmem>>) attributes {dimension_semantics = [#tpu.dimension_semantics<parallel>], iteration_bounds = array<i64: 1>, scalar_prefetch = 0 : i64, scratch_operands = 0 : i64, tpu.core_type = #tpu.core_type<tc>, window_params = [{transform_indices = @transform_0, window_bounds = array<i64: 32, 144>}, {pipeline_mode = #tpu.pipeline_mode<synchronous>, transform_indices = @transform_1, window_bounds = array<i64: 144, 4>}, {pipeline_mode = #tpu.pipeline_mode<synchronous>, transform_indices = @transform_2, window_bounds = array<i64: 1, 4>}, {transform_indices = @transform_3, window_bounds = array<i64: 32, 4>}]} {
    %c0 = arith.constant 0 : index
    %c0_0 = arith.constant 0 : index
    %0 = vector.load %arg1[%c0, %c0_0] : memref<32x144xbf16, #tpu.memory_space<vmem>>, vector<32x144xbf16>
    %c0_1 = arith.constant 0 : index
    %c0_2 = arith.constant 0 : index
    %1 = vector.load %arg2[%c0_1, %c0_2] : memref<144x4xbf16, #tpu.memory_space<vmem>>, vector<144x4xbf16>
    %cst = arith.constant dense<0.000000e+00> : vector<32x4xf32>
    %2 = tpu.matmul %0, %1, %cst {dimension_numbers = #tpu.dot_dimension_numbers<[1], [0], [0], [1], [0, 0, 1, 1], [], []>} : vector<32x144xbf16>, vector<144x4xbf16>, vector<32x4xf32> -> vector<32x4xf32>
    %c0_3 = arith.constant 0 : index
    %c0_4 = arith.constant 0 : index
    %3 = vector.load %arg3[%c0_3, %c0_4] : memref<1x4xf32, #tpu.memory_space<vmem>>, vector<1x4xf32>
    %4 = vector.broadcast %3 : vector<1x4xf32> to vector<32x4xf32>
    %5 = arith.addf %2, %4 : vector<32x4xf32>
    %6 = arith.truncf %5 : vector<32x4xf32> to vector<32x4xbf16>
    %c0_5 = arith.constant 0 : index
    %c0_6 = arith.constant 0 : index
    %7 = vector.load %arg4[%c0_5, %c0_6] : memref<32x4xbf16, #tpu.memory_space<vmem>>, vector<32x4xbf16>
    tpu.vector_store %arg4[%c0_5, %c0_6], %6 {strides = array<i32>} : memref<32x4xbf16, #tpu.memory_space<vmem>>, vector<32x4xbf16>,
    return
  }
  func.func @transform_0(%arg0: i32) -> (i32, i32) {
    %c0_i32 = arith.constant 0 : i32
    %c0_i32_0 = arith.constant 0 : i32
    return %arg0, %c0_i32 : i32, i32
  }
  func.func @transform_1(%arg0: i32) -> (i32, i32) {
    %c0_i32 = arith.constant 0 : i32
    %c0_i32_0 = arith.constant 0 : i32
    %c0_i32_1 = arith.constant 0 : i32
    return %c0_i32, %c0_i32_0 : i32, i32
  }
  func.func @transform_2(%arg0: i32) -> (i32, i32) {
    %c0_i32 = arith.constant 0 : i32
    %c0_i32_0 = arith.constant 0 : i32
    %c0_i32_1 = arith.constant 0 : i32
    return %c0_i32, %c0_i32_0 : i32, i32
  }
  func.func @transform_3(%arg0: i32) -> (i32, i32) {
    %c0_i32 = arith.constant 0 : i32
    %c0_i32_0 = arith.constant 0 : i32
    return %arg0, %c0_i32 : i32, i32
  }
}

module attributes {stable_mosaic.version = 11 : i64} {
  func.func @_head_kernel(%arg0: i32, %arg1: memref<512x144xbf16, #tpu.memory_space<vmem>>, %arg2: memref<144x4xbf16, #tpu.memory_space<vmem>>, %arg3: memref<1x4xf32, #tpu.memory_space<vmem>>, %arg4: memref<1x4xf32, #tpu.memory_space<vmem>>, %arg5: memref<1x1xf32, #tpu.memory_space<vmem>>, %arg6: memref<512x1xf32, #tpu.memory_space<vmem>>) attributes {dimension_semantics = [#tpu.dimension_semantics<parallel>], iteration_bounds = array<i64: 1>, scalar_prefetch = 0 : i64, scratch_operands = 0 : i64, tpu.core_type = #tpu.core_type<tc>, window_params = [{transform_indices = @transform_0, window_bounds = array<i64: 512, 144>}, {pipeline_mode = #tpu.pipeline_mode<synchronous>, transform_indices = @transform_1, window_bounds = array<i64: 144, 4>}, {pipeline_mode = #tpu.pipeline_mode<synchronous>, transform_indices = @transform_2, window_bounds = array<i64: 1, 4>}, {pipeline_mode = #tpu.pipeline_mode<synchronous>, transform_indices = @transform_3, window_bounds = array<i64: 1, 4>}, {pipeline_mode = #tpu.pipeline_mode<synchronous>, transform_indices = @transform_4, window_bounds = array<i64: 1, 1>}, {transform_indices = @transform_5, window_bounds = array<i64: 512, 1>}]} {
    %c0 = arith.constant 0 : index
    %c0_0 = arith.constant 0 : index
    %0 = vector.load %arg1[%c0, %c0_0] : memref<512x144xbf16, #tpu.memory_space<vmem>>, vector<512x144xbf16>
    %c0_1 = arith.constant 0 : index
    %c0_2 = arith.constant 0 : index
    %1 = vector.load %arg2[%c0_1, %c0_2] : memref<144x4xbf16, #tpu.memory_space<vmem>>, vector<144x4xbf16>
    %cst = arith.constant dense<0.000000e+00> : vector<512x4xf32>
    %2 = tpu.matmul %0, %1, %cst {dimension_numbers = #tpu.dot_dimension_numbers<[1], [0], [0], [1], [0, 0, 1, 1], [], []>} : vector<512x144xbf16>, vector<144x4xbf16>, vector<512x4xf32> -> vector<512x4xf32>
    %c0_3 = arith.constant 0 : index
    %c0_4 = arith.constant 0 : index
    %3 = vector.load %arg3[%c0_3, %c0_4] : memref<1x4xf32, #tpu.memory_space<vmem>>, vector<1x4xf32>
    %4 = vector.broadcast %3 : vector<1x4xf32> to vector<512x4xf32>
    %5 = arith.addf %2, %4 : vector<512x4xf32>
    %cst_5 = arith.constant 0.000000e+00 : f32
    %6 = vector.broadcast %cst_5 : f32 to vector<512x4xf32>
    %7 = arith.maximumf %5, %6 : vector<512x4xf32>
    %c0_6 = arith.constant 0 : index
    %c0_7 = arith.constant 0 : index
    %8 = vector.load %arg4[%c0_6, %c0_7] : memref<1x4xf32, #tpu.memory_space<vmem>>, vector<1x4xf32>
    %9 = vector.broadcast %8 : vector<1x4xf32> to vector<512x4xf32>
    %10 = arith.mulf %7, %9 : vector<512x4xf32>
    %cst_8 = arith.constant dense<0.000000e+00> : vector<512xf32>
    %11 = vector.multi_reduction <add>, %10, %cst_8 [1] : vector<512x4xf32> to vector<512xf32>
    %12 = vector.shape_cast %11 : vector<512xf32> to vector<512x1xf32>
    %c0_9 = arith.constant 0 : index
    %c0_10 = arith.constant 0 : index
    %13 = vector.load %arg5[%c0_9, %c0_10] : memref<1x1xf32, #tpu.memory_space<vmem>>, vector<1x1xf32>
    %14 = vector.broadcast %13 : vector<1x1xf32> to vector<512x1xf32>
    %15 = arith.addf %12, %14 : vector<512x1xf32>
    %cst_11 = arith.constant 5.000000e-01 : f32
    %16 = vector.broadcast %cst_11 : f32 to vector<512x1xf32>
    %17 = arith.mulf %16, %15 : vector<512x1xf32>
    %18 = math.tanh %17 : vector<512x1xf32>
    %cst_12 = arith.constant 1.000000e+00 : f32
    %19 = vector.broadcast %cst_12 : f32 to vector<512x1xf32>
    %20 = arith.addf %18, %19 : vector<512x1xf32>
    %cst_13 = arith.constant 5.000000e-01 : f32
    %21 = vector.broadcast %cst_13 : f32 to vector<512x1xf32>
    %22 = arith.mulf %21, %20 : vector<512x1xf32>
    %c0_14 = arith.constant 0 : index
    %c0_15 = arith.constant 0 : index
    %23 = vector.load %arg6[%c0_14, %c0_15] : memref<512x1xf32, #tpu.memory_space<vmem>>, vector<512x1xf32>
    tpu.vector_store %arg6[%c0_14, %c0_15], %22 {strides = array<i32>} : memref<512x1xf32, #tpu.memory_space<vmem>>, vector<512x1xf32>,
    return
  }
  func.func @transform_0(%arg0: i32) -> (i32, i32) {
    %c0_i32 = arith.constant 0 : i32
    %c0_i32_0 = arith.constant 0 : i32
    return %arg0, %c0_i32 : i32, i32
  }
  func.func @transform_1(%arg0: i32) -> (i32, i32) {
    %c0_i32 = arith.constant 0 : i32
    %c0_i32_0 = arith.constant 0 : i32
    %c0_i32_1 = arith.constant 0 : i32
    return %c0_i32, %c0_i32_0 : i32, i32
  }
  func.func @transform_2(%arg0: i32) -> (i32, i32) {
    %c0_i32 = arith.constant 0 : i32
    %c0_i32_0 = arith.constant 0 : i32
    %c0_i32_1 = arith.constant 0 : i32
    return %c0_i32, %c0_i32_0 : i32, i32
  }
  func.func @transform_3(%arg0: i32) -> (i32, i32) {
    %c0_i32 = arith.constant 0 : i32
    %c0_i32_0 = arith.constant 0 : i32
    %c0_i32_1 = arith.constant 0 : i32
    return %c0_i32, %c0_i32_0 : i32, i32
  }
  func.func @transform_4(%arg0: i32) -> (i32, i32) {
    %c0_i32 = arith.constant 0 : i32
    %c0_i32_0 = arith.constant 0 : i32
    %c0_i32_1 = arith.constant 0 : i32
    return %c0_i32, %c0_i32_0 : i32, i32
  }
  func.func @transform_5(%arg0: i32) -> (i32, i32) {
    %c0_i32 = arith.constant 0 : i32
    %c0_i32_0 = arith.constant 0 : i32
    return %arg0, %c0_i32 : i32, i32
  }
}

module attributes {stable_mosaic.version = 11 : i64} {
  func.func @_mm_kernel(%arg0: i32, %arg1: memref<32x16xf32, #tpu.memory_space<vmem>>, %arg2: memref<16x32xf32, #tpu.memory_space<vmem>>, %arg3: memref<32x32xf32, #tpu.memory_space<vmem>>) attributes {dimension_semantics = [#tpu.dimension_semantics<parallel>], iteration_bounds = array<i64: 1>, scalar_prefetch = 0 : i64, scratch_operands = 0 : i64, tpu.core_type = #tpu.core_type<tc>, window_params = [{transform_indices = @transform_0, window_bounds = array<i64: 32, 16>}, {pipeline_mode = #tpu.pipeline_mode<synchronous>, transform_indices = @transform_1, window_bounds = array<i64: 16, 32>}, {transform_indices = @transform_2, window_bounds = array<i64: 32, 32>}]} {
    %c0 = arith.constant 0 : index
    %c0_0 = arith.constant 0 : index
    %0 = vector.load %arg1[%c0, %c0_0] : memref<32x16xf32, #tpu.memory_space<vmem>>, vector<32x16xf32>
    %c0_1 = arith.constant 0 : index
    %c0_2 = arith.constant 0 : index
    %1 = vector.load %arg2[%c0_1, %c0_2] : memref<16x32xf32, #tpu.memory_space<vmem>>, vector<16x32xf32>
    %cst = arith.constant dense<0.000000e+00> : vector<32x32xf32>
    %2 = tpu.matmul %0, %1, %cst {dimension_numbers = #tpu.dot_dimension_numbers<[1], [0], [0], [1], [0, 0, 1, 1], [], []>} : vector<32x16xf32>, vector<16x32xf32>, vector<32x32xf32> -> vector<32x32xf32>
    %c0_3 = arith.constant 0 : index
    %c0_4 = arith.constant 0 : index
    %3 = vector.load %arg3[%c0_3, %c0_4] : memref<32x32xf32, #tpu.memory_space<vmem>>, vector<32x32xf32>
    tpu.vector_store %arg3[%c0_3, %c0_4], %2 {strides = array<i32>} : memref<32x32xf32, #tpu.memory_space<vmem>>, vector<32x32xf32>,
    return
  }
  func.func @transform_0(%arg0: i32) -> (i32, i32) {
    %c0_i32 = arith.constant 0 : i32
    %c0_i32_0 = arith.constant 0 : i32
    return %arg0, %c0_i32 : i32, i32
  }
  func.func @transform_1(%arg0: i32) -> (i32, i32) {
    %c0_i32 = arith.constant 0 : i32
    %c0_i32_0 = arith.constant 0 : i32
    %c0_i32_1 = arith.constant 0 : i32
    return %c0_i32, %c0_i32_0 : i32, i32
  }
  func.func @transform_2(%arg0: i32) -> (i32, i32) {
    %c0_i32 = arith.constant 0 : i32
    %c0_i32_0 = arith.constant 0 : i32
    return %arg0, %c0_i32 : i32, i32
  }
}

module attributes {stable_mosaic.version = 11 : i64} {
  func.func @_mm_kernel(%arg0: i32, %arg1: memref<64x16xf32, #tpu.memory_space<vmem>>, %arg2: memref<16x32xf32, #tpu.memory_space<vmem>>, %arg3: memref<64x32xf32, #tpu.memory_space<vmem>>) attributes {dimension_semantics = [#tpu.dimension_semantics<parallel>], iteration_bounds = array<i64: 1>, scalar_prefetch = 0 : i64, scratch_operands = 0 : i64, tpu.core_type = #tpu.core_type<tc>, window_params = [{transform_indices = @transform_0, window_bounds = array<i64: 64, 16>}, {pipeline_mode = #tpu.pipeline_mode<synchronous>, transform_indices = @transform_1, window_bounds = array<i64: 16, 32>}, {transform_indices = @transform_2, window_bounds = array<i64: 64, 32>}]} {
    %c0 = arith.constant 0 : index
    %c0_0 = arith.constant 0 : index
    %0 = vector.load %arg1[%c0, %c0_0] : memref<64x16xf32, #tpu.memory_space<vmem>>, vector<64x16xf32>
    %c0_1 = arith.constant 0 : index
    %c0_2 = arith.constant 0 : index
    %1 = vector.load %arg2[%c0_1, %c0_2] : memref<16x32xf32, #tpu.memory_space<vmem>>, vector<16x32xf32>
    %cst = arith.constant dense<0.000000e+00> : vector<64x32xf32>
    %2 = tpu.matmul %0, %1, %cst {dimension_numbers = #tpu.dot_dimension_numbers<[1], [0], [0], [1], [0, 0, 1, 1], [], []>} : vector<64x16xf32>, vector<16x32xf32>, vector<64x32xf32> -> vector<64x32xf32>
    %c0_3 = arith.constant 0 : index
    %c0_4 = arith.constant 0 : index
    %3 = vector.load %arg3[%c0_3, %c0_4] : memref<64x32xf32, #tpu.memory_space<vmem>>, vector<64x32xf32>
    tpu.vector_store %arg3[%c0_3, %c0_4], %2 {strides = array<i32>} : memref<64x32xf32, #tpu.memory_space<vmem>>, vector<64x32xf32>,
    return
  }
  func.func @transform_0(%arg0: i32) -> (i32, i32) {
    %c0_i32 = arith.constant 0 : i32
    %c0_i32_0 = arith.constant 0 : i32
    return %arg0, %c0_i32 : i32, i32
  }
  func.func @transform_1(%arg0: i32) -> (i32, i32) {
    %c0_i32 = arith.constant 0 : i32
    %c0_i32_0 = arith.constant 0 : i32
    %c0_i32_1 = arith.constant 0 : i32
    return %c0_i32, %c0_i32_0 : i32, i32
  }
  func.func @transform_2(%arg0: i32) -> (i32, i32) {
    %c0_i32 = arith.constant 0 : i32
    %c0_i32_0 = arith.constant 0 : i32
    return %arg0, %c0_i32 : i32, i32
  }
}

</mosaic_0001>

<llo_original>
// kernel: model_forward.18
$region0: #{model_forward.18}
  #allocation0 [shape = 'u32[]', space=smem, size = 0x4, offset = 0x4, fixed_abs, tag = 'smem constant byte address 0x4 - core index']
  #allocation1 [shape = 'u32[144,128]{1,0:T(1,128)}', space=vmem, size = 0x12000, scoped, tag = 'internal scratch']
  %s0 = inlined_call_operand.vmem [shape: bf16[512,27], index: 0, kind: input, shape index: {}]
  %s1 = inlined_call_operand.vmem [shape: bf16[27,8], index: 1, kind: input, shape index: {}]
  %s2 = inlined_call_operand.vmem [shape: f32[1,8], index: 2, kind: input, shape index: {}]
  %s3 = inlined_call_operand.vmem [shape: bf16[512,8], index: 3, kind: output, shape index: {}]
  %s4 = sld [smem:[#allocation0]]
  $region22: #{model_forward.18} parent=0
    _
  %s6 = ssub.s32 1, %s4
  %s7 = scalar_select 0, %s6, %s4
  // Predicated region
  $region2: #{model_forward.18} parent=0 // pred_check
    _
  $region3: #{model_forward.18} parent=0 // pred_check_branch
    %9 = sbr.rel (0) target = $region5
  $region4: #{model_forward.18} parent=0 // pred_region
    _
  $region5: #{model_forward.18} parent=0 // pred_fallthru
    _
  // Predicated region
  $region6: #{model_forward.18} parent=0 // pred_check
    _
  $region7: #{model_forward.18} parent=0 // pred_check_branch
    %11 = sbr.rel (0) target = $region9
  $region8: #{model_forward.18} parent=0 // pred_region
    _
  $region9: #{model_forward.18} parent=0 // pred_fallthru
    _
  // Predicated region
  $region10: #{model_forward.18} parent=0 // pred_check
    _
  $region11: #{model_forward.18} parent=0 // pred_check_branch
    %13 = sbr.rel (0) target = $region13
  $region12: #{model_forward.18} parent=0 // pred_region
    _
  $region13: #{model_forward.18} parent=0 // pred_fallthru
    _
  %v15 = vld [vmem:[%s0] sm:$0xf]
  %v16 = vld [vmem:[%s0 + $0x4] sm:$0xf]
  %v17 = vld [vmem:[%s0 + $0x8] sm:$0xf]
  %v18 = vld [vmem:[%s0 + $0xc] sm:$0xf]
  %v19 = vld [vmem:[%s0 + $0x10] sm:$0xf]
  %v20 = vld [vmem:[%s0 + $0x14] sm:$0xf]
  %v21 = vld [vmem:[%s0 + $0x18] sm:$0xf]
  %v22 = vld [vmem:[%s0 + $0x1c] sm:$0xf]
  %v23 = vld [vmem:[%s0 + $0x20] sm:$0xf]
  %v24 = vld [vmem:[%s0 + $0x24] sm:$0xf]
  %v25 = vld [vmem:[%s0 + $0x28] sm:$0xf]
  %v26 = vld [vmem:[%s0 + $0x2c] sm:$0xf]
  %v27 = vld [vmem:[%s0 + $0x30] sm:$0xf]
  %v28 = vld [vmem:[%s0 + $0x34] sm:$0xf]
  %v29 = vld [vmem:[%s0 + $0x38] sm:$0xf]
  %v30 = vld [vmem:[%s0 + $0x3c] sm:$0xf]
  %v31 = vld [vmem:[%s0 + $0x40] sm:$0xf]
  %v32 = vld [vmem:[%s0 + $0x44] sm:$0xf]
  %v33 = vld [vmem:[%s0 + $0x48] sm:$0xf]
  %v34 = vld [vmem:[%s0 + $0x4c] sm:$0xf]
  %v35 = vld [vmem:[%s0 + $0x50] sm:$0xf]
  %v36 = vld [vmem:[%s0 + $0x54] sm:$0xf]
  %v37 = vld [vmem:[%s0 + $0x58] sm:$0xf]
  %v38 = vld [vmem:[%s0 + $0x5c] sm:$0xf]
  %v39 = vld [vmem:[%s0 + $0x60] sm:$0xf]
  %v40 = vld [vmem:[%s0 + $0x64] sm:$0xf]
  %v41 = vld [vmem:[%s0 + $0x68] sm:$0xf]
  %v42 = vld [vmem:[%s0 + $0x6c] sm:$0xf]
  %v43 = vld [vmem:[%s0 + $0x70] sm:$0xf]
  %v44 = vld [vmem:[%s0 + $0x74] sm:$0xf]
  %v45 = vld [vmem:[%s0 + $0x78] sm:$0xf]
  %v46 = vld [vmem:[%s0 + $0x7c] sm:$0xf]
  %v47 = vld [vmem:[%s0 + $0x80] sm:$0xf]
  %v48 = vld [vmem:[%s0 + $0x84] sm:$0xf]
  %v49 = vld [vmem:[%s0 + $0x88] sm:$0xf]
  %v50 = vld [vmem:[%s0 + $0x8c] sm:$0xf]
  %v51 = vld [vmem:[%s0 + $0x90] sm:$0xf]
  %v52 = vld [vmem:[%s0 + $0x94] sm:$0xf]
  %v53 = vld [vmem:[%s0 + $0x98] sm:$0xf]
  %v54 = vld [vmem:[%s0 + $0x9c] sm:$0xf]
  %v55 = vld [vmem:[%s0 + $0xa0] sm:$0xf]
  %v56 = vld [vmem:[%s0 + $0xa4] sm:$0xf]
  %v57 = vld [vmem:[%s0 + $0xa8] sm:$0xf]
  %v58 = vld [vmem:[%s0 + $0xac] sm:$0xf]
  %v59 = vld [vmem:[%s0 + $0xb0] sm:$0xf]
  %v60 = vld [vmem:[%s0 + $0xb4] sm:$0xf]
  %v61 = vld [vmem:[%s0 + $0xb8] sm:$0xf]
  %v62 = vld [vmem:[%s0 + $0xbc] sm:$0xf]
  %v63 = vld [vmem:[%s0 + $0xc0] sm:$0xf]
  %v64 = vld [vmem:[%s0 + $0xc4] sm:$0xf]
  %v65 = vld [vmem:[%s0 + $0xc8] sm:$0xf]
  %v66 = vld [vmem:[%s0 + $0xcc] sm:$0xf]
  %v67 = vld [vmem:[%s0 + $0xd0] sm:$0xf]
  %v68 = vld [vmem:[%s0 + $0xd4] sm:$0xf]
  %v69 = vld [vmem:[%s0 + $0xd8] sm:$0xf]
  %v70 = vld [vmem:[%s0 + $0xdc] sm:$0xf]
  %v71 = vld [vmem:[%s0 + $0xe0] sm:$0xf]
  %v72 = vld [vmem:[%s0 + $0xe4] sm:$0xf]
  %v73 = vld [vmem:[%s0 + $0xe8] sm:$0xf]
  %v74 = vld [vmem:[%s0 + $0xec] sm:$0xf]
  %v75 = vld [vmem:[%s0 + $0xf0] sm:$0xf]
  %v76 = vld [vmem:[%s0 + $0xf4] sm:$0xf]
  %v77 = vld [vmem:[%s0 + $0xf8] sm:$0xf]
  %v78 = vld [vmem:[%s0 + $0xfc] sm:$0xf]
  %v79 = vld [vmem:[%s1] sm:$0xf]
  %v80 = vld [vmem:[%s1 + $0x4] sm:$0xf]
  %v81 = vld [vmem:[%s1 + $0x8] sm:$0xf]
  %v82 = vld [vmem:[%s1 + $0xc] sm:$0x3]
  %v83 = vld [vmem:[%s2] sm:$0x1]
  %v85 = vlaneseq
  %v86 = vshrl.u32 %v85, 7
  %v87 = vsub.s32 0, %v86
  %v88 = vrot.slane %v83, %v87
  %v154 = vunpack.c.l.b16 %v15
  %v155 = vunpack.c.l.b16 %v16
  %v156 = vunpack.c.l.b16 %v17
  %v157 = vunpack.c.l.b16 %v18
  %v158 = vunpack.c.l.b16 %v19
  %v159 = vunpack.c.l.b16 %v20
  %v160 = vunpack.c.l.b16 %v21
  %v161 = vunpack.c.l.b16 %v22
  %v162 = vunpack.c.l.b16 %v23
  %v163 = vunpack.c.l.b16 %v24
  %v164 = vunpack.c.l.b16 %v25
  %v165 = vunpack.c.l.b16 %v26
  %v166 = vunpack.c.l.b16 %v27
  %v167 = vunpack.c.l.b16 %v28
  %v168 = vunpack.c.l.b16 %v29
  %v169 = vunpack.c.l.b16 %v30
  %v170 = vunpack.c.l.b16 %v31
  %v171 = vunpack.c.l.b16 %v32
  %v172 = vunpack.c.l.b16 %v33
  %v173 = vunpack.c.l.b16 %v34
  %v174 = vunpack.c.l.b16 %v35
  %v175 = vunpack.c.l.b16 %v36
  %v176 = vunpack.c.l.b16 %v37
  %v177 = vunpack.c.l.b16 %v38
  %v178 = vunpack.c.l.b16 %v39
  %v179 = vunpack.c.l.b16 %v40
  %v180 = vunpack.c.l.b16 %v41
  %v181 = vunpack.c.l.b16 %v42
  %v182 = vunpack.c.l.b16 %v43
  %v183 = vunpack.c.l.b16 %v44
  %v184 = vunpack.c.l.b16 %v45
  %v185 = vunpack.c.l.b16 %v46
  %v186 = vunpack.c.l.b16 %v47
  %v187 = vunpack.c.l.b16 %v48
  %v188 = vunpack.c.l.b16 %v49
  %v189 = vunpack.c.l.b16 %v50
  %v190 = vunpack.c.l.b16 %v51
  %v191 = vunpack.c.l.b16 %v52
  %v192 = vunpack.c.l.b16 %v53
  %v193 = vunpack.c.l.b16 %v54
  %v194 = vunpack.c.l.b16 %v55
  %v195 = vunpack.c.l.b16 %v56
  %v196 = vunpack.c.l.b16 %v57
  %v197 = vunpack.c.l.b16 %v58
  %v198 = vunpack.c.l.b16 %v59
  %v199 = vunpack.c.l.b16 %v60
  %v200 = vunpack.c.l.b16 %v61
  %v201 = vunpack.c.l.b16 %v62
  %v202 = vunpack.c.l.b16 %v63
  %v203 = vunpack.c.l.b16 %v64
  %v204 = vunpack.c.l.b16 %v65
  %v205 = vunpack.c.l.b16 %v66
  %v206 = vunpack.c.l.b16 %v67
  %v207 = vunpack.c.l.b16 %v68
  %v208 = vunpack.c.l.b16 %v69
  %v209 = vunpack.c.l.b16 %v70
  %v210 = vunpack.c.l.b16 %v71
  %v211 = vunpack.c.l.b16 %v72
  %v212 = vunpack.c.l.b16 %v73
  %v213 = vunpack.c.l.b16 %v74
  %v214 = vunpack.c.l.b16 %v75
  %v215 = vunpack.c.l.b16 %v76
  %v216 = vunpack.c.l.b16 %v77
  %v217 = vunpack.c.l.b16 %v78
  %v218 = vpack.c.b16 %v155, %v154
  %v219 = vpack.c.b16 %v157, %v156
  %v220 = vpack.c.b16 %v159, %v158
  %v221 = vpack.c.b16 %v161, %v160
  %v222 = vpack.c.b16 %v163, %v162
  %v223 = vpack.c.b16 %v165, %v164
  %v224 = vpack.c.b16 %v167, %v166
  %v225 = vpack.c.b16 %v169, %v168
  %v226 = vpack.c.b16 %v171, %v170
  %v227 = vpack.c.b16 %v173, %v172
  %v228 = vpack.c.b16 %v175, %v174
  %v229 = vpack.c.b16 %v177, %v176
  %v230 = vpack.c.b16 %v179, %v178
  %v231 = vpack.c.b16 %v181, %v180
  %v232 = vpack.c.b16 %v183, %v182
  %v233 = vpack.c.b16 %v185, %v184
  %v234 = vpack.c.b16 %v187, %v186
  %v235 = vpack.c.b16 %v189, %v188
  %v236 = vpack.c.b16 %v191, %v190
  %v237 = vpack.c.b16 %v193, %v192
  %v238 = vpack.c.b16 %v195, %v194
  %v239 = vpack.c.b16 %v197, %v196
  %v240 = vpack.c.b16 %v199, %v198
  %v241 = vpack.c.b16 %v201, %v200
  %v242 = vpack.c.b16 %v203, %v202
  %v243 = vpack.c.b16 %v205, %v204
  %v244 = vpack.c.b16 %v207, %v206
  %v245 = vpack.c.b16 %v209, %v208
  %v246 = vpack.c.b16 %v211, %v210
  %v247 = vpack.c.b16 %v213, %v212
  %v248 = vpack.c.b16 %v215, %v214
  %v249 = vpack.c.b16 %v217, %v216
  %v254 = vunpack.c.l.b16 %v79
  %v255 = vunpack.c.l.b16 %v80
  %v256 = vunpack.c.l.b16 %v81
  %v257 = vunpack.c.l.b16 %v82
  %v258 = vpack.c.b16 %v255, %v254
  %v259 = vpack.c.b16 %v257, %v256
  %vm261 = vcmask 220160
  %v263 = vsel %vm261, %v218, 0
  %v266 = vsel %vm261, %v219, 0
  %v269 = vsel %vm261, %v220, 0
  %v272 = vsel %vm261, %v221, 0
  %v275 = vsel %vm261, %v222, 0
  %v278 = vsel %vm261, %v223, 0
  %v281 = vsel %vm261, %v224, 0
  %v284 = vsel %vm261, %v225, 0
  %v287 = vsel %vm261, %v226, 0
  %v290 = vsel %vm261, %v227, 0
  %v293 = vsel %vm261, %v228, 0
  %v296 = vsel %vm261, %v229, 0
  %v299 = vsel %vm261, %v230, 0
  %v302 = vsel %vm261, %v231, 0
  %v305 = vsel %vm261, %v232, 0
  %v308 = vsel %vm261, %v233, 0
  %v311 = vsel %vm261, %v234, 0
  %v314 = vsel %vm261, %v235, 0
  %v317 = vsel %vm261, %v236, 0
  %v320 = vsel %vm261, %v237, 0
  %v323 = vsel %vm261, %v238, 0
  %v326 = vsel %vm261, %v239, 0
  %v329 = vsel %vm261, %v240, 0
  %v332 = vsel %vm261, %v241, 0
  %v335 = vsel %vm261, %v242, 0
  %v338 = vsel %vm261, %v243, 0
  %v341 = vsel %vm261, %v244, 0
  %v344 = vsel %vm261, %v245, 0
  %v347 = vsel %vm261, %v246, 0
  %v350 = vsel %vm261, %v247, 0
  %v353 = vsel %vm261, %v248, 0
  %v356 = vsel %vm261, %v249, 0
  %vm358 = vcmask 1044480
  %vm359 = vcmask 1045504
  %v360 = vsel %vm358, 4294967295, 65535
  %v361 = vsel %vm359, %v360, 0
  %v363 = vand.u32 %v259, %v361
  %365 = vmatprep.subr.bf16.mxu0 0
  %366 = vmatpush1.bf16.msra.mxu0 %v258
  %367 = vmatprep.subr.bf16.mxu0 0
  %368 = vmatpush1.bf16.msra.mxu0 %v363
  %369 = vmatprep.subr.bf16.mxu0 0
  %370 = vmatpush1.bf16.msra.mxu0 0
  %371 = vmatprep.subr.bf16.mxu0 0
  %372 = vmatpush1.bf16.msra.mxu0 0
  %373 = vmatprep.subr.bf16.mxu0 0
  %374 = vmatpush1.bf16.msra.mxu0 0
  %375 = vmatprep.subr.bf16.mxu0 0
  %376 = vmatpush1.bf16.msra.mxu0 0
  %377 = vmatprep.subr.bf16.mxu0 0
  %378 = vmatpush1.bf16.msra.mxu0 0
  %379 = vmatprep.subr.bf16.mxu0 0
  %380 = vmatpush1.bf16.msra.mxu0 0
  %381 = vmatprep.subr.bf16.mxu0 0
  %382 = vmatpush1.bf16.msra.mxu0 0
  %383 = vmatprep.subr.bf16.mxu0 0
  %384 = vmatpush1.bf16.msra.mxu0 0
  %385 = vmatprep.subr.bf16.mxu0 0
  %386 = vmatpush1.bf16.msra.mxu0 0
  %387 = vmatprep.subr.bf16.mxu0 0
  %388 = vmatpush1.bf16.msra.mxu0 0
  %389 = vmatprep.subr.bf16.mxu0 0
  %390 = vmatpush1.bf16.msra.mxu0 0
  %391 = vmatprep.subr.bf16.mxu0 0
  %392 = vmatpush1.bf16.msra.mxu0 0
  %393 = vmatprep.subr.bf16.mxu0 0
  %394 = vmatpush1.bf16.msra.mxu0 0
  %395 = vmatprep.subr.bf16.mxu0 0
  %396 = vmatpush1.bf16.msra.mxu0 0
  %397 = vmatprep.mubr.bf16.mxu0 0
  %398 = vmatmul.mubr.bf16.gmra.mrb[0].mxu0 %v263
  %v399 = vpop.f32.mrb[0].mxu0
  %v400 = vadd.f32 %v88, %v399
  %v401 = vpop.f32.mrb[0].mxu0
  %v402 = vpop.f32.mrb[0].mxu0
  %v403 = vadd.f32 %v88, %v402
  %v404 = vpop.f32.mrb[0].mxu0
  %405 = vmatprep.mubr.bf16.mxu0 0
  %406 = vmatmul.mubr.bf16.gmra.mrb[0].mxu0 %v266
  %v407 = vpop.f32.mrb[0].mxu0
  %v408 = vadd.f32 %v88, %v407
  %v409 = vpop.f32.mrb[0].mxu0
  %v410 = vpop.f32.mrb[0].mxu0
  %v411 = vadd.f32 %v88, %v410
  %v412 = vpop.f32.mrb[0].mxu0
  %413 = vmatprep.mubr.bf16.mxu0 0
  %414 = vmatmul.mubr.bf16.gmra.mrb[0].mxu0 %v269
  %v415 = vpop.f32.mrb[0].mxu0
  %v416 = vadd.f32 %v88, %v415
  %v417 = vpop.f32.mrb[0].mxu0
  %v418 = vpop.f32.mrb[0].mxu0
  %v419 = vadd.f32 %v88, %v418
  %v420 = vpop.f32.mrb[0].mxu0
  %421 = vmatprep.mubr.bf16.mxu0 0
  %422 = vmatmul.mubr.bf16.gmra.mrb[0].mxu0 %v272
  %v423 = vpop.f32.mrb[0].mxu0
  %v424 = vadd.f32 %v88, %v423
  %v425 = vpop.f32.mrb[0].mxu0
  %v426 = vpop.f32.mrb[0].mxu0
  %v427 = vadd.f32 %v88, %v426
  %v428 = vpop.f32.mrb[0].mxu0
  %429 = vmatprep.mubr.bf16.mxu0 0
  %430 = vmatmul.mubr.bf16.gmra.mrb[0].mxu0 %v275
  %v431 = vpop.f32.mrb[0].mxu0
  %v432 = vadd.f32 %v88, %v431
  %v433 = vpop.f32.mrb[0].mxu0
  %v434 = vpop.f32.mrb[0].mxu0
  %v435 = vadd.f32 %v88, %v434
  %v436 = vpop.f32.mrb[0].mxu0
  %437 = vmatprep.mubr.bf16.mxu0 0
  %438 = vmatmul.mubr.bf16.gmra.mrb[0].mxu0 %v278
  %v439 = vpop.f32.mrb[0].mxu0
  %v440 = vadd.f32 %v88, %v439
  %v441 = vpop.f32.mrb[0].mxu0
  %v442 = vpop.f32.mrb[0].mxu0
  %v443 = vadd.f32 %v88, %v442
  %v444 = vpop.f32.mrb[0].mxu0
  %445 = vmatprep.mubr.bf16.mxu0 0
  %446 = vmatmul.mubr.bf16.gmra.mrb[0].mxu0 %v281
  %v447 = vpop.f32.mrb[0].mxu0
  %v448 = vadd.f32 %v88, %v447
  %v449 = vpop.f32.mrb[0].mxu0
  %v450 = vpop.f32.mrb[0].mxu0
  %v451 = vadd.f32 %v88, %v450
  %v452 = vpop.f32.mrb[0].mxu0
  %453 = vmatprep.mubr.bf16.mxu0 0
  %454 = vmatmul.mubr.bf16.gmra.mrb[0].mxu0 %v284
  %v455 = vpop.f32.mrb[0].mxu0
  %v456 = vadd.f32 %v88, %v455
  %v457 = vpop.f32.mrb[0].mxu0
  %v458 = vpop.f32.mrb[0].mxu0
  %v459 = vadd.f32 %v88, %v458
  %v460 = vpop.f32.mrb[0].mxu0
  %461 = vmatprep.mubr.bf16.mxu0 0
  %462 = vmatmul.mubr.bf16.gmra.mrb[0].mxu0 %v287
  %v463 = vpop.f32.mrb[0].mxu0
  %v464 = vadd.f32 %v88, %v463
  %v465 = vpop.f32.mrb[0].mxu0
  %v466 = vpop.f32.mrb[0].mxu0
  %v467 = vadd.f32 %v88, %v466
  %v468 = vpop.f32.mrb[0].mxu0
  %469 = vmatprep.mubr.bf16.mxu0 0
  %470 = vmatmul.mubr.bf16.gmra.mrb[0].mxu0 %v290
  %v471 = vpop.f32.mrb[0].mxu0
  %v472 = vadd.f32 %v88, %v471
  %v473 = vpop.f32.mrb[0].mxu0
  %v474 = vpop.f32.mrb[0].mxu0
  %v475 = vadd.f32 %v88, %v474
  %v476 = vpop.f32.mrb[0].mxu0
  %477 = vmatprep.mubr.bf16.mxu0 0
  %478 = vmatmul.mubr.bf16.gmra.mrb[0].mxu0 %v293
  %v479 = vpop.f32.mrb[0].mxu0
  %v480 = vadd.f32 %v88, %v479
  %v481 = vpop.f32.mrb[0].mxu0
  %v482 = vpop.f32.mrb[0].mxu0
  %v483 = vadd.f32 %v88, %v482
  %v484 = vpop.f32.mrb[0].mxu0
  %485 = vmatprep.mubr.bf16.mxu0 0
  %486 = vmatmul.mubr.bf16.gmra.mrb[0].mxu0 %v296
  %v487 = vpop.f32.mrb[0].mxu0
  %v488 = vadd.f32 %v88, %v487
  %v489 = vpop.f32.mrb[0].mxu0
  %v490 = vpop.f32.mrb[0].mxu0
  %v491 = vadd.f32 %v88, %v490
  %v492 = vpop.f32.mrb[0].mxu0
  %493 = vmatprep.mubr.bf16.mxu0 0
  %494 = vmatmul.mubr.bf16.gmra.mrb[0].mxu0 %v299
  %v495 = vpop.f32.mrb[0].mxu0
  %v496 = vadd.f32 %v88, %v495
  %v497 = vpop.f32.mrb[0].mxu0
  %v498 = vpop.f32.mrb[0].mxu0
  %v499 = vadd.f32 %v88, %v498
  %v500 = vpop.f32.mrb[0].mxu0
  %501 = vmatprep.mubr.bf16.mxu0 0
  %502 = vmatmul.mubr.bf16.gmra.mrb[0].mxu0 %v302
  %v503 = vpop.f32.mrb[0].mxu0
  %v504 = vadd.f32 %v88, %v503
  %v505 = vpop.f32.mrb[0].mxu0
  %v506 = vpop.f32.mrb[0].mxu0
  %v507 = vadd.f32 %v88, %v506
  %v508 = vpop.f32.mrb[0].mxu0
  %509 = vmatprep.mubr.bf16.mxu0 0
  %510 = vmatmul.mubr.bf16.gmra.mrb[0].mxu0 %v305
  %v511 = vpop.f32.mrb[0].mxu0
  %v512 = vadd.f32 %v88, %v511
  %v513 = vpop.f32.mrb[0].mxu0
  %v514 = vpop.f32.mrb[0].mxu0
  %v515 = vadd.f32 %v88, %v514
  %v516 = vpop.f32.mrb[0].mxu0
  %517 = vmatprep.mubr.bf16.mxu0 0
  %518 = vmatmul.mubr.bf16.gmra.mrb[0].mxu0 %v308
  %v519 = vpop.f32.mrb[0].mxu0
  %v520 = vadd.f32 %v88, %v519
  %v521 = vpop.f32.mrb[0].mxu0
  %v522 = vpop.f32.mrb[0].mxu0
  %v523 = vadd.f32 %v88, %v522
  %v524 = vpop.f32.mrb[0].mxu0
  %525 = vmatprep.mubr.bf16.mxu0 0
  %526 = vmatmul.mubr.bf16.gmra.mrb[0].mxu0 %v311
  %v527 = vpop.f32.mrb[0].mxu0
  %v528 = vadd.f32 %v88, %v527
  %v529 = vpop.f32.mrb[0].mxu0
  %v530 = vpop.f32.mrb[0].mxu0
  %v531 = vadd.f32 %v88, %v530
  %v532 = vpop.f32.mrb[0].mxu0
  %533 = vmatprep.mubr.bf16.mxu0 0
  %534 = vmatmul.mubr.bf16.gmra.mrb[0].mxu0 %v314
  %v535 = vpop.f32.mrb[0].mxu0
  %v536 = vadd.f32 %v88, %v535
  %v537 = vpop.f32.mrb[0].mxu0
  %v538 = vpop.f32.mrb[0].mxu0
  %v539 = vadd.f32 %v88, %v538
  %v540 = vpop.f32.mrb[0].mxu0
  %541 = vmatprep.mubr.bf16.mxu0 0
  %542 = vmatmul.mubr.bf16.gmra.mrb[0].mxu0 %v317
  %v543 = vpop.f32.mrb[0].mxu0
  %v544 = vadd.f32 %v88, %v543
  %v545 = vpop.f32.mrb[0].mxu0
  %v546 = vpop.f32.mrb[0].mxu0
  %v547 = vadd.f32 %v88, %v546
  %v548 = vpop.f32.mrb[0].mxu0
  %549 = vmatprep.mubr.bf16.mxu0 0
  %550 = vmatmul.mubr.bf16.gmra.mrb[0].mxu0 %v320
  %v551 = vpop.f32.mrb[0].mxu0
  %v552 = vadd.f32 %v88, %v551
  %v553 = vpop.f32.mrb[0].mxu0
  %v554 = vpop.f32.mrb[0].mxu0
  %v555 = vadd.f32 %v88, %v554
  %v556 = vpop.f32.mrb[0].mxu0
  %557 = vmatprep.mubr.bf16.mxu0 0
  %558 = vmatmul.mubr.bf16.gmra.mrb[0].mxu0 %v323
  %v559 = vpop.f32.mrb[0].mxu0
  %v560 = vadd.f32 %v88, %v559
  %v561 = vpop.f32.mrb[0].mxu0
  %v562 = vpop.f32.mrb[0].mxu0
  %v563 = vadd.f32 %v88, %v562
  %v564 = vpop.f32.mrb[0].mxu0
  %565 = vmatprep.mubr.bf16.mxu0 0
  %566 = vmatmul.mubr.bf16.gmra.mrb[0].mxu0 %v326
  %v567 = vpop.f32.mrb[0].mxu0
  %v568 = vadd.f32 %v88, %v567
  %v569 = vpop.f32.mrb[0].mxu0
  %v570 = vpop.f32.mrb[0].mxu0
  %v571 = vadd.f32 %v88, %v570
  %v572 = vpop.f32.mrb[0].mxu0
  %573 = vmatprep.mubr.bf16.mxu0 0
  %574 = vmatmul.mubr.bf16.gmra.mrb[0].mxu0 %v329
  %v575 = vpop.f32.mrb[0].mxu0
  %v576 = vadd.f32 %v88, %v575
  %v577 = vpop.f32.mrb[0].mxu0
  %v578 = vpop.f32.mrb[0].mxu0
  %v579 = vadd.f32 %v88, %v578
  %v580 = vpop.f32.mrb[0].mxu0
  %581 = vmatprep.mubr.bf16.mxu0 0
  %582 = vmatmul.mubr.bf16.gmra.mrb[0].mxu0 %v332
  %v583 = vpop.f32.mrb[0].mxu0
  %v584 = vadd.f32 %v88, %v583
  %v585 = vpop.f32.mrb[0].mxu0
  %v586 = vpop.f32.mrb[0].mxu0
  %v587 = vadd.f32 %v88, %v586
  %v588 = vpop.f32.mrb[0].mxu0
  %589 = vmatprep.mubr.bf16.mxu0 0
  %590 = vmatmul.mubr.bf16.gmra.mrb[0].mxu0 %v335
  %v591 = vpop.f32.mrb[0].mxu0
  %v592 = vadd.f32 %v88, %v591
  %v593 = vpop.f32.mrb[0].mxu0
  %v594 = vpop.f32.mrb[0].mxu0
  %v595 = vadd.f32 %v88, %v594
  %v596 = vpop.f32.mrb[0].mxu0
  %597 = vmatprep.mubr.bf16.mxu0 0
  %598 = vmatmul.mubr.bf16.gmra.mrb[0].mxu0 %v338
  %v599 = vpop.f32.mrb[0].mxu0
  %v600 = vadd.f32 %v88, %v599
  %v601 = vpop.f32.mrb[0].mxu0
  %v602 = vpop.f32.mrb[0].mxu0
  %v603 = vadd.f32 %v88, %v602
  %v604 = vpop.f32.mrb[0].mxu0
  %605 = vmatprep.mubr.bf16.mxu0 0
  %606 = vmatmul.mubr.bf16.gmra.mrb[0].mxu0 %v341
  %v607 = vpop.f32.mrb[0].mxu0
  %v608 = vadd.f32 %v88, %v607
  %v609 = vpop.f32.mrb[0].mxu0
  %v610 = vpop.f32.mrb[0].mxu0
  %v611 = vadd.f32 %v88, %v610
  %v612 = vpop.f32.mrb[0].mxu0
  %613 = vmatprep.mubr.bf16.mxu0 0
  %614 = vmatmul.mubr.bf16.gmra.mrb[0].mxu0 %v344
  %v615 = vpop.f32.mrb[0].mxu0
  %v616 = vadd.f32 %v88, %v615
  %v617 = vpop.f32.mrb[0].mxu0
  %v618 = vpop.f32.mrb[0].mxu0
  %v619 = vadd.f32 %v88, %v618
  %v620 = vpop.f32.mrb[0].mxu0
  %621 = vmatprep.mubr.bf16.mxu0 0
  %622 = vmatmul.mubr.bf16.gmra.mrb[0].mxu0 %v347
  %v623 = vpop.f32.mrb[0].mxu0
  %v624 = vadd.f32 %v88, %v623
  %v625 = vpop.f32.mrb[0].mxu0
  %v626 = vpop.f32.mrb[0].mxu0
  %v627 = vadd.f32 %v88, %v626
  %v628 = vpop.f32.mrb[0].mxu0
  %629 = vmatprep.mubr.bf16.mxu0 0
  %630 = vmatmul.mubr.bf16.gmra.mrb[0].mxu0 %v350
  %v631 = vpop.f32.mrb[0].mxu0
  %v632 = vadd.f32 %v88, %v631
  %v633 = vpop.f32.mrb[0].mxu0
  %v634 = vpop.f32.mrb[0].mxu0
  %v635 = vadd.f32 %v88, %v634
  %v636 = vpop.f32.mrb[0].mxu0
  %637 = vmatprep.mubr.bf16.mxu0 0
  %638 = vmatmul.mubr.bf16.gmra.mrb[0].mxu0 %v353
  %v639 = vpop.f32.mrb[0].mxu0
  %v640 = vadd.f32 %v88, %v639
  %v641 = vpop.f32.mrb[0].mxu0
  %v642 = vpop.f32.mrb[0].mxu0
  %v643 = vadd.f32 %v88, %v642
  %v644 = vpop.f32.mrb[0].mxu0
  %645 = vmatprep.mubr.bf16.mxu0 0
  %646 = vmatmul.mubr.bf16.gmra.mrb[0].mxu0 %v356
  %v647 = vpop.f32.mrb[0].mxu0
  %v648 = vadd.f32 %v88, %v647
  %v649 = vpop.f32.mrb[0].mxu0
  %v650 = vpop.f32.mrb[0].mxu0
  %v651 = vadd.f32 %v88, %v650
  %v652 = vpop.f32.mrb[0].mxu0
  %653 = vdwg.mxu0
  %v654 = vmax.f32 %v400, 0.0
  %v655 = vmax.f32 %v403, 0.0
  %v656 = vmax.f32 %v408, 0.0
  %v657 = vmax.f32 %v411, 0.0
  %v658 = vmax.f32 %v416, 0.0
  %v659 = vmax.f32 %v419, 0.0
  %v660 = vmax.f32 %v424, 0.0
  %v661 = vmax.f32 %v427, 0.0
  %v662 = vmax.f32 %v432, 0.0
  %v663 = vmax.f32 %v435, 0.0
  %v664 = vmax.f32 %v440, 0.0
  %v665 = vmax.f32 %v443, 0.0
  %v666 = vmax.f32 %v448, 0.0
  %v667 = vmax.f32 %v451, 0.0
  %v668 = vmax.f32 %v456, 0.0
  %v669 = vmax.f32 %v459, 0.0
  %v670 = vmax.f32 %v464, 0.0
  %v671 = vmax.f32 %v467, 0.0
  %v672 = vmax.f32 %v472, 0.0
  %v673 = vmax.f32 %v475, 0.0
  %v674 = vmax.f32 %v480, 0.0
  %v675 = vmax.f32 %v483, 0.0
  %v676 = vmax.f32 %v488, 0.0
  %v677 = vmax.f32 %v491, 0.0
  %v678 = vmax.f32 %v496, 0.0
  %v679 = vmax.f32 %v499, 0.0
  %v680 = vmax.f32 %v504, 0.0
  %v681 = vmax.f32 %v507, 0.0
  %v682 = vmax.f32 %v512, 0.0
  %v683 = vmax.f32 %v515, 0.0
  %v684 = vmax.f32 %v520, 0.0
  %v685 = vmax.f32 %v523, 0.0
  %v686 = vmax.f32 %v528, 0.0
  %v687 = vmax.f32 %v531, 0.0
  %v688 = vmax.f32 %v536, 0.0
  %v689 = vmax.f32 %v539, 0.0
  %v690 = vmax.f32 %v544, 0.0
  %v691 = vmax.f32 %v547, 0.0
  %v692 = vmax.f32 %v552, 0.0
  %v693 = vmax.f32 %v555, 0.0
  %v694 = vmax.f32 %v560, 0.0
  %v695 = vmax.f32 %v563, 0.0
  %v696 = vmax.f32 %v568, 0.0
  %v697 = vmax.f32 %v571, 0.0
  %v698 = vmax.f32 %v576, 0.0
  %v699 = vmax.f32 %v579, 0.0
  %v700 = vmax.f32 %v584, 0.0
  %v701 = vmax.f32 %v587, 0.0
  %v702 = vmax.f32 %v592, 0.0
  %v703 = vmax.f32 %v595, 0.0
  %v704 = vmax.f32 %v600, 0.0
  %v705 = vmax.f32 %v603, 0.0
  %v706 = vmax.f32 %v608, 0.0
  %v707 = vmax.f32 %v611, 0.0
  %v708 = vmax.f32 %v616, 0.0
  %v709 = vmax.f32 %v619, 0.0
  %v710 = vmax.f32 %v624, 0.0
  %v711 = vmax.f32 %v627, 0.0
  %v712 = vmax.f32 %v632, 0.0
  %v713 = vmax.f32 %v635, 0.0
  %v714 = vmax.f32 %v640, 0.0
  %v715 = vmax.f32 %v643, 0.0
  %v716 = vmax.f32 %v648, 0.0
  %v717 = vmax.f32 %v651, 0.0
  %v718 = vpack.c.bf16 %v655, %v654
  %v719 = vpack.c.bf16 %v657, %v656
  %v720 = vpack.c.bf16 %v659, %v658
  %v721 = vpack.c.bf16 %v661, %v660
  %v722 = vpack.c.bf16 %v663, %v662
  %v723 = vpack.c.bf16 %v665, %v664
  %v724 = vpack.c.bf16 %v667, %v666
  %v725 = vpack.c.bf16 %v669, %v668
  %v726 = vpack.c.bf16 %v671, %v670
  %v727 = vpack.c.bf16 %v673, %v672
  %v728 = vpack.c.bf16 %v675, %v674
  %v729 = vpack.c.bf16 %v677, %v676
  %v730 = vpack.c.bf16 %v679, %v678
  %v731 = vpack.c.bf16 %v681, %v680
  %v732 = vpack.c.bf16 %v683, %v682
  %v733 = vpack.c.bf16 %v685, %v684
  %v734 = vpack.c.bf16 %v687, %v686
  %v735 = vpack.c.bf16 %v689, %v688
  %v736 = vpack.c.bf16 %v691, %v690
  %v737 = vpack.c.bf16 %v693, %v692
  %v738 = vpack.c.bf16 %v695, %v694
  %v739 = vpack.c.bf16 %v697, %v696
  %v740 = vpack.c.bf16 %v699, %v698
  %v741 = vpack.c.bf16 %v701, %v700
  %v742 = vpack.c.bf16 %v703, %v702
  %v743 = vpack.c.bf16 %v705, %v704
  %v744 = vpack.c.bf16 %v707, %v706
  %v745 = vpack.c.bf16 %v709, %v708
  %v746 = vpack.c.bf16 %v711, %v710
  %v747 = vpack.c.bf16 %v713, %v712
  %v748 = vpack.c.bf16 %v715, %v714
  %v749 = vpack.c.bf16 %v717, %v716
  %v782 = vunpack.c.l.b16 %v718
  %v783 = vunpack.c.h.b16 %v718
  %v784 = vunpack.c.l.b16 %v719
  %v785 = vunpack.c.h.b16 %v719
  %v786 = vunpack.c.l.b16 %v720
  %v787 = vunpack.c.h.b16 %v720
  %v788 = vunpack.c.l.b16 %v721
  %v789 = vunpack.c.h.b16 %v721
  %v790 = vunpack.c.l.b16 %v722
  %v791 = vunpack.c.h.b16 %v722
  %v792 = vunpack.c.l.b16 %v723
  %v793 = vunpack.c.h.b16 %v723
  %v794 = vunpack.c.l.b16 %v724
  %v795 = vunpack.c.h.b16 %v724
  %v796 = vunpack.c.l.b16 %v725
  %v797 = vunpack.c.h.b16 %v725
  %v798 = vunpack.c.l.b16 %v726
  %v799 = vunpack.c.h.b16 %v726
  %v800 = vunpack.c.l.b16 %v727
  %v801 = vunpack.c.h.b16 %v727
  %v802 = vunpack.c.l.b16 %v728
  %v803 = vunpack.c.h.b16 %v728
  %v804 = vunpack.c.l.b16 %v729
  %v805 = vunpack.c.h.b16 %v729
  %v806 = vunpack.c.l.b16 %v730
  %v807 = vunpack.c.h.b16 %v730
  %v808 = vunpack.c.l.b16 %v731
  %v809 = vunpack.c.h.b16 %v731
  %v810 = vunpack.c.l.b16 %v732
  %v811 = vunpack.c.h.b16 %v732
  %v812 = vunpack.c.l.b16 %v733
  %v813 = vunpack.c.h.b16 %v733
  %v814 = vunpack.c.l.b16 %v734
  %v815 = vunpack.c.h.b16 %v734
  %v816 = vunpack.c.l.b16 %v735
  %v817 = vunpack.c.h.b16 %v735
  %v818 = vunpack.c.l.b16 %v736
  %v819 = vunpack.c.h.b16 %v736
  %v820 = vunpack.c.l.b16 %v737
  %v821 = vunpack.c.h.b16 %v737
  %v822 = vunpack.c.l.b16 %v738
  %v823 = vunpack.c.h.b16 %v738
  %v824 = vunpack.c.l.b16 %v739
  %v825 = vunpack.c.h.b16 %v739
  %v826 = vunpack.c.l.b16 %v740
  %v827 = vunpack.c.h.b16 %v740
  %v828 = vunpack.c.l.b16 %v741
  %v829 = vunpack.c.h.b16 %v741
  %v830 = vunpack.c.l.b16 %v742
  %v831 = vunpack.c.h.b16 %v742
  %v832 = vunpack.c.l.b16 %v743
  %v833 = vunpack.c.h.b16 %v743
  %v834 = vunpack.c.l.b16 %v744
  %v835 = vunpack.c.h.b16 %v744
  %v836 = vunpack.c.l.b16 %v745
  %v837 = vunpack.c.h.b16 %v745
  %v838 = vunpack.c.l.b16 %v746
  %v839 = vunpack.c.h.b16 %v746
  %v840 = vunpack.c.l.b16 %v747
  %v841 = vunpack.c.h.b16 %v747
  %v842 = vunpack.c.l.b16 %v748
  %v843 = vunpack.c.h.b16 %v748
  %v844 = vunpack.c.l.b16 %v749
  %v845 = vunpack.c.h.b16 %v749
  %v846 = vpack.c.b16 %v782, %v782
  %v847 = vpack.c.b16 %v783, %v783
  %v848 = vpack.c.b16 %v784, %v784
  %v849 = vpack.c.b16 %v785, %v785
  %v850 = vpack.c.b16 %v786, %v786
  %v851 = vpack.c.b16 %v787, %v787
  %v852 = vpack.c.b16 %v788, %v788
  %v853 = vpack.c.b16 %v789, %v789
  %v854 = vpack.c.b16 %v790, %v790
  %v855 = vpack.c.b16 %v791, %v791
  %v856 = vpack.c.b16 %v792, %v792
  %v857 = vpack.c.b16 %v793, %v793
  %v858 = vpack.c.b16 %v794, %v794
  %v859 = vpack.c.b16 %v795, %v795
  %v860 = vpack.c.b16 %v796, %v796
  %v861 = vpack.c.b16 %v797, %v797
  %v862 = vpack.c.b16 %v798, %v798
  %v863 = vpack.c.b16 %v799, %v799
  %v864 = vpack.c.b16 %v800, %v800
  %v865 = vpack.c.b16 %v801, %v801
  %v866 = vpack.c.b16 %v802, %v802
  %v867 = vpack.c.b16 %v803, %v803
  %v868 = vpack.c.b16 %v804, %v804
  %v869 = vpack.c.b16 %v805, %v805
  %v870 = vpack.c.b16 %v806, %v806
  %v871 = vpack.c.b16 %v807, %v807
  %v872 = vpack.c.b16 %v808, %v808
  %v873 = vpack.c.b16 %v809, %v809
  %v874 = vpack.c.b16 %v810, %v810
  %v875 = vpack.c.b16 %v811, %v811
  %v876 = vpack.c.b16 %v812, %v812
  %v877 = vpack.c.b16 %v813, %v813
  %v878 = vpack.c.b16 %v814, %v814
  %v879 = vpack.c.b16 %v815, %v815
  %v880 = vpack.c.b16 %v816, %v816
  %v881 = vpack.c.b16 %v817, %v817
  %v882 = vpack.c.b16 %v818, %v818
  %v883 = vpack.c.b16 %v819, %v819
  %v884 = vpack.c.b16 %v820, %v820
  %v885 = vpack.c.b16 %v821, %v821
  %v886 = vpack.c.b16 %v822, %v822
  %v887 = vpack.c.b16 %v823, %v823
  %v888 = vpack.c.b16 %v824, %v824
  %v889 = vpack.c.b16 %v825, %v825
  %v890 = vpack.c.b16 %v826, %v826
  %v891 = vpack.c.b16 %v827, %v827
  %v892 = vpack.c.b16 %v828, %v828
  %v893 = vpack.c.b16 %v829, %v829
  %v894 = vpack.c.b16 %v830, %v830
  %v895 = vpack.c.b16 %v831, %v831
  %v896 = vpack.c.b16 %v832, %v832
  %v897 = vpack.c.b16 %v833, %v833
  %v898 = vpack.c.b16 %v834, %v834
  %v899 = vpack.c.b16 %v835, %v835
  %v900 = vpack.c.b16 %v836, %v836
  %v901 = vpack.c.b16 %v837, %v837
  %v902 = vpack.c.b16 %v838, %v838
  %v903 = vpack.c.b16 %v839, %v839
  %v904 = vpack.c.b16 %v840, %v840
  %v905 = vpack.c.b16 %v841, %v841
  %v906 = vpack.c.b16 %v842, %v842
  %v907 = vpack.c.b16 %v843, %v843
  %v908 = vpack.c.b16 %v844, %v844
  %v909 = vpack.c.b16 %v845, %v845
  %vm974 = vcmask 60416
  %975 = vst.msk [vmem:[%s3] sm:$0xf] %vm974, %v846
  %976 = vst.msk [vmem:[%s3 + $0x4] sm:$0xf] %vm974, %v847
  %977 = vst.msk [vmem:[%s3 + $0x8] sm:$0xf] %vm974, %v848
  %978 = vst.msk [vmem:[%s3 + $0xc] sm:$0xf] %vm974, %v849
  %979 = vst.msk [vmem:[%s3 + $0x10] sm:$0xf] %vm974, %v850
  %980 = vst.msk [vmem:[%s3 + $0x14] sm:$0xf] %vm974, %v851
  %981 = vst.msk [vmem:[%s3 + $0x18] sm:$0xf] %vm974, %v852
  %982 = vst.msk [vmem:[%s3 + $0x1c] sm:$0xf] %vm974, %v853
  %983 = vst.msk [vmem:[%s3 + $0x20] sm:$0xf] %vm974, %v854
  %984 = vst.msk [vmem:[%s3 + $0x24] sm:$0xf] %vm974, %v855
  %985 = vst.msk [vmem:[%s3 + $0x28] sm:$0xf] %vm974, %v856
  %986 = vst.msk [vmem:[%s3 + $0x2c] sm:$0xf] %vm974, %v857
  %987 = vst.msk [vmem:[%s3 + $0x30] sm:$0xf] %vm974, %v858
  %988 = vst.msk [vmem:[%s3 + $0x34] sm:$0xf] %vm974, %v859
  %989 = vst.msk [vmem:[%s3 + $0x38] sm:$0xf] %vm974, %v860
  %990 = vst.msk [vmem:[%s3 + $0x3c] sm:$0xf] %vm974, %v861
  %991 = vst.msk [vmem:[%s3 + $0x40] sm:$0xf] %vm974, %v862
  %992 = vst.msk [vmem:[%s3 + $0x44] sm:$0xf] %vm974, %v863
  %993 = vst.msk [vmem:[%s3 + $0x48] sm:$0xf] %vm974, %v864
  %994 = vst.msk [vmem:[%s3 + $0x4c] sm:$0xf] %vm974, %v865
  %995 = vst.msk [vmem:[%s3 + $0x50] sm:$0xf] %vm974, %v866
  %996 = vst.msk [vmem:[%s3 + $0x54] sm:$0xf] %vm974, %v867
  %997 = vst.msk [vmem:[%s3 + $0x58] sm:$0xf] %vm974, %v868
  %998 = vst.msk [vmem:[%s3 + $0x5c] sm:$0xf] %vm974, %v869
  %999 = vst.msk [vmem:[%s3 + $0x60] sm:$0xf] %vm974, %v870
  %1000 = vst.msk [vmem:[%s3 + $0x64] sm:$0xf] %vm974, %v871
  %1001 = vst.msk [vmem:[%s3 + $0x68] sm:$0xf] %vm974, %v872
  %1002 = vst.msk [vmem:[%s3 + $0x6c] sm:$0xf] %vm974, %v873
  %1003 = vst.msk [vmem:[%s3 + $0x70] sm:$0xf] %vm974, %v874
  %1004 = vst.msk [vmem:[%s3 + $0x74] sm:$0xf] %vm974, %v875
  %1005 = vst.msk [vmem:[%s3 + $0x78] sm:$0xf] %vm974, %v876
  %1006 = vst.msk [vmem:[%s3 + $0x7c] sm:$0xf] %vm974, %v877
  %1007 = vst.msk [vmem:[%s3 + $0x80] sm:$0xf] %vm974, %v878
  %1008 = vst.msk [vmem:[%s3 + $0x84] sm:$0xf] %vm974, %v879
  %1009 = vst.msk [vmem:[%s3 + $0x88] sm:$0xf] %vm974, %v880
  %1010 = vst.msk [vmem:[%s3 + $0x8c] sm:$0xf] %vm974, %v881
  %1011 = vst.msk [vmem:[%s3 + $0x90] sm:$0xf] %vm974, %v882
  %1012 = vst.msk [vmem:[%s3 + $0x94] sm:$0xf] %vm974, %v883
  %1013 = vst.msk [vmem:[%s3 + $0x98] sm:$0xf] %vm974, %v884
  %1014 = vst.msk [vmem:[%s3 + $0x9c] sm:$0xf] %vm974, %v885
  %1015 = vst.msk [vmem:[%s3 + $0xa0] sm:$0xf] %vm974, %v886
  %1016 = vst.msk [vmem:[%s3 + $0xa4] sm:$0xf] %vm974, %v887
  %1017 = vst.msk [vmem:[%s3 + $0xa8] sm:$0xf] %vm974, %v888
  %1018 = vst.msk [vmem:[%s3 + $0xac] sm:$0xf] %vm974, %v889
  %1019 = vst.msk [vmem:[%s3 + $0xb0] sm:$0xf] %vm974, %v890
  %1020 = vst.msk [vmem:[%s3 + $0xb4] sm:$0xf] %vm974, %v891
  %1021 = vst.msk [vmem:[%s3 + $0xb8] sm:$0xf] %vm974, %v892
  %1022 = vst.msk [vmem:[%s3 + $0xbc] sm:$0xf] %vm974, %v893
  %1023 = vst.msk [vmem:[%s3 + $0xc0] sm:$0xf] %vm974, %v894
  %1024 = vst.msk [vmem:[%s3 + $0xc4] sm:$0xf] %vm974, %v895
  %1025 = vst.msk [vmem:[%s3 + $0xc8] sm:$0xf] %vm974, %v896
  %1026 = vst.msk [vmem:[%s3 + $0xcc] sm:$0xf] %vm974, %v897
  %1027 = vst.msk [vmem:[%s3 + $0xd0] sm:$0xf] %vm974, %v898
  %1028 = vst.msk [vmem:[%s3 + $0xd4] sm:$0xf] %vm974, %v899
  %1029 = vst.msk [vmem:[%s3 + $0xd8] sm:$0xf] %vm974, %v900
  %1030 = vst.msk [vmem:[%s3 + $0xdc] sm:$0xf] %vm974, %v901
  %1031 = vst.msk [vmem:[%s3 + $0xe0] sm:$0xf] %vm974, %v902
  %1032 = vst.msk [vmem:[%s3 + $0xe4] sm:$0xf] %vm974, %v903
  %1033 = vst.msk [vmem:[%s3 + $0xe8] sm:$0xf] %vm974, %v904
  %1034 = vst.msk [vmem:[%s3 + $0xec] sm:$0xf] %vm974, %v905
  %1035 = vst.msk [vmem:[%s3 + $0xf0] sm:$0xf] %vm974, %v906
  %1036 = vst.msk [vmem:[%s3 + $0xf4] sm:$0xf] %vm974, %v907
  %1037 = vst.msk [vmem:[%s3 + $0xf8] sm:$0xf] %vm974, %v908
  %1038 = vst.msk [vmem:[%s3 + $0xfc] sm:$0xf] %vm974, %v909
  // Predicated region
  $region14: #{model_forward.18} parent=0 // pred_check
    _
  $region15: #{model_forward.18} parent=0 // pred_check_branch
    %1040 = sbr.rel (0) target = $region17
  $region16: #{model_forward.18} parent=0 // pred_region
    _
  $region17: #{model_forward.18} parent=0 // pred_fallthru
    _
  // Predicated region
  $region18: #{model_forward.18} parent=0 // pred_check
    _
  $region19: #{model_forward.18} parent=0 // pred_check_branch
    %1042 = sbr.rel (0) target = $region21
  $region20: #{model_forward.18} parent=0 // pred_region
    _
  $region21: #{model_forward.18} parent=0 // pred_fallthru
    _

// kernel: model_forward.19
$region0: #{model_forward.19}
  #allocation0 [shape = 'u32[]', space=smem, size = 0x4, offset = 0x4, fixed_abs, tag = 'smem constant byte address 0x4 - core index']
  #allocation1 [shape = 'u32[144,128]{1,0:T(1,128)}', space=vmem, size = 0x12000, scoped, tag = 'internal scratch']
  %s0 = inlined_call_operand.vmem [shape: bf16[128,72], index: 0, kind: input, shape index: {}]
  %s1 = inlined_call_operand.vmem [shape: bf16[72,16], index: 1, kind: input, shape index: {}]
  %s2 = inlined_call_operand.vmem [shape: f32[1,16], index: 2, kind: input, shape index: {}]
  %s3 = inlined_call_operand.vmem [shape: bf16[128,16], index: 3, kind: output, shape index: {}]
  %s4 = sld [smem:[#allocation0]]
  $region22: #{model_forward.19} parent=0
    _
  %s6 = ssub.s32 1, %s4
  %s7 = scalar_select 0, %s6, %s4
  // Predicated region
  $region2: #{model_forward.19} parent=0 // pred_check
    _
  $region3: #{model_forward.19} parent=0 // pred_check_branch
    %9 = sbr.rel (0) target = $region5
  $region4: #{model_forward.19} parent=0 // pred_region
    _
  $region5: #{model_forward.19} parent=0 // pred_fallthru
    _
  // Predicated region
  $region6: #{model_forward.19} parent=0 // pred_check
    _
  $region7: #{model_forward.19} parent=0 // pred_check_branch
    %11 = sbr.rel (0) target = $region9
  $region8: #{model_forward.19} parent=0 // pred_region
    _
  $region9: #{model_forward.19} parent=0 // pred_fallthru
    _
  // Predicated region
  $region10: #{model_forward.19} parent=0 // pred_check
    _
  $region11: #{model_forward.19} parent=0 // pred_check_branch
    %13 = sbr.rel (0) target = $region13
  $region12: #{model_forward.19} parent=0 // pred_region
    _
  $region13: #{model_forward.19} parent=0 // pred_fallthru
    _
  %v15 = vld [vmem:[%s0] sm:$0xf]
  %v16 = vld [vmem:[%s0 + $0x4] sm:$0xf]
  %v17 = vld [vmem:[%s0 + $0x8] sm:$0xf]
  %v18 = vld [vmem:[%s0 + $0xc] sm:$0xf]
  %v19 = vld [vmem:[%s0 + $0x10] sm:$0xf]
  %v20 = vld [vmem:[%s0 + $0x14] sm:$0xf]
  %v21 = vld [vmem:[%s0 + $0x18] sm:$0xf]
  %v22 = vld [vmem:[%s0 + $0x1c] sm:$0xf]
  %v23 = vld [vmem:[%s0 + $0x20] sm:$0xf]
  %v24 = vld [vmem:[%s0 + $0x24] sm:$0xf]
  %v25 = vld [vmem:[%s0 + $0x28] sm:$0xf]
  %v26 = vld [vmem:[%s0 + $0x2c] sm:$0xf]
  %v27 = vld [vmem:[%s0 + $0x30] sm:$0xf]
  %v28 = vld [vmem:[%s0 + $0x34] sm:$0xf]
  %v29 = vld [vmem:[%s0 + $0x38] sm:$0xf]
  %v30 = vld [vmem:[%s0 + $0x3c] sm:$0xf]
  %v31 = vld [vmem:[%s1] sm:$0xf]
  %v32 = vld [vmem:[%s1 + $0x4] sm:$0xf]
  %v33 = vld [vmem:[%s1 + $0x8] sm:$0xf]
  %v34 = vld [vmem:[%s1 + $0xc] sm:$0xf]
  %v35 = vld [vmem:[%s1 + $0x10] sm:$0xf]
  %v36 = vld [vmem:[%s1 + $0x14] sm:$0xf]
  %v37 = vld [vmem:[%s1 + $0x18] sm:$0xf]
  %v38 = vld [vmem:[%s1 + $0x1c] sm:$0xf]
  %v39 = vld [vmem:[%s1 + $0x20] sm:$0xf]
  %v40 = vld [vmem:[%s2] sm:$0x1]
  %v42 = vlaneseq
  %v43 = vshrl.u32 %v42, 7
  %v44 = vsub.s32 0, %v43
  %v45 = vrot.slane %v40, %v44
  %v63 = vunpack.c.l.b16 %v15
  %v64 = vunpack.c.l.b16 %v16
  %v65 = vunpack.c.l.b16 %v17
  %v66 = vunpack.c.l.b16 %v18
  %v67 = vunpack.c.l.b16 %v19
  %v68 = vunpack.c.l.b16 %v20
  %v69 = vunpack.c.l.b16 %v21
  %v70 = vunpack.c.l.b16 %v22
  %v71 = vunpack.c.l.b16 %v23
  %v72 = vunpack.c.l.b16 %v24
  %v73 = vunpack.c.l.b16 %v25
  %v74 = vunpack.c.l.b16 %v26
  %v75 = vunpack.c.l.b16 %v27
  %v76 = vunpack.c.l.b16 %v28
  %v77 = vunpack.c.l.b16 %v29
  %v78 = vunpack.c.l.b16 %v30
  %v79 = vpack.c.b16 %v64, %v63
  %v80 = vpack.c.b16 %v66, %v65
  %v81 = vpack.c.b16 %v68, %v67
  %v82 = vpack.c.b16 %v70, %v69
  %v83 = vpack.c.b16 %v72, %v71
  %v84 = vpack.c.b16 %v74, %v73
  %v85 = vpack.c.b16 %v76, %v75
  %v86 = vpack.c.b16 %v78, %v77
  %v96 = vunpack.c.l.b16 %v31
  %v97 = vunpack.c.l.b16 %v32
  %v98 = vunpack.c.l.b16 %v33
  %v99 = vunpack.c.l.b16 %v34
  %v100 = vunpack.c.l.b16 %v35
  %v101 = vunpack.c.l.b16 %v36
  %v102 = vunpack.c.l.b16 %v37
  %v103 = vunpack.c.l.b16 %v38
  %v104 = vunpack.c.l.b16 %v39
  %v105 = vpack.c.b16 %v97, %v96
  %v106 = vpack.c.b16 %v99, %v98
  %v107 = vpack.c.b16 %v101, %v100
  %v108 = vpack.c.b16 %v103, %v102
  %v109 = vpack.c.b16 %v104, %v104
  %vm114 = vcmask 588800
  %v116 = vsel %vm114, %v79, 0
  %v119 = vsel %vm114, %v80, 0
  %v122 = vsel %vm114, %v81, 0
  %v125 = vsel %vm114, %v82, 0
  %v128 = vsel %vm114, %v83, 0
  %v131 = vsel %vm114, %v84, 0
  %v134 = vsel %vm114, %v85, 0
  %v137 = vsel %vm114, %v86, 0
  %vm139 = vcmask 1043456
  %v141 = vsel %vm139, %v109, 0
  %143 = vmatprep.subr.bf16.mxu0 0
  %144 = vmatpush1.bf16.msra.mxu0 %v105
  %145 = vmatprep.subr.bf16.mxu0 0
  %146 = vmatpush1.bf16.msra.mxu0 %v106
  %147 = vmatprep.subr.bf16.mxu0 0
  %148 = vmatpush1.bf16.msra.mxu0 %v107
  %149 = vmatprep.subr.bf16.mxu0 0
  %150 = vmatpush1.bf16.msra.mxu0 %v108
  %151 = vmatprep.subr.bf16.mxu0 0
  %152 = vmatpush1.bf16.msra.mxu0 %v141
  %153 = vmatprep.subr.bf16.mxu0 0
  %154 = vmatpush1.bf16.msra.mxu0 0
  %155 = vmatprep.subr.bf16.mxu0 0
  %156 = vmatpush1.bf16.msra.mxu0 0
  %157 = vmatprep.subr.bf16.mxu0 0
  %158 = vmatpush1.bf16.msra.mxu0 0
  %159 = vmatprep.subr.bf16.mxu0 0
  %160 = vmatpush1.bf16.msra.mxu0 0
  %161 = vmatprep.subr.bf16.mxu0 0
  %162 = vmatpush1.bf16.msra.mxu0 0
  %163 = vmatprep.subr.bf16.mxu0 0
  %164 = vmatpush1.bf16.msra.mxu0 0
  %165 = vmatprep.subr.bf16.mxu0 0
  %166 = vmatpush1.bf16.msra.mxu0 0
  %167 = vmatprep.subr.bf16.mxu0 0
  %168 = vmatpush1.bf16.msra.mxu0 0
  %169 = vmatprep.subr.bf16.mxu0 0
  %170 = vmatpush1.bf16.msra.mxu0 0
  %171 = vmatprep.subr.bf16.mxu0 0
  %172 = vmatpush1.bf16.msra.mxu0 0
  %173 = vmatprep.subr.bf16.mxu0 0
  %174 = vmatpush1.bf16.msra.mxu0 0
  %175 = vmatprep.mubr.bf16.mxu0 0
  %176 = vmatmul.mubr.bf16.gmra.mrb[0].mxu0 %v116
  %v177 = vpop.f32.mrb[0].mxu0
  %v178 = vadd.f32 %v45, %v177
  %v179 = vpop.f32.mrb[0].mxu0
  %v180 = vpop.f32.mrb[0].mxu0
  %v181 = vadd.f32 %v45, %v180
  %v182 = vpop.f32.mrb[0].mxu0
  %183 = vmatprep.mubr.bf16.mxu0 0
  %184 = vmatmul.mubr.bf16.gmra.mrb[0].mxu0 %v119
  %v185 = vpop.f32.mrb[0].mxu0
  %v186 = vadd.f32 %v45, %v185
  %v187 = vpop.f32.mrb[0].mxu0
  %v188 = vpop.f32.mrb[0].mxu0
  %v189 = vadd.f32 %v45, %v188
  %v190 = vpop.f32.mrb[0].mxu0
  %191 = vmatprep.mubr.bf16.mxu0 0
  %192 = vmatmul.mubr.bf16.gmra.mrb[0].mxu0 %v122
  %v193 = vpop.f32.mrb[0].mxu0
  %v194 = vadd.f32 %v45, %v193
  %v195 = vpop.f32.mrb[0].mxu0
  %v196 = vpop.f32.mrb[0].mxu0
  %v197 = vadd.f32 %v45, %v196
  %v198 = vpop.f32.mrb[0].mxu0
  %199 = vmatprep.mubr.bf16.mxu0 0
  %200 = vmatmul.mubr.bf16.gmra.mrb[0].mxu0 %v125
  %v201 = vpop.f32.mrb[0].mxu0
  %v202 = vadd.f32 %v45, %v201
  %v203 = vpop.f32.mrb[0].mxu0
  %v204 = vpop.f32.mrb[0].mxu0
  %v205 = vadd.f32 %v45, %v204
  %v206 = vpop.f32.mrb[0].mxu0
  %207 = vmatprep.mubr.bf16.mxu0 0
  %208 = vmatmul.mubr.bf16.gmra.mrb[0].mxu0 %v128
  %v209 = vpop.f32.mrb[0].mxu0
  %v210 = vadd.f32 %v45, %v209
  %v211 = vpop.f32.mrb[0].mxu0
  %v212 = vpop.f32.mrb[0].mxu0
  %v213 = vadd.f32 %v45, %v212
  %v214 = vpop.f32.mrb[0].mxu0
  %215 = vmatprep.mubr.bf16.mxu0 0
  %216 = vmatmul.mubr.bf16.gmra.mrb[0].mxu0 %v131
  %v217 = vpop.f32.mrb[0].mxu0
  %v218 = vadd.f32 %v45, %v217
  %v219 = vpop.f32.mrb[0].mxu0
  %v220 = vpop.f32.mrb[0].mxu0
  %v221 = vadd.f32 %v45, %v220
  %v222 = vpop.f32.mrb[0].mxu0
  %223 = vmatprep.mubr.bf16.mxu0 0
  %224 = vmatmul.mubr.bf16.gmra.mrb[0].mxu0 %v134
  %v225 = vpop.f32.mrb[0].mxu0
  %v226 = vadd.f32 %v45, %v225
  %v227 = vpop.f32.mrb[0].mxu0
  %v228 = vpop.f32.mrb[0].mxu0
  %v229 = vadd.f32 %v45, %v228
  %v230 = vpop.f32.mrb[0].mxu0
  %231 = vmatprep.mubr.bf16.mxu0 0
  %232 = vmatmul.mubr.bf16.gmra.mrb[0].mxu0 %v137
  %v233 = vpop.f32.mrb[0].mxu0
  %v234 = vadd.f32 %v45, %v233
  %v235 = vpop.f32.mrb[0].mxu0
  %v236 = vpop.f32.mrb[0].mxu0
  %v237 = vadd.f32 %v45, %v236
  %v238 = vpop.f32.mrb[0].mxu0
  %239 = vdwg.mxu0
  %v240 = vmax.f32 %v178, 0.0
  %v241 = vmax.f32 %v181, 0.0
  %v242 = vmax.f32 %v186, 0.0
  %v243 = vmax.f32 %v189, 0.0
  %v244 = vmax.f32 %v194, 0.0
  %v245 = vmax.f32 %v197, 0.0
  %v246 = vmax.f32 %v202, 0.0
  %v247 = vmax.f32 %v205, 0.0
  %v248 = vmax.f32 %v210, 0.0
  %v249 = vmax.f32 %v213, 0.0
  %v250 = vmax.f32 %v218, 0.0
  %v251 = vmax.f32 %v221, 0.0
  %v252 = vmax.f32 %v226, 0.0
  %v253 = vmax.f32 %v229, 0.0
  %v254 = vmax.f32 %v234, 0.0
  %v255 = vmax.f32 %v237, 0.0
  %v256 = vpack.c.bf16 %v241, %v240
  %v257 = vpack.c.bf16 %v243, %v242
  %v258 = vpack.c.bf16 %v245, %v244
  %v259 = vpack.c.bf16 %v247, %v246
  %v260 = vpack.c.bf16 %v249, %v248
  %v261 = vpack.c.bf16 %v251, %v250
  %v262 = vpack.c.bf16 %v253, %v252
  %v263 = vpack.c.bf16 %v255, %v254
  %v272 = vunpack.c.l.b16 %v256
  %v273 = vunpack.c.h.b16 %v256
  %v274 = vunpack.c.l.b16 %v257
  %v275 = vunpack.c.h.b16 %v257
  %v276 = vunpack.c.l.b16 %v258
  %v277 = vunpack.c.h.b16 %v258
  %v278 = vunpack.c.l.b16 %v259
  %v279 = vunpack.c.h.b16 %v259
  %v280 = vunpack.c.l.b16 %v260
  %v281 = vunpack.c.h.b16 %v260
  %v282 = vunpack.c.l.b16 %v261
  %v283 = vunpack.c.h.b16 %v261
  %v284 = vunpack.c.l.b16 %v262
  %v285 = vunpack.c.h.b16 %v262
  %v286 = vunpack.c.l.b16 %v263
  %v287 = vunpack.c.h.b16 %v263
  %v288 = vpack.c.b16 %v272, %v272
  %v289 = vpack.c.b16 %v273, %v273
  %v290 = vpack.c.b16 %v274, %v274
  %v291 = vpack.c.b16 %v275, %v275
  %v292 = vpack.c.b16 %v276, %v276
  %v293 = vpack.c.b16 %v277, %v277
  %v294 = vpack.c.b16 %v278, %v278
  %v295 = vpack.c.b16 %v279, %v279
  %v296 = vpack.c.b16 %v280, %v280
  %v297 = vpack.c.b16 %v281, %v281
  %v298 = vpack.c.b16 %v282, %v282
  %v299 = vpack.c.b16 %v283, %v283
  %v300 = vpack.c.b16 %v284, %v284
  %v301 = vpack.c.b16 %v285, %v285
  %v302 = vpack.c.b16 %v286, %v286
  %v303 = vpack.c.b16 %v287, %v287
  %vm320 = vcmask 125952
  %321 = vst.msk [vmem:[%s3] sm:$0xf] %vm320, %v288
  %322 = vst.msk [vmem:[%s3 + $0x4] sm:$0xf] %vm320, %v289
  %323 = vst.msk [vmem:[%s3 + $0x8] sm:$0xf] %vm320, %v290
  %324 = vst.msk [vmem:[%s3 + $0xc] sm:$0xf] %vm320, %v291
  %325 = vst.msk [vmem:[%s3 + $0x10] sm:$0xf] %vm320, %v292
  %326 = vst.msk [vmem:[%s3 + $0x14] sm:$0xf] %vm320, %v293
  %327 = vst.msk [vmem:[%s3 + $0x18] sm:$0xf] %vm320, %v294
  %328 = vst.msk [vmem:[%s3 + $0x1c] sm:$0xf] %vm320, %v295
  %329 = vst.msk [vmem:[%s3 + $0x20] sm:$0xf] %vm320, %v296
  %330 = vst.msk [vmem:[%s3 + $0x24] sm:$0xf] %vm320, %v297
  %331 = vst.msk [vmem:[%s3 + $0x28] sm:$0xf] %vm320, %v298
  %332 = vst.msk [vmem:[%s3 + $0x2c] sm:$0xf] %vm320, %v299
  %333 = vst.msk [vmem:[%s3 + $0x30] sm:$0xf] %vm320, %v300
  %334 = vst.msk [vmem:[%s3 + $0x34] sm:$0xf] %vm320, %v301
  %335 = vst.msk [vmem:[%s3 + $0x38] sm:$0xf] %vm320, %v302
  %336 = vst.msk [vmem:[%s3 + $0x3c] sm:$0xf] %vm320, %v303
  // Predicated region
  $region14: #{model_forward.19} parent=0 // pred_check
    _
  $region15: #{model_forward.19} parent=0 // pred_check_branch
    %338 = sbr.rel (0) target = $region17
  $region16: #{model_forward.19} parent=0 // pred_region
    _
  $region17: #{model_forward.19} parent=0 // pred_fallthru
    _
  // Predicated region
  $region18: #{model_forward.19} parent=0 // pred_check
    _
  $region19: #{model_forward.19} parent=0 // pred_check_branch
    %340 = sbr.rel (0) target = $region21
  $region20: #{model_forward.19} parent=0 // pred_region
    _
  $region21: #{model_forward.19} parent=0 // pred_fallthru
    _

// kernel: model_forward.20
$region0: #{model_forward.20}
  #allocation0 [shape = 'u32[]', space=smem, size = 0x4, offset = 0x4, fixed_abs, tag = 'smem constant byte address 0x4 - core index']
  #allocation1 [shape = 'u32[144,128]{1,0:T(1,128)}', space=vmem, size = 0x12000, scoped, tag = 'internal scratch']
  %s0 = inlined_call_operand.vmem [shape: bf16[32,144], index: 0, kind: input, shape index: {}]
  %s1 = inlined_call_operand.vmem [shape: bf16[144,32], index: 1, kind: input, shape index: {}]
  %s2 = inlined_call_operand.vmem [shape: f32[1,32], index: 2, kind: input, shape index: {}]
  %s3 = inlined_call_operand.vmem [shape: bf16[32,32], index: 3, kind: output, shape index: {}]
  %s4 = sld [smem:[#allocation0]]
  $region22: #{model_forward.20} parent=0
    _
  %s6 = ssub.s32 1, %s4
  %s7 = scalar_select 0, %s6, %s4
  // Predicated region
  $region2: #{model_forward.20} parent=0 // pred_check
    _
  $region3: #{model_forward.20} parent=0 // pred_check_branch
    %9 = sbr.rel (0) target = $region5
  $region4: #{model_forward.20} parent=0 // pred_region
    _
  $region5: #{model_forward.20} parent=0 // pred_fallthru
    _
  // Predicated region
  $region6: #{model_forward.20} parent=0 // pred_check
    _
  $region7: #{model_forward.20} parent=0 // pred_check_branch
    %11 = sbr.rel (0) target = $region9
  $region8: #{model_forward.20} parent=0 // pred_region
    _
  $region9: #{model_forward.20} parent=0 // pred_fallthru
    _
  // Predicated region
  $region10: #{model_forward.20} parent=0 // pred_check
    _
  $region11: #{model_forward.20} parent=0 // pred_check_branch
    %13 = sbr.rel (0) target = $region13
  $region12: #{model_forward.20} parent=0 // pred_region
    _
  $region13: #{model_forward.20} parent=0 // pred_fallthru
    _
  %v15 = vld [vmem:[%s0] sm:$0xff]
  %v16 = vld [vmem:[%s0 + $0x8] sm:$0xff]
  %v17 = vld [vmem:[%s0 + $0x10] sm:$0xff]
  %v18 = vld [vmem:[%s0 + $0x18] sm:$0xff]
  %v19 = vld [vmem:[%s1] sm:$0xf]
  %v20 = vld [vmem:[%s1 + $0x4] sm:$0xf]
  %v21 = vld [vmem:[%s1 + $0x8] sm:$0xf]
  %v22 = vld [vmem:[%s1 + $0xc] sm:$0xf]
  %v23 = vld [vmem:[%s1 + $0x10] sm:$0xf]
  %v24 = vld [vmem:[%s1 + $0x14] sm:$0xf]
  %v25 = vld [vmem:[%s1 + $0x18] sm:$0xf]
  %v26 = vld [vmem:[%s1 + $0x1c] sm:$0xf]
  %v27 = vld [vmem:[%s1 + $0x20] sm:$0xf]
  %v28 = vld [vmem:[%s1 + $0x24] sm:$0xf]
  %v29 = vld [vmem:[%s1 + $0x28] sm:$0xf]
  %v30 = vld [vmem:[%s1 + $0x2c] sm:$0xf]
  %v31 = vld [vmem:[%s1 + $0x30] sm:$0xf]
  %v32 = vld [vmem:[%s1 + $0x34] sm:$0xf]
  %v33 = vld [vmem:[%s1 + $0x38] sm:$0xf]
  %v34 = vld [vmem:[%s1 + $0x3c] sm:$0xf]
  %v35 = vld [vmem:[%s1 + $0x40] sm:$0xf]
  %v36 = vld [vmem:[%s1 + $0x44] sm:$0xf]
  %v37 = vld [vmem:[%s2] sm:$0x1]
  %v39 = vlaneseq
  %v40 = vshrl.u32 %v39, 7
  %v41 = vsub.s32 0, %v40
  %v42 = vrot.slane %v37, %v41
  %v48 = vunpack.c.l.b16 %v15
  %v49 = vunpack.c.h.b16 %v15
  %v50 = vunpack.c.l.b16 %v16
  %v51 = vunpack.c.h.b16 %v16
  %v52 = vunpack.c.l.b16 %v17
  %v53 = vunpack.c.h.b16 %v17
  %v54 = vunpack.c.l.b16 %v18
  %v55 = vunpack.c.h.b16 %v18
  %v56 = vpack.c.b16 %v50, %v48
  %v57 = vpack.c.b16 %v51, %v49
  %v58 = vpack.c.b16 %v54, %v52
  %v59 = vpack.c.b16 %v55, %v53
  %v80 = vunpack.c.l.b16 %v19
  %v81 = vunpack.c.l.b16 %v20
  %v82 = vunpack.c.l.b16 %v21
  %v83 = vunpack.c.l.b16 %v22
  %v84 = vunpack.c.l.b16 %v23
  %v85 = vunpack.c.l.b16 %v24
  %v86 = vunpack.c.l.b16 %v25
  %v87 = vunpack.c.l.b16 %v26
  %v88 = vunpack.c.l.b16 %v27
  %v89 = vunpack.c.l.b16 %v28
  %v90 = vunpack.c.l.b16 %v29
  %v91 = vunpack.c.l.b16 %v30
  %v92 = vunpack.c.l.b16 %v31
  %v93 = vunpack.c.l.b16 %v32
  %v94 = vunpack.c.l.b16 %v33
  %v95 = vunpack.c.l.b16 %v34
  %v96 = vunpack.c.l.b16 %v35
  %v97 = vunpack.c.l.b16 %v36
  %v98 = vpack.c.b16 %v81, %v80
  %v99 = vpack.c.b16 %v83, %v82
  %v100 = vpack.c.b16 %v85, %v84
  %v101 = vpack.c.b16 %v87, %v86
  %v102 = vpack.c.b16 %v89, %v88
  %v103 = vpack.c.b16 %v91, %v90
  %v104 = vpack.c.b16 %v93, %v92
  %v105 = vpack.c.b16 %v95, %v94
  %v106 = vpack.c.b16 %v97, %v96
  %vm116 = vcmask 130048
  %v118 = vsel %vm116, %v57, 0
  %v121 = vsel %vm116, %v59, 0
  %123 = vmatprep.subr.bf16.mxu0 0
  %124 = vmatpush1.bf16.msra.mxu0 %v98
  %125 = vmatprep.subr.bf16.mxu0 0
  %126 = vmatpush1.bf16.msra.mxu0 %v99
  %127 = vmatprep.subr.bf16.mxu0 0
  %128 = vmatpush1.bf16.msra.mxu0 %v100
  %129 = vmatprep.subr.bf16.mxu0 0
  %130 = vmatpush1.bf16.msra.mxu0 %v101
  %131 = vmatprep.subr.bf16.mxu0 0
  %132 = vmatpush1.bf16.msra.mxu0 %v102
  %133 = vmatprep.subr.bf16.mxu0 0
  %134 = vmatpush1.bf16.msra.mxu0 %v103
  %135 = vmatprep.subr.bf16.mxu0 0
  %136 = vmatpush1.bf16.msra.mxu0 %v104
  %137 = vmatprep.subr.bf16.mxu0 0
  %138 = vmatpush1.bf16.msra.mxu0 %v105
  %139 = vmatprep.subr.bf16.mxu0 0
  %140 = vmatpush1.bf16.msra.mxu0 %v106
  %141 = vmatprep.subr.bf16.mxu0 0
  %142 = vmatpush1.bf16.msra.mxu0 0
  %143 = vmatprep.subr.bf16.mxu0 0
  %144 = vmatpush1.bf16.msra.mxu0 0
  %145 = vmatprep.subr.bf16.mxu0 0
  %146 = vmatpush1.bf16.msra.mxu0 0
  %147 = vmatprep.subr.bf16.mxu0 0
  %148 = vmatpush1.bf16.msra.mxu0 0
  %149 = vmatprep.subr.bf16.mxu0 0
  %150 = vmatpush1.bf16.msra.mxu0 0
  %151 = vmatprep.subr.bf16.mxu0 0
  %152 = vmatpush1.bf16.msra.mxu0 0
  %153 = vmatprep.subr.bf16.mxu0 0
  %154 = vmatpush1.bf16.msra.mxu0 0
  %155 = vmatprep.mubr.bf16.mxu0 %v118
  %156 = vmatmul.mubr.bf16.gmra.mrb[0].mxu0 %v56
  %v157 = vpop.f32.mrb[0].mxu0
  %v158 = vadd.f32 %v42, %v157
  %v159 = vpop.f32.mrb[0].mxu0
  %v160 = vpop.f32.mrb[0].mxu0
  %v161 = vadd.f32 %v42, %v160
  %v162 = vpop.f32.mrb[0].mxu0
  %163 = vmatprep.mubr.bf16.mxu0 %v121
  %164 = vmatmul.mubr.bf16.gmra.mrb[0].mxu0 %v58
  %v165 = vpop.f32.mrb[0].mxu0
  %v166 = vadd.f32 %v42, %v165
  %v167 = vpop.f32.mrb[0].mxu0
  %v168 = vpop.f32.mrb[0].mxu0
  %v169 = vadd.f32 %v42, %v168
  %v170 = vpop.f32.mrb[0].mxu0
  %171 = vdwg.mxu0
  %v172 = vmax.f32 %v158, 0.0
  %v173 = vmax.f32 %v161, 0.0
  %v174 = vmax.f32 %v166, 0.0
  %v175 = vmax.f32 %v169, 0.0
  %v176 = vpack.c.bf16 %v173, %v172
  %v177 = vpack.c.bf16 %v175, %v174
  %v180 = vunpack.c.l.b16 %v176
  %v181 = vunpack.c.h.b16 %v176
  %v182 = vunpack.c.l.b16 %v177
  %v183 = vunpack.c.h.b16 %v177
  %v184 = vpack.c.b16 %v180, %v180
  %v185 = vpack.c.b16 %v181, %v181
  %v186 = vpack.c.b16 %v182, %v182
  %v187 = vpack.c.b16 %v183, %v183
  %vm192 = vcmask 257024
  %193 = vst.msk [vmem:[%s3] sm:$0xf] %vm192, %v184
  %194 = vst.msk [vmem:[%s3 + $0x4] sm:$0xf] %vm192, %v185
  %195 = vst.msk [vmem:[%s3 + $0x8] sm:$0xf] %vm192, %v186
  %196 = vst.msk [vmem:[%s3 + $0xc] sm:$0xf] %vm192, %v187
  // Predicated region
  $region14: #{model_forward.20} parent=0 // pred_check
    _
  $region15: #{model_forward.20} parent=0 // pred_check_branch
    %198 = sbr.rel (0) target = $region17
  $region16: #{model_forward.20} parent=0 // pred_region
    _
  $region17: #{model_forward.20} parent=0 // pred_fallthru
    _
  // Predicated region
  $region18: #{model_forward.20} parent=0 // pred_check
    _
  $region19: #{model_forward.20} parent=0 // pred_check_branch
    %200 = sbr.rel (0) target = $region21
  $region20: #{model_forward.20} parent=0 // pred_region
    _
  $region21: #{model_forward.20} parent=0 // pred_fallthru
    _

// kernel: model_forward.24
$region0: #{model_forward.24}
  #allocation0 [shape = 'u32[]', space=smem, size = 0x4, offset = 0x4, fixed_abs, tag = 'smem constant byte address 0x4 - core index']
  #allocation1 [shape = 'u32[144,128]{1,0:T(1,128)}', space=vmem, size = 0x12000, scoped, tag = 'internal scratch']
  %s0 = inlined_call_operand.vmem [shape: bf16[32,32], index: 0, kind: input, shape index: {}]
  %s1 = inlined_call_operand.vmem [shape: bf16[32,16], index: 1, kind: input, shape index: {}]
  %s2 = inlined_call_operand.vmem [shape: f32[1,16], index: 2, kind: input, shape index: {}]
  %s3 = inlined_call_operand.vmem [shape: bf16[32,16], index: 3, kind: output, shape index: {}]
  %s4 = sld [smem:[#allocation0]]
  $region22: #{model_forward.24} parent=0
    _
  %s6 = ssub.s32 1, %s4
  %s7 = scalar_select 0, %s6, %s4
  // Predicated region
  $region2: #{model_forward.24} parent=0 // pred_check
    _
  $region3: #{model_forward.24} parent=0 // pred_check_branch
    %9 = sbr.rel (0) target = $region5
  $region4: #{model_forward.24} parent=0 // pred_region
    _
  $region5: #{model_forward.24} parent=0 // pred_fallthru
    _
  // Predicated region
  $region6: #{model_forward.24} parent=0 // pred_check
    _
  $region7: #{model_forward.24} parent=0 // pred_check_branch
    %11 = sbr.rel (0) target = $region9
  $region8: #{model_forward.24} parent=0 // pred_region
    _
  $region9: #{model_forward.24} parent=0 // pred_fallthru
    _
  // Predicated region
  $region10: #{model_forward.24} parent=0 // pred_check
    _
  $region11: #{model_forward.24} parent=0 // pred_check_branch
    %13 = sbr.rel (0) target = $region13
  $region12: #{model_forward.24} parent=0 // pred_region
    _
  $region13: #{model_forward.24} parent=0 // pred_fallthru
    _
  %v15 = vld [vmem:[%s0] sm:$0xf]
  %v16 = vld [vmem:[%s0 + $0x4] sm:$0xf]
  %v17 = vld [vmem:[%s0 + $0x8] sm:$0xf]
  %v18 = vld [vmem:[%s0 + $0xc] sm:$0xf]
  %v19 = vld [vmem:[%s1] sm:$0xf]
  %v20 = vld [vmem:[%s1 + $0x4] sm:$0xf]
  %v21 = vld [vmem:[%s1 + $0x8] sm:$0xf]
  %v22 = vld [vmem:[%s1 + $0xc] sm:$0xf]
  %v23 = vld [vmem:[%s2] sm:$0x1]
  %v25 = vlaneseq
  %v26 = vshrl.u32 %v25, 7
  %v27 = vsub.s32 0, %v26
  %v28 = vrot.slane %v23, %v27
  %v34 = vunpack.c.l.b16 %v15
  %v35 = vunpack.c.l.b16 %v16
  %v36 = vunpack.c.l.b16 %v17
  %v37 = vunpack.c.l.b16 %v18
  %v38 = vpack.c.b16 %v35, %v34
  %v39 = vpack.c.b16 %v37, %v36
  %v44 = vunpack.c.l.b16 %v19
  %v45 = vunpack.c.l.b16 %v20
  %v46 = vunpack.c.l.b16 %v21
  %v47 = vunpack.c.l.b16 %v22
  %v48 = vpack.c.b16 %v45, %v44
  %v49 = vpack.c.b16 %v47, %v46
  %vm52 = vcmask 261120
  %v54 = vsel %vm52, %v38, 0
  %v57 = vsel %vm52, %v39, 0
  %59 = vmatprep.subr.bf16.mxu0 0
  %60 = vmatpush1.bf16.msra.mxu0 %v48
  %61 = vmatprep.subr.bf16.mxu0 0
  %62 = vmatpush1.bf16.msra.mxu0 %v49
  %63 = vmatprep.subr.bf16.mxu0 0
  %64 = vmatpush1.bf16.msra.mxu0 0
  %65 = vmatprep.subr.bf16.mxu0 0
  %66 = vmatpush1.bf16.msra.mxu0 0
  %67 = vmatprep.subr.bf16.mxu0 0
  %68 = vmatpush1.bf16.msra.mxu0 0
  %69 = vmatprep.subr.bf16.mxu0 0
  %70 = vmatpush1.bf16.msra.mxu0 0
  %71 = vmatprep.subr.bf16.mxu0 0
  %72 = vmatpush1.bf16.msra.mxu0 0
  %73 = vmatprep.subr.bf16.mxu0 0
  %74 = vmatpush1.bf16.msra.mxu0 0
  %75 = vmatprep.subr.bf16.mxu0 0
  %76 = vmatpush1.bf16.msra.mxu0 0
  %77 = vmatprep.subr.bf16.mxu0 0
  %78 = vmatpush1.bf16.msra.mxu0 0
  %79 = vmatprep.subr.bf16.mxu0 0
  %80 = vmatpush1.bf16.msra.mxu0 0
  %81 = vmatprep.subr.bf16.mxu0 0
  %82 = vmatpush1.bf16.msra.mxu0 0
  %83 = vmatprep.subr.bf16.mxu0 0
  %84 = vmatpush1.bf16.msra.mxu0 0
  %85 = vmatprep.subr.bf16.mxu0 0
  %86 = vmatpush1.bf16.msra.mxu0 0
  %87 = vmatprep.subr.bf16.mxu0 0
  %88 = vmatpush1.bf16.msra.mxu0 0
  %89 = vmatprep.subr.bf16.mxu0 0
  %90 = vmatpush1.bf16.msra.mxu0 0
  %91 = vmatprep.mubr.bf16.mxu0 0
  %92 = vmatmul.mubr.bf16.gmra.mrb[0].mxu0 %v54
  %v93 = vpop.f32.mrb[0].mxu0
  %v94 = vadd.f32 %v28, %v93
  %v95 = vpop.f32.mrb[0].mxu0
  %v96 = vpop.f32.mrb[0].mxu0
  %v97 = vadd.f32 %v28, %v96
  %v98 = vpop.f32.mrb[0].mxu0
  %99 = vmatprep.mubr.bf16.mxu0 0
  %100 = vmatmul.mubr.bf16.gmra.mrb[0].mxu0 %v57
  %v101 = vpop.f32.mrb[0].mxu0
  %v102 = vadd.f32 %v28, %v101
  %v103 = vpop.f32.mrb[0].mxu0
  %v104 = vpop.f32.mrb[0].mxu0
  %v105 = vadd.f32 %v28, %v104
  %v106 = vpop.f32.mrb[0].mxu0
  %107 = vdwg.mxu0
  %v108 = vpack.c.bf16 %v97, %v94
  %v109 = vpack.c.bf16 %v105, %v102
  %v112 = vunpack.c.l.b16 %v108
  %v113 = vunpack.c.h.b16 %v108
  %v114 = vunpack.c.l.b16 %v109
  %v115 = vunpack.c.h.b16 %v109
  %v116 = vpack.c.b16 %v112, %v112
  %v117 = vpack.c.b16 %v113, %v113
  %v118 = vpack.c.b16 %v114, %v114
  %v119 = vpack.c.b16 %v115, %v115
  %vm124 = vcmask 125952
  %125 = vst.msk [vmem:[%s3] sm:$0xf] %vm124, %v116
  %126 = vst.msk [vmem:[%s3 + $0x4] sm:$0xf] %vm124, %v117
  %127 = vst.msk [vmem:[%s3 + $0x8] sm:$0xf] %vm124, %v118
  %128 = vst.msk [vmem:[%s3 + $0xc] sm:$0xf] %vm124, %v119
  // Predicated region
  $region14: #{model_forward.24} parent=0 // pred_check
    _
  $region15: #{model_forward.24} parent=0 // pred_check_branch
    %130 = sbr.rel (0) target = $region17
  $region16: #{model_forward.24} parent=0 // pred_region
    _
  $region17: #{model_forward.24} parent=0 // pred_fallthru
    _
  // Predicated region
  $region18: #{model_forward.24} parent=0 // pred_check
    _
  $region19: #{model_forward.24} parent=0 // pred_check_branch
    %132 = sbr.rel (0) target = $region21
  $region20: #{model_forward.24} parent=0 // pred_region
    _
  $region21: #{model_forward.24} parent=0 // pred_fallthru
    _

// kernel: model_forward.21
$region0: #{model_forward.21}
  #allocation0 [shape = 'u32[]', space=smem, size = 0x4, offset = 0x4, fixed_abs, tag = 'smem constant byte address 0x4 - core index']
  #allocation1 [shape = 'u32[144,128]{1,0:T(1,128)}', space=vmem, size = 0x12000, scoped, tag = 'internal scratch']
  %s0 = inlined_call_operand.vmem [shape: bf16[8,288], index: 0, kind: input, shape index: {}]
  %s1 = inlined_call_operand.vmem [shape: bf16[288,64], index: 1, kind: input, shape index: {}]
  %s2 = inlined_call_operand.vmem [shape: f32[1,64], index: 2, kind: input, shape index: {}]
  %s3 = inlined_call_operand.vmem [shape: bf16[8,64], index: 3, kind: output, shape index: {}]
  %s4 = sld [smem:[#allocation0]]
  $region22: #{model_forward.21} parent=0
    _
  %s6 = ssub.s32 1, %s4
  %s7 = scalar_select 0, %s6, %s4
  // Predicated region
  $region2: #{model_forward.21} parent=0 // pred_check
    _
  $region3: #{model_forward.21} parent=0 // pred_check_branch
    %9 = sbr.rel (0) target = $region5
  $region4: #{model_forward.21} parent=0 // pred_region
    _
  $region5: #{model_forward.21} parent=0 // pred_fallthru
    _
  // Predicated region
  $region6: #{model_forward.21} parent=0 // pred_check
    _
  $region7: #{model_forward.21} parent=0 // pred_check_branch
    %11 = sbr.rel (0) target = $region9
  $region8: #{model_forward.21} parent=0 // pred_region
    _
  $region9: #{model_forward.21} parent=0 // pred_fallthru
    _
  // Predicated region
  $region10: #{model_forward.21} parent=0 // pred_check
    _
  $region11: #{model_forward.21} parent=0 // pred_check_branch
    %13 = sbr.rel (0) target = $region13
  $region12: #{model_forward.21} parent=0 // pred_region
    _
  $region13: #{model_forward.21} parent=0 // pred_fallthru
    _
  %v15 = vld [vmem:[%s0] sm:$0xff]
  %v16 = vld [vmem:[%s0 + $0x8] sm:$0xf]
  %v17 = vld [vmem:[%s1] sm:$0xf]
  %v18 = vld [vmem:[%s1 + $0x4] sm:$0xf]
  %v19 = vld [vmem:[%s1 + $0x8] sm:$0xf]
  %v20 = vld [vmem:[%s1 + $0xc] sm:$0xf]
  %v21 = vld [vmem:[%s1 + $0x10] sm:$0xf]
  %v22 = vld [vmem:[%s1 + $0x14] sm:$0xf]
  %v23 = vld [vmem:[%s1 + $0x18] sm:$0xf]
  %v24 = vld [vmem:[%s1 + $0x1c] sm:$0xf]
  %v25 = vld [vmem:[%s1 + $0x20] sm:$0xf]
  %v26 = vld [vmem:[%s1 + $0x24] sm:$0xf]
  %v27 = vld [vmem:[%s1 + $0x28] sm:$0xf]
  %v28 = vld [vmem:[%s1 + $0x2c] sm:$0xf]
  %v29 = vld [vmem:[%s1 + $0x30] sm:$0xf]
  %v30 = vld [vmem:[%s1 + $0x34] sm:$0xf]
  %v31 = vld [vmem:[%s1 + $0x38] sm:$0xf]
  %v32 = vld [vmem:[%s1 + $0x3c] sm:$0xf]
  %v33 = vld [vmem:[%s1 + $0x40] sm:$0xf]
  %v34 = vld [vmem:[%s1 + $0x44] sm:$0xf]
  %v35 = vld [vmem:[%s1 + $0x48] sm:$0xf]
  %v36 = vld [vmem:[%s1 + $0x4c] sm:$0xf]
  %v37 = vld [vmem:[%s1 + $0x50] sm:$0xf]
  %v38 = vld [vmem:[%s1 + $0x54] sm:$0xf]
  %v39 = vld [vmem:[%s1 + $0x58] sm:$0xf]
  %v40 = vld [vmem:[%s1 + $0x5c] sm:$0xf]
  %v41 = vld [vmem:[%s1 + $0x60] sm:$0xf]
  %v42 = vld [vmem:[%s1 + $0x64] sm:$0xf]
  %v43 = vld [vmem:[%s1 + $0x68] sm:$0xf]
  %v44 = vld [vmem:[%s1 + $0x6c] sm:$0xf]
  %v45 = vld [vmem:[%s1 + $0x70] sm:$0xf]
  %v46 = vld [vmem:[%s1 + $0x74] sm:$0xf]
  %v47 = vld [vmem:[%s1 + $0x78] sm:$0xf]
  %v48 = vld [vmem:[%s1 + $0x7c] sm:$0xf]
  %v49 = vld [vmem:[%s1 + $0x80] sm:$0xf]
  %v50 = vld [vmem:[%s1 + $0x84] sm:$0xf]
  %v51 = vld [vmem:[%s1 + $0x88] sm:$0xf]
  %v52 = vld [vmem:[%s1 + $0x8c] sm:$0xf]
  %v53 = vld [vmem:[%s2] sm:$0x1]
  %v55 = vlaneseq
  %v56 = vshrl.u32 %v55, 7
  %v57 = vsub.s32 0, %v56
  %v58 = vrot.slane %v53, %v57
  %v62 = vunpack.c.l.b16 %v15
  %v63 = vunpack.c.h.b16 %v15
  %v64 = vunpack.c.l.b16 %v16
  %v65 = vpack.c.b16 %v62, %v62
  %v66 = vpack.c.b16 %v63, %v63
  %v67 = vpack.c.b16 %v64, %v64
  %v106 = vunpack.c.l.b16 %v17
  %v107 = vunpack.c.l.b16 %v18
  %v108 = vunpack.c.l.b16 %v19
  %v109 = vunpack.c.l.b16 %v20
  %v110 = vunpack.c.l.b16 %v21
  %v111 = vunpack.c.l.b16 %v22
  %v112 = vunpack.c.l.b16 %v23
  %v113 = vunpack.c.l.b16 %v24
  %v114 = vunpack.c.l.b16 %v25
  %v115 = vunpack.c.l.b16 %v26
  %v116 = vunpack.c.l.b16 %v27
  %v117 = vunpack.c.l.b16 %v28
  %v118 = vunpack.c.l.b16 %v29
  %v119 = vunpack.c.l.b16 %v30
  %v120 = vunpack.c.l.b16 %v31
  %v121 = vunpack.c.l.b16 %v32
  %v122 = vunpack.c.l.b16 %v33
  %v123 = vunpack.c.l.b16 %v34
  %v124 = vunpack.c.l.b16 %v35
  %v125 = vunpack.c.l.b16 %v36
  %v126 = vunpack.c.l.b16 %v37
  %v127 = vunpack.c.l.b16 %v38
  %v128 = vunpack.c.l.b16 %v39
  %v129 = vunpack.c.l.b16 %v40
  %v130 = vunpack.c.l.b16 %v41
  %v131 = vunpack.c.l.b16 %v42
  %v132 = vunpack.c.l.b16 %v43
  %v133 = vunpack.c.l.b16 %v44
  %v134 = vunpack.c.l.b16 %v45
  %v135 = vunpack.c.l.b16 %v46
  %v136 = vunpack.c.l.b16 %v47
  %v137 = vunpack.c.l.b16 %v48
  %v138 = vunpack.c.l.b16 %v49
  %v139 = vunpack.c.l.b16 %v50
  %v140 = vunpack.c.l.b16 %v51
  %v141 = vunpack.c.l.b16 %v52
  %v142 = vpack.c.b16 %v107, %v106
  %v143 = vpack.c.b16 %v109, %v108
  %v144 = vpack.c.b16 %v111, %v110
  %v145 = vpack.c.b16 %v113, %v112
  %v146 = vpack.c.b16 %v115, %v114
  %v147 = vpack.c.b16 %v117, %v116
  %v148 = vpack.c.b16 %v119, %v118
  %v149 = vpack.c.b16 %v121, %v120
  %v150 = vpack.c.b16 %v123, %v122
  %v151 = vpack.c.b16 %v125, %v124
  %v152 = vpack.c.b16 %v127, %v126
  %v153 = vpack.c.b16 %v129, %v128
  %v154 = vpack.c.b16 %v131, %v130
  %v155 = vpack.c.b16 %v133, %v132
  %v156 = vpack.c.b16 %v135, %v134
  %v157 = vpack.c.b16 %v137, %v136
  %v158 = vpack.c.b16 %v139, %v138
  %v159 = vpack.c.b16 %v141, %v140
  %vm178 = vcmask 261120
  %v180 = vsel %vm178, %v67, 0
  %182 = vmatprep.subr.bf16.mxu0 0
  %183 = vmatpush1.bf16.msra.mxu0 %v142
  %184 = vmatprep.subr.bf16.mxu0 0
  %185 = vmatpush1.bf16.msra.mxu0 %v143
  %186 = vmatprep.subr.bf16.mxu0 0
  %187 = vmatpush1.bf16.msra.mxu0 %v144
  %188 = vmatprep.subr.bf16.mxu0 0
  %189 = vmatpush1.bf16.msra.mxu0 %v145
  %190 = vmatprep.subr.bf16.mxu0 0
  %191 = vmatpush1.bf16.msra.mxu0 %v146
  %192 = vmatprep.subr.bf16.mxu0 0
  %193 = vmatpush1.bf16.msra.mxu0 %v147
  %194 = vmatprep.subr.bf16.mxu0 0
  %195 = vmatpush1.bf16.msra.mxu0 %v148
  %196 = vmatprep.subr.bf16.mxu0 0
  %197 = vmatpush1.bf16.msra.mxu0 %v149
  %198 = vmatprep.subr.bf16.mxu0 0
  %199 = vmatpush1.bf16.msra.mxu0 %v150
  %200 = vmatprep.subr.bf16.mxu0 0
  %201 = vmatpush1.bf16.msra.mxu0 %v151
  %202 = vmatprep.subr.bf16.mxu0 0
  %203 = vmatpush1.bf16.msra.mxu0 %v152
  %204 = vmatprep.subr.bf16.mxu0 0
  %205 = vmatpush1.bf16.msra.mxu0 %v153
  %206 = vmatprep.subr.bf16.mxu0 0
  %207 = vmatpush1.bf16.msra.mxu0 %v154
  %208 = vmatprep.subr.bf16.mxu0 0
  %209 = vmatpush1.bf16.msra.mxu0 %v155
  %210 = vmatprep.subr.bf16.mxu0 0
  %211 = vmatpush1.bf16.msra.mxu0 %v156
  %212 = vmatprep.subr.bf16.mxu0 0
  %213 = vmatpush1.bf16.msra.mxu0 %v157
  %214 = vmatprep.mubr.bf16.mxu0 %v66
  %215 = vmatmul.mubr.bf16.gmra.mrb[0].mxu0 %v65
  %v216 = vpop.f32.mrb[0].mxu0
  %v217 = vadd.f32 %v58, %v216
  %v218 = vpop.f32.mrb[0].mxu0
  %v219 = vpop.f32.mrb[0].mxu0
  %v220 = vpop.f32.mrb[0].mxu0
  %221 = vdwg.mxu0
  %222 = vmatprep.subr.bf16.mxu0 0
  %223 = vmatpush1.bf16.msra.mxu0 %v158
  %224 = vmatprep.subr.bf16.mxu0 0
  %225 = vmatpush1.bf16.msra.mxu0 %v159
  %226 = vmatprep.subr.bf16.mxu0 0
  %227 = vmatpush1.bf16.msra.mxu0 0
  %228 = vmatprep.subr.bf16.mxu0 0
  %229 = vmatpush1.bf16.msra.mxu0 0
  %230 = vmatprep.subr.bf16.mxu0 0
  %231 = vmatpush1.bf16.msra.mxu0 0
  %232 = vmatprep.subr.bf16.mxu0 0
  %233 = vmatpush1.bf16.msra.mxu0 0
  %234 = vmatprep.subr.bf16.mxu0 0
  %235 = vmatpush1.bf16.msra.mxu0 0
  %236 = vmatprep.subr.bf16.mxu0 0
  %237 = vmatpush1.bf16.msra.mxu0 0
  %238 = vmatprep.subr.bf16.mxu0 0
  %239 = vmatpush1.bf16.msra.mxu0 0
  %240 = vmatprep.subr.bf16.mxu0 0
  %241 = vmatpush1.bf16.msra.mxu0 0
  %242 = vmatprep.subr.bf16.mxu0 0
  %243 = vmatpush1.bf16.msra.mxu0 0
  %244 = vmatprep.subr.bf16.mxu0 0
  %245 = vmatpush1.bf16.msra.mxu0 0
  %246 = vmatprep.subr.bf16.mxu0 0
  %247 = vmatpush1.bf16.msra.mxu0 0
  %248 = vmatprep.subr.bf16.mxu0 0
  %249 = vmatpush1.bf16.msra.mxu0 0
  %250 = vmatprep.subr.bf16.mxu0 0
  %251 = vmatpush1.bf16.msra.mxu0 0
  %252 = vmatprep.subr.bf16.mxu0 0
  %253 = vmatpush1.bf16.msra.mxu0 0
  %254 = vmatprep.mubr.bf16.mxu0 0
  %255 = vmatmul.mubr.bf16.gmra.mrb[0].mxu0 %v180
  %v256 = vpop.f32.mrb[0].mxu0
  %v257 = vadd.f32 %v217, %v256
  %v258 = vpop.f32.mrb[0].mxu0
  %v259 = vpop.f32.mrb[0].mxu0
  %v260 = vpop.f32.mrb[0].mxu0
  %261 = vdwg.mxu0
  %v262 = vmax.f32 %v257, 0.0
  %v263 = vpack.c.bf16 %v262, %v262
  %vm264 = vcmask 519168
  %265 = vst.msk [vmem:[%s3] sm:$0xf] %vm264, %v263
  // Predicated region
  $region14: #{model_forward.21} parent=0 // pred_check
    _
  $region15: #{model_forward.21} parent=0 // pred_check_branch
    %267 = sbr.rel (0) target = $region17
  $region16: #{model_forward.21} parent=0 // pred_region
    _
  $region17: #{model_forward.21} parent=0 // pred_fallthru
    _
  // Predicated region
  $region18: #{model_forward.21} parent=0 // pred_check
    _
  $region19: #{model_forward.21} parent=0 // pred_check_branch
    %269 = sbr.rel (0) target = $region21
  $region20: #{model_forward.21} parent=0 // pred_region
    _
  $region21: #{model_forward.21} parent=0 // pred_fallthru
    _

// kernel: model_forward.25
$region0: #{model_forward.25}
  #allocation0 [shape = 'u32[]', space=smem, size = 0x4, offset = 0x4, fixed_abs, tag = 'smem constant byte address 0x4 - core index']
  #allocation1 [shape = 'u32[144,128]{1,0:T(1,128)}', space=vmem, size = 0x12000, scoped, tag = 'internal scratch']
  %s0 = inlined_call_operand.vmem [shape: bf16[8,64], index: 0, kind: input, shape index: {}]
  %s1 = inlined_call_operand.vmem [shape: bf16[64,16], index: 1, kind: input, shape index: {}]
  %s2 = inlined_call_operand.vmem [shape: f32[1,16], index: 2, kind: input, shape index: {}]
  %s3 = inlined_call_operand.vmem [shape: bf16[8,16], index: 3, kind: output, shape index: {}]
  %s4 = sld [smem:[#allocation0]]
  $region22: #{model_forward.25} parent=0
    _
  %s6 = ssub.s32 1, %s4
  %s7 = scalar_select 0, %s6, %s4
  // Predicated region
  $region2: #{model_forward.25} parent=0 // pred_check
    _
  $region3: #{model_forward.25} parent=0 // pred_check_branch
    %9 = sbr.rel (0) target = $region5
  $region4: #{model_forward.25} parent=0 // pred_region
    _
  $region5: #{model_forward.25} parent=0 // pred_fallthru
    _
  // Predicated region
  $region6: #{model_forward.25} parent=0 // pred_check
    _
  $region7: #{model_forward.25} parent=0 // pred_check_branch
    %11 = sbr.rel (0) target = $region9
  $region8: #{model_forward.25} parent=0 // pred_region
    _
  $region9: #{model_forward.25} parent=0 // pred_fallthru
    _
  // Predicated region
  $region10: #{model_forward.25} parent=0 // pred_check
    _
  $region11: #{model_forward.25} parent=0 // pred_check_branch
    %13 = sbr.rel (0) target = $region13
  $region12: #{model_forward.25} parent=0 // pred_region
    _
  $region13: #{model_forward.25} parent=0 // pred_fallthru
    _
  %v15 = vld [vmem:[%s0] sm:$0xf]
  %v16 = vld [vmem:[%s1] sm:$0xf]
  %v17 = vld [vmem:[%s1 + $0x4] sm:$0xf]
  %v18 = vld [vmem:[%s1 + $0x8] sm:$0xf]
  %v19 = vld [vmem:[%s1 + $0xc] sm:$0xf]
  %v20 = vld [vmem:[%s1 + $0x10] sm:$0xf]
  %v21 = vld [vmem:[%s1 + $0x14] sm:$0xf]
  %v22 = vld [vmem:[%s1 + $0x18] sm:$0xf]
  %v23 = vld [vmem:[%s1 + $0x1c] sm:$0xf]
  %v24 = vld [vmem:[%s2] sm:$0x1]
  %v26 = vlaneseq
  %v27 = vshrl.u32 %v26, 7
  %v28 = vsub.s32 0, %v27
  %v29 = vrot.slane %v24, %v28
  %v39 = vunpack.c.l.b16 %v16
  %v40 = vunpack.c.l.b16 %v17
  %v41 = vunpack.c.l.b16 %v18
  %v42 = vunpack.c.l.b16 %v19
  %v43 = vunpack.c.l.b16 %v20
  %v44 = vunpack.c.l.b16 %v21
  %v45 = vunpack.c.l.b16 %v22
  %v46 = vunpack.c.l.b16 %v23
  %v47 = vpack.c.b16 %v40, %v39
  %v48 = vpack.c.b16 %v42, %v41
  %v49 = vpack.c.b16 %v44, %v43
  %v50 = vpack.c.b16 %v46, %v45
  %vm55 = vcmask 523264
  %v57 = vsel %vm55, %v15, 0
  %59 = vmatprep.subr.bf16.mxu0 0
  %60 = vmatpush1.bf16.msra.mxu0 %v47
  %61 = vmatprep.subr.bf16.mxu0 0
  %62 = vmatpush1.bf16.msra.mxu0 %v48
  %63 = vmatprep.subr.bf16.mxu0 0
  %64 = vmatpush1.bf16.msra.mxu0 %v49
  %65 = vmatprep.subr.bf16.mxu0 0
  %66 = vmatpush1.bf16.msra.mxu0 %v50
  %67 = vmatprep.subr.bf16.mxu0 0
  %68 = vmatpush1.bf16.msra.mxu0 0
  %69 = vmatprep.subr.bf16.mxu0 0
  %70 = vmatpush1.bf16.msra.mxu0 0
  %71 = vmatprep.subr.bf16.mxu0 0
  %72 = vmatpush1.bf16.msra.mxu0 0
  %73 = vmatprep.subr.bf16.mxu0 0
  %74 = vmatpush1.bf16.msra.mxu0 0
  %75 = vmatprep.subr.bf16.mxu0 0
  %76 = vmatpush1.bf16.msra.mxu0 0
  %77 = vmatprep.subr.bf16.mxu0 0
  %78 = vmatpush1.bf16.msra.mxu0 0
  %79 = vmatprep.subr.bf16.mxu0 0
  %80 = vmatpush1.bf16.msra.mxu0 0
  %81 = vmatprep.subr.bf16.mxu0 0
  %82 = vmatpush1.bf16.msra.mxu0 0
  %83 = vmatprep.subr.bf16.mxu0 0
  %84 = vmatpush1.bf16.msra.mxu0 0
  %85 = vmatprep.subr.bf16.mxu0 0
  %86 = vmatpush1.bf16.msra.mxu0 0
  %87 = vmatprep.subr.bf16.mxu0 0
  %88 = vmatpush1.bf16.msra.mxu0 0
  %89 = vmatprep.subr.bf16.mxu0 0
  %90 = vmatpush1.bf16.msra.mxu0 0
  %91 = vmatprep.mubr.bf16.mxu0 0
  %92 = vmatmul.mubr.bf16.gmra.mrb[0].mxu0 %v57
  %v93 = vpop.f32.mrb[0].mxu0
  %v94 = vadd.f32 %v29, %v93
  %v95 = vpop.f32.mrb[0].mxu0
  %v96 = vpop.f32.mrb[0].mxu0
  %v97 = vpop.f32.mrb[0].mxu0
  %98 = vdwg.mxu0
  %v99 = vpack.c.bf16 %v94, %v94
  %vm100 = vcmask 125952
  %101 = vst.msk [vmem:[%s3] sm:$0xf] %vm100, %v99
  // Predicated region
  $region14: #{model_forward.25} parent=0 // pred_check
    _
  $region15: #{model_forward.25} parent=0 // pred_check_branch
    %103 = sbr.rel (0) target = $region17
  $region16: #{model_forward.25} parent=0 // pred_region
    _
  $region17: #{model_forward.25} parent=0 // pred_fallthru
    _
  // Predicated region
  $region18: #{model_forward.25} parent=0 // pred_check
    _
  $region19: #{model_forward.25} parent=0 // pred_check_branch
    %105 = sbr.rel (0) target = $region21
  $region20: #{model_forward.25} parent=0 // pred_region
    _
  $region21: #{model_forward.25} parent=0 // pred_fallthru
    _

// kernel: model_forward.26
$region0: #{model_forward.26}
  #allocation0 [shape = 'u32[]', space=smem, size = 0x4, offset = 0x4, fixed_abs, tag = 'smem constant byte address 0x4 - core index']
  #allocation1 [shape = 'u32[144,128]{1,0:T(1,128)}', space=vmem, size = 0x12000, scoped, tag = 'internal scratch']
  %s0 = inlined_call_operand.vmem [shape: bf16[4,2,4,16], index: 0, kind: input, shape index: {}]
  %s1 = inlined_call_operand.vmem [shape: bf16[4,4,16], index: 1, kind: input, shape index: {}]
  %s2 = inlined_call_operand.vmem [shape: bf16[4,2,4,16], index: 2, kind: output, shape index: {}]
  %s3 = sld [smem:[#allocation0]]
  $region18: #{model_forward.26} parent=0
    _
  %s5 = ssub.s32 1, %s3
  %s6 = scalar_select 0, %s5, %s3
  // Predicated region
  $region2: #{model_forward.26} parent=0 // pred_check
    _
  $region3: #{model_forward.26} parent=0 // pred_check_branch
    %8 = sbr.rel (0) target = $region5
  $region4: #{model_forward.26} parent=0 // pred_region
    _
  $region5: #{model_forward.26} parent=0 // pred_fallthru
    _
  // Predicated region
  $region6: #{model_forward.26} parent=0 // pred_check
    _
  $region7: #{model_forward.26} parent=0 // pred_check_branch
    %10 = sbr.rel (0) target = $region9
  $region8: #{model_forward.26} parent=0 // pred_region
    _
  $region9: #{model_forward.26} parent=0 // pred_fallthru
    _
  %v11 = vld [vmem:[%s1] sm:$0x3]
  %v12 = vld [vmem:[%s1 + $0x2] sm:$0x3]
  %v13 = vld [vmem:[%s1 + $0x4] sm:$0x3]
  %v14 = vld [vmem:[%s1 + $0x6] sm:$0x3]
  %v15 = vunpack.c.l.bf16 %v11
  %v16 = vunpack.c.l.bf16 %v12
  %v17 = vunpack.c.l.bf16 %v13
  %v18 = vunpack.c.l.bf16 %v14
  %v19 = vld [vmem:[%s0] sm:$0x3]
  %v20 = vld [vmem:[%s0 + $0x2] sm:$0x3]
  %v21 = vld [vmem:[%s0 + $0x4] sm:$0x3]
  %v22 = vld [vmem:[%s0 + $0x6] sm:$0x3]
  %v23 = vld [vmem:[%s0 + $0x8] sm:$0x3]
  %v24 = vld [vmem:[%s0 + $0xa] sm:$0x3]
  %v25 = vld [vmem:[%s0 + $0xc] sm:$0x3]
  %v26 = vld [vmem:[%s0 + $0xe] sm:$0x3]
  %v27 = vunpack.c.l.bf16 %v19
  %v28 = vunpack.c.l.bf16 %v20
  %v29 = vunpack.c.l.bf16 %v21
  %v30 = vunpack.c.l.bf16 %v22
  %v31 = vunpack.c.l.bf16 %v23
  %v32 = vunpack.c.l.bf16 %v24
  %v33 = vunpack.c.l.bf16 %v25
  %v34 = vunpack.c.l.bf16 %v26
  %v35 = vadd.f32 %v27, %v15
  %v36 = vadd.f32 %v28, %v15
  %v37 = vadd.f32 %v29, %v16
  %v38 = vadd.f32 %v30, %v16
  %v39 = vadd.f32 %v31, %v17
  %v40 = vadd.f32 %v32, %v17
  %v41 = vadd.f32 %v33, %v18
  %v42 = vadd.f32 %v34, %v18
  %v43 = vpack.c.bf16 %v35, %v35
  %v44 = vpack.c.bf16 %v36, %v36
  %v45 = vpack.c.bf16 %v37, %v37
  %v46 = vpack.c.bf16 %v38, %v38
  %v47 = vpack.c.bf16 %v39, %v39
  %v48 = vpack.c.bf16 %v40, %v40
  %v49 = vpack.c.bf16 %v41, %v41
  %v50 = vpack.c.bf16 %v42, %v42
  %vm51 = vcmask 123904
  %52 = vst.msk [vmem:[%s2] sm:$0x3] %vm51, %v43
  %53 = vst.msk [vmem:[%s2 + $0x2] sm:$0x3] %vm51, %v44
  %54 = vst.msk [vmem:[%s2 + $0x4] sm:$0x3] %vm51, %v45
  %55 = vst.msk [vmem:[%s2 + $0x6] sm:$0x3] %vm51, %v46
  %56 = vst.msk [vmem:[%s2 + $0x8] sm:$0x3] %vm51, %v47
  %57 = vst.msk [vmem:[%s2 + $0xa] sm:$0x3] %vm51, %v48
  %58 = vst.msk [vmem:[%s2 + $0xc] sm:$0x3] %vm51, %v49
  %59 = vst.msk [vmem:[%s2 + $0xe] sm:$0x3] %vm51, %v50
  // Predicated region
  $region10: #{model_forward.26} parent=0 // pred_check
    _
  $region11: #{model_forward.26} parent=0 // pred_check_branch
    %61 = sbr.rel (0) target = $region13
  $region12: #{model_forward.26} parent=0 // pred_region
    _
  $region13: #{model_forward.26} parent=0 // pred_fallthru
    _
  // Predicated region
  $region14: #{model_forward.26} parent=0 // pred_check
    _
  $region15: #{model_forward.26} parent=0 // pred_check_branch
    %63 = sbr.rel (0) target = $region17
  $region16: #{model_forward.26} parent=0 // pred_region
    _
  $region17: #{model_forward.26} parent=0 // pred_fallthru
    _

// kernel: model_forward.27
$region0: #{model_forward.27}
  #allocation0 [shape = 'u32[]', space=smem, size = 0x4, offset = 0x4, fixed_abs, tag = 'smem constant byte address 0x4 - core index']
  #allocation1 [shape = 'u32[144,128]{1,0:T(1,128)}', space=vmem, size = 0x12000, scoped, tag = 'internal scratch']
  %s0 = inlined_call_operand.vmem [shape: bf16[8,2,8,16], index: 0, kind: input, shape index: {}]
  %s1 = inlined_call_operand.vmem [shape: bf16[8,8,16], index: 1, kind: input, shape index: {}]
  %s2 = inlined_call_operand.vmem [shape: bf16[8,2,8,16], index: 2, kind: output, shape index: {}]
  %s3 = sld [smem:[#allocation0]]
  $region18: #{model_forward.27} parent=0
    _
  %s5 = ssub.s32 1, %s3
  %s6 = scalar_select 0, %s5, %s3
  // Predicated region
  $region2: #{model_forward.27} parent=0 // pred_check
    _
  $region3: #{model_forward.27} parent=0 // pred_check_branch
    %8 = sbr.rel (0) target = $region5
  $region4: #{model_forward.27} parent=0 // pred_region
    _
  $region5: #{model_forward.27} parent=0 // pred_fallthru
    _
  // Predicated region
  $region6: #{model_forward.27} parent=0 // pred_check
    _
  $region7: #{model_forward.27} parent=0 // pred_check_branch
    %10 = sbr.rel (0) target = $region9
  $region8: #{model_forward.27} parent=0 // pred_region
    _
  $region9: #{model_forward.27} parent=0 // pred_fallthru
    _
  %v11 = vld [vmem:[%s1] sm:$0xf]
  %v12 = vld [vmem:[%s1 + $0x4] sm:$0xf]
  %v13 = vld [vmem:[%s1 + $0x8] sm:$0xf]
  %v14 = vld [vmem:[%s1 + $0xc] sm:$0xf]
  %v15 = vld [vmem:[%s1 + $0x10] sm:$0xf]
  %v16 = vld [vmem:[%s1 + $0x14] sm:$0xf]
  %v17 = vld [vmem:[%s1 + $0x18] sm:$0xf]
  %v18 = vld [vmem:[%s1 + $0x1c] sm:$0xf]
  %v19 = vunpack.c.l.bf16 %v11
  %v20 = vunpack.c.l.bf16 %v12
  %v21 = vunpack.c.l.bf16 %v13
  %v22 = vunpack.c.l.bf16 %v14
  %v23 = vunpack.c.l.bf16 %v15
  %v24 = vunpack.c.l.bf16 %v16
  %v25 = vunpack.c.l.bf16 %v17
  %v26 = vunpack.c.l.bf16 %v18
  %v27 = vld [vmem:[%s0] sm:$0xf]
  %v28 = vld [vmem:[%s0 + $0x4] sm:$0xf]
  %v29 = vld [vmem:[%s0 + $0x8] sm:$0xf]
  %v30 = vld [vmem:[%s0 + $0xc] sm:$0xf]
  %v31 = vld [vmem:[%s0 + $0x10] sm:$0xf]
  %v32 = vld [vmem:[%s0 + $0x14] sm:$0xf]
  %v33 = vld [vmem:[%s0 + $0x18] sm:$0xf]
  %v34 = vld [vmem:[%s0 + $0x1c] sm:$0xf]
  %v35 = vld [vmem:[%s0 + $0x20] sm:$0xf]
  %v36 = vld [vmem:[%s0 + $0x24] sm:$0xf]
  %v37 = vld [vmem:[%s0 + $0x28] sm:$0xf]
  %v38 = vld [vmem:[%s0 + $0x2c] sm:$0xf]
  %v39 = vld [vmem:[%s0 + $0x30] sm:$0xf]
  %v40 = vld [vmem:[%s0 + $0x34] sm:$0xf]
  %v41 = vld [vmem:[%s0 + $0x38] sm:$0xf]
  %v42 = vld [vmem:[%s0 + $0x3c] sm:$0xf]
  %v43 = vunpack.c.l.bf16 %v27
  %v44 = vunpack.c.l.bf16 %v28
  %v45 = vunpack.c.l.bf16 %v29
  %v46 = vunpack.c.l.bf16 %v30
  %v47 = vunpack.c.l.bf16 %v31
  %v48 = vunpack.c.l.bf16 %v32
  %v49 = vunpack.c.l.bf16 %v33
  %v50 = vunpack.c.l.bf16 %v34
  %v51 = vunpack.c.l.bf16 %v35
  %v52 = vunpack.c.l.bf16 %v36
  %v53 = vunpack.c.l.bf16 %v37
  %v54 = vunpack.c.l.bf16 %v38
  %v55 = vunpack.c.l.bf16 %v39
  %v56 = vunpack.c.l.bf16 %v40
  %v57 = vunpack.c.l.bf16 %v41
  %v58 = vunpack.c.l.bf16 %v42
  %v59 = vadd.f32 %v43, %v19
  %v60 = vadd.f32 %v44, %v19
  %v61 = vadd.f32 %v45, %v20
  %v62 = vadd.f32 %v46, %v20
  %v63 = vadd.f32 %v47, %v21
  %v64 = vadd.f32 %v48, %v21
  %v65 = vadd.f32 %v49, %v22
  %v66 = vadd.f32 %v50, %v22
  %v67 = vadd.f32 %v51, %v23
  %v68 = vadd.f32 %v52, %v23
  %v69 = vadd.f32 %v53, %v24
  %v70 = vadd.f32 %v54, %v24
  %v71 = vadd.f32 %v55, %v25
  %v72 = vadd.f32 %v56, %v25
  %v73 = vadd.f32 %v57, %v26
  %v74 = vadd.f32 %v58, %v26
  %v75 = vpack.c.bf16 %v59, %v59
  %v76 = vpack.c.bf16 %v60, %v60
  %v77 = vpack.c.bf16 %v61, %v61
  %v78 = vpack.c.bf16 %v62, %v62
  %v79 = vpack.c.bf16 %v63, %v63
  %v80 = vpack.c.bf16 %v64, %v64
  %v81 = vpack.c.bf16 %v65, %v65
  %v82 = vpack.c.bf16 %v66, %v66
  %v83 = vpack.c.bf16 %v67, %v67
  %v84 = vpack.c.bf16 %v68, %v68
  %v85 = vpack.c.bf16 %v69, %v69
  %v86 = vpack.c.bf16 %v70, %v70
  %v87 = vpack.c.bf16 %v71, %v71
  %v88 = vpack.c.bf16 %v72, %v72
  %v89 = vpack.c.bf16 %v73, %v73
  %v90 = vpack.c.bf16 %v74, %v74
  %vm91 = vcmask 125952
  %92 = vst.msk [vmem:[%s2] sm:$0xf] %vm91, %v75
  %93 = vst.msk [vmem:[%s2 + $0x4] sm:$0xf] %vm91, %v76
  %94 = vst.msk [vmem:[%s2 + $0x8] sm:$0xf] %vm91, %v77
  %95 = vst.msk [vmem:[%s2 + $0xc] sm:$0xf] %vm91, %v78
  %96 = vst.msk [vmem:[%s2 + $0x10] sm:$0xf] %vm91, %v79
  %97 = vst.msk [vmem:[%s2 + $0x14] sm:$0xf] %vm91, %v80
  %98 = vst.msk [vmem:[%s2 + $0x18] sm:$0xf] %vm91, %v81
  %99 = vst.msk [vmem:[%s2 + $0x1c] sm:$0xf] %vm91, %v82
  %100 = vst.msk [vmem:[%s2 + $0x20] sm:$0xf] %vm91, %v83
  %101 = vst.msk [vmem:[%s2 + $0x24] sm:$0xf] %vm91, %v84
  %102 = vst.msk [vmem:[%s2 + $0x28] sm:$0xf] %vm91, %v85
  %103 = vst.msk [vmem:[%s2 + $0x2c] sm:$0xf] %vm91, %v86
  %104 = vst.msk [vmem:[%s2 + $0x30] sm:$0xf] %vm91, %v87
  %105 = vst.msk [vmem:[%s2 + $0x34] sm:$0xf] %vm91, %v88
  %106 = vst.msk [vmem:[%s2 + $0x38] sm:$0xf] %vm91, %v89
  %107 = vst.msk [vmem:[%s2 + $0x3c] sm:$0xf] %vm91, %v90
  // Predicated region
  $region10: #{model_forward.27} parent=0 // pred_check
    _
  $region11: #{model_forward.27} parent=0 // pred_check_branch
    %109 = sbr.rel (0) target = $region13
  $region12: #{model_forward.27} parent=0 // pred_region
    _
  $region13: #{model_forward.27} parent=0 // pred_fallthru
    _
  // Predicated region
  $region14: #{model_forward.27} parent=0 // pred_check
    _
  $region15: #{model_forward.27} parent=0 // pred_check_branch
    %111 = sbr.rel (0) target = $region17
  $region16: #{model_forward.27} parent=0 // pred_region
    _
  $region17: #{model_forward.27} parent=0 // pred_fallthru
    _

// kernel: model_forward.23
$region0: #{model_forward.23}
  #allocation0 [shape = 'u32[]', space=smem, size = 0x4, offset = 0x4, fixed_abs, tag = 'smem constant byte address 0x4 - core index']
  #allocation1 [shape = 'u32[144,128]{1,0:T(1,128)}', space=vmem, size = 0x12000, scoped, tag = 'internal scratch']
  %s0 = inlined_call_operand.vmem [shape: bf16[128,16], index: 0, kind: input, shape index: {}]
  %s1 = inlined_call_operand.vmem [shape: bf16[16,16], index: 1, kind: input, shape index: {}]
  %s2 = inlined_call_operand.vmem [shape: f32[1,16], index: 2, kind: input, shape index: {}]
  %s3 = inlined_call_operand.vmem [shape: bf16[128,16], index: 3, kind: output, shape index: {}]
  %s4 = sld [smem:[#allocation0]]
  $region22: #{model_forward.23} parent=0
    _
  %s6 = ssub.s32 1, %s4
  %s7 = scalar_select 0, %s6, %s4
  // Predicated region
  $region2: #{model_forward.23} parent=0 // pred_check
    _
  $region3: #{model_forward.23} parent=0 // pred_check_branch
    %9 = sbr.rel (0) target = $region5
  $region4: #{model_forward.23} parent=0 // pred_region
    _
  $region5: #{model_forward.23} parent=0 // pred_fallthru
    _
  // Predicated region
  $region6: #{model_forward.23} parent=0 // pred_check
    _
  $region7: #{model_forward.23} parent=0 // pred_check_branch
    %11 = sbr.rel (0) target = $region9
  $region8: #{model_forward.23} parent=0 // pred_region
    _
  $region9: #{model_forward.23} parent=0 // pred_fallthru
    _
  // Predicated region
  $region10: #{model_forward.23} parent=0 // pred_check
    _
  $region11: #{model_forward.23} parent=0 // pred_check_branch
    %13 = sbr.rel (0) target = $region13
  $region12: #{model_forward.23} parent=0 // pred_region
    _
  $region13: #{model_forward.23} parent=0 // pred_fallthru
    _
  %v15 = vld [vmem:[%s0] sm:$0xf]
  %v16 = vld [vmem:[%s0 + $0x4] sm:$0xf]
  %v17 = vld [vmem:[%s0 + $0x8] sm:$0xf]
  %v18 = vld [vmem:[%s0 + $0xc] sm:$0xf]
  %v19 = vld [vmem:[%s0 + $0x10] sm:$0xf]
  %v20 = vld [vmem:[%s0 + $0x14] sm:$0xf]
  %v21 = vld [vmem:[%s0 + $0x18] sm:$0xf]
  %v22 = vld [vmem:[%s0 + $0x1c] sm:$0xf]
  %v23 = vld [vmem:[%s0 + $0x20] sm:$0xf]
  %v24 = vld [vmem:[%s0 + $0x24] sm:$0xf]
  %v25 = vld [vmem:[%s0 + $0x28] sm:$0xf]
  %v26 = vld [vmem:[%s0 + $0x2c] sm:$0xf]
  %v27 = vld [vmem:[%s0 + $0x30] sm:$0xf]
  %v28 = vld [vmem:[%s0 + $0x34] sm:$0xf]
  %v29 = vld [vmem:[%s0 + $0x38] sm:$0xf]
  %v30 = vld [vmem:[%s0 + $0x3c] sm:$0xf]
  %v31 = vld [vmem:[%s1] sm:$0xf]
  %v32 = vld [vmem:[%s1 + $0x4] sm:$0xf]
  %v33 = vld [vmem:[%s2] sm:$0x1]
  %v35 = vlaneseq
  %v36 = vshrl.u32 %v35, 7
  %v37 = vsub.s32 0, %v36
  %v38 = vrot.slane %v33, %v37
  %v56 = vunpack.c.l.b16 %v15
  %v57 = vunpack.c.l.b16 %v16
  %v58 = vunpack.c.l.b16 %v17
  %v59 = vunpack.c.l.b16 %v18
  %v60 = vunpack.c.l.b16 %v19
  %v61 = vunpack.c.l.b16 %v20
  %v62 = vunpack.c.l.b16 %v21
  %v63 = vunpack.c.l.b16 %v22
  %v64 = vunpack.c.l.b16 %v23
  %v65 = vunpack.c.l.b16 %v24
  %v66 = vunpack.c.l.b16 %v25
  %v67 = vunpack.c.l.b16 %v26
  %v68 = vunpack.c.l.b16 %v27
  %v69 = vunpack.c.l.b16 %v28
  %v70 = vunpack.c.l.b16 %v29
  %v71 = vunpack.c.l.b16 %v30
  %v72 = vpack.c.b16 %v57, %v56
  %v73 = vpack.c.b16 %v59, %v58
  %v74 = vpack.c.b16 %v61, %v60
  %v75 = vpack.c.b16 %v63, %v62
  %v76 = vpack.c.b16 %v65, %v64
  %v77 = vpack.c.b16 %v67, %v66
  %v78 = vpack.c.b16 %v69, %v68
  %v79 = vpack.c.b16 %v71, %v70
  %v82 = vunpack.c.l.b16 %v31
  %v83 = vunpack.c.l.b16 %v32
  %v84 = vpack.c.b16 %v83, %v82
  %vm86 = vcmask 130048
  %v88 = vsel %vm86, %v72, 0
  %v91 = vsel %vm86, %v73, 0
  %v94 = vsel %vm86, %v74, 0
  %v97 = vsel %vm86, %v75, 0
  %v100 = vsel %vm86, %v76, 0
  %v103 = vsel %vm86, %v77, 0
  %v106 = vsel %vm86, %v78, 0
  %v109 = vsel %vm86, %v79, 0
  %111 = vmatprep.subr.bf16.mxu0 0
  %112 = vmatpush1.bf16.msra.mxu0 %v84
  %113 = vmatprep.subr.bf16.mxu0 0
  %114 = vmatpush1.bf16.msra.mxu0 0
  %115 = vmatprep.subr.bf16.mxu0 0
  %116 = vmatpush1.bf16.msra.mxu0 0
  %117 = vmatprep.subr.bf16.mxu0 0
  %118 = vmatpush1.bf16.msra.mxu0 0
  %119 = vmatprep.subr.bf16.mxu0 0
  %120 = vmatpush1.bf16.msra.mxu0 0
  %121 = vmatprep.subr.bf16.mxu0 0
  %122 = vmatpush1.bf16.msra.mxu0 0
  %123 = vmatprep.subr.bf16.mxu0 0
  %124 = vmatpush1.bf16.msra.mxu0 0
  %125 = vmatprep.subr.bf16.mxu0 0
  %126 = vmatpush1.bf16.msra.mxu0 0
  %127 = vmatprep.subr.bf16.mxu0 0
  %128 = vmatpush1.bf16.msra.mxu0 0
  %129 = vmatprep.subr.bf16.mxu0 0
  %130 = vmatpush1.bf16.msra.mxu0 0
  %131 = vmatprep.subr.bf16.mxu0 0
  %132 = vmatpush1.bf16.msra.mxu0 0
  %133 = vmatprep.subr.bf16.mxu0 0
  %134 = vmatpush1.bf16.msra.mxu0 0
  %135 = vmatprep.subr.bf16.mxu0 0
  %136 = vmatpush1.bf16.msra.mxu0 0
  %137 = vmatprep.subr.bf16.mxu0 0
  %138 = vmatpush1.bf16.msra.mxu0 0
  %139 = vmatprep.subr.bf16.mxu0 0
  %140 = vmatpush1.bf16.msra.mxu0 0
  %141 = vmatprep.subr.bf16.mxu0 0
  %142 = vmatpush1.bf16.msra.mxu0 0
  %143 = vmatprep.mubr.bf16.mxu0 0
  %144 = vmatmul.mubr.bf16.gmra.mrb[0].mxu0 %v88
  %v145 = vpop.f32.mrb[0].mxu0
  %v146 = vadd.f32 %v38, %v145
  %v147 = vpop.f32.mrb[0].mxu0
  %v148 = vpop.f32.mrb[0].mxu0
  %v149 = vadd.f32 %v38, %v148
  %v150 = vpop.f32.mrb[0].mxu0
  %151 = vmatprep.mubr.bf16.mxu0 0
  %152 = vmatmul.mubr.bf16.gmra.mrb[0].mxu0 %v91
  %v153 = vpop.f32.mrb[0].mxu0
  %v154 = vadd.f32 %v38, %v153
  %v155 = vpop.f32.mrb[0].mxu0
  %v156 = vpop.f32.mrb[0].mxu0
  %v157 = vadd.f32 %v38, %v156
  %v158 = vpop.f32.mrb[0].mxu0
  %159 = vmatprep.mubr.bf16.mxu0 0
  %160 = vmatmul.mubr.bf16.gmra.mrb[0].mxu0 %v94
  %v161 = vpop.f32.mrb[0].mxu0
  %v162 = vadd.f32 %v38, %v161
  %v163 = vpop.f32.mrb[0].mxu0
  %v164 = vpop.f32.mrb[0].mxu0
  %v165 = vadd.f32 %v38, %v164
  %v166 = vpop.f32.mrb[0].mxu0
  %167 = vmatprep.mubr.bf16.mxu0 0
  %168 = vmatmul.mubr.bf16.gmra.mrb[0].mxu0 %v97
  %v169 = vpop.f32.mrb[0].mxu0
  %v170 = vadd.f32 %v38, %v169
  %v171 = vpop.f32.mrb[0].mxu0
  %v172 = vpop.f32.mrb[0].mxu0
  %v173 = vadd.f32 %v38, %v172
  %v174 = vpop.f32.mrb[0].mxu0
  %175 = vmatprep.mubr.bf16.mxu0 0
  %176 = vmatmul.mubr.bf16.gmra.mrb[0].mxu0 %v100
  %v177 = vpop.f32.mrb[0].mxu0
  %v178 = vadd.f32 %v38, %v177
  %v179 = vpop.f32.mrb[0].mxu0
  %v180 = vpop.f32.mrb[0].mxu0
  %v181 = vadd.f32 %v38, %v180
  %v182 = vpop.f32.mrb[0].mxu0
  %183 = vmatprep.mubr.bf16.mxu0 0
  %184 = vmatmul.mubr.bf16.gmra.mrb[0].mxu0 %v103
  %v185 = vpop.f32.mrb[0].mxu0
  %v186 = vadd.f32 %v38, %v185
  %v187 = vpop.f32.mrb[0].mxu0
  %v188 = vpop.f32.mrb[0].mxu0
  %v189 = vadd.f32 %v38, %v188
  %v190 = vpop.f32.mrb[0].mxu0
  %191 = vmatprep.mubr.bf16.mxu0 0
  %192 = vmatmul.mubr.bf16.gmra.mrb[0].mxu0 %v106
  %v193 = vpop.f32.mrb[0].mxu0
  %v194 = vadd.f32 %v38, %v193
  %v195 = vpop.f32.mrb[0].mxu0
  %v196 = vpop.f32.mrb[0].mxu0
  %v197 = vadd.f32 %v38, %v196
  %v198 = vpop.f32.mrb[0].mxu0
  %199 = vmatprep.mubr.bf16.mxu0 0
  %200 = vmatmul.mubr.bf16.gmra.mrb[0].mxu0 %v109
  %v201 = vpop.f32.mrb[0].mxu0
  %v202 = vadd.f32 %v38, %v201
  %v203 = vpop.f32.mrb[0].mxu0
  %v204 = vpop.f32.mrb[0].mxu0
  %v205 = vadd.f32 %v38, %v204
  %v206 = vpop.f32.mrb[0].mxu0
  %207 = vdwg.mxu0
  %v208 = vpack.c.bf16 %v149, %v146
  %v209 = vpack.c.bf16 %v157, %v154
  %v210 = vpack.c.bf16 %v165, %v162
  %v211 = vpack.c.bf16 %v173, %v170
  %v212 = vpack.c.bf16 %v181, %v178
  %v213 = vpack.c.bf16 %v189, %v186
  %v214 = vpack.c.bf16 %v197, %v194
  %v215 = vpack.c.bf16 %v205, %v202
  %v224 = vunpack.c.l.b16 %v208
  %v225 = vunpack.c.h.b16 %v208
  %v226 = vunpack.c.l.b16 %v209
  %v227 = vunpack.c.h.b16 %v209
  %v228 = vunpack.c.l.b16 %v210
  %v229 = vunpack.c.h.b16 %v210
  %v230 = vunpack.c.l.b16 %v211
  %v231 = vunpack.c.h.b16 %v211
  %v232 = vunpack.c.l.b16 %v212
  %v233 = vunpack.c.h.b16 %v212
  %v234 = vunpack.c.l.b16 %v213
  %v235 = vunpack.c.h.b16 %v213
  %v236 = vunpack.c.l.b16 %v214
  %v237 = vunpack.c.h.b16 %v214
  %v238 = vunpack.c.l.b16 %v215
  %v239 = vunpack.c.h.b16 %v215
  %v240 = vpack.c.b16 %v224, %v224
  %v241 = vpack.c.b16 %v225, %v225
  %v242 = vpack.c.b16 %v226, %v226
  %v243 = vpack.c.b16 %v227, %v227
  %v244 = vpack.c.b16 %v228, %v228
  %v245 = vpack.c.b16 %v229, %v229
  %v246 = vpack.c.b16 %v230, %v230
  %v247 = vpack.c.b16 %v231, %v231
  %v248 = vpack.c.b16 %v232, %v232
  %v249 = vpack.c.b16 %v233, %v233
  %v250 = vpack.c.b16 %v234, %v234
  %v251 = vpack.c.b16 %v235, %v235
  %v252 = vpack.c.b16 %v236, %v236
  %v253 = vpack.c.b16 %v237, %v237
  %v254 = vpack.c.b16 %v238, %v238
  %v255 = vpack.c.b16 %v239, %v239
  %vm272 = vcmask 125952
  %273 = vst.msk [vmem:[%s3] sm:$0xf] %vm272, %v240
  %274 = vst.msk [vmem:[%s3 + $0x4] sm:$0xf] %vm272, %v241
  %275 = vst.msk [vmem:[%s3 + $0x8] sm:$0xf] %vm272, %v242
  %276 = vst.msk [vmem:[%s3 + $0xc] sm:$0xf] %vm272, %v243
  %277 = vst.msk [vmem:[%s3 + $0x10] sm:$0xf] %vm272, %v244
  %278 = vst.msk [vmem:[%s3 + $0x14] sm:$0xf] %vm272, %v245
  %279 = vst.msk [vmem:[%s3 + $0x18] sm:$0xf] %vm272, %v246
  %280 = vst.msk [vmem:[%s3 + $0x1c] sm:$0xf] %vm272, %v247
  %281 = vst.msk [vmem:[%s3 + $0x20] sm:$0xf] %vm272, %v248
  %282 = vst.msk [vmem:[%s3 + $0x24] sm:$0xf] %vm272, %v249
  %283 = vst.msk [vmem:[%s3 + $0x28] sm:$0xf] %vm272, %v250
  %284 = vst.msk [vmem:[%s3 + $0x2c] sm:$0xf] %vm272, %v251
  %285 = vst.msk [vmem:[%s3 + $0x30] sm:$0xf] %vm272, %v252
  %286 = vst.msk [vmem:[%s3 + $0x34] sm:$0xf] %vm272, %v253
  %287 = vst.msk [vmem:[%s3 + $0x38] sm:$0xf] %vm272, %v254
  %288 = vst.msk [vmem:[%s3 + $0x3c] sm:$0xf] %vm272, %v255
  // Predicated region
  $region14: #{model_forward.23} parent=0 // pred_check
    _
  $region15: #{model_forward.23} parent=0 // pred_check_branch
    %290 = sbr.rel (0) target = $region17
  $region16: #{model_forward.23} parent=0 // pred_region
    _
  $region17: #{model_forward.23} parent=0 // pred_fallthru
    _
  // Predicated region
  $region18: #{model_forward.23} parent=0 // pred_check
    _
  $region19: #{model_forward.23} parent=0 // pred_check_branch
    %292 = sbr.rel (0) target = $region21
  $region20: #{model_forward.23} parent=0 // pred_region
    _
  $region21: #{model_forward.23} parent=0 // pred_fallthru
    _

// kernel: model_forward.22
$region0: #{model_forward.22}
  #allocation0 [shape = 'u32[]', space=smem, size = 0x4, offset = 0x4, fixed_abs, tag = 'smem constant byte address 0x4 - core index']
  #allocation1 [shape = 'u32[144,128]{1,0:T(1,128)}', space=vmem, size = 0x12000, scoped, tag = 'internal scratch']
  %s0 = inlined_call_operand.vmem [shape: bf16[512,8], index: 0, kind: input, shape index: {}]
  %s1 = inlined_call_operand.vmem [shape: bf16[8,16], index: 1, kind: input, shape index: {}]
  %s2 = inlined_call_operand.vmem [shape: f32[1,16], index: 2, kind: input, shape index: {}]
  %s3 = inlined_call_operand.vmem [shape: bf16[512,16], index: 3, kind: output, shape index: {}]
  %s4 = sld [smem:[#allocation0]]
  $region22: #{model_forward.22} parent=0
    _
  %s6 = ssub.s32 1, %s4
  %s7 = scalar_select 0, %s6, %s4
  // Predicated region
  $region2: #{model_forward.22} parent=0 // pred_check
    _
  $region3: #{model_forward.22} parent=0 // pred_check_branch
    %9 = sbr.rel (0) target = $region5
  $region4: #{model_forward.22} parent=0 // pred_region
    _
  $region5: #{model_forward.22} parent=0 // pred_fallthru
    _
  // Predicated region
  $region6: #{model_forward.22} parent=0 // pred_check
    _
  $region7: #{model_forward.22} parent=0 // pred_check_branch
    %11 = sbr.rel (0) target = $region9
  $region8: #{model_forward.22} parent=0 // pred_region
    _
  $region9: #{model_forward.22} parent=0 // pred_fallthru
    _
  // Predicated region
  $region10: #{model_forward.22} parent=0 // pred_check
    _
  $region11: #{model_forward.22} parent=0 // pred_check_branch
    %13 = sbr.rel (0) target = $region13
  $region12: #{model_forward.22} parent=0 // pred_region
    _
  $region13: #{model_forward.22} parent=0 // pred_fallthru
    _
  %v15 = vld [vmem:[%s0] sm:$0xf]
  %v16 = vld [vmem:[%s0 + $0x4] sm:$0xf]
  %v17 = vld [vmem:[%s0 + $0x8] sm:$0xf]
  %v18 = vld [vmem:[%s0 + $0xc] sm:$0xf]
  %v19 = vld [vmem:[%s0 + $0x10] sm:$0xf]
  %v20 = vld [vmem:[%s0 + $0x14] sm:$0xf]
  %v21 = vld [vmem:[%s0 + $0x18] sm:$0xf]
  %v22 = vld [vmem:[%s0 + $0x1c] sm:$0xf]
  %v23 = vld [vmem:[%s0 + $0x20] sm:$0xf]
  %v24 = vld [vmem:[%s0 + $0x24] sm:$0xf]
  %v25 = vld [vmem:[%s0 + $0x28] sm:$0xf]
  %v26 = vld [vmem:[%s0 + $0x2c] sm:$0xf]
  %v27 = vld [vmem:[%s0 + $0x30] sm:$0xf]
  %v28 = vld [vmem:[%s0 + $0x34] sm:$0xf]
  %v29 = vld [vmem:[%s0 + $0x38] sm:$0xf]
  %v30 = vld [vmem:[%s0 + $0x3c] sm:$0xf]
  %v31 = vld [vmem:[%s0 + $0x40] sm:$0xf]
  %v32 = vld [vmem:[%s0 + $0x44] sm:$0xf]
  %v33 = vld [vmem:[%s0 + $0x48] sm:$0xf]
  %v34 = vld [vmem:[%s0 + $0x4c] sm:$0xf]
  %v35 = vld [vmem:[%s0 + $0x50] sm:$0xf]
  %v36 = vld [vmem:[%s0 + $0x54] sm:$0xf]
  %v37 = vld [vmem:[%s0 + $0x58] sm:$0xf]
  %v38 = vld [vmem:[%s0 + $0x5c] sm:$0xf]
  %v39 = vld [vmem:[%s0 + $0x60] sm:$0xf]
  %v40 = vld [vmem:[%s0 + $0x64] sm:$0xf]
  %v41 = vld [vmem:[%s0 + $0x68] sm:$0xf]
  %v42 = vld [vmem:[%s0 + $0x6c] sm:$0xf]
  %v43 = vld [vmem:[%s0 + $0x70] sm:$0xf]
  %v44 = vld [vmem:[%s0 + $0x74] sm:$0xf]
  %v45 = vld [vmem:[%s0 + $0x78] sm:$0xf]
  %v46 = vld [vmem:[%s0 + $0x7c] sm:$0xf]
  %v47 = vld [vmem:[%s0 + $0x80] sm:$0xf]
  %v48 = vld [vmem:[%s0 + $0x84] sm:$0xf]
  %v49 = vld [vmem:[%s0 + $0x88] sm:$0xf]
  %v50 = vld [vmem:[%s0 + $0x8c] sm:$0xf]
  %v51 = vld [vmem:[%s0 + $0x90] sm:$0xf]
  %v52 = vld [vmem:[%s0 + $0x94] sm:$0xf]
  %v53 = vld [vmem:[%s0 + $0x98] sm:$0xf]
  %v54 = vld [vmem:[%s0 + $0x9c] sm:$0xf]
  %v55 = vld [vmem:[%s0 + $0xa0] sm:$0xf]
  %v56 = vld [vmem:[%s0 + $0xa4] sm:$0xf]
  %v57 = vld [vmem:[%s0 + $0xa8] sm:$0xf]
  %v58 = vld [vmem:[%s0 + $0xac] sm:$0xf]
  %v59 = vld [vmem:[%s0 + $0xb0] sm:$0xf]
  %v60 = vld [vmem:[%s0 + $0xb4] sm:$0xf]
  %v61 = vld [vmem:[%s0 + $0xb8] sm:$0xf]
  %v62 = vld [vmem:[%s0 + $0xbc] sm:$0xf]
  %v63 = vld [vmem:[%s0 + $0xc0] sm:$0xf]
  %v64 = vld [vmem:[%s0 + $0xc4] sm:$0xf]
  %v65 = vld [vmem:[%s0 + $0xc8] sm:$0xf]
  %v66 = vld [vmem:[%s0 + $0xcc] sm:$0xf]
  %v67 = vld [vmem:[%s0 + $0xd0] sm:$0xf]
  %v68 = vld [vmem:[%s0 + $0xd4] sm:$0xf]
  %v69 = vld [vmem:[%s0 + $0xd8] sm:$0xf]
  %v70 = vld [vmem:[%s0 + $0xdc] sm:$0xf]
  %v71 = vld [vmem:[%s0 + $0xe0] sm:$0xf]
  %v72 = vld [vmem:[%s0 + $0xe4] sm:$0xf]
  %v73 = vld [vmem:[%s0 + $0xe8] sm:$0xf]
  %v74 = vld [vmem:[%s0 + $0xec] sm:$0xf]
  %v75 = vld [vmem:[%s0 + $0xf0] sm:$0xf]
  %v76 = vld [vmem:[%s0 + $0xf4] sm:$0xf]
  %v77 = vld [vmem:[%s0 + $0xf8] sm:$0xf]
  %v78 = vld [vmem:[%s0 + $0xfc] sm:$0xf]
  %v79 = vld [vmem:[%s1] sm:$0xf]
  %v80 = vld [vmem:[%s2] sm:$0x1]
  %v82 = vlaneseq
  %v83 = vshrl.u32 %v82, 7
  %v84 = vsub.s32 0, %v83
  %v85 = vrot.slane %v80, %v84
  %v151 = vunpack.c.l.b16 %v15
  %v152 = vunpack.c.l.b16 %v16
  %v153 = vunpack.c.l.b16 %v17
  %v154 = vunpack.c.l.b16 %v18
  %v155 = vunpack.c.l.b16 %v19
  %v156 = vunpack.c.l.b16 %v20
  %v157 = vunpack.c.l.b16 %v21
  %v158 = vunpack.c.l.b16 %v22
  %v159 = vunpack.c.l.b16 %v23
  %v160 = vunpack.c.l.b16 %v24
  %v161 = vunpack.c.l.b16 %v25
  %v162 = vunpack.c.l.b16 %v26
  %v163 = vunpack.c.l.b16 %v27
  %v164 = vunpack.c.l.b16 %v28
  %v165 = vunpack.c.l.b16 %v29
  %v166 = vunpack.c.l.b16 %v30
  %v167 = vunpack.c.l.b16 %v31
  %v168 = vunpack.c.l.b16 %v32
  %v169 = vunpack.c.l.b16 %v33
  %v170 = vunpack.c.l.b16 %v34
  %v171 = vunpack.c.l.b16 %v35
  %v172 = vunpack.c.l.b16 %v36
  %v173 = vunpack.c.l.b16 %v37
  %v174 = vunpack.c.l.b16 %v38
  %v175 = vunpack.c.l.b16 %v39
  %v176 = vunpack.c.l.b16 %v40
  %v177 = vunpack.c.l.b16 %v41
  %v178 = vunpack.c.l.b16 %v42
  %v179 = vunpack.c.l.b16 %v43
  %v180 = vunpack.c.l.b16 %v44
  %v181 = vunpack.c.l.b16 %v45
  %v182 = vunpack.c.l.b16 %v46
  %v183 = vunpack.c.l.b16 %v47
  %v184 = vunpack.c.l.b16 %v48
  %v185 = vunpack.c.l.b16 %v49
  %v186 = vunpack.c.l.b16 %v50
  %v187 = vunpack.c.l.b16 %v51
  %v188 = vunpack.c.l.b16 %v52
  %v189 = vunpack.c.l.b16 %v53
  %v190 = vunpack.c.l.b16 %v54
  %v191 = vunpack.c.l.b16 %v55
  %v192 = vunpack.c.l.b16 %v56
  %v193 = vunpack.c.l.b16 %v57
  %v194 = vunpack.c.l.b16 %v58
  %v195 = vunpack.c.l.b16 %v59
  %v196 = vunpack.c.l.b16 %v60
  %v197 = vunpack.c.l.b16 %v61
  %v198 = vunpack.c.l.b16 %v62
  %v199 = vunpack.c.l.b16 %v63
  %v200 = vunpack.c.l.b16 %v64
  %v201 = vunpack.c.l.b16 %v65
  %v202 = vunpack.c.l.b16 %v66
  %v203 = vunpack.c.l.b16 %v67
  %v204 = vunpack.c.l.b16 %v68
  %v205 = vunpack.c.l.b16 %v69
  %v206 = vunpack.c.l.b16 %v70
  %v207 = vunpack.c.l.b16 %v71
  %v208 = vunpack.c.l.b16 %v72
  %v209 = vunpack.c.l.b16 %v73
  %v210 = vunpack.c.l.b16 %v74
  %v211 = vunpack.c.l.b16 %v75
  %v212 = vunpack.c.l.b16 %v76
  %v213 = vunpack.c.l.b16 %v77
  %v214 = vunpack.c.l.b16 %v78
  %v215 = vpack.c.b16 %v152, %v151
  %v216 = vpack.c.b16 %v154, %v153
  %v217 = vpack.c.b16 %v156, %v155
  %v218 = vpack.c.b16 %v158, %v157
  %v219 = vpack.c.b16 %v160, %v159
  %v220 = vpack.c.b16 %v162, %v161
  %v221 = vpack.c.b16 %v164, %v163
  %v222 = vpack.c.b16 %v166, %v165
  %v223 = vpack.c.b16 %v168, %v167
  %v224 = vpack.c.b16 %v170, %v169
  %v225 = vpack.c.b16 %v172, %v171
  %v226 = vpack.c.b16 %v174, %v173
  %v227 = vpack.c.b16 %v176, %v175
  %v228 = vpack.c.b16 %v178, %v177
  %v229 = vpack.c.b16 %v180, %v179
  %v230 = vpack.c.b16 %v182, %v181
  %v231 = vpack.c.b16 %v184, %v183
  %v232 = vpack.c.b16 %v186, %v185
  %v233 = vpack.c.b16 %v188, %v187
  %v234 = vpack.c.b16 %v190, %v189
  %v235 = vpack.c.b16 %v192, %v191
  %v236 = vpack.c.b16 %v194, %v193
  %v237 = vpack.c.b16 %v196, %v195
  %v238 = vpack.c.b16 %v198, %v197
  %v239 = vpack.c.b16 %v200, %v199
  %v240 = vpack.c.b16 %v202, %v201
  %v241 = vpack.c.b16 %v204, %v203
  %v242 = vpack.c.b16 %v206, %v205
  %v243 = vpack.c.b16 %v208, %v207
  %v244 = vpack.c.b16 %v210, %v209
  %v245 = vpack.c.b16 %v212, %v211
  %v246 = vpack.c.b16 %v214, %v213
  %vm247 = vcmask 64512
  %v249 = vsel %vm247, %v215, 0
  %v252 = vsel %vm247, %v216, 0
  %v255 = vsel %vm247, %v217, 0
  %v258 = vsel %vm247, %v218, 0
  %v261 = vsel %vm247, %v219, 0
  %v264 = vsel %vm247, %v220, 0
  %v267 = vsel %vm247, %v221, 0
  %v270 = vsel %vm247, %v222, 0
  %v273 = vsel %vm247, %v223, 0
  %v276 = vsel %vm247, %v224, 0
  %v279 = vsel %vm247, %v225, 0
  %v282 = vsel %vm247, %v226, 0
  %v285 = vsel %vm247, %v227, 0
  %v288 = vsel %vm247, %v228, 0
  %v291 = vsel %vm247, %v229, 0
  %v294 = vsel %vm247, %v230, 0
  %v297 = vsel %vm247, %v231, 0
  %v300 = vsel %vm247, %v232, 0
  %v303 = vsel %vm247, %v233, 0
  %v306 = vsel %vm247, %v234, 0
  %v309 = vsel %vm247, %v235, 0
  %v312 = vsel %vm247, %v236, 0
  %v315 = vsel %vm247, %v237, 0
  %v318 = vsel %vm247, %v238, 0
  %v321 = vsel %vm247, %v239, 0
  %v324 = vsel %vm247, %v240, 0
  %v327 = vsel %vm247, %v241, 0
  %v330 = vsel %vm247, %v242, 0
  %v333 = vsel %vm247, %v243, 0
  %v336 = vsel %vm247, %v244, 0
  %v339 = vsel %vm247, %v245, 0
  %v342 = vsel %vm247, %v246, 0
  %vm344 = vcmask 1043456
  %v346 = vsel %vm344, %v79, 0
  %348 = vmatprep.subr.bf16.mxu0 0
  %349 = vmatpush1.bf16.msra.mxu0 %v346
  %350 = vmatprep.subr.bf16.mxu0 0
  %351 = vmatpush1.bf16.msra.mxu0 0
  %352 = vmatprep.subr.bf16.mxu0 0
  %353 = vmatpush1.bf16.msra.mxu0 0
  %354 = vmatprep.subr.bf16.mxu0 0
  %355 = vmatpush1.bf16.msra.mxu0 0
  %356 = vmatprep.subr.bf16.mxu0 0
  %357 = vmatpush1.bf16.msra.mxu0 0
  %358 = vmatprep.subr.bf16.mxu0 0
  %359 = vmatpush1.bf16.msra.mxu0 0
  %360 = vmatprep.subr.bf16.mxu0 0
  %361 = vmatpush1.bf16.msra.mxu0 0
  %362 = vmatprep.subr.bf16.mxu0 0
  %363 = vmatpush1.bf16.msra.mxu0 0
  %364 = vmatprep.subr.bf16.mxu0 0
  %365 = vmatpush1.bf16.msra.mxu0 0
  %366 = vmatprep.subr.bf16.mxu0 0
  %367 = vmatpush1.bf16.msra.mxu0 0
  %368 = vmatprep.subr.bf16.mxu0 0
  %369 = vmatpush1.bf16.msra.mxu0 0
  %370 = vmatprep.subr.bf16.mxu0 0
  %371 = vmatpush1.bf16.msra.mxu0 0
  %372 = vmatprep.subr.bf16.mxu0 0
  %373 = vmatpush1.bf16.msra.mxu0 0
  %374 = vmatprep.subr.bf16.mxu0 0
  %375 = vmatpush1.bf16.msra.mxu0 0
  %376 = vmatprep.subr.bf16.mxu0 0
  %377 = vmatpush1.bf16.msra.mxu0 0
  %378 = vmatprep.subr.bf16.mxu0 0
  %379 = vmatpush1.bf16.msra.mxu0 0
  %380 = vmatprep.mubr.bf16.mxu0 0
  %381 = vmatmul.mubr.bf16.gmra.mrb[0].mxu0 %v249
  %v382 = vpop.f32.mrb[0].mxu0
  %v383 = vadd.f32 %v85, %v382
  %v384 = vpop.f32.mrb[0].mxu0
  %v385 = vpop.f32.mrb[0].mxu0
  %v386 = vadd.f32 %v85, %v385
  %v387 = vpop.f32.mrb[0].mxu0
  %388 = vmatprep.mubr.bf16.mxu0 0
  %389 = vmatmul.mubr.bf16.gmra.mrb[0].mxu0 %v252
  %v390 = vpop.f32.mrb[0].mxu0
  %v391 = vadd.f32 %v85, %v390
  %v392 = vpop.f32.mrb[0].mxu0
  %v393 = vpop.f32.mrb[0].mxu0
  %v394 = vadd.f32 %v85, %v393
  %v395 = vpop.f32.mrb[0].mxu0
  %396 = vmatprep.mubr.bf16.mxu0 0
  %397 = vmatmul.mubr.bf16.gmra.mrb[0].mxu0 %v255
  %v398 = vpop.f32.mrb[0].mxu0
  %v399 = vadd.f32 %v85, %v398
  %v400 = vpop.f32.mrb[0].mxu0
  %v401 = vpop.f32.mrb[0].mxu0
  %v402 = vadd.f32 %v85, %v401
  %v403 = vpop.f32.mrb[0].mxu0
  %404 = vmatprep.mubr.bf16.mxu0 0
  %405 = vmatmul.mubr.bf16.gmra.mrb[0].mxu0 %v258
  %v406 = vpop.f32.mrb[0].mxu0
  %v407 = vadd.f32 %v85, %v406
  %v408 = vpop.f32.mrb[0].mxu0
  %v409 = vpop.f32.mrb[0].mxu0
  %v410 = vadd.f32 %v85, %v409
  %v411 = vpop.f32.mrb[0].mxu0
  %412 = vmatprep.mubr.bf16.mxu0 0
  %413 = vmatmul.mubr.bf16.gmra.mrb[0].mxu0 %v261
  %v414 = vpop.f32.mrb[0].mxu0
  %v415 = vadd.f32 %v85, %v414
  %v416 = vpop.f32.mrb[0].mxu0
  %v417 = vpop.f32.mrb[0].mxu0
  %v418 = vadd.f32 %v85, %v417
  %v419 = vpop.f32.mrb[0].mxu0
  %420 = vmatprep.mubr.bf16.mxu0 0
  %421 = vmatmul.mubr.bf16.gmra.mrb[0].mxu0 %v264
  %v422 = vpop.f32.mrb[0].mxu0
  %v423 = vadd.f32 %v85, %v422
  %v424 = vpop.f32.mrb[0].mxu0
  %v425 = vpop.f32.mrb[0].mxu0
  %v426 = vadd.f32 %v85, %v425
  %v427 = vpop.f32.mrb[0].mxu0
  %428 = vmatprep.mubr.bf16.mxu0 0
  %429 = vmatmul.mubr.bf16.gmra.mrb[0].mxu0 %v267
  %v430 = vpop.f32.mrb[0].mxu0
  %v431 = vadd.f32 %v85, %v430
  %v432 = vpop.f32.mrb[0].mxu0
  %v433 = vpop.f32.mrb[0].mxu0
  %v434 = vadd.f32 %v85, %v433
  %v435 = vpop.f32.mrb[0].mxu0
  %436 = vmatprep.mubr.bf16.mxu0 0
  %437 = vmatmul.mubr.bf16.gmra.mrb[0].mxu0 %v270
  %v438 = vpop.f32.mrb[0].mxu0
  %v439 = vadd.f32 %v85, %v438
  %v440 = vpop.f32.mrb[0].mxu0
  %v441 = vpop.f32.mrb[0].mxu0
  %v442 = vadd.f32 %v85, %v441
  %v443 = vpop.f32.mrb[0].mxu0
  %444 = vmatprep.mubr.bf16.mxu0 0
  %445 = vmatmul.mubr.bf16.gmra.mrb[0].mxu0 %v273
  %v446 = vpop.f32.mrb[0].mxu0
  %v447 = vadd.f32 %v85, %v446
  %v448 = vpop.f32.mrb[0].mxu0
  %v449 = vpop.f32.mrb[0].mxu0
  %v450 = vadd.f32 %v85, %v449
  %v451 = vpop.f32.mrb[0].mxu0
  %452 = vmatprep.mubr.bf16.mxu0 0
  %453 = vmatmul.mubr.bf16.gmra.mrb[0].mxu0 %v276
  %v454 = vpop.f32.mrb[0].mxu0
  %v455 = vadd.f32 %v85, %v454
  %v456 = vpop.f32.mrb[0].mxu0
  %v457 = vpop.f32.mrb[0].mxu0
  %v458 = vadd.f32 %v85, %v457
  %v459 = vpop.f32.mrb[0].mxu0
  %460 = vmatprep.mubr.bf16.mxu0 0
  %461 = vmatmul.mubr.bf16.gmra.mrb[0].mxu0 %v279
  %v462 = vpop.f32.mrb[0].mxu0
  %v463 = vadd.f32 %v85, %v462
  %v464 = vpop.f32.mrb[0].mxu0
  %v465 = vpop.f32.mrb[0].mxu0
  %v466 = vadd.f32 %v85, %v465
  %v467 = vpop.f32.mrb[0].mxu0
  %468 = vmatprep.mubr.bf16.mxu0 0
  %469 = vmatmul.mubr.bf16.gmra.mrb[0].mxu0 %v282
  %v470 = vpop.f32.mrb[0].mxu0
  %v471 = vadd.f32 %v85, %v470
  %v472 = vpop.f32.mrb[0].mxu0
  %v473 = vpop.f32.mrb[0].mxu0
  %v474 = vadd.f32 %v85, %v473
  %v475 = vpop.f32.mrb[0].mxu0
  %476 = vmatprep.mubr.bf16.mxu0 0
  %477 = vmatmul.mubr.bf16.gmra.mrb[0].mxu0 %v285
  %v478 = vpop.f32.mrb[0].mxu0
  %v479 = vadd.f32 %v85, %v478
  %v480 = vpop.f32.mrb[0].mxu0
  %v481 = vpop.f32.mrb[0].mxu0
  %v482 = vadd.f32 %v85, %v481
  %v483 = vpop.f32.mrb[0].mxu0
  %484 = vmatprep.mubr.bf16.mxu0 0
  %485 = vmatmul.mubr.bf16.gmra.mrb[0].mxu0 %v288
  %v486 = vpop.f32.mrb[0].mxu0
  %v487 = vadd.f32 %v85, %v486
  %v488 = vpop.f32.mrb[0].mxu0
  %v489 = vpop.f32.mrb[0].mxu0
  %v490 = vadd.f32 %v85, %v489
  %v491 = vpop.f32.mrb[0].mxu0
  %492 = vmatprep.mubr.bf16.mxu0 0
  %493 = vmatmul.mubr.bf16.gmra.mrb[0].mxu0 %v291
  %v494 = vpop.f32.mrb[0].mxu0
  %v495 = vadd.f32 %v85, %v494
  %v496 = vpop.f32.mrb[0].mxu0
  %v497 = vpop.f32.mrb[0].mxu0
  %v498 = vadd.f32 %v85, %v497
  %v499 = vpop.f32.mrb[0].mxu0
  %500 = vmatprep.mubr.bf16.mxu0 0
  %501 = vmatmul.mubr.bf16.gmra.mrb[0].mxu0 %v294
  %v502 = vpop.f32.mrb[0].mxu0
  %v503 = vadd.f32 %v85, %v502
  %v504 = vpop.f32.mrb[0].mxu0
  %v505 = vpop.f32.mrb[0].mxu0
  %v506 = vadd.f32 %v85, %v505
  %v507 = vpop.f32.mrb[0].mxu0
  %508 = vmatprep.mubr.bf16.mxu0 0
  %509 = vmatmul.mubr.bf16.gmra.mrb[0].mxu0 %v297
  %v510 = vpop.f32.mrb[0].mxu0
  %v511 = vadd.f32 %v85, %v510
  %v512 = vpop.f32.mrb[0].mxu0
  %v513 = vpop.f32.mrb[0].mxu0
  %v514 = vadd.f32 %v85, %v513
  %v515 = vpop.f32.mrb[0].mxu0
  %516 = vmatprep.mubr.bf16.mxu0 0
  %517 = vmatmul.mubr.bf16.gmra.mrb[0].mxu0 %v300
  %v518 = vpop.f32.mrb[0].mxu0
  %v519 = vadd.f32 %v85, %v518
  %v520 = vpop.f32.mrb[0].mxu0
  %v521 = vpop.f32.mrb[0].mxu0
  %v522 = vadd.f32 %v85, %v521
  %v523 = vpop.f32.mrb[0].mxu0
  %524 = vmatprep.mubr.bf16.mxu0 0
  %525 = vmatmul.mubr.bf16.gmra.mrb[0].mxu0 %v303
  %v526 = vpop.f32.mrb[0].mxu0
  %v527 = vadd.f32 %v85, %v526
  %v528 = vpop.f32.mrb[0].mxu0
  %v529 = vpop.f32.mrb[0].mxu0
  %v530 = vadd.f32 %v85, %v529
  %v531 = vpop.f32.mrb[0].mxu0
  %532 = vmatprep.mubr.bf16.mxu0 0
  %533 = vmatmul.mubr.bf16.gmra.mrb[0].mxu0 %v306
  %v534 = vpop.f32.mrb[0].mxu0
  %v535 = vadd.f32 %v85, %v534
  %v536 = vpop.f32.mrb[0].mxu0
  %v537 = vpop.f32.mrb[0].mxu0
  %v538 = vadd.f32 %v85, %v537
  %v539 = vpop.f32.mrb[0].mxu0
  %540 = vmatprep.mubr.bf16.mxu0 0
  %541 = vmatmul.mubr.bf16.gmra.mrb[0].mxu0 %v309
  %v542 = vpop.f32.mrb[0].mxu0
  %v543 = vadd.f32 %v85, %v542
  %v544 = vpop.f32.mrb[0].mxu0
  %v545 = vpop.f32.mrb[0].mxu0
  %v546 = vadd.f32 %v85, %v545
  %v547 = vpop.f32.mrb[0].mxu0
  %548 = vmatprep.mubr.bf16.mxu0 0
  %549 = vmatmul.mubr.bf16.gmra.mrb[0].mxu0 %v312
  %v550 = vpop.f32.mrb[0].mxu0
  %v551 = vadd.f32 %v85, %v550
  %v552 = vpop.f32.mrb[0].mxu0
  %v553 = vpop.f32.mrb[0].mxu0
  %v554 = vadd.f32 %v85, %v553
  %v555 = vpop.f32.mrb[0].mxu0
  %556 = vmatprep.mubr.bf16.mxu0 0
  %557 = vmatmul.mubr.bf16.gmra.mrb[0].mxu0 %v315
  %v558 = vpop.f32.mrb[0].mxu0
  %v559 = vadd.f32 %v85, %v558
  %v560 = vpop.f32.mrb[0].mxu0
  %v561 = vpop.f32.mrb[0].mxu0
  %v562 = vadd.f32 %v85, %v561
  %v563 = vpop.f32.mrb[0].mxu0
  %564 = vmatprep.mubr.bf16.mxu0 0
  %565 = vmatmul.mubr.bf16.gmra.mrb[0].mxu0 %v318
  %v566 = vpop.f32.mrb[0].mxu0
  %v567 = vadd.f32 %v85, %v566
  %v568 = vpop.f32.mrb[0].mxu0
  %v569 = vpop.f32.mrb[0].mxu0
  %v570 = vadd.f32 %v85, %v569
  %v571 = vpop.f32.mrb[0].mxu0
  %572 = vmatprep.mubr.bf16.mxu0 0
  %573 = vmatmul.mubr.bf16.gmra.mrb[0].mxu0 %v321
  %v574 = vpop.f32.mrb[0].mxu0
  %v575 = vadd.f32 %v85, %v574
  %v576 = vpop.f32.mrb[0].mxu0
  %v577 = vpop.f32.mrb[0].mxu0
  %v578 = vadd.f32 %v85, %v577
  %v579 = vpop.f32.mrb[0].mxu0
  %580 = vmatprep.mubr.bf16.mxu0 0
  %581 = vmatmul.mubr.bf16.gmra.mrb[0].mxu0 %v324
  %v582 = vpop.f32.mrb[0].mxu0
  %v583 = vadd.f32 %v85, %v582
  %v584 = vpop.f32.mrb[0].mxu0
  %v585 = vpop.f32.mrb[0].mxu0
  %v586 = vadd.f32 %v85, %v585
  %v587 = vpop.f32.mrb[0].mxu0
  %588 = vmatprep.mubr.bf16.mxu0 0
  %589 = vmatmul.mubr.bf16.gmra.mrb[0].mxu0 %v327
  %v590 = vpop.f32.mrb[0].mxu0
  %v591 = vadd.f32 %v85, %v590
  %v592 = vpop.f32.mrb[0].mxu0
  %v593 = vpop.f32.mrb[0].mxu0
  %v594 = vadd.f32 %v85, %v593
  %v595 = vpop.f32.mrb[0].mxu0
  %596 = vmatprep.mubr.bf16.mxu0 0
  %597 = vmatmul.mubr.bf16.gmra.mrb[0].mxu0 %v330
  %v598 = vpop.f32.mrb[0].mxu0
  %v599 = vadd.f32 %v85, %v598
  %v600 = vpop.f32.mrb[0].mxu0
  %v601 = vpop.f32.mrb[0].mxu0
  %v602 = vadd.f32 %v85, %v601
  %v603 = vpop.f32.mrb[0].mxu0
  %604 = vmatprep.mubr.bf16.mxu0 0
  %605 = vmatmul.mubr.bf16.gmra.mrb[0].mxu0 %v333
  %v606 = vpop.f32.mrb[0].mxu0
  %v607 = vadd.f32 %v85, %v606
  %v608 = vpop.f32.mrb[0].mxu0
  %v609 = vpop.f32.mrb[0].mxu0
  %v610 = vadd.f32 %v85, %v609
  %v611 = vpop.f32.mrb[0].mxu0
  %612 = vmatprep.mubr.bf16.mxu0 0
  %613 = vmatmul.mubr.bf16.gmra.mrb[0].mxu0 %v336
  %v614 = vpop.f32.mrb[0].mxu0
  %v615 = vadd.f32 %v85, %v614
  %v616 = vpop.f32.mrb[0].mxu0
  %v617 = vpop.f32.mrb[0].mxu0
  %v618 = vadd.f32 %v85, %v617
  %v619 = vpop.f32.mrb[0].mxu0
  %620 = vmatprep.mubr.bf16.mxu0 0
  %621 = vmatmul.mubr.bf16.gmra.mrb[0].mxu0 %v339
  %v622 = vpop.f32.mrb[0].mxu0
  %v623 = vadd.f32 %v85, %v622
  %v624 = vpop.f32.mrb[0].mxu0
  %v625 = vpop.f32.mrb[0].mxu0
  %v626 = vadd.f32 %v85, %v625
  %v627 = vpop.f32.mrb[0].mxu0
  %628 = vmatprep.mubr.bf16.mxu0 0
  %629 = vmatmul.mubr.bf16.gmra.mrb[0].mxu0 %v342
  %v630 = vpop.f32.mrb[0].mxu0
  %v631 = vadd.f32 %v85, %v630
  %v632 = vpop.f32.mrb[0].mxu0
  %v633 = vpop.f32.mrb[0].mxu0
  %v634 = vadd.f32 %v85, %v633
  %v635 = vpop.f32.mrb[0].mxu0
  %636 = vdwg.mxu0
  %v637 = vpack.c.bf16 %v386, %v383
  %v638 = vpack.c.bf16 %v394, %v391
  %v639 = vpack.c.bf16 %v402, %v399
  %v640 = vpack.c.bf16 %v410, %v407
  %v641 = vpack.c.bf16 %v418, %v415
  %v642 = vpack.c.bf16 %v426, %v423
  %v643 = vpack.c.bf16 %v434, %v431
  %v644 = vpack.c.bf16 %v442, %v439
  %v645 = vpack.c.bf16 %v450, %v447
  %v646 = vpack.c.bf16 %v458, %v455
  %v647 = vpack.c.bf16 %v466, %v463
  %v648 = vpack.c.bf16 %v474, %v471
  %v649 = vpack.c.bf16 %v482, %v479
  %v650 = vpack.c.bf16 %v490, %v487
  %v651 = vpack.c.bf16 %v498, %v495
  %v652 = vpack.c.bf16 %v506, %v503
  %v653 = vpack.c.bf16 %v514, %v511
  %v654 = vpack.c.bf16 %v522, %v519
  %v655 = vpack.c.bf16 %v530, %v527
  %v656 = vpack.c.bf16 %v538, %v535
  %v657 = vpack.c.bf16 %v546, %v543
  %v658 = vpack.c.bf16 %v554, %v551
  %v659 = vpack.c.bf16 %v562, %v559
  %v660 = vpack.c.bf16 %v570, %v567
  %v661 = vpack.c.bf16 %v578, %v575
  %v662 = vpack.c.bf16 %v586, %v583
  %v663 = vpack.c.bf16 %v594, %v591
  %v664 = vpack.c.bf16 %v602, %v599
  %v665 = vpack.c.bf16 %v610, %v607
  %v666 = vpack.c.bf16 %v618, %v615
  %v667 = vpack.c.bf16 %v626, %v623
  %v668 = vpack.c.bf16 %v634, %v631
  %v701 = vunpack.c.l.b16 %v637
  %v702 = vunpack.c.h.b16 %v637
  %v703 = vunpack.c.l.b16 %v638
  %v704 = vunpack.c.h.b16 %v638
  %v705 = vunpack.c.l.b16 %v639
  %v706 = vunpack.c.h.b16 %v639
  %v707 = vunpack.c.l.b16 %v640
  %v708 = vunpack.c.h.b16 %v640
  %v709 = vunpack.c.l.b16 %v641
  %v710 = vunpack.c.h.b16 %v641
  %v711 = vunpack.c.l.b16 %v642
  %v712 = vunpack.c.h.b16 %v642
  %v713 = vunpack.c.l.b16 %v643
  %v714 = vunpack.c.h.b16 %v643
  %v715 = vunpack.c.l.b16 %v644
  %v716 = vunpack.c.h.b16 %v644
  %v717 = vunpack.c.l.b16 %v645
  %v718 = vunpack.c.h.b16 %v645
  %v719 = vunpack.c.l.b16 %v646
  %v720 = vunpack.c.h.b16 %v646
  %v721 = vunpack.c.l.b16 %v647
  %v722 = vunpack.c.h.b16 %v647
  %v723 = vunpack.c.l.b16 %v648
  %v724 = vunpack.c.h.b16 %v648
  %v725 = vunpack.c.l.b16 %v649
  %v726 = vunpack.c.h.b16 %v649
  %v727 = vunpack.c.l.b16 %v650
  %v728 = vunpack.c.h.b16 %v650
  %v729 = vunpack.c.l.b16 %v651
  %v730 = vunpack.c.h.b16 %v651
  %v731 = vunpack.c.l.b16 %v652
  %v732 = vunpack.c.h.b16 %v652
  %v733 = vunpack.c.l.b16 %v653
  %v734 = vunpack.c.h.b16 %v653
  %v735 = vunpack.c.l.b16 %v654
  %v736 = vunpack.c.h.b16 %v654
  %v737 = vunpack.c.l.b16 %v655
  %v738 = vunpack.c.h.b16 %v655
  %v739 = vunpack.c.l.b16 %v656
  %v740 = vunpack.c.h.b16 %v656
  %v741 = vunpack.c.l.b16 %v657
  %v742 = vunpack.c.h.b16 %v657
  %v743 = vunpack.c.l.b16 %v658
  %v744 = vunpack.c.h.b16 %v658
  %v745 = vunpack.c.l.b16 %v659
  %v746 = vunpack.c.h.b16 %v659
  %v747 = vunpack.c.l.b16 %v660
  %v748 = vunpack.c.h.b16 %v660
  %v749 = vunpack.c.l.b16 %v661
  %v750 = vunpack.c.h.b16 %v661
  %v751 = vunpack.c.l.b16 %v662
  %v752 = vunpack.c.h.b16 %v662
  %v753 = vunpack.c.l.b16 %v663
  %v754 = vunpack.c.h.b16 %v663
  %v755 = vunpack.c.l.b16 %v664
  %v756 = vunpack.c.h.b16 %v664
  %v757 = vunpack.c.l.b16 %v665
  %v758 = vunpack.c.h.b16 %v665
  %v759 = vunpack.c.l.b16 %v666
  %v760 = vunpack.c.h.b16 %v666
  %v761 = vunpack.c.l.b16 %v667
  %v762 = vunpack.c.h.b16 %v667
  %v763 = vunpack.c.l.b16 %v668
  %v764 = vunpack.c.h.b16 %v668
  %v765 = vpack.c.b16 %v701, %v701
  %v766 = vpack.c.b16 %v702, %v702
  %v767 = vpack.c.b16 %v703, %v703
  %v768 = vpack.c.b16 %v704, %v704
  %v769 = vpack.c.b16 %v705, %v705
  %v770 = vpack.c.b16 %v706, %v706
  %v771 = vpack.c.b16 %v707, %v707
  %v772 = vpack.c.b16 %v708, %v708
  %v773 = vpack.c.b16 %v709, %v709
  %v774 = vpack.c.b16 %v710, %v710
  %v775 = vpack.c.b16 %v711, %v711
  %v776 = vpack.c.b16 %v712, %v712
  %v777 = vpack.c.b16 %v713, %v713
  %v778 = vpack.c.b16 %v714, %v714
  %v779 = vpack.c.b16 %v715, %v715
  %v780 = vpack.c.b16 %v716, %v716
  %v781 = vpack.c.b16 %v717, %v717
  %v782 = vpack.c.b16 %v718, %v718
  %v783 = vpack.c.b16 %v719, %v719
  %v784 = vpack.c.b16 %v720, %v720
  %v785 = vpack.c.b16 %v721, %v721
  %v786 = vpack.c.b16 %v722, %v722
  %v787 = vpack.c.b16 %v723, %v723
  %v788 = vpack.c.b16 %v724, %v724
  %v789 = vpack.c.b16 %v725, %v725
  %v790 = vpack.c.b16 %v726, %v726
  %v791 = vpack.c.b16 %v727, %v727
  %v792 = vpack.c.b16 %v728, %v728
  %v793 = vpack.c.b16 %v729, %v729
  %v794 = vpack.c.b16 %v730, %v730
  %v795 = vpack.c.b16 %v731, %v731
  %v796 = vpack.c.b16 %v732, %v732
  %v797 = vpack.c.b16 %v733, %v733
  %v798 = vpack.c.b16 %v734, %v734
  %v799 = vpack.c.b16 %v735, %v735
  %v800 = vpack.c.b16 %v736, %v736
  %v801 = vpack.c.b16 %v737, %v737
  %v802 = vpack.c.b16 %v738, %v738
  %v803 = vpack.c.b16 %v739, %v739
  %v804 = vpack.c.b16 %v740, %v740
  %v805 = vpack.c.b16 %v741, %v741
  %v806 = vpack.c.b16 %v742, %v742
  %v807 = vpack.c.b16 %v743, %v743
  %v808 = vpack.c.b16 %v744, %v744
  %v809 = vpack.c.b16 %v745, %v745
  %v810 = vpack.c.b16 %v746, %v746
  %v811 = vpack.c.b16 %v747, %v747
  %v812 = vpack.c.b16 %v748, %v748
  %v813 = vpack.c.b16 %v749, %v749
  %v814 = vpack.c.b16 %v750, %v750
  %v815 = vpack.c.b16 %v751, %v751
  %v816 = vpack.c.b16 %v752, %v752
  %v817 = vpack.c.b16 %v753, %v753
  %v818 = vpack.c.b16 %v754, %v754
  %v819 = vpack.c.b16 %v755, %v755
  %v820 = vpack.c.b16 %v756, %v756
  %v821 = vpack.c.b16 %v757, %v757
  %v822 = vpack.c.b16 %v758, %v758
  %v823 = vpack.c.b16 %v759, %v759
  %v824 = vpack.c.b16 %v760, %v760
  %v825 = vpack.c.b16 %v761, %v761
  %v826 = vpack.c.b16 %v762, %v762
  %v827 = vpack.c.b16 %v763, %v763
  %v828 = vpack.c.b16 %v764, %v764
  %vm893 = vcmask 125952
  %894 = vst.msk [vmem:[%s3] sm:$0xf] %vm893, %v765
  %895 = vst.msk [vmem:[%s3 + $0x4] sm:$0xf] %vm893, %v766
  %896 = vst.msk [vmem:[%s3 + $0x8] sm:$0xf] %vm893, %v767
  %897 = vst.msk [vmem:[%s3 + $0xc] sm:$0xf] %vm893, %v768
  %898 = vst.msk [vmem:[%s3 + $0x10] sm:$0xf] %vm893, %v769
  %899 = vst.msk [vmem:[%s3 + $0x14] sm:$0xf] %vm893, %v770
  %900 = vst.msk [vmem:[%s3 + $0x18] sm:$0xf] %vm893, %v771
  %901 = vst.msk [vmem:[%s3 + $0x1c] sm:$0xf] %vm893, %v772
  %902 = vst.msk [vmem:[%s3 + $0x20] sm:$0xf] %vm893, %v773
  %903 = vst.msk [vmem:[%s3 + $0x24] sm:$0xf] %vm893, %v774
  %904 = vst.msk [vmem:[%s3 + $0x28] sm:$0xf] %vm893, %v775
  %905 = vst.msk [vmem:[%s3 + $0x2c] sm:$0xf] %vm893, %v776
  %906 = vst.msk [vmem:[%s3 + $0x30] sm:$0xf] %vm893, %v777
  %907 = vst.msk [vmem:[%s3 + $0x34] sm:$0xf] %vm893, %v778
  %908 = vst.msk [vmem:[%s3 + $0x38] sm:$0xf] %vm893, %v779
  %909 = vst.msk [vmem:[%s3 + $0x3c] sm:$0xf] %vm893, %v780
  %910 = vst.msk [vmem:[%s3 + $0x40] sm:$0xf] %vm893, %v781
  %911 = vst.msk [vmem:[%s3 + $0x44] sm:$0xf] %vm893, %v782
  %912 = vst.msk [vmem:[%s3 + $0x48] sm:$0xf] %vm893, %v783
  %913 = vst.msk [vmem:[%s3 + $0x4c] sm:$0xf] %vm893, %v784
  %914 = vst.msk [vmem:[%s3 + $0x50] sm:$0xf] %vm893, %v785
  %915 = vst.msk [vmem:[%s3 + $0x54] sm:$0xf] %vm893, %v786
  %916 = vst.msk [vmem:[%s3 + $0x58] sm:$0xf] %vm893, %v787
  %917 = vst.msk [vmem:[%s3 + $0x5c] sm:$0xf] %vm893, %v788
  %918 = vst.msk [vmem:[%s3 + $0x60] sm:$0xf] %vm893, %v789
  %919 = vst.msk [vmem:[%s3 + $0x64] sm:$0xf] %vm893, %v790
  %920 = vst.msk [vmem:[%s3 + $0x68] sm:$0xf] %vm893, %v791
  %921 = vst.msk [vmem:[%s3 + $0x6c] sm:$0xf] %vm893, %v792
  %922 = vst.msk [vmem:[%s3 + $0x70] sm:$0xf] %vm893, %v793
  %923 = vst.msk [vmem:[%s3 + $0x74] sm:$0xf] %vm893, %v794
  %924 = vst.msk [vmem:[%s3 + $0x78] sm:$0xf] %vm893, %v795
  %925 = vst.msk [vmem:[%s3 + $0x7c] sm:$0xf] %vm893, %v796
  %926 = vst.msk [vmem:[%s3 + $0x80] sm:$0xf] %vm893, %v797
  %927 = vst.msk [vmem:[%s3 + $0x84] sm:$0xf] %vm893, %v798
  %928 = vst.msk [vmem:[%s3 + $0x88] sm:$0xf] %vm893, %v799
  %929 = vst.msk [vmem:[%s3 + $0x8c] sm:$0xf] %vm893, %v800
  %930 = vst.msk [vmem:[%s3 + $0x90] sm:$0xf] %vm893, %v801
  %931 = vst.msk [vmem:[%s3 + $0x94] sm:$0xf] %vm893, %v802
  %932 = vst.msk [vmem:[%s3 + $0x98] sm:$0xf] %vm893, %v803
  %933 = vst.msk [vmem:[%s3 + $0x9c] sm:$0xf] %vm893, %v804
  %934 = vst.msk [vmem:[%s3 + $0xa0] sm:$0xf] %vm893, %v805
  %935 = vst.msk [vmem:[%s3 + $0xa4] sm:$0xf] %vm893, %v806
  %936 = vst.msk [vmem:[%s3 + $0xa8] sm:$0xf] %vm893, %v807
  %937 = vst.msk [vmem:[%s3 + $0xac] sm:$0xf] %vm893, %v808
  %938 = vst.msk [vmem:[%s3 + $0xb0] sm:$0xf] %vm893, %v809
  %939 = vst.msk [vmem:[%s3 + $0xb4] sm:$0xf] %vm893, %v810
  %940 = vst.msk [vmem:[%s3 + $0xb8] sm:$0xf] %vm893, %v811
  %941 = vst.msk [vmem:[%s3 + $0xbc] sm:$0xf] %vm893, %v812
  %942 = vst.msk [vmem:[%s3 + $0xc0] sm:$0xf] %vm893, %v813
  %943 = vst.msk [vmem:[%s3 + $0xc4] sm:$0xf] %vm893, %v814
  %944 = vst.msk [vmem:[%s3 + $0xc8] sm:$0xf] %vm893, %v815
  %945 = vst.msk [vmem:[%s3 + $0xcc] sm:$0xf] %vm893, %v816
  %946 = vst.msk [vmem:[%s3 + $0xd0] sm:$0xf] %vm893, %v817
  %947 = vst.msk [vmem:[%s3 + $0xd4] sm:$0xf] %vm893, %v818
  %948 = vst.msk [vmem:[%s3 + $0xd8] sm:$0xf] %vm893, %v819
  %949 = vst.msk [vmem:[%s3 + $0xdc] sm:$0xf] %vm893, %v820
  %950 = vst.msk [vmem:[%s3 + $0xe0] sm:$0xf] %vm893, %v821
  %951 = vst.msk [vmem:[%s3 + $0xe4] sm:$0xf] %vm893, %v822
  %952 = vst.msk [vmem:[%s3 + $0xe8] sm:$0xf] %vm893, %v823
  %953 = vst.msk [vmem:[%s3 + $0xec] sm:$0xf] %vm893, %v824
  %954 = vst.msk [vmem:[%s3 + $0xf0] sm:$0xf] %vm893, %v825
  %955 = vst.msk [vmem:[%s3 + $0xf4] sm:$0xf] %vm893, %v826
  %956 = vst.msk [vmem:[%s3 + $0xf8] sm:$0xf] %vm893, %v827
  %957 = vst.msk [vmem:[%s3 + $0xfc] sm:$0xf] %vm893, %v828
  // Predicated region
  $region14: #{model_forward.22} parent=0 // pred_check
    _
  $region15: #{model_forward.22} parent=0 // pred_check_branch
    %959 = sbr.rel (0) target = $region17
  $region16: #{model_forward.22} parent=0 // pred_region
    _
  $region17: #{model_forward.22} parent=0 // pred_fallthru
    _
  // Predicated region
  $region18: #{model_forward.22} parent=0 // pred_check
    _
  $region19: #{model_forward.22} parent=0 // pred_check_branch
    %961 = sbr.rel (0) target = $region21
  $region20: #{model_forward.22} parent=0 // pred_region
    _
  $region21: #{model_forward.22} parent=0 // pred_fallthru
    _

// kernel: model_forward.32
$region0: #{model_forward.32}
  #allocation0 [shape = 'u32[]', space=smem, size = 0x4, offset = 0x4, fixed_abs, tag = 'smem constant byte address 0x4 - core index']
  #allocation1 [shape = 'u32[144,128]{1,0:T(1,128)}', space=vmem, size = 0x12000, scoped, tag = 'internal scratch']
  %s0 = inlined_call_operand.vmem [shape: bf16[8,144], index: 0, kind: input, shape index: {}]
  %s1 = inlined_call_operand.vmem [shape: bf16[144,4], index: 1, kind: input, shape index: {}]
  %s2 = inlined_call_operand.vmem [shape: f32[1,4], index: 2, kind: input, shape index: {}]
  %s3 = inlined_call_operand.vmem [shape: bf16[8,4], index: 3, kind: output, shape index: {}]
  %s4 = sld [smem:[#allocation0]]
  $region22: #{model_forward.32} parent=0
    _
  %s6 = ssub.s32 1, %s4
  %s7 = scalar_select 0, %s6, %s4
  // Predicated region
  $region2: #{model_forward.32} parent=0 // pred_check
    _
  $region3: #{model_forward.32} parent=0 // pred_check_branch
    %9 = sbr.rel (0) target = $region5
  $region4: #{model_forward.32} parent=0 // pred_region
    _
  $region5: #{model_forward.32} parent=0 // pred_fallthru
    _
  // Predicated region
  $region6: #{model_forward.32} parent=0 // pred_check
    _
  $region7: #{model_forward.32} parent=0 // pred_check_branch
    %11 = sbr.rel (0) target = $region9
  $region8: #{model_forward.32} parent=0 // pred_region
    _
  $region9: #{model_forward.32} parent=0 // pred_fallthru
    _
  // Predicated region
  $region10: #{model_forward.32} parent=0 // pred_check
    _
  $region11: #{model_forward.32} parent=0 // pred_check_branch
    %13 = sbr.rel (0) target = $region13
  $region12: #{model_forward.32} parent=0 // pred_region
    _
  $region13: #{model_forward.32} parent=0 // pred_fallthru
    _
  %v15 = vld [vmem:[%s0] sm:$0xff]
  %v16 = vld [vmem:[%s1] sm:$0xf]
  %v17 = vld [vmem:[%s1 + $0x4] sm:$0xf]
  %v18 = vld [vmem:[%s1 + $0x8] sm:$0xf]
  %v19 = vld [vmem:[%s1 + $0xc] sm:$0xf]
  %v20 = vld [vmem:[%s1 + $0x10] sm:$0xf]
  %v21 = vld [vmem:[%s1 + $0x14] sm:$0xf]
  %v22 = vld [vmem:[%s1 + $0x18] sm:$0xf]
  %v23 = vld [vmem:[%s1 + $0x1c] sm:$0xf]
  %v24 = vld [vmem:[%s1 + $0x20] sm:$0xf]
  %v25 = vld [vmem:[%s1 + $0x24] sm:$0xf]
  %v26 = vld [vmem:[%s1 + $0x28] sm:$0xf]
  %v27 = vld [vmem:[%s1 + $0x2c] sm:$0xf]
  %v28 = vld [vmem:[%s1 + $0x30] sm:$0xf]
  %v29 = vld [vmem:[%s1 + $0x34] sm:$0xf]
  %v30 = vld [vmem:[%s1 + $0x38] sm:$0xf]
  %v31 = vld [vmem:[%s1 + $0x3c] sm:$0xf]
  %v32 = vld [vmem:[%s1 + $0x40] sm:$0xf]
  %v33 = vld [vmem:[%s1 + $0x44] sm:$0xf]
  %v34 = vld [vmem:[%s2] sm:$0x1]
  %v36 = vlaneseq
  %v37 = vshrl.u32 %v36, 7
  %v38 = vsub.s32 0, %v37
  %v39 = vrot.slane %v34, %v38
  %v42 = vunpack.c.l.b16 %v15
  %v43 = vunpack.c.h.b16 %v15
  %v44 = vpack.c.b16 %v42, %v42
  %v45 = vpack.c.b16 %v43, %v43
  %v65 = vunpack.c.l.b16 %v16
  %v66 = vunpack.c.l.b16 %v17
  %v67 = vunpack.c.l.b16 %v18
  %v68 = vunpack.c.l.b16 %v19
  %v69 = vunpack.c.l.b16 %v20
  %v70 = vunpack.c.l.b16 %v21
  %v71 = vunpack.c.l.b16 %v22
  %v72 = vunpack.c.l.b16 %v23
  %v73 = vunpack.c.l.b16 %v24
  %v74 = vunpack.c.l.b16 %v25
  %v75 = vunpack.c.l.b16 %v26
  %v76 = vunpack.c.l.b16 %v27
  %v77 = vunpack.c.l.b16 %v28
  %v78 = vunpack.c.l.b16 %v29
  %v79 = vunpack.c.l.b16 %v30
  %v80 = vunpack.c.l.b16 %v31
  %v81 = vunpack.c.l.b16 %v32
  %v82 = vunpack.c.l.b16 %v33
  %v83 = vpack.c.b16 %v66, %v65
  %v84 = vpack.c.b16 %v68, %v67
  %v85 = vpack.c.b16 %v70, %v69
  %v86 = vpack.c.b16 %v72, %v71
  %v87 = vpack.c.b16 %v74, %v73
  %v88 = vpack.c.b16 %v76, %v75
  %v89 = vpack.c.b16 %v78, %v77
  %v90 = vpack.c.b16 %v80, %v79
  %v91 = vpack.c.b16 %v82, %v81
  %vm101 = vcmask 130048
  %v103 = vsel %vm101, %v45, 0
  %105 = vmatprep.subr.bf16.mxu0 0
  %106 = vmatpush1.bf16.msra.mxu0 %v83
  %107 = vmatprep.subr.bf16.mxu0 0
  %108 = vmatpush1.bf16.msra.mxu0 %v84
  %109 = vmatprep.subr.bf16.mxu0 0
  %110 = vmatpush1.bf16.msra.mxu0 %v85
  %111 = vmatprep.subr.bf16.mxu0 0
  %112 = vmatpush1.bf16.msra.mxu0 %v86
  %113 = vmatprep.subr.bf16.mxu0 0
  %114 = vmatpush1.bf16.msra.mxu0 %v87
  %115 = vmatprep.subr.bf16.mxu0 0
  %116 = vmatpush1.bf16.msra.mxu0 %v88
  %117 = vmatprep.subr.bf16.mxu0 0
  %118 = vmatpush1.bf16.msra.mxu0 %v89
  %119 = vmatprep.subr.bf16.mxu0 0
  %120 = vmatpush1.bf16.msra.mxu0 %v90
  %121 = vmatprep.subr.bf16.mxu0 0
  %122 = vmatpush1.bf16.msra.mxu0 %v91
  %123 = vmatprep.subr.bf16.mxu0 0
  %124 = vmatpush1.bf16.msra.mxu0 0
  %125 = vmatprep.subr.bf16.mxu0 0
  %126 = vmatpush1.bf16.msra.mxu0 0
  %127 = vmatprep.subr.bf16.mxu0 0
  %128 = vmatpush1.bf16.msra.mxu0 0
  %129 = vmatprep.subr.bf16.mxu0 0
  %130 = vmatpush1.bf16.msra.mxu0 0
  %131 = vmatprep.subr.bf16.mxu0 0
  %132 = vmatpush1.bf16.msra.mxu0 0
  %133 = vmatprep.subr.bf16.mxu0 0
  %134 = vmatpush1.bf16.msra.mxu0 0
  %135 = vmatprep.subr.bf16.mxu0 0
  %136 = vmatpush1.bf16.msra.mxu0 0
  %137 = vmatprep.mubr.bf16.mxu0 %v103
  %138 = vmatmul.mubr.bf16.gmra.mrb[0].mxu0 %v44
  %v139 = vpop.f32.mrb[0].mxu0
  %v140 = vadd.f32 %v39, %v139
  %v141 = vpop.f32.mrb[0].mxu0
  %v142 = vpop.f32.mrb[0].mxu0
  %v143 = vpop.f32.mrb[0].mxu0
  %144 = vdwg.mxu0
  %v145 = vpack.c.bf16 %v140, %v140
  %vm146 = vcmask 27648
  %147 = vst.msk [vmem:[%s3] sm:$0xf] %vm146, %v145
  // Predicated region
  $region14: #{model_forward.32} parent=0 // pred_check
    _
  $region15: #{model_forward.32} parent=0 // pred_check_branch
    %149 = sbr.rel (0) target = $region17
  $region16: #{model_forward.32} parent=0 // pred_region
    _
  $region17: #{model_forward.32} parent=0 // pred_fallthru
    _
  // Predicated region
  $region18: #{model_forward.32} parent=0 // pred_check
    _
  $region19: #{model_forward.32} parent=0 // pred_check_branch
    %151 = sbr.rel (0) target = $region21
  $region20: #{model_forward.32} parent=0 // pred_region
    _
  $region21: #{model_forward.32} parent=0 // pred_fallthru
    _

// kernel: model_forward.28
$region0: #{model_forward.28}
  #allocation0 [shape = 'u32[]', space=smem, size = 0x4, offset = 0x4, fixed_abs, tag = 'smem constant byte address 0x4 - core index']
  #allocation1 [shape = 'u32[144,128]{1,0:T(1,128)}', space=vmem, size = 0x12000, scoped, tag = 'internal scratch']
  %s0 = inlined_call_operand.vmem [shape: bf16[16,2,16,16], index: 0, kind: input, shape index: {}]
  %s1 = inlined_call_operand.vmem [shape: bf16[16,16,16], index: 1, kind: input, shape index: {}]
  %s2 = inlined_call_operand.vmem [shape: bf16[16,2,16,16], index: 2, kind: output, shape index: {}]
  %s3 = sld [smem:[#allocation0]]
  $region18: #{model_forward.28} parent=0
    _
  %s5 = ssub.s32 1, %s3
  %s6 = scalar_select 0, %s5, %s3
  // Predicated region
  $region2: #{model_forward.28} parent=0 // pred_check
    _
  $region3: #{model_forward.28} parent=0 // pred_check_branch
    %8 = sbr.rel (0) target = $region5
  $region4: #{model_forward.28} parent=0 // pred_region
    _
  $region5: #{model_forward.28} parent=0 // pred_fallthru
    _
  // Predicated region
  $region6: #{model_forward.28} parent=0 // pred_check
    _
  $region7: #{model_forward.28} parent=0 // pred_check_branch
    %10 = sbr.rel (0) target = $region9
  $region8: #{model_forward.28} parent=0 // pred_region
    _
  $region9: #{model_forward.28} parent=0 // pred_fallthru
    _
  %v11 = vld [vmem:[%s1] sm:$0xf]
  %v12 = vld [vmem:[%s1 + $0x4] sm:$0xf]
  %v13 = vld [vmem:[%s1 + $0x8] sm:$0xf]
  %v14 = vld [vmem:[%s1 + $0xc] sm:$0xf]
  %v15 = vld [vmem:[%s1 + $0x10] sm:$0xf]
  %v16 = vld [vmem:[%s1 + $0x14] sm:$0xf]
  %v17 = vld [vmem:[%s1 + $0x18] sm:$0xf]
  %v18 = vld [vmem:[%s1 + $0x1c] sm:$0xf]
  %v19 = vld [vmem:[%s1 + $0x20] sm:$0xf]
  %v20 = vld [vmem:[%s1 + $0x24] sm:$0xf]
  %v21 = vld [vmem:[%s1 + $0x28] sm:$0xf]
  %v22 = vld [vmem:[%s1 + $0x2c] sm:$0xf]
  %v23 = vld [vmem:[%s1 + $0x30] sm:$0xf]
  %v24 = vld [vmem:[%s1 + $0x34] sm:$0xf]
  %v25 = vld [vmem:[%s1 + $0x38] sm:$0xf]
  %v26 = vld [vmem:[%s1 + $0x3c] sm:$0xf]
  %v27 = vld [vmem:[%s1 + $0x40] sm:$0xf]
  %v28 = vld [vmem:[%s1 + $0x44] sm:$0xf]
  %v29 = vld [vmem:[%s1 + $0x48] sm:$0xf]
  %v30 = vld [vmem:[%s1 + $0x4c] sm:$0xf]
  %v31 = vld [vmem:[%s1 + $0x50] sm:$0xf]
  %v32 = vld [vmem:[%s1 + $0x54] sm:$0xf]
  %v33 = vld [vmem:[%s1 + $0x58] sm:$0xf]
  %v34 = vld [vmem:[%s1 + $0x5c] sm:$0xf]
  %v35 = vld [vmem:[%s1 + $0x60] sm:$0xf]
  %v36 = vld [vmem:[%s1 + $0x64] sm:$0xf]
  %v37 = vld [vmem:[%s1 + $0x68] sm:$0xf]
  %v38 = vld [vmem:[%s1 + $0x6c] sm:$0xf]
  %v39 = vld [vmem:[%s1 + $0x70] sm:$0xf]
  %v40 = vld [vmem:[%s1 + $0x74] sm:$0xf]
  %v41 = vld [vmem:[%s1 + $0x78] sm:$0xf]
  %v42 = vld [vmem:[%s1 + $0x7c] sm:$0xf]
  %v43 = vunpack.c.l.bf16 %v11
  %v44 = vunpack.c.l.bf16 %v12
  %v45 = vunpack.c.l.bf16 %v13
  %v46 = vunpack.c.l.bf16 %v14
  %v47 = vunpack.c.l.bf16 %v15
  %v48 = vunpack.c.l.bf16 %v16
  %v49 = vunpack.c.l.bf16 %v17
  %v50 = vunpack.c.l.bf16 %v18
  %v51 = vunpack.c.l.bf16 %v19
  %v52 = vunpack.c.l.bf16 %v20
  %v53 = vunpack.c.l.bf16 %v21
  %v54 = vunpack.c.l.bf16 %v22
  %v55 = vunpack.c.l.bf16 %v23
  %v56 = vunpack.c.l.bf16 %v24
  %v57 = vunpack.c.l.bf16 %v25
  %v58 = vunpack.c.l.bf16 %v26
  %v59 = vunpack.c.l.bf16 %v27
  %v60 = vunpack.c.l.bf16 %v28
  %v61 = vunpack.c.l.bf16 %v29
  %v62 = vunpack.c.l.bf16 %v30
  %v63 = vunpack.c.l.bf16 %v31
  %v64 = vunpack.c.l.bf16 %v32
  %v65 = vunpack.c.l.bf16 %v33
  %v66 = vunpack.c.l.bf16 %v34
  %v67 = vunpack.c.l.bf16 %v35
  %v68 = vunpack.c.l.bf16 %v36
  %v69 = vunpack.c.l.bf16 %v37
  %v70 = vunpack.c.l.bf16 %v38
  %v71 = vunpack.c.l.bf16 %v39
  %v72 = vunpack.c.l.bf16 %v40
  %v73 = vunpack.c.l.bf16 %v41
  %v74 = vunpack.c.l.bf16 %v42
  %v75 = vld [vmem:[%s0] sm:$0xf]
  %v76 = vld [vmem:[%s0 + $0x4] sm:$0xf]
  %v77 = vld [vmem:[%s0 + $0x8] sm:$0xf]
  %v78 = vld [vmem:[%s0 + $0xc] sm:$0xf]
  %v79 = vld [vmem:[%s0 + $0x10] sm:$0xf]
  %v80 = vld [vmem:[%s0 + $0x14] sm:$0xf]
  %v81 = vld [vmem:[%s0 + $0x18] sm:$0xf]
  %v82 = vld [vmem:[%s0 + $0x1c] sm:$0xf]
  %v83 = vld [vmem:[%s0 + $0x20] sm:$0xf]
  %v84 = vld [vmem:[%s0 + $0x24] sm:$0xf]
  %v85 = vld [vmem:[%s0 + $0x28] sm:$0xf]
  %v86 = vld [vmem:[%s0 + $0x2c] sm:$0xf]
  %v87 = vld [vmem:[%s0 + $0x30] sm:$0xf]
  %v88 = vld [vmem:[%s0 + $0x34] sm:$0xf]
  %v89 = vld [vmem:[%s0 + $0x38] sm:$0xf]
  %v90 = vld [vmem:[%s0 + $0x3c] sm:$0xf]
  %v91 = vld [vmem:[%s0 + $0x40] sm:$0xf]
  %v92 = vld [vmem:[%s0 + $0x44] sm:$0xf]
  %v93 = vld [vmem:[%s0 + $0x48] sm:$0xf]
  %v94 = vld [vmem:[%s0 + $0x4c] sm:$0xf]
  %v95 = vld [vmem:[%s0 + $0x50] sm:$0xf]
  %v96 = vld [vmem:[%s0 + $0x54] sm:$0xf]
  %v97 = vld [vmem:[%s0 + $0x58] sm:$0xf]
  %v98 = vld [vmem:[%s0 + $0x5c] sm:$0xf]
  %v99 = vld [vmem:[%s0 + $0x60] sm:$0xf]
  %v100 = vld [vmem:[%s0 + $0x64] sm:$0xf]
  %v101 = vld [vmem:[%s0 + $0x68] sm:$0xf]
  %v102 = vld [vmem:[%s0 + $0x6c] sm:$0xf]
  %v103 = vld [vmem:[%s0 + $0x70] sm:$0xf]
  %v104 = vld [vmem:[%s0 + $0x74] sm:$0xf]
  %v105 = vld [vmem:[%s0 + $0x78] sm:$0xf]
  %v106 = vld [vmem:[%s0 + $0x7c] sm:$0xf]
  %v107 = vld [vmem:[%s0 + $0x80] sm:$0xf]
  %v108 = vld [vmem:[%s0 + $0x84] sm:$0xf]
  %v109 = vld [vmem:[%s0 + $0x88] sm:$0xf]
  %v110 = vld [vmem:[%s0 + $0x8c] sm:$0xf]
  %v111 = vld [vmem:[%s0 + $0x90] sm:$0xf]
  %v112 = vld [vmem:[%s0 + $0x94] sm:$0xf]
  %v113 = vld [vmem:[%s0 + $0x98] sm:$0xf]
  %v114 = vld [vmem:[%s0 + $0x9c] sm:$0xf]
  %v115 = vld [vmem:[%s0 + $0xa0] sm:$0xf]
  %v116 = vld [vmem:[%s0 + $0xa4] sm:$0xf]
  %v117 = vld [vmem:[%s0 + $0xa8] sm:$0xf]
  %v118 = vld [vmem:[%s0 + $0xac] sm:$0xf]
  %v119 = vld [vmem:[%s0 + $0xb0] sm:$0xf]
  %v120 = vld [vmem:[%s0 + $0xb4] sm:$0xf]
  %v121 = vld [vmem:[%s0 + $0xb8] sm:$0xf]
  %v122 = vld [vmem:[%s0 + $0xbc] sm:$0xf]
  %v123 = vld [vmem:[%s0 + $0xc0] sm:$0xf]
  %v124 = vld [vmem:[%s0 + $0xc4] sm:$0xf]
  %v125 = vld [vmem:[%s0 + $0xc8] sm:$0xf]
  %v126 = vld [vmem:[%s0 + $0xcc] sm:$0xf]
  %v127 = vld [vmem:[%s0 + $0xd0] sm:$0xf]
  %v128 = vld [vmem:[%s0 + $0xd4] sm:$0xf]
  %v129 = vld [vmem:[%s0 + $0xd8] sm:$0xf]
  %v130 = vld [vmem:[%s0 + $0xdc] sm:$0xf]
  %v131 = vld [vmem:[%s0 + $0xe0] sm:$0xf]
  %v132 = vld [vmem:[%s0 + $0xe4] sm:$0xf]
  %v133 = vld [vmem:[%s0 + $0xe8] sm:$0xf]
  %v134 = vld [vmem:[%s0 + $0xec] sm:$0xf]
  %v135 = vld [vmem:[%s0 + $0xf0] sm:$0xf]
  %v136 = vld [vmem:[%s0 + $0xf4] sm:$0xf]
  %v137 = vld [vmem:[%s0 + $0xf8] sm:$0xf]
  %v138 = vld [vmem:[%s0 + $0xfc] sm:$0xf]
  %v139 = vunpack.c.l.bf16 %v75
  %v140 = vunpack.c.l.bf16 %v76
  %v141 = vunpack.c.l.bf16 %v77
  %v142 = vunpack.c.l.bf16 %v78
  %v143 = vunpack.c.l.bf16 %v79
  %v144 = vunpack.c.l.bf16 %v80
  %v145 = vunpack.c.l.bf16 %v81
  %v146 = vunpack.c.l.bf16 %v82
  %v147 = vunpack.c.l.bf16 %v83
  %v148 = vunpack.c.l.bf16 %v84
  %v149 = vunpack.c.l.bf16 %v85
  %v150 = vunpack.c.l.bf16 %v86
  %v151 = vunpack.c.l.bf16 %v87
  %v152 = vunpack.c.l.bf16 %v88
  %v153 = vunpack.c.l.bf16 %v89
  %v154 = vunpack.c.l.bf16 %v90
  %v155 = vunpack.c.l.bf16 %v91
  %v156 = vunpack.c.l.bf16 %v92
  %v157 = vunpack.c.l.bf16 %v93
  %v158 = vunpack.c.l.bf16 %v94
  %v159 = vunpack.c.l.bf16 %v95
  %v160 = vunpack.c.l.bf16 %v96
  %v161 = vunpack.c.l.bf16 %v97
  %v162 = vunpack.c.l.bf16 %v98
  %v163 = vunpack.c.l.bf16 %v99
  %v164 = vunpack.c.l.bf16 %v100
  %v165 = vunpack.c.l.bf16 %v101
  %v166 = vunpack.c.l.bf16 %v102
  %v167 = vunpack.c.l.bf16 %v103
  %v168 = vunpack.c.l.bf16 %v104
  %v169 = vunpack.c.l.bf16 %v105
  %v170 = vunpack.c.l.bf16 %v106
  %v171 = vunpack.c.l.bf16 %v107
  %v172 = vunpack.c.l.bf16 %v108
  %v173 = vunpack.c.l.bf16 %v109
  %v174 = vunpack.c.l.bf16 %v110
  %v175 = vunpack.c.l.bf16 %v111
  %v176 = vunpack.c.l.bf16 %v112
  %v177 = vunpack.c.l.bf16 %v113
  %v178 = vunpack.c.l.bf16 %v114
  %v179 = vunpack.c.l.bf16 %v115
  %v180 = vunpack.c.l.bf16 %v116
  %v181 = vunpack.c.l.bf16 %v117
  %v182 = vunpack.c.l.bf16 %v118
  %v183 = vunpack.c.l.bf16 %v119
  %v184 = vunpack.c.l.bf16 %v120
  %v185 = vunpack.c.l.bf16 %v121
  %v186 = vunpack.c.l.bf16 %v122
  %v187 = vunpack.c.l.bf16 %v123
  %v188 = vunpack.c.l.bf16 %v124
  %v189 = vunpack.c.l.bf16 %v125
  %v190 = vunpack.c.l.bf16 %v126
  %v191 = vunpack.c.l.bf16 %v127
  %v192 = vunpack.c.l.bf16 %v128
  %v193 = vunpack.c.l.bf16 %v129
  %v194 = vunpack.c.l.bf16 %v130
  %v195 = vunpack.c.l.bf16 %v131
  %v196 = vunpack.c.l.bf16 %v132
  %v197 = vunpack.c.l.bf16 %v133
  %v198 = vunpack.c.l.bf16 %v134
  %v199 = vunpack.c.l.bf16 %v135
  %v200 = vunpack.c.l.bf16 %v136
  %v201 = vunpack.c.l.bf16 %v137
  %v202 = vunpack.c.l.bf16 %v138
  %v203 = vadd.f32 %v139, %v43
  %v204 = vadd.f32 %v140, %v44
  %v205 = vadd.f32 %v141, %v43
  %v206 = vadd.f32 %v142, %v44
  %v207 = vadd.f32 %v143, %v45
  %v208 = vadd.f32 %v144, %v46
  %v209 = vadd.f32 %v145, %v45
  %v210 = vadd.f32 %v146, %v46
  %v211 = vadd.f32 %v147, %v47
  %v212 = vadd.f32 %v148, %v48
  %v213 = vadd.f32 %v149, %v47
  %v214 = vadd.f32 %v150, %v48
  %v215 = vadd.f32 %v151, %v49
  %v216 = vadd.f32 %v152, %v50
  %v217 = vadd.f32 %v153, %v49
  %v218 = vadd.f32 %v154, %v50
  %v219 = vadd.f32 %v155, %v51
  %v220 = vadd.f32 %v156, %v52
  %v221 = vadd.f32 %v157, %v51
  %v222 = vadd.f32 %v158, %v52
  %v223 = vadd.f32 %v159, %v53
  %v224 = vadd.f32 %v160, %v54
  %v225 = vadd.f32 %v161, %v53
  %v226 = vadd.f32 %v162, %v54
  %v227 = vadd.f32 %v163, %v55
  %v228 = vadd.f32 %v164, %v56
  %v229 = vadd.f32 %v165, %v55
  %v230 = vadd.f32 %v166, %v56
  %v231 = vadd.f32 %v167, %v57
  %v232 = vadd.f32 %v168, %v58
  %v233 = vadd.f32 %v169, %v57
  %v234 = vadd.f32 %v170, %v58
  %v235 = vadd.f32 %v171, %v59
  %v236 = vadd.f32 %v172, %v60
  %v237 = vadd.f32 %v173, %v59
  %v238 = vadd.f32 %v174, %v60
  %v239 = vadd.f32 %v175, %v61
  %v240 = vadd.f32 %v176, %v62
  %v241 = vadd.f32 %v177, %v61
  %v242 = vadd.f32 %v178, %v62
  %v243 = vadd.f32 %v179, %v63
  %v244 = vadd.f32 %v180, %v64
  %v245 = vadd.f32 %v181, %v63
  %v246 = vadd.f32 %v182, %v64
  %v247 = vadd.f32 %v183, %v65
  %v248 = vadd.f32 %v184, %v66
  %v249 = vadd.f32 %v185, %v65
  %v250 = vadd.f32 %v186, %v66
  %v251 = vadd.f32 %v187, %v67
  %v252 = vadd.f32 %v188, %v68
  %v253 = vadd.f32 %v189, %v67
  %v254 = vadd.f32 %v190, %v68
  %v255 = vadd.f32 %v191, %v69
  %v256 = vadd.f32 %v192, %v70
  %v257 = vadd.f32 %v193, %v69
  %v258 = vadd.f32 %v194, %v70
  %v259 = vadd.f32 %v195, %v71
  %v260 = vadd.f32 %v196, %v72
  %v261 = vadd.f32 %v197, %v71
  %v262 = vadd.f32 %v198, %v72
  %v263 = vadd.f32 %v199, %v73
  %v264 = vadd.f32 %v200, %v74
  %v265 = vadd.f32 %v201, %v73
  %v266 = vadd.f32 %v202, %v74
  %v267 = vpack.c.bf16 %v204, %v203
  %v268 = vpack.c.bf16 %v206, %v205
  %v269 = vpack.c.bf16 %v208, %v207
  %v270 = vpack.c.bf16 %v210, %v209
  %v271 = vpack.c.bf16 %v212, %v211
  %v272 = vpack.c.bf16 %v214, %v213
  %v273 = vpack.c.bf16 %v216, %v215
  %v274 = vpack.c.bf16 %v218, %v217
  %v275 = vpack.c.bf16 %v220, %v219
  %v276 = vpack.c.bf16 %v222, %v221
  %v277 = vpack.c.bf16 %v224, %v223
  %v278 = vpack.c.bf16 %v226, %v225
  %v279 = vpack.c.bf16 %v228, %v227
  %v280 = vpack.c.bf16 %v230, %v229
  %v281 = vpack.c.bf16 %v232, %v231
  %v282 = vpack.c.bf16 %v234, %v233
  %v283 = vpack.c.bf16 %v236, %v235
  %v284 = vpack.c.bf16 %v238, %v237
  %v285 = vpack.c.bf16 %v240, %v239
  %v286 = vpack.c.bf16 %v242, %v241
  %v287 = vpack.c.bf16 %v244, %v243
  %v288 = vpack.c.bf16 %v246, %v245
  %v289 = vpack.c.bf16 %v248, %v247
  %v290 = vpack.c.bf16 %v250, %v249
  %v291 = vpack.c.bf16 %v252, %v251
  %v292 = vpack.c.bf16 %v254, %v253
  %v293 = vpack.c.bf16 %v256, %v255
  %v294 = vpack.c.bf16 %v258, %v257
  %v295 = vpack.c.bf16 %v260, %v259
  %v296 = vpack.c.bf16 %v262, %v261
  %v297 = vpack.c.bf16 %v264, %v263
  %v298 = vpack.c.bf16 %v266, %v265
  %v331 = vunpack.c.l.b16 %v267
  %v332 = vunpack.c.h.b16 %v267
  %v333 = vunpack.c.l.b16 %v268
  %v334 = vunpack.c.h.b16 %v268
  %v335 = vunpack.c.l.b16 %v269
  %v336 = vunpack.c.h.b16 %v269
  %v337 = vunpack.c.l.b16 %v270
  %v338 = vunpack.c.h.b16 %v270
  %v339 = vunpack.c.l.b16 %v271
  %v340 = vunpack.c.h.b16 %v271
  %v341 = vunpack.c.l.b16 %v272
  %v342 = vunpack.c.h.b16 %v272
  %v343 = vunpack.c.l.b16 %v273
  %v344 = vunpack.c.h.b16 %v273
  %v345 = vunpack.c.l.b16 %v274
  %v346 = vunpack.c.h.b16 %v274
  %v347 = vunpack.c.l.b16 %v275
  %v348 = vunpack.c.h.b16 %v275
  %v349 = vunpack.c.l.b16 %v276
  %v350 = vunpack.c.h.b16 %v276
  %v351 = vunpack.c.l.b16 %v277
  %v352 = vunpack.c.h.b16 %v277
  %v353 = vunpack.c.l.b16 %v278
  %v354 = vunpack.c.h.b16 %v278
  %v355 = vunpack.c.l.b16 %v279
  %v356 = vunpack.c.h.b16 %v279
  %v357 = vunpack.c.l.b16 %v280
  %v358 = vunpack.c.h.b16 %v280
  %v359 = vunpack.c.l.b16 %v281
  %v360 = vunpack.c.h.b16 %v281
  %v361 = vunpack.c.l.b16 %v282
  %v362 = vunpack.c.h.b16 %v282
  %v363 = vunpack.c.l.b16 %v283
  %v364 = vunpack.c.h.b16 %v283
  %v365 = vunpack.c.l.b16 %v284
  %v366 = vunpack.c.h.b16 %v284
  %v367 = vunpack.c.l.b16 %v285
  %v368 = vunpack.c.h.b16 %v285
  %v369 = vunpack.c.l.b16 %v286
  %v370 = vunpack.c.h.b16 %v286
  %v371 = vunpack.c.l.b16 %v287
  %v372 = vunpack.c.h.b16 %v287
  %v373 = vunpack.c.l.b16 %v288
  %v374 = vunpack.c.h.b16 %v288
  %v375 = vunpack.c.l.b16 %v289
  %v376 = vunpack.c.h.b16 %v289
  %v377 = vunpack.c.l.b16 %v290
  %v378 = vunpack.c.h.b16 %v290
  %v379 = vunpack.c.l.b16 %v291
  %v380 = vunpack.c.h.b16 %v291
  %v381 = vunpack.c.l.b16 %v292
  %v382 = vunpack.c.h.b16 %v292
  %v383 = vunpack.c.l.b16 %v293
  %v384 = vunpack.c.h.b16 %v293
  %v385 = vunpack.c.l.b16 %v294
  %v386 = vunpack.c.h.b16 %v294
  %v387 = vunpack.c.l.b16 %v295
  %v388 = vunpack.c.h.b16 %v295
  %v389 = vunpack.c.l.b16 %v296
  %v390 = vunpack.c.h.b16 %v296
  %v391 = vunpack.c.l.b16 %v297
  %v392 = vunpack.c.h.b16 %v297
  %v393 = vunpack.c.l.b16 %v298
  %v394 = vunpack.c.h.b16 %v298
  %v395 = vpack.c.b16 %v331, %v331
  %v396 = vpack.c.b16 %v332, %v332
  %v397 = vpack.c.b16 %v333, %v333
  %v398 = vpack.c.b16 %v334, %v334
  %v399 = vpack.c.b16 %v335, %v335
  %v400 = vpack.c.b16 %v336, %v336
  %v401 = vpack.c.b16 %v337, %v337
  %v402 = vpack.c.b16 %v338, %v338
  %v403 = vpack.c.b16 %v339, %v339
  %v404 = vpack.c.b16 %v340, %v340
  %v405 = vpack.c.b16 %v341, %v341
  %v406 = vpack.c.b16 %v342, %v342
  %v407 = vpack.c.b16 %v343, %v343
  %v408 = vpack.c.b16 %v344, %v344
  %v409 = vpack.c.b16 %v345, %v345
  %v410 = vpack.c.b16 %v346, %v346
  %v411 = vpack.c.b16 %v347, %v347
  %v412 = vpack.c.b16 %v348, %v348
  %v413 = vpack.c.b16 %v349, %v349
  %v414 = vpack.c.b16 %v350, %v350
  %v415 = vpack.c.b16 %v351, %v351
  %v416 = vpack.c.b16 %v352, %v352
  %v417 = vpack.c.b16 %v353, %v353
  %v418 = vpack.c.b16 %v354, %v354
  %v419 = vpack.c.b16 %v355, %v355
  %v420 = vpack.c.b16 %v356, %v356
  %v421 = vpack.c.b16 %v357, %v357
  %v422 = vpack.c.b16 %v358, %v358
  %v423 = vpack.c.b16 %v359, %v359
  %v424 = vpack.c.b16 %v360, %v360
  %v425 = vpack.c.b16 %v361, %v361
  %v426 = vpack.c.b16 %v362, %v362
  %v427 = vpack.c.b16 %v363, %v363
  %v428 = vpack.c.b16 %v364, %v364
  %v429 = vpack.c.b16 %v365, %v365
  %v430 = vpack.c.b16 %v366, %v366
  %v431 = vpack.c.b16 %v367, %v367
  %v432 = vpack.c.b16 %v368, %v368
  %v433 = vpack.c.b16 %v369, %v369
  %v434 = vpack.c.b16 %v370, %v370
  %v435 = vpack.c.b16 %v371, %v371
  %v436 = vpack.c.b16 %v372, %v372
  %v437 = vpack.c.b16 %v373, %v373
  %v438 = vpack.c.b16 %v374, %v374
  %v439 = vpack.c.b16 %v375, %v375
  %v440 = vpack.c.b16 %v376, %v376
  %v441 = vpack.c.b16 %v377, %v377
  %v442 = vpack.c.b16 %v378, %v378
  %v443 = vpack.c.b16 %v379, %v379
  %v444 = vpack.c.b16 %v380, %v380
  %v445 = vpack.c.b16 %v381, %v381
  %v446 = vpack.c.b16 %v382, %v382
  %v447 = vpack.c.b16 %v383, %v383
  %v448 = vpack.c.b16 %v384, %v384
  %v449 = vpack.c.b16 %v385, %v385
  %v450 = vpack.c.b16 %v386, %v386
  %v451 = vpack.c.b16 %v387, %v387
  %v452 = vpack.c.b16 %v388, %v388
  %v453 = vpack.c.b16 %v389, %v389
  %v454 = vpack.c.b16 %v390, %v390
  %v455 = vpack.c.b16 %v391, %v391
  %v456 = vpack.c.b16 %v392, %v392
  %v457 = vpack.c.b16 %v393, %v393
  %v458 = vpack.c.b16 %v394, %v394
  %vm523 = vcmask 125952
  %524 = vst.msk [vmem:[%s2] sm:$0xf] %vm523, %v395
  %525 = vst.msk [vmem:[%s2 + $0x4] sm:$0xf] %vm523, %v396
  %526 = vst.msk [vmem:[%s2 + $0x8] sm:$0xf] %vm523, %v397
  %527 = vst.msk [vmem:[%s2 + $0xc] sm:$0xf] %vm523, %v398
  %528 = vst.msk [vmem:[%s2 + $0x10] sm:$0xf] %vm523, %v399
  %529 = vst.msk [vmem:[%s2 + $0x14] sm:$0xf] %vm523, %v400
  %530 = vst.msk [vmem:[%s2 + $0x18] sm:$0xf] %vm523, %v401
  %531 = vst.msk [vmem:[%s2 + $0x1c] sm:$0xf] %vm523, %v402
  %532 = vst.msk [vmem:[%s2 + $0x20] sm:$0xf] %vm523, %v403
  %533 = vst.msk [vmem:[%s2 + $0x24] sm:$0xf] %vm523, %v404
  %534 = vst.msk [vmem:[%s2 + $0x28] sm:$0xf] %vm523, %v405
  %535 = vst.msk [vmem:[%s2 + $0x2c] sm:$0xf] %vm523, %v406
  %536 = vst.msk [vmem:[%s2 + $0x30] sm:$0xf] %vm523, %v407
  %537 = vst.msk [vmem:[%s2 + $0x34] sm:$0xf] %vm523, %v408
  %538 = vst.msk [vmem:[%s2 + $0x38] sm:$0xf] %vm523, %v409
  %539 = vst.msk [vmem:[%s2 + $0x3c] sm:$0xf] %vm523, %v410
  %540 = vst.msk [vmem:[%s2 + $0x40] sm:$0xf] %vm523, %v411
  %541 = vst.msk [vmem:[%s2 + $0x44] sm:$0xf] %vm523, %v412
  %542 = vst.msk [vmem:[%s2 + $0x48] sm:$0xf] %vm523, %v413
  %543 = vst.msk [vmem:[%s2 + $0x4c] sm:$0xf] %vm523, %v414
  %544 = vst.msk [vmem:[%s2 + $0x50] sm:$0xf] %vm523, %v415
  %545 = vst.msk [vmem:[%s2 + $0x54] sm:$0xf] %vm523, %v416
  %546 = vst.msk [vmem:[%s2 + $0x58] sm:$0xf] %vm523, %v417
  %547 = vst.msk [vmem:[%s2 + $0x5c] sm:$0xf] %vm523, %v418
  %548 = vst.msk [vmem:[%s2 + $0x60] sm:$0xf] %vm523, %v419
  %549 = vst.msk [vmem:[%s2 + $0x64] sm:$0xf] %vm523, %v420
  %550 = vst.msk [vmem:[%s2 + $0x68] sm:$0xf] %vm523, %v421
  %551 = vst.msk [vmem:[%s2 + $0x6c] sm:$0xf] %vm523, %v422
  %552 = vst.msk [vmem:[%s2 + $0x70] sm:$0xf] %vm523, %v423
  %553 = vst.msk [vmem:[%s2 + $0x74] sm:$0xf] %vm523, %v424
  %554 = vst.msk [vmem:[%s2 + $0x78] sm:$0xf] %vm523, %v425
  %555 = vst.msk [vmem:[%s2 + $0x7c] sm:$0xf] %vm523, %v426
  %556 = vst.msk [vmem:[%s2 + $0x80] sm:$0xf] %vm523, %v427
  %557 = vst.msk [vmem:[%s2 + $0x84] sm:$0xf] %vm523, %v428
  %558 = vst.msk [vmem:[%s2 + $0x88] sm:$0xf] %vm523, %v429
  %559 = vst.msk [vmem:[%s2 + $0x8c] sm:$0xf] %vm523, %v430
  %560 = vst.msk [vmem:[%s2 + $0x90] sm:$0xf] %vm523, %v431
  %561 = vst.msk [vmem:[%s2 + $0x94] sm:$0xf] %vm523, %v432
  %562 = vst.msk [vmem:[%s2 + $0x98] sm:$0xf] %vm523, %v433
  %563 = vst.msk [vmem:[%s2 + $0x9c] sm:$0xf] %vm523, %v434
  %564 = vst.msk [vmem:[%s2 + $0xa0] sm:$0xf] %vm523, %v435
  %565 = vst.msk [vmem:[%s2 + $0xa4] sm:$0xf] %vm523, %v436
  %566 = vst.msk [vmem:[%s2 + $0xa8] sm:$0xf] %vm523, %v437
  %567 = vst.msk [vmem:[%s2 + $0xac] sm:$0xf] %vm523, %v438
  %568 = vst.msk [vmem:[%s2 + $0xb0] sm:$0xf] %vm523, %v439
  %569 = vst.msk [vmem:[%s2 + $0xb4] sm:$0xf] %vm523, %v440
  %570 = vst.msk [vmem:[%s2 + $0xb8] sm:$0xf] %vm523, %v441
  %571 = vst.msk [vmem:[%s2 + $0xbc] sm:$0xf] %vm523, %v442
  %572 = vst.msk [vmem:[%s2 + $0xc0] sm:$0xf] %vm523, %v443
  %573 = vst.msk [vmem:[%s2 + $0xc4] sm:$0xf] %vm523, %v444
  %574 = vst.msk [vmem:[%s2 + $0xc8] sm:$0xf] %vm523, %v445
  %575 = vst.msk [vmem:[%s2 + $0xcc] sm:$0xf] %vm523, %v446
  %576 = vst.msk [vmem:[%s2 + $0xd0] sm:$0xf] %vm523, %v447
  %577 = vst.msk [vmem:[%s2 + $0xd4] sm:$0xf] %vm523, %v448
  %578 = vst.msk [vmem:[%s2 + $0xd8] sm:$0xf] %vm523, %v449
  %579 = vst.msk [vmem:[%s2 + $0xdc] sm:$0xf] %vm523, %v450
  %580 = vst.msk [vmem:[%s2 + $0xe0] sm:$0xf] %vm523, %v451
  %581 = vst.msk [vmem:[%s2 + $0xe4] sm:$0xf] %vm523, %v452
  %582 = vst.msk [vmem:[%s2 + $0xe8] sm:$0xf] %vm523, %v453
  %583 = vst.msk [vmem:[%s2 + $0xec] sm:$0xf] %vm523, %v454
  %584 = vst.msk [vmem:[%s2 + $0xf0] sm:$0xf] %vm523, %v455
  %585 = vst.msk [vmem:[%s2 + $0xf4] sm:$0xf] %vm523, %v456
  %586 = vst.msk [vmem:[%s2 + $0xf8] sm:$0xf] %vm523, %v457
  %587 = vst.msk [vmem:[%s2 + $0xfc] sm:$0xf] %vm523, %v458
  // Predicated region
  $region10: #{model_forward.28} parent=0 // pred_check
    _
  $region11: #{model_forward.28} parent=0 // pred_check_branch
    %589 = sbr.rel (0) target = $region13
  $region12: #{model_forward.28} parent=0 // pred_region
    _
  $region13: #{model_forward.28} parent=0 // pred_fallthru
    _
  // Predicated region
  $region14: #{model_forward.28} parent=0 // pred_check
    _
  $region15: #{model_forward.28} parent=0 // pred_check_branch
    %591 = sbr.rel (0) target = $region17
  $region16: #{model_forward.28} parent=0 // pred_region
    _
  $region17: #{model_forward.28} parent=0 // pred_fallthru
    _

// kernel: model_forward.29
$region0: #{model_forward.29}
  #allocation0 [shape = 'u32[]', space=smem, size = 0x4, offset = 0x4, fixed_abs, tag = 'smem constant byte address 0x4 - core index']
  #allocation1 [shape = 'u32[144,128]{1,0:T(1,128)}', space=vmem, size = 0x12000, scoped, tag = 'internal scratch']
  %s0 = inlined_call_operand.vmem [shape: bf16[512,144], index: 0, kind: input, shape index: {}]
  %s1 = inlined_call_operand.vmem [shape: bf16[144,4], index: 1, kind: input, shape index: {}]
  %s2 = inlined_call_operand.vmem [shape: f32[1,4], index: 2, kind: input, shape index: {}]
  %s3 = inlined_call_operand.vmem [shape: bf16[512,4], index: 3, kind: output, shape index: {}]
  %s4 = sld [smem:[#allocation0]]
  $region22: #{model_forward.29} parent=0
    _
  %s6 = ssub.s32 1, %s4
  %s7 = scalar_select 0, %s6, %s4
  // Predicated region
  $region2: #{model_forward.29} parent=0 // pred_check
    _
  $region3: #{model_forward.29} parent=0 // pred_check_branch
    %9 = sbr.rel (0) target = $region5
  $region4: #{model_forward.29} parent=0 // pred_region
    _
  $region5: #{model_forward.29} parent=0 // pred_fallthru
    _
  // Predicated region
  $region6: #{model_forward.29} parent=0 // pred_check
    _
  $region7: #{model_forward.29} parent=0 // pred_check_branch
    %11 = sbr.rel (0) target = $region9
  $region8: #{model_forward.29} parent=0 // pred_region
    _
  $region9: #{model_forward.29} parent=0 // pred_fallthru
    _
  // Predicated region
  $region10: #{model_forward.29} parent=0 // pred_check
    _
  $region11: #{model_forward.29} parent=0 // pred_check_branch
    %13 = sbr.rel (0) target = $region13
  $region12: #{model_forward.29} parent=0 // pred_region
    _
  $region13: #{model_forward.29} parent=0 // pred_fallthru
    _
  %v15 = vld [vmem:[%s0] sm:$0xff]
  %v16 = vld [vmem:[%s0 + $0x8] sm:$0xff]
  %v17 = vld [vmem:[%s0 + $0x10] sm:$0xff]
  %v18 = vld [vmem:[%s0 + $0x18] sm:$0xff]
  %v19 = vld [vmem:[%s0 + $0x20] sm:$0xff]
  %v20 = vld [vmem:[%s0 + $0x28] sm:$0xff]
  %v21 = vld [vmem:[%s0 + $0x30] sm:$0xff]
  %v22 = vld [vmem:[%s0 + $0x38] sm:$0xff]
  %v23 = vld [vmem:[%s0 + $0x40] sm:$0xff]
  %v24 = vld [vmem:[%s0 + $0x48] sm:$0xff]
  %v25 = vld [vmem:[%s0 + $0x50] sm:$0xff]
  %v26 = vld [vmem:[%s0 + $0x58] sm:$0xff]
  %v27 = vld [vmem:[%s0 + $0x60] sm:$0xff]
  %v28 = vld [vmem:[%s0 + $0x68] sm:$0xff]
  %v29 = vld [vmem:[%s0 + $0x70] sm:$0xff]
  %v30 = vld [vmem:[%s0 + $0x78] sm:$0xff]
  %v31 = vld [vmem:[%s0 + $0x80] sm:$0xff]
  %v32 = vld [vmem:[%s0 + $0x88] sm:$0xff]
  %v33 = vld [vmem:[%s0 + $0x90] sm:$0xff]
  %v34 = vld [vmem:[%s0 + $0x98] sm:$0xff]
  %v35 = vld [vmem:[%s0 + $0xa0] sm:$0xff]
  %v36 = vld [vmem:[%s0 + $0xa8] sm:$0xff]
  %v37 = vld [vmem:[%s0 + $0xb0] sm:$0xff]
  %v38 = vld [vmem:[%s0 + $0xb8] sm:$0xff]
  %v39 = vld [vmem:[%s0 + $0xc0] sm:$0xff]
  %v40 = vld [vmem:[%s0 + $0xc8] sm:$0xff]
  %v41 = vld [vmem:[%s0 + $0xd0] sm:$0xff]
  %v42 = vld [vmem:[%s0 + $0xd8] sm:$0xff]
  %v43 = vld [vmem:[%s0 + $0xe0] sm:$0xff]
  %v44 = vld [vmem:[%s0 + $0xe8] sm:$0xff]
  %v45 = vld [vmem:[%s0 + $0xf0] sm:$0xff]
  %v46 = vld [vmem:[%s0 + $0xf8] sm:$0xff]
  %v47 = vld [vmem:[%s0 + $0x100] sm:$0xff]
  %v48 = vld [vmem:[%s0 + $0x108] sm:$0xff]
  %v49 = vld [vmem:[%s0 + $0x110] sm:$0xff]
  %v50 = vld [vmem:[%s0 + $0x118] sm:$0xff]
  %v51 = vld [vmem:[%s0 + $0x120] sm:$0xff]
  %v52 = vld [vmem:[%s0 + $0x128] sm:$0xff]
  %v53 = vld [vmem:[%s0 + $0x130] sm:$0xff]
  %v54 = vld [vmem:[%s0 + $0x138] sm:$0xff]
  %v55 = vld [vmem:[%s0 + $0x140] sm:$0xff]
  %v56 = vld [vmem:[%s0 + $0x148] sm:$0xff]
  %v57 = vld [vmem:[%s0 + $0x150] sm:$0xff]
  %v58 = vld [vmem:[%s0 + $0x158] sm:$0xff]
  %v59 = vld [vmem:[%s0 + $0x160] sm:$0xff]
  %v60 = vld [vmem:[%s0 + $0x168] sm:$0xff]
  %v61 = vld [vmem:[%s0 + $0x170] sm:$0xff]
  %v62 = vld [vmem:[%s0 + $0x178] sm:$0xff]
  %v63 = vld [vmem:[%s0 + $0x180] sm:$0xff]
  %v64 = vld [vmem:[%s0 + $0x188] sm:$0xff]
  %v65 = vld [vmem:[%s0 + $0x190] sm:$0xff]
  %v66 = vld [vmem:[%s0 + $0x198] sm:$0xff]
  %v67 = vld [vmem:[%s0 + $0x1a0] sm:$0xff]
  %v68 = vld [vmem:[%s0 + $0x1a8] sm:$0xff]
  %v69 = vld [vmem:[%s0 + $0x1b0] sm:$0xff]
  %v70 = vld [vmem:[%s0 + $0x1b8] sm:$0xff]
  %v71 = vld [vmem:[%s0 + $0x1c0] sm:$0xff]
  %v72 = vld [vmem:[%s0 + $0x1c8] sm:$0xff]
  %v73 = vld [vmem:[%s0 + $0x1d0] sm:$0xff]
  %v74 = vld [vmem:[%s0 + $0x1d8] sm:$0xff]
  %v75 = vld [vmem:[%s0 + $0x1e0] sm:$0xff]
  %v76 = vld [vmem:[%s0 + $0x1e8] sm:$0xff]
  %v77 = vld [vmem:[%s0 + $0x1f0] sm:$0xff]
  %v78 = vld [vmem:[%s0 + $0x1f8] sm:$0xff]
  %v79 = vld [vmem:[%s1] sm:$0xf]
  %v80 = vld [vmem:[%s1 + $0x4] sm:$0xf]
  %v81 = vld [vmem:[%s1 + $0x8] sm:$0xf]
  %v82 = vld [vmem:[%s1 + $0xc] sm:$0xf]
  %v83 = vld [vmem:[%s1 + $0x10] sm:$0xf]
  %v84 = vld [vmem:[%s1 + $0x14] sm:$0xf]
  %v85 = vld [vmem:[%s1 + $0x18] sm:$0xf]
  %v86 = vld [vmem:[%s1 + $0x1c] sm:$0xf]
  %v87 = vld [vmem:[%s1 + $0x20] sm:$0xf]
  %v88 = vld [vmem:[%s1 + $0x24] sm:$0xf]
  %v89 = vld [vmem:[%s1 + $0x28] sm:$0xf]
  %v90 = vld [vmem:[%s1 + $0x2c] sm:$0xf]
  %v91 = vld [vmem:[%s1 + $0x30] sm:$0xf]
  %v92 = vld [vmem:[%s1 + $0x34] sm:$0xf]
  %v93 = vld [vmem:[%s1 + $0x38] sm:$0xf]
  %v94 = vld [vmem:[%s1 + $0x3c] sm:$0xf]
  %v95 = vld [vmem:[%s1 + $0x40] sm:$0xf]
  %v96 = vld [vmem:[%s1 + $0x44] sm:$0xf]
  %v97 = vld [vmem:[%s2] sm:$0x1]
  %v99 = vlaneseq
  %v100 = vshrl.u32 %v99, 7
  %v101 = vsub.s32 0, %v100
  %v102 = vrot.slane %v97, %v101
  %v168 = vunpack.c.l.b16 %v15
  %v169 = vunpack.c.h.b16 %v15
  %v170 = vunpack.c.l.b16 %v16
  %v171 = vunpack.c.h.b16 %v16
  %v172 = vunpack.c.l.b16 %v17
  %v173 = vunpack.c.h.b16 %v17
  %v174 = vunpack.c.l.b16 %v18
  %v175 = vunpack.c.h.b16 %v18
  %v176 = vunpack.c.l.b16 %v19
  %v177 = vunpack.c.h.b16 %v19
  %v178 = vunpack.c.l.b16 %v20
  %v179 = vunpack.c.h.b16 %v20
  %v180 = vunpack.c.l.b16 %v21
  %v181 = vunpack.c.h.b16 %v21
  %v182 = vunpack.c.l.b16 %v22
  %v183 = vunpack.c.h.b16 %v22
  %v184 = vunpack.c.l.b16 %v23
  %v185 = vunpack.c.h.b16 %v23
  %v186 = vunpack.c.l.b16 %v24
  %v187 = vunpack.c.h.b16 %v24
  %v188 = vunpack.c.l.b16 %v25
  %v189 = vunpack.c.h.b16 %v25
  %v190 = vunpack.c.l.b16 %v26
  %v191 = vunpack.c.h.b16 %v26
  %v192 = vunpack.c.l.b16 %v27
  %v193 = vunpack.c.h.b16 %v27
  %v194 = vunpack.c.l.b16 %v28
  %v195 = vunpack.c.h.b16 %v28
  %v196 = vunpack.c.l.b16 %v29
  %v197 = vunpack.c.h.b16 %v29
  %v198 = vunpack.c.l.b16 %v30
  %v199 = vunpack.c.h.b16 %v30
  %v200 = vunpack.c.l.b16 %v31
  %v201 = vunpack.c.h.b16 %v31
  %v202 = vunpack.c.l.b16 %v32
  %v203 = vunpack.c.h.b16 %v32
  %v204 = vunpack.c.l.b16 %v33
  %v205 = vunpack.c.h.b16 %v33
  %v206 = vunpack.c.l.b16 %v34
  %v207 = vunpack.c.h.b16 %v34
  %v208 = vunpack.c.l.b16 %v35
  %v209 = vunpack.c.h.b16 %v35
  %v210 = vunpack.c.l.b16 %v36
  %v211 = vunpack.c.h.b16 %v36
  %v212 = vunpack.c.l.b16 %v37
  %v213 = vunpack.c.h.b16 %v37
  %v214 = vunpack.c.l.b16 %v38
  %v215 = vunpack.c.h.b16 %v38
  %v216 = vunpack.c.l.b16 %v39
  %v217 = vunpack.c.h.b16 %v39
  %v218 = vunpack.c.l.b16 %v40
  %v219 = vunpack.c.h.b16 %v40
  %v220 = vunpack.c.l.b16 %v41
  %v221 = vunpack.c.h.b16 %v41
  %v222 = vunpack.c.l.b16 %v42
  %v223 = vunpack.c.h.b16 %v42
  %v224 = vunpack.c.l.b16 %v43
  %v225 = vunpack.c.h.b16 %v43
  %v226 = vunpack.c.l.b16 %v44
  %v227 = vunpack.c.h.b16 %v44
  %v228 = vunpack.c.l.b16 %v45
  %v229 = vunpack.c.h.b16 %v45
  %v230 = vunpack.c.l.b16 %v46
  %v231 = vunpack.c.h.b16 %v46
  %v232 = vunpack.c.l.b16 %v47
  %v233 = vunpack.c.h.b16 %v47
  %v234 = vunpack.c.l.b16 %v48
  %v235 = vunpack.c.h.b16 %v48
  %v236 = vunpack.c.l.b16 %v49
  %v237 = vunpack.c.h.b16 %v49
  %v238 = vunpack.c.l.b16 %v50
  %v239 = vunpack.c.h.b16 %v50
  %v240 = vunpack.c.l.b16 %v51
  %v241 = vunpack.c.h.b16 %v51
  %v242 = vunpack.c.l.b16 %v52
  %v243 = vunpack.c.h.b16 %v52
  %v244 = vunpack.c.l.b16 %v53
  %v245 = vunpack.c.h.b16 %v53
  %v246 = vunpack.c.l.b16 %v54
  %v247 = vunpack.c.h.b16 %v54
  %v248 = vunpack.c.l.b16 %v55
  %v249 = vunpack.c.h.b16 %v55
  %v250 = vunpack.c.l.b16 %v56
  %v251 = vunpack.c.h.b16 %v56
  %v252 = vunpack.c.l.b16 %v57
  %v253 = vunpack.c.h.b16 %v57
  %v254 = vunpack.c.l.b16 %v58
  %v255 = vunpack.c.h.b16 %v58
  %v256 = vunpack.c.l.b16 %v59
  %v257 = vunpack.c.h.b16 %v59
  %v258 = vunpack.c.l.b16 %v60
  %v259 = vunpack.c.h.b16 %v60
  %v260 = vunpack.c.l.b16 %v61
  %v261 = vunpack.c.h.b16 %v61
  %v262 = vunpack.c.l.b16 %v62
  %v263 = vunpack.c.h.b16 %v62
  %v264 = vunpack.c.l.b16 %v63
  %v265 = vunpack.c.h.b16 %v63
  %v266 = vunpack.c.l.b16 %v64
  %v267 = vunpack.c.h.b16 %v64
  %v268 = vunpack.c.l.b16 %v65
  %v269 = vunpack.c.h.b16 %v65
  %v270 = vunpack.c.l.b16 %v66
  %v271 = vunpack.c.h.b16 %v66
  %v272 = vunpack.c.l.b16 %v67
  %v273 = vunpack.c.h.b16 %v67
  %v274 = vunpack.c.l.b16 %v68
  %v275 = vunpack.c.h.b16 %v68
  %v276 = vunpack.c.l.b16 %v69
  %v277 = vunpack.c.h.b16 %v69
  %v278 = vunpack.c.l.b16 %v70
  %v279 = vunpack.c.h.b16 %v70
  %v280 = vunpack.c.l.b16 %v71
  %v281 = vunpack.c.h.b16 %v71
  %v282 = vunpack.c.l.b16 %v72
  %v283 = vunpack.c.h.b16 %v72
  %v284 = vunpack.c.l.b16 %v73
  %v285 = vunpack.c.h.b16 %v73
  %v286 = vunpack.c.l.b16 %v74
  %v287 = vunpack.c.h.b16 %v74
  %v288 = vunpack.c.l.b16 %v75
  %v289 = vunpack.c.h.b16 %v75
  %v290 = vunpack.c.l.b16 %v76
  %v291 = vunpack.c.h.b16 %v76
  %v292 = vunpack.c.l.b16 %v77
  %v293 = vunpack.c.h.b16 %v77
  %v294 = vunpack.c.l.b16 %v78
  %v295 = vunpack.c.h.b16 %v78
  %v296 = vpack.c.b16 %v170, %v168
  %v297 = vpack.c.b16 %v171, %v169
  %v298 = vpack.c.b16 %v174, %v172
  %v299 = vpack.c.b16 %v175, %v173
  %v300 = vpack.c.b16 %v178, %v176
  %v301 = vpack.c.b16 %v179, %v177
  %v302 = vpack.c.b16 %v182, %v180
  %v303 = vpack.c.b16 %v183, %v181
  %v304 = vpack.c.b16 %v186, %v184
  %v305 = vpack.c.b16 %v187, %v185
  %v306 = vpack.c.b16 %v190, %v188
  %v307 = vpack.c.b16 %v191, %v189
  %v308 = vpack.c.b16 %v194, %v192
  %v309 = vpack.c.b16 %v195, %v193
  %v310 = vpack.c.b16 %v198, %v196
  %v311 = vpack.c.b16 %v199, %v197
  %v312 = vpack.c.b16 %v202, %v200
  %v313 = vpack.c.b16 %v203, %v201
  %v314 = vpack.c.b16 %v206, %v204
  %v315 = vpack.c.b16 %v207, %v205
  %v316 = vpack.c.b16 %v210, %v208
  %v317 = vpack.c.b16 %v211, %v209
  %v318 = vpack.c.b16 %v214, %v212
  %v319 = vpack.c.b16 %v215, %v213
  %v320 = vpack.c.b16 %v218, %v216
  %v321 = vpack.c.b16 %v219, %v217
  %v322 = vpack.c.b16 %v222, %v220
  %v323 = vpack.c.b16 %v223, %v221
  %v324 = vpack.c.b16 %v226, %v224
  %v325 = vpack.c.b16 %v227, %v225
  %v326 = vpack.c.b16 %v230, %v228
  %v327 = vpack.c.b16 %v231, %v229
  %v328 = vpack.c.b16 %v234, %v232
  %v329 = vpack.c.b16 %v235, %v233
  %v330 = vpack.c.b16 %v238, %v236
  %v331 = vpack.c.b16 %v239, %v237
  %v332 = vpack.c.b16 %v242, %v240
  %v333 = vpack.c.b16 %v243, %v241
  %v334 = vpack.c.b16 %v246, %v244
  %v335 = vpack.c.b16 %v247, %v245
  %v336 = vpack.c.b16 %v250, %v248
  %v337 = vpack.c.b16 %v251, %v249
  %v338 = vpack.c.b16 %v254, %v252
  %v339 = vpack.c.b16 %v255, %v253
  %v340 = vpack.c.b16 %v258, %v256
  %v341 = vpack.c.b16 %v259, %v257
  %v342 = vpack.c.b16 %v262, %v260
  %v343 = vpack.c.b16 %v263, %v261
  %v344 = vpack.c.b16 %v266, %v264
  %v345 = vpack.c.b16 %v267, %v265
  %v346 = vpack.c.b16 %v270, %v268
  %v347 = vpack.c.b16 %v271, %v269
  %v348 = vpack.c.b16 %v274, %v272
  %v349 = vpack.c.b16 %v275, %v273
  %v350 = vpack.c.b16 %v278, %v276
  %v351 = vpack.c.b16 %v279, %v277
  %v352 = vpack.c.b16 %v282, %v280
  %v353 = vpack.c.b16 %v283, %v281
  %v354 = vpack.c.b16 %v286, %v284
  %v355 = vpack.c.b16 %v287, %v285
  %v356 = vpack.c.b16 %v290, %v288
  %v357 = vpack.c.b16 %v291, %v289
  %v358 = vpack.c.b16 %v294, %v292
  %v359 = vpack.c.b16 %v295, %v293
  %v410 = vunpack.c.l.b16 %v79
  %v411 = vunpack.c.l.b16 %v80
  %v412 = vunpack.c.l.b16 %v81
  %v413 = vunpack.c.l.b16 %v82
  %v414 = vunpack.c.l.b16 %v83
  %v415 = vunpack.c.l.b16 %v84
  %v416 = vunpack.c.l.b16 %v85
  %v417 = vunpack.c.l.b16 %v86
  %v418 = vunpack.c.l.b16 %v87
  %v419 = vunpack.c.l.b16 %v88
  %v420 = vunpack.c.l.b16 %v89
  %v421 = vunpack.c.l.b16 %v90
  %v422 = vunpack.c.l.b16 %v91
  %v423 = vunpack.c.l.b16 %v92
  %v424 = vunpack.c.l.b16 %v93
  %v425 = vunpack.c.l.b16 %v94
  %v426 = vunpack.c.l.b16 %v95
  %v427 = vunpack.c.l.b16 %v96
  %v428 = vpack.c.b16 %v411, %v410
  %v429 = vpack.c.b16 %v413, %v412
  %v430 = vpack.c.b16 %v415, %v414
  %v431 = vpack.c.b16 %v417, %v416
  %v432 = vpack.c.b16 %v419, %v418
  %v433 = vpack.c.b16 %v421, %v420
  %v434 = vpack.c.b16 %v423, %v422
  %v435 = vpack.c.b16 %v425, %v424
  %v436 = vpack.c.b16 %v427, %v426
  %vm446 = vcmask 130048
  %v448 = vsel %vm446, %v297, 0
  %v451 = vsel %vm446, %v299, 0
  %v454 = vsel %vm446, %v301, 0
  %v457 = vsel %vm446, %v303, 0
  %v460 = vsel %vm446, %v305, 0
  %v463 = vsel %vm446, %v307, 0
  %v466 = vsel %vm446, %v309, 0
  %v469 = vsel %vm446, %v311, 0
  %v472 = vsel %vm446, %v313, 0
  %v475 = vsel %vm446, %v315, 0
  %v478 = vsel %vm446, %v317, 0
  %v481 = vsel %vm446, %v319, 0
  %v484 = vsel %vm446, %v321, 0
  %v487 = vsel %vm446, %v323, 0
  %v490 = vsel %vm446, %v325, 0
  %v493 = vsel %vm446, %v327, 0
  %v496 = vsel %vm446, %v329, 0
  %v499 = vsel %vm446, %v331, 0
  %v502 = vsel %vm446, %v333, 0
  %v505 = vsel %vm446, %v335, 0
  %v508 = vsel %vm446, %v337, 0
  %v511 = vsel %vm446, %v339, 0
  %v514 = vsel %vm446, %v341, 0
  %v517 = vsel %vm446, %v343, 0
  %v520 = vsel %vm446, %v345, 0
  %v523 = vsel %vm446, %v347, 0
  %v526 = vsel %vm446, %v349, 0
  %v529 = vsel %vm446, %v351, 0
  %v532 = vsel %vm446, %v353, 0
  %v535 = vsel %vm446, %v355, 0
  %v538 = vsel %vm446, %v357, 0
  %v541 = vsel %vm446, %v359, 0
  %543 = vmatprep.subr.bf16.mxu0 0
  %544 = vmatpush1.bf16.msra.mxu0 %v428
  %545 = vmatprep.subr.bf16.mxu0 0
  %546 = vmatpush1.bf16.msra.mxu0 %v429
  %547 = vmatprep.subr.bf16.mxu0 0
  %548 = vmatpush1.bf16.msra.mxu0 %v430
  %549 = vmatprep.subr.bf16.mxu0 0
  %550 = vmatpush1.bf16.msra.mxu0 %v431
  %551 = vmatprep.subr.bf16.mxu0 0
  %552 = vmatpush1.bf16.msra.mxu0 %v432
  %553 = vmatprep.subr.bf16.mxu0 0
  %554 = vmatpush1.bf16.msra.mxu0 %v433
  %555 = vmatprep.subr.bf16.mxu0 0
  %556 = vmatpush1.bf16.msra.mxu0 %v434
  %557 = vmatprep.subr.bf16.mxu0 0
  %558 = vmatpush1.bf16.msra.mxu0 %v435
  %559 = vmatprep.subr.bf16.mxu0 0
  %560 = vmatpush1.bf16.msra.mxu0 %v436
  %561 = vmatprep.subr.bf16.mxu0 0
  %562 = vmatpush1.bf16.msra.mxu0 0
  %563 = vmatprep.subr.bf16.mxu0 0
  %564 = vmatpush1.bf16.msra.mxu0 0
  %565 = vmatprep.subr.bf16.mxu0 0
  %566 = vmatpush1.bf16.msra.mxu0 0
  %567 = vmatprep.subr.bf16.mxu0 0
  %568 = vmatpush1.bf16.msra.mxu0 0
  %569 = vmatprep.subr.bf16.mxu0 0
  %570 = vmatpush1.bf16.msra.mxu0 0
  %571 = vmatprep.subr.bf16.mxu0 0
  %572 = vmatpush1.bf16.msra.mxu0 0
  %573 = vmatprep.subr.bf16.mxu0 0
  %574 = vmatpush1.bf16.msra.mxu0 0
  %575 = vmatprep.mubr.bf16.mxu0 %v448
  %576 = vmatmul.mubr.bf16.gmra.mrb[0].mxu0 %v296
  %v577 = vpop.f32.mrb[0].mxu0
  %v578 = vadd.f32 %v102, %v577
  %v579 = vpop.f32.mrb[0].mxu0
  %v580 = vpop.f32.mrb[0].mxu0
  %v581 = vadd.f32 %v102, %v580
  %v582 = vpop.f32.mrb[0].mxu0
  %583 = vmatprep.mubr.bf16.mxu0 %v451
  %584 = vmatmul.mubr.bf16.gmra.mrb[0].mxu0 %v298
  %v585 = vpop.f32.mrb[0].mxu0
  %v586 = vadd.f32 %v102, %v585
  %v587 = vpop.f32.mrb[0].mxu0
  %v588 = vpop.f32.mrb[0].mxu0
  %v589 = vadd.f32 %v102, %v588
  %v590 = vpop.f32.mrb[0].mxu0
  %591 = vmatprep.mubr.bf16.mxu0 %v454
  %592 = vmatmul.mubr.bf16.gmra.mrb[0].mxu0 %v300
  %v593 = vpop.f32.mrb[0].mxu0
  %v594 = vadd.f32 %v102, %v593
  %v595 = vpop.f32.mrb[0].mxu0
  %v596 = vpop.f32.mrb[0].mxu0
  %v597 = vadd.f32 %v102, %v596
  %v598 = vpop.f32.mrb[0].mxu0
  %599 = vmatprep.mubr.bf16.mxu0 %v457
  %600 = vmatmul.mubr.bf16.gmra.mrb[0].mxu0 %v302
  %v601 = vpop.f32.mrb[0].mxu0
  %v602 = vadd.f32 %v102, %v601
  %v603 = vpop.f32.mrb[0].mxu0
  %v604 = vpop.f32.mrb[0].mxu0
  %v605 = vadd.f32 %v102, %v604
  %v606 = vpop.f32.mrb[0].mxu0
  %607 = vmatprep.mubr.bf16.mxu0 %v460
  %608 = vmatmul.mubr.bf16.gmra.mrb[0].mxu0 %v304
  %v609 = vpop.f32.mrb[0].mxu0
  %v610 = vadd.f32 %v102, %v609
  %v611 = vpop.f32.mrb[0].mxu0
  %v612 = vpop.f32.mrb[0].mxu0
  %v613 = vadd.f32 %v102, %v612
  %v614 = vpop.f32.mrb[0].mxu0
  %615 = vmatprep.mubr.bf16.mxu0 %v463
  %616 = vmatmul.mubr.bf16.gmra.mrb[0].mxu0 %v306
  %v617 = vpop.f32.mrb[0].mxu0
  %v618 = vadd.f32 %v102, %v617
  %v619 = vpop.f32.mrb[0].mxu0
  %v620 = vpop.f32.mrb[0].mxu0
  %v621 = vadd.f32 %v102, %v620
  %v622 = vpop.f32.mrb[0].mxu0
  %623 = vmatprep.mubr.bf16.mxu0 %v466
  %624 = vmatmul.mubr.bf16.gmra.mrb[0].mxu0 %v308
  %v625 = vpop.f32.mrb[0].mxu0
  %v626 = vadd.f32 %v102, %v625
  %v627 = vpop.f32.mrb[0].mxu0
  %v628 = vpop.f32.mrb[0].mxu0
  %v629 = vadd.f32 %v102, %v628
  %v630 = vpop.f32.mrb[0].mxu0
  %631 = vmatprep.mubr.bf16.mxu0 %v469
  %632 = vmatmul.mubr.bf16.gmra.mrb[0].mxu0 %v310
  %v633 = vpop.f32.mrb[0].mxu0
  %v634 = vadd.f32 %v102, %v633
  %v635 = vpop.f32.mrb[0].mxu0
  %v636 = vpop.f32.mrb[0].mxu0
  %v637 = vadd.f32 %v102, %v636
  %v638 = vpop.f32.mrb[0].mxu0
  %639 = vmatprep.mubr.bf16.mxu0 %v472
  %640 = vmatmul.mubr.bf16.gmra.mrb[0].mxu0 %v312
  %v641 = vpop.f32.mrb[0].mxu0
  %v642 = vadd.f32 %v102, %v641
  %v643 = vpop.f32.mrb[0].mxu0
  %v644 = vpop.f32.mrb[0].mxu0
  %v645 = vadd.f32 %v102, %v644
  %v646 = vpop.f32.mrb[0].mxu0
  %647 = vmatprep.mubr.bf16.mxu0 %v475
  %648 = vmatmul.mubr.bf16.gmra.mrb[0].mxu0 %v314
  %v649 = vpop.f32.mrb[0].mxu0
  %v650 = vadd.f32 %v102, %v649
  %v651 = vpop.f32.mrb[0].mxu0
  %v652 = vpop.f32.mrb[0].mxu0
  %v653 = vadd.f32 %v102, %v652
  %v654 = vpop.f32.mrb[0].mxu0
  %655 = vmatprep.mubr.bf16.mxu0 %v478
  %656 = vmatmul.mubr.bf16.gmra.mrb[0].mxu0 %v316
  %v657 = vpop.f32.mrb[0].mxu0
  %v658 = vadd.f32 %v102, %v657
  %v659 = vpop.f32.mrb[0].mxu0
  %v660 = vpop.f32.mrb[0].mxu0
  %v661 = vadd.f32 %v102, %v660
  %v662 = vpop.f32.mrb[0].mxu0
  %663 = vmatprep.mubr.bf16.mxu0 %v481
  %664 = vmatmul.mubr.bf16.gmra.mrb[0].mxu0 %v318
  %v665 = vpop.f32.mrb[0].mxu0
  %v666 = vadd.f32 %v102, %v665
  %v667 = vpop.f32.mrb[0].mxu0
  %v668 = vpop.f32.mrb[0].mxu0
  %v669 = vadd.f32 %v102, %v668
  %v670 = vpop.f32.mrb[0].mxu0
  %671 = vmatprep.mubr.bf16.mxu0 %v484
  %672 = vmatmul.mubr.bf16.gmra.mrb[0].mxu0 %v320
  %v673 = vpop.f32.mrb[0].mxu0
  %v674 = vadd.f32 %v102, %v673
  %v675 = vpop.f32.mrb[0].mxu0
  %v676 = vpop.f32.mrb[0].mxu0
  %v677 = vadd.f32 %v102, %v676
  %v678 = vpop.f32.mrb[0].mxu0
  %679 = vmatprep.mubr.bf16.mxu0 %v487
  %680 = vmatmul.mubr.bf16.gmra.mrb[0].mxu0 %v322
  %v681 = vpop.f32.mrb[0].mxu0
  %v682 = vadd.f32 %v102, %v681
  %v683 = vpop.f32.mrb[0].mxu0
  %v684 = vpop.f32.mrb[0].mxu0
  %v685 = vadd.f32 %v102, %v684
  %v686 = vpop.f32.mrb[0].mxu0
  %687 = vmatprep.mubr.bf16.mxu0 %v490
  %688 = vmatmul.mubr.bf16.gmra.mrb[0].mxu0 %v324
  %v689 = vpop.f32.mrb[0].mxu0
  %v690 = vadd.f32 %v102, %v689
  %v691 = vpop.f32.mrb[0].mxu0
  %v692 = vpop.f32.mrb[0].mxu0
  %v693 = vadd.f32 %v102, %v692
  %v694 = vpop.f32.mrb[0].mxu0
  %695 = vmatprep.mubr.bf16.mxu0 %v493
  %696 = vmatmul.mubr.bf16.gmra.mrb[0].mxu0 %v326
  %v697 = vpop.f32.mrb[0].mxu0
  %v698 = vadd.f32 %v102, %v697
  %v699 = vpop.f32.mrb[0].mxu0
  %v700 = vpop.f32.mrb[0].mxu0
  %v701 = vadd.f32 %v102, %v700
  %v702 = vpop.f32.mrb[0].mxu0
  %703 = vmatprep.mubr.bf16.mxu0 %v496
  %704 = vmatmul.mubr.bf16.gmra.mrb[0].mxu0 %v328
  %v705 = vpop.f32.mrb[0].mxu0
  %v706 = vadd.f32 %v102, %v705
  %v707 = vpop.f32.mrb[0].mxu0
  %v708 = vpop.f32.mrb[0].mxu0
  %v709 = vadd.f32 %v102, %v708
  %v710 = vpop.f32.mrb[0].mxu0
  %711 = vmatprep.mubr.bf16.mxu0 %v499
  %712 = vmatmul.mubr.bf16.gmra.mrb[0].mxu0 %v330
  %v713 = vpop.f32.mrb[0].mxu0
  %v714 = vadd.f32 %v102, %v713
  %v715 = vpop.f32.mrb[0].mxu0
  %v716 = vpop.f32.mrb[0].mxu0
  %v717 = vadd.f32 %v102, %v716
  %v718 = vpop.f32.mrb[0].mxu0
  %719 = vmatprep.mubr.bf16.mxu0 %v502
  %720 = vmatmul.mubr.bf16.gmra.mrb[0].mxu0 %v332
  %v721 = vpop.f32.mrb[0].mxu0
  %v722 = vadd.f32 %v102, %v721
  %v723 = vpop.f32.mrb[0].mxu0
  %v724 = vpop.f32.mrb[0].mxu0
  %v725 = vadd.f32 %v102, %v724
  %v726 = vpop.f32.mrb[0].mxu0
  %727 = vmatprep.mubr.bf16.mxu0 %v505
  %728 = vmatmul.mubr.bf16.gmra.mrb[0].mxu0 %v334
  %v729 = vpop.f32.mrb[0].mxu0
  %v730 = vadd.f32 %v102, %v729
  %v731 = vpop.f32.mrb[0].mxu0
  %v732 = vpop.f32.mrb[0].mxu0
  %v733 = vadd.f32 %v102, %v732
  %v734 = vpop.f32.mrb[0].mxu0
  %735 = vmatprep.mubr.bf16.mxu0 %v508
  %736 = vmatmul.mubr.bf16.gmra.mrb[0].mxu0 %v336
  %v737 = vpop.f32.mrb[0].mxu0
  %v738 = vadd.f32 %v102, %v737
  %v739 = vpop.f32.mrb[0].mxu0
  %v740 = vpop.f32.mrb[0].mxu0
  %v741 = vadd.f32 %v102, %v740
  %v742 = vpop.f32.mrb[0].mxu0
  %743 = vmatprep.mubr.bf16.mxu0 %v511
  %744 = vmatmul.mubr.bf16.gmra.mrb[0].mxu0 %v338
  %v745 = vpop.f32.mrb[0].mxu0
  %v746 = vadd.f32 %v102, %v745
  %v747 = vpop.f32.mrb[0].mxu0
  %v748 = vpop.f32.mrb[0].mxu0
  %v749 = vadd.f32 %v102, %v748
  %v750 = vpop.f32.mrb[0].mxu0
  %751 = vmatprep.mubr.bf16.mxu0 %v514
  %752 = vmatmul.mubr.bf16.gmra.mrb[0].mxu0 %v340
  %v753 = vpop.f32.mrb[0].mxu0
  %v754 = vadd.f32 %v102, %v753
  %v755 = vpop.f32.mrb[0].mxu0
  %v756 = vpop.f32.mrb[0].mxu0
  %v757 = vadd.f32 %v102, %v756
  %v758 = vpop.f32.mrb[0].mxu0
  %759 = vmatprep.mubr.bf16.mxu0 %v517
  %760 = vmatmul.mubr.bf16.gmra.mrb[0].mxu0 %v342
  %v761 = vpop.f32.mrb[0].mxu0
  %v762 = vadd.f32 %v102, %v761
  %v763 = vpop.f32.mrb[0].mxu0
  %v764 = vpop.f32.mrb[0].mxu0
  %v765 = vadd.f32 %v102, %v764
  %v766 = vpop.f32.mrb[0].mxu0
  %767 = vmatprep.mubr.bf16.mxu0 %v520
  %768 = vmatmul.mubr.bf16.gmra.mrb[0].mxu0 %v344
  %v769 = vpop.f32.mrb[0].mxu0
  %v770 = vadd.f32 %v102, %v769
  %v771 = vpop.f32.mrb[0].mxu0
  %v772 = vpop.f32.mrb[0].mxu0
  %v773 = vadd.f32 %v102, %v772
  %v774 = vpop.f32.mrb[0].mxu0
  %775 = vmatprep.mubr.bf16.mxu0 %v523
  %776 = vmatmul.mubr.bf16.gmra.mrb[0].mxu0 %v346
  %v777 = vpop.f32.mrb[0].mxu0
  %v778 = vadd.f32 %v102, %v777
  %v779 = vpop.f32.mrb[0].mxu0
  %v780 = vpop.f32.mrb[0].mxu0
  %v781 = vadd.f32 %v102, %v780
  %v782 = vpop.f32.mrb[0].mxu0
  %783 = vmatprep.mubr.bf16.mxu0 %v526
  %784 = vmatmul.mubr.bf16.gmra.mrb[0].mxu0 %v348
  %v785 = vpop.f32.mrb[0].mxu0
  %v786 = vadd.f32 %v102, %v785
  %v787 = vpop.f32.mrb[0].mxu0
  %v788 = vpop.f32.mrb[0].mxu0
  %v789 = vadd.f32 %v102, %v788
  %v790 = vpop.f32.mrb[0].mxu0
  %791 = vmatprep.mubr.bf16.mxu0 %v529
  %792 = vmatmul.mubr.bf16.gmra.mrb[0].mxu0 %v350
  %v793 = vpop.f32.mrb[0].mxu0
  %v794 = vadd.f32 %v102, %v793
  %v795 = vpop.f32.mrb[0].mxu0
  %v796 = vpop.f32.mrb[0].mxu0
  %v797 = vadd.f32 %v102, %v796
  %v798 = vpop.f32.mrb[0].mxu0
  %799 = vmatprep.mubr.bf16.mxu0 %v532
  %800 = vmatmul.mubr.bf16.gmra.mrb[0].mxu0 %v352
  %v801 = vpop.f32.mrb[0].mxu0
  %v802 = vadd.f32 %v102, %v801
  %v803 = vpop.f32.mrb[0].mxu0
  %v804 = vpop.f32.mrb[0].mxu0
  %v805 = vadd.f32 %v102, %v804
  %v806 = vpop.f32.mrb[0].mxu0
  %807 = vmatprep.mubr.bf16.mxu0 %v535
  %808 = vmatmul.mubr.bf16.gmra.mrb[0].mxu0 %v354
  %v809 = vpop.f32.mrb[0].mxu0
  %v810 = vadd.f32 %v102, %v809
  %v811 = vpop.f32.mrb[0].mxu0
  %v812 = vpop.f32.mrb[0].mxu0
  %v813 = vadd.f32 %v102, %v812
  %v814 = vpop.f32.mrb[0].mxu0
  %815 = vmatprep.mubr.bf16.mxu0 %v538
  %816 = vmatmul.mubr.bf16.gmra.mrb[0].mxu0 %v356
  %v817 = vpop.f32.mrb[0].mxu0
  %v818 = vadd.f32 %v102, %v817
  %v819 = vpop.f32.mrb[0].mxu0
  %v820 = vpop.f32.mrb[0].mxu0
  %v821 = vadd.f32 %v102, %v820
  %v822 = vpop.f32.mrb[0].mxu0
  %823 = vmatprep.mubr.bf16.mxu0 %v541
  %824 = vmatmul.mubr.bf16.gmra.mrb[0].mxu0 %v358
  %v825 = vpop.f32.mrb[0].mxu0
  %v826 = vadd.f32 %v102, %v825
  %v827 = vpop.f32.mrb[0].mxu0
  %v828 = vpop.f32.mrb[0].mxu0
  %v829 = vadd.f32 %v102, %v828
  %v830 = vpop.f32.mrb[0].mxu0
  %831 = vdwg.mxu0
  %v832 = vpack.c.bf16 %v581, %v578
  %v833 = vpack.c.bf16 %v589, %v586
  %v834 = vpack.c.bf16 %v597, %v594
  %v835 = vpack.c.bf16 %v605, %v602
  %v836 = vpack.c.bf16 %v613, %v610
  %v837 = vpack.c.bf16 %v621, %v618
  %v838 = vpack.c.bf16 %v629, %v626
  %v839 = vpack.c.bf16 %v637, %v634
  %v840 = vpack.c.bf16 %v645, %v642
  %v841 = vpack.c.bf16 %v653, %v650
  %v842 = vpack.c.bf16 %v661, %v658
  %v843 = vpack.c.bf16 %v669, %v666
  %v844 = vpack.c.bf16 %v677, %v674
  %v845 = vpack.c.bf16 %v685, %v682
  %v846 = vpack.c.bf16 %v693, %v690
  %v847 = vpack.c.bf16 %v701, %v698
  %v848 = vpack.c.bf16 %v709, %v706
  %v849 = vpack.c.bf16 %v717, %v714
  %v850 = vpack.c.bf16 %v725, %v722
  %v851 = vpack.c.bf16 %v733, %v730
  %v852 = vpack.c.bf16 %v741, %v738
  %v853 = vpack.c.bf16 %v749, %v746
  %v854 = vpack.c.bf16 %v757, %v754
  %v855 = vpack.c.bf16 %v765, %v762
  %v856 = vpack.c.bf16 %v773, %v770
  %v857 = vpack.c.bf16 %v781, %v778
  %v858 = vpack.c.bf16 %v789, %v786
  %v859 = vpack.c.bf16 %v797, %v794
  %v860 = vpack.c.bf16 %v805, %v802
  %v861 = vpack.c.bf16 %v813, %v810
  %v862 = vpack.c.bf16 %v821, %v818
  %v863 = vpack.c.bf16 %v829, %v826
  %v896 = vunpack.c.l.b16 %v832
  %v897 = vunpack.c.h.b16 %v832
  %v898 = vunpack.c.l.b16 %v833
  %v899 = vunpack.c.h.b16 %v833
  %v900 = vunpack.c.l.b16 %v834
  %v901 = vunpack.c.h.b16 %v834
  %v902 = vunpack.c.l.b16 %v835
  %v903 = vunpack.c.h.b16 %v835
  %v904 = vunpack.c.l.b16 %v836
  %v905 = vunpack.c.h.b16 %v836
  %v906 = vunpack.c.l.b16 %v837
  %v907 = vunpack.c.h.b16 %v837
  %v908 = vunpack.c.l.b16 %v838
  %v909 = vunpack.c.h.b16 %v838
  %v910 = vunpack.c.l.b16 %v839
  %v911 = vunpack.c.h.b16 %v839
  %v912 = vunpack.c.l.b16 %v840
  %v913 = vunpack.c.h.b16 %v840
  %v914 = vunpack.c.l.b16 %v841
  %v915 = vunpack.c.h.b16 %v841
  %v916 = vunpack.c.l.b16 %v842
  %v917 = vunpack.c.h.b16 %v842
  %v918 = vunpack.c.l.b16 %v843
  %v919 = vunpack.c.h.b16 %v843
  %v920 = vunpack.c.l.b16 %v844
  %v921 = vunpack.c.h.b16 %v844
  %v922 = vunpack.c.l.b16 %v845
  %v923 = vunpack.c.h.b16 %v845
  %v924 = vunpack.c.l.b16 %v846
  %v925 = vunpack.c.h.b16 %v846
  %v926 = vunpack.c.l.b16 %v847
  %v927 = vunpack.c.h.b16 %v847
  %v928 = vunpack.c.l.b16 %v848
  %v929 = vunpack.c.h.b16 %v848
  %v930 = vunpack.c.l.b16 %v849
  %v931 = vunpack.c.h.b16 %v849
  %v932 = vunpack.c.l.b16 %v850
  %v933 = vunpack.c.h.b16 %v850
  %v934 = vunpack.c.l.b16 %v851
  %v935 = vunpack.c.h.b16 %v851
  %v936 = vunpack.c.l.b16 %v852
  %v937 = vunpack.c.h.b16 %v852
  %v938 = vunpack.c.l.b16 %v853
  %v939 = vunpack.c.h.b16 %v853
  %v940 = vunpack.c.l.b16 %v854
  %v941 = vunpack.c.h.b16 %v854
  %v942 = vunpack.c.l.b16 %v855
  %v943 = vunpack.c.h.b16 %v855
  %v944 = vunpack.c.l.b16 %v856
  %v945 = vunpack.c.h.b16 %v856
  %v946 = vunpack.c.l.b16 %v857
  %v947 = vunpack.c.h.b16 %v857
  %v948 = vunpack.c.l.b16 %v858
  %v949 = vunpack.c.h.b16 %v858
  %v950 = vunpack.c.l.b16 %v859
  %v951 = vunpack.c.h.b16 %v859
  %v952 = vunpack.c.l.b16 %v860
  %v953 = vunpack.c.h.b16 %v860
  %v954 = vunpack.c.l.b16 %v861
  %v955 = vunpack.c.h.b16 %v861
  %v956 = vunpack.c.l.b16 %v862
  %v957 = vunpack.c.h.b16 %v862
  %v958 = vunpack.c.l.b16 %v863
  %v959 = vunpack.c.h.b16 %v863
  %v960 = vpack.c.b16 %v896, %v896
  %v961 = vpack.c.b16 %v897, %v897
  %v962 = vpack.c.b16 %v898, %v898
  %v963 = vpack.c.b16 %v899, %v899
  %v964 = vpack.c.b16 %v900, %v900
  %v965 = vpack.c.b16 %v901, %v901
  %v966 = vpack.c.b16 %v902, %v902
  %v967 = vpack.c.b16 %v903, %v903
  %v968 = vpack.c.b16 %v904, %v904
  %v969 = vpack.c.b16 %v905, %v905
  %v970 = vpack.c.b16 %v906, %v906
  %v971 = vpack.c.b16 %v907, %v907
  %v972 = vpack.c.b16 %v908, %v908
  %v973 = vpack.c.b16 %v909, %v909
  %v974 = vpack.c.b16 %v910, %v910
  %v975 = vpack.c.b16 %v911, %v911
  %v976 = vpack.c.b16 %v912, %v912
  %v977 = vpack.c.b16 %v913, %v913
  %v978 = vpack.c.b16 %v914, %v914
  %v979 = vpack.c.b16 %v915, %v915
  %v980 = vpack.c.b16 %v916, %v916
  %v981 = vpack.c.b16 %v917, %v917
  %v982 = vpack.c.b16 %v918, %v918
  %v983 = vpack.c.b16 %v919, %v919
  %v984 = vpack.c.b16 %v920, %v920
  %v985 = vpack.c.b16 %v921, %v921
  %v986 = vpack.c.b16 %v922, %v922
  %v987 = vpack.c.b16 %v923, %v923
  %v988 = vpack.c.b16 %v924, %v924
  %v989 = vpack.c.b16 %v925, %v925
  %v990 = vpack.c.b16 %v926, %v926
  %v991 = vpack.c.b16 %v927, %v927
  %v992 = vpack.c.b16 %v928, %v928
  %v993 = vpack.c.b16 %v929, %v929
  %v994 = vpack.c.b16 %v930, %v930
  %v995 = vpack.c.b16 %v931, %v931
  %v996 = vpack.c.b16 %v932, %v932
  %v997 = vpack.c.b16 %v933, %v933
  %v998 = vpack.c.b16 %v934, %v934
  %v999 = vpack.c.b16 %v935, %v935
  %v1000 = vpack.c.b16 %v936, %v936
  %v1001 = vpack.c.b16 %v937, %v937
  %v1002 = vpack.c.b16 %v938, %v938
  %v1003 = vpack.c.b16 %v939, %v939
  %v1004 = vpack.c.b16 %v940, %v940
  %v1005 = vpack.c.b16 %v941, %v941
  %v1006 = vpack.c.b16 %v942, %v942
  %v1007 = vpack.c.b16 %v943, %v943
  %v1008 = vpack.c.b16 %v944, %v944
  %v1009 = vpack.c.b16 %v945, %v945
  %v1010 = vpack.c.b16 %v946, %v946
  %v1011 = vpack.c.b16 %v947, %v947
  %v1012 = vpack.c.b16 %v948, %v948
  %v1013 = vpack.c.b16 %v949, %v949
  %v1014 = vpack.c.b16 %v950, %v950
  %v1015 = vpack.c.b16 %v951, %v951
  %v1016 = vpack.c.b16 %v952, %v952
  %v1017 = vpack.c.b16 %v953, %v953
  %v1018 = vpack.c.b16 %v954, %v954
  %v1019 = vpack.c.b16 %v955, %v955
  %v1020 = vpack.c.b16 %v956, %v956
  %v1021 = vpack.c.b16 %v957, %v957
  %v1022 = vpack.c.b16 %v958, %v958
  %v1023 = vpack.c.b16 %v959, %v959
  %vm1088 = vcmask 27648
  %1089 = vst.msk [vmem:[%s3] sm:$0xf] %vm1088, %v960
  %1090 = vst.msk [vmem:[%s3 + $0x4] sm:$0xf] %vm1088, %v961
  %1091 = vst.msk [vmem:[%s3 + $0x8] sm:$0xf] %vm1088, %v962
  %1092 = vst.msk [vmem:[%s3 + $0xc] sm:$0xf] %vm1088, %v963
  %1093 = vst.msk [vmem:[%s3 + $0x10] sm:$0xf] %vm1088, %v964
  %1094 = vst.msk [vmem:[%s3 + $0x14] sm:$0xf] %vm1088, %v965
  %1095 = vst.msk [vmem:[%s3 + $0x18] sm:$0xf] %vm1088, %v966
  %1096 = vst.msk [vmem:[%s3 + $0x1c] sm:$0xf] %vm1088, %v967
  %1097 = vst.msk [vmem:[%s3 + $0x20] sm:$0xf] %vm1088, %v968
  %1098 = vst.msk [vmem:[%s3 + $0x24] sm:$0xf] %vm1088, %v969
  %1099 = vst.msk [vmem:[%s3 + $0x28] sm:$0xf] %vm1088, %v970
  %1100 = vst.msk [vmem:[%s3 + $0x2c] sm:$0xf] %vm1088, %v971
  %1101 = vst.msk [vmem:[%s3 + $0x30] sm:$0xf] %vm1088, %v972
  %1102 = vst.msk [vmem:[%s3 + $0x34] sm:$0xf] %vm1088, %v973
  %1103 = vst.msk [vmem:[%s3 + $0x38] sm:$0xf] %vm1088, %v974
  %1104 = vst.msk [vmem:[%s3 + $0x3c] sm:$0xf] %vm1088, %v975
  %1105 = vst.msk [vmem:[%s3 + $0x40] sm:$0xf] %vm1088, %v976
  %1106 = vst.msk [vmem:[%s3 + $0x44] sm:$0xf] %vm1088, %v977
  %1107 = vst.msk [vmem:[%s3 + $0x48] sm:$0xf] %vm1088, %v978
  %1108 = vst.msk [vmem:[%s3 + $0x4c] sm:$0xf] %vm1088, %v979
  %1109 = vst.msk [vmem:[%s3 + $0x50] sm:$0xf] %vm1088, %v980
  %1110 = vst.msk [vmem:[%s3 + $0x54] sm:$0xf] %vm1088, %v981
  %1111 = vst.msk [vmem:[%s3 + $0x58] sm:$0xf] %vm1088, %v982
  %1112 = vst.msk [vmem:[%s3 + $0x5c] sm:$0xf] %vm1088, %v983
  %1113 = vst.msk [vmem:[%s3 + $0x60] sm:$0xf] %vm1088, %v984
  %1114 = vst.msk [vmem:[%s3 + $0x64] sm:$0xf] %vm1088, %v985
  %1115 = vst.msk [vmem:[%s3 + $0x68] sm:$0xf] %vm1088, %v986
  %1116 = vst.msk [vmem:[%s3 + $0x6c] sm:$0xf] %vm1088, %v987
  %1117 = vst.msk [vmem:[%s3 + $0x70] sm:$0xf] %vm1088, %v988
  %1118 = vst.msk [vmem:[%s3 + $0x74] sm:$0xf] %vm1088, %v989
  %1119 = vst.msk [vmem:[%s3 + $0x78] sm:$0xf] %vm1088, %v990
  %1120 = vst.msk [vmem:[%s3 + $0x7c] sm:$0xf] %vm1088, %v991
  %1121 = vst.msk [vmem:[%s3 + $0x80] sm:$0xf] %vm1088, %v992
  %1122 = vst.msk [vmem:[%s3 + $0x84] sm:$0xf] %vm1088, %v993
  %1123 = vst.msk [vmem:[%s3 + $0x88] sm:$0xf] %vm1088, %v994
  %1124 = vst.msk [vmem:[%s3 + $0x8c] sm:$0xf] %vm1088, %v995
  %1125 = vst.msk [vmem:[%s3 + $0x90] sm:$0xf] %vm1088, %v996
  %1126 = vst.msk [vmem:[%s3 + $0x94] sm:$0xf] %vm1088, %v997
  %1127 = vst.msk [vmem:[%s3 + $0x98] sm:$0xf] %vm1088, %v998
  %1128 = vst.msk [vmem:[%s3 + $0x9c] sm:$0xf] %vm1088, %v999
  %1129 = vst.msk [vmem:[%s3 + $0xa0] sm:$0xf] %vm1088, %v1000
  %1130 = vst.msk [vmem:[%s3 + $0xa4] sm:$0xf] %vm1088, %v1001
  %1131 = vst.msk [vmem:[%s3 + $0xa8] sm:$0xf] %vm1088, %v1002
  %1132 = vst.msk [vmem:[%s3 + $0xac] sm:$0xf] %vm1088, %v1003
  %1133 = vst.msk [vmem:[%s3 + $0xb0] sm:$0xf] %vm1088, %v1004
  %1134 = vst.msk [vmem:[%s3 + $0xb4] sm:$0xf] %vm1088, %v1005
  %1135 = vst.msk [vmem:[%s3 + $0xb8] sm:$0xf] %vm1088, %v1006
  %1136 = vst.msk [vmem:[%s3 + $0xbc] sm:$0xf] %vm1088, %v1007
  %1137 = vst.msk [vmem:[%s3 + $0xc0] sm:$0xf] %vm1088, %v1008
  %1138 = vst.msk [vmem:[%s3 + $0xc4] sm:$0xf] %vm1088, %v1009
  %1139 = vst.msk [vmem:[%s3 + $0xc8] sm:$0xf] %vm1088, %v1010
  %1140 = vst.msk [vmem:[%s3 + $0xcc] sm:$0xf] %vm1088, %v1011
  %1141 = vst.msk [vmem:[%s3 + $0xd0] sm:$0xf] %vm1088, %v1012
  %1142 = vst.msk [vmem:[%s3 + $0xd4] sm:$0xf] %vm1088, %v1013
  %1143 = vst.msk [vmem:[%s3 + $0xd8] sm:$0xf] %vm1088, %v1014
  %1144 = vst.msk [vmem:[%s3 + $0xdc] sm:$0xf] %vm1088, %v1015
  %1145 = vst.msk [vmem:[%s3 + $0xe0] sm:$0xf] %vm1088, %v1016
  %1146 = vst.msk [vmem:[%s3 + $0xe4] sm:$0xf] %vm1088, %v1017
  %1147 = vst.msk [vmem:[%s3 + $0xe8] sm:$0xf] %vm1088, %v1018
  %1148 = vst.msk [vmem:[%s3 + $0xec] sm:$0xf] %vm1088, %v1019
  %1149 = vst.msk [vmem:[%s3 + $0xf0] sm:$0xf] %vm1088, %v1020
  %1150 = vst.msk [vmem:[%s3 + $0xf4] sm:$0xf] %vm1088, %v1021
  %1151 = vst.msk [vmem:[%s3 + $0xf8] sm:$0xf] %vm1088, %v1022
  %1152 = vst.msk [vmem:[%s3 + $0xfc] sm:$0xf] %vm1088, %v1023
  // Predicated region
  $region14: #{model_forward.29} parent=0 // pred_check
    _
  $region15: #{model_forward.29} parent=0 // pred_check_branch
    %1154 = sbr.rel (0) target = $region17
  $region16: #{model_forward.29} parent=0 // pred_region
    _
  $region17: #{model_forward.29} parent=0 // pred_fallthru
    _
  // Predicated region
  $region18: #{model_forward.29} parent=0 // pred_check
    _
  $region19: #{model_forward.29} parent=0 // pred_check_branch
    %1156 = sbr.rel (0) target = $region21
  $region20: #{model_forward.29} parent=0 // pred_region
    _
  $region21: #{model_forward.29} parent=0 // pred_fallthru
    _

// kernel: model_forward.30
$region0: #{model_forward.30}
  #allocation0 [shape = 'u32[]', space=smem, size = 0x4, offset = 0x4, fixed_abs, tag = 'smem constant byte address 0x4 - core index']
  #allocation1 [shape = 'u32[144,128]{1,0:T(1,128)}', space=vmem, size = 0x12000, scoped, tag = 'internal scratch']
  %s0 = inlined_call_operand.vmem [shape: bf16[128,144], index: 0, kind: input, shape index: {}]
  %s1 = inlined_call_operand.vmem [shape: bf16[144,4], index: 1, kind: input, shape index: {}]
  %s2 = inlined_call_operand.vmem [shape: f32[1,4], index: 2, kind: input, shape index: {}]
  %s3 = inlined_call_operand.vmem [shape: bf16[128,4], index: 3, kind: output, shape index: {}]
  %s4 = sld [smem:[#allocation0]]
  $region22: #{model_forward.30} parent=0
    _
  %s6 = ssub.s32 1, %s4
  %s7 = scalar_select 0, %s6, %s4
  // Predicated region
  $region2: #{model_forward.30} parent=0 // pred_check
    _
  $region3: #{model_forward.30} parent=0 // pred_check_branch
    %9 = sbr.rel (0) target = $region5
  $region4: #{model_forward.30} parent=0 // pred_region
    _
  $region5: #{model_forward.30} parent=0 // pred_fallthru
    _
  // Predicated region
  $region6: #{model_forward.30} parent=0 // pred_check
    _
  $region7: #{model_forward.30} parent=0 // pred_check_branch
    %11 = sbr.rel (0) target = $region9
  $region8: #{model_forward.30} parent=0 // pred_region
    _
  $region9: #{model_forward.30} parent=0 // pred_fallthru
    _
  // Predicated region
  $region10: #{model_forward.30} parent=0 // pred_check
    _
  $region11: #{model_forward.30} parent=0 // pred_check_branch
    %13 = sbr.rel (0) target = $region13
  $region12: #{model_forward.30} parent=0 // pred_region
    _
  $region13: #{model_forward.30} parent=0 // pred_fallthru
    _
  %v15 = vld [vmem:[%s0] sm:$0xff]
  %v16 = vld [vmem:[%s0 + $0x8] sm:$0xff]
  %v17 = vld [vmem:[%s0 + $0x10] sm:$0xff]
  %v18 = vld [vmem:[%s0 + $0x18] sm:$0xff]
  %v19 = vld [vmem:[%s0 + $0x20] sm:$0xff]
  %v20 = vld [vmem:[%s0 + $0x28] sm:$0xff]
  %v21 = vld [vmem:[%s0 + $0x30] sm:$0xff]
  %v22 = vld [vmem:[%s0 + $0x38] sm:$0xff]
  %v23 = vld [vmem:[%s0 + $0x40] sm:$0xff]
  %v24 = vld [vmem:[%s0 + $0x48] sm:$0xff]
  %v25 = vld [vmem:[%s0 + $0x50] sm:$0xff]
  %v26 = vld [vmem:[%s0 + $0x58] sm:$0xff]
  %v27 = vld [vmem:[%s0 + $0x60] sm:$0xff]
  %v28 = vld [vmem:[%s0 + $0x68] sm:$0xff]
  %v29 = vld [vmem:[%s0 + $0x70] sm:$0xff]
  %v30 = vld [vmem:[%s0 + $0x78] sm:$0xff]
  %v31 = vld [vmem:[%s1] sm:$0xf]
  %v32 = vld [vmem:[%s1 + $0x4] sm:$0xf]
  %v33 = vld [vmem:[%s1 + $0x8] sm:$0xf]
  %v34 = vld [vmem:[%s1 + $0xc] sm:$0xf]
  %v35 = vld [vmem:[%s1 + $0x10] sm:$0xf]
  %v36 = vld [vmem:[%s1 + $0x14] sm:$0xf]
  %v37 = vld [vmem:[%s1 + $0x18] sm:$0xf]
  %v38 = vld [vmem:[%s1 + $0x1c] sm:$0xf]
  %v39 = vld [vmem:[%s1 + $0x20] sm:$0xf]
  %v40 = vld [vmem:[%s1 + $0x24] sm:$0xf]
  %v41 = vld [vmem:[%s1 + $0x28] sm:$0xf]
  %v42 = vld [vmem:[%s1 + $0x2c] sm:$0xf]
  %v43 = vld [vmem:[%s1 + $0x30] sm:$0xf]
  %v44 = vld [vmem:[%s1 + $0x34] sm:$0xf]
  %v45 = vld [vmem:[%s1 + $0x38] sm:$0xf]
  %v46 = vld [vmem:[%s1 + $0x3c] sm:$0xf]
  %v47 = vld [vmem:[%s1 + $0x40] sm:$0xf]
  %v48 = vld [vmem:[%s1 + $0x44] sm:$0xf]
  %v49 = vld [vmem:[%s2] sm:$0x1]
  %v51 = vlaneseq
  %v52 = vshrl.u32 %v51, 7
  %v53 = vsub.s32 0, %v52
  %v54 = vrot.slane %v49, %v53
  %v72 = vunpack.c.l.b16 %v15
  %v73 = vunpack.c.h.b16 %v15
  %v74 = vunpack.c.l.b16 %v16
  %v75 = vunpack.c.h.b16 %v16
  %v76 = vunpack.c.l.b16 %v17
  %v77 = vunpack.c.h.b16 %v17
  %v78 = vunpack.c.l.b16 %v18
  %v79 = vunpack.c.h.b16 %v18
  %v80 = vunpack.c.l.b16 %v19
  %v81 = vunpack.c.h.b16 %v19
  %v82 = vunpack.c.l.b16 %v20
  %v83 = vunpack.c.h.b16 %v20
  %v84 = vunpack.c.l.b16 %v21
  %v85 = vunpack.c.h.b16 %v21
  %v86 = vunpack.c.l.b16 %v22
  %v87 = vunpack.c.h.b16 %v22
  %v88 = vunpack.c.l.b16 %v23
  %v89 = vunpack.c.h.b16 %v23
  %v90 = vunpack.c.l.b16 %v24
  %v91 = vunpack.c.h.b16 %v24
  %v92 = vunpack.c.l.b16 %v25
  %v93 = vunpack.c.h.b16 %v25
  %v94 = vunpack.c.l.b16 %v26
  %v95 = vunpack.c.h.b16 %v26
  %v96 = vunpack.c.l.b16 %v27
  %v97 = vunpack.c.h.b16 %v27
  %v98 = vunpack.c.l.b16 %v28
  %v99 = vunpack.c.h.b16 %v28
  %v100 = vunpack.c.l.b16 %v29
  %v101 = vunpack.c.h.b16 %v29
  %v102 = vunpack.c.l.b16 %v30
  %v103 = vunpack.c.h.b16 %v30
  %v104 = vpack.c.b16 %v74, %v72
  %v105 = vpack.c.b16 %v75, %v73
  %v106 = vpack.c.b16 %v78, %v76
  %v107 = vpack.c.b16 %v79, %v77
  %v108 = vpack.c.b16 %v82, %v80
  %v109 = vpack.c.b16 %v83, %v81
  %v110 = vpack.c.b16 %v86, %v84
  %v111 = vpack.c.b16 %v87, %v85
  %v112 = vpack.c.b16 %v90, %v88
  %v113 = vpack.c.b16 %v91, %v89
  %v114 = vpack.c.b16 %v94, %v92
  %v115 = vpack.c.b16 %v95, %v93
  %v116 = vpack.c.b16 %v98, %v96
  %v117 = vpack.c.b16 %v99, %v97
  %v118 = vpack.c.b16 %v102, %v100
  %v119 = vpack.c.b16 %v103, %v101
  %v146 = vunpack.c.l.b16 %v31
  %v147 = vunpack.c.l.b16 %v32
  %v148 = vunpack.c.l.b16 %v33
  %v149 = vunpack.c.l.b16 %v34
  %v150 = vunpack.c.l.b16 %v35
  %v151 = vunpack.c.l.b16 %v36
  %v152 = vunpack.c.l.b16 %v37
  %v153 = vunpack.c.l.b16 %v38
  %v154 = vunpack.c.l.b16 %v39
  %v155 = vunpack.c.l.b16 %v40
  %v156 = vunpack.c.l.b16 %v41
  %v157 = vunpack.c.l.b16 %v42
  %v158 = vunpack.c.l.b16 %v43
  %v159 = vunpack.c.l.b16 %v44
  %v160 = vunpack.c.l.b16 %v45
  %v161 = vunpack.c.l.b16 %v46
  %v162 = vunpack.c.l.b16 %v47
  %v163 = vunpack.c.l.b16 %v48
  %v164 = vpack.c.b16 %v147, %v146
  %v165 = vpack.c.b16 %v149, %v148
  %v166 = vpack.c.b16 %v151, %v150
  %v167 = vpack.c.b16 %v153, %v152
  %v168 = vpack.c.b16 %v155, %v154
  %v169 = vpack.c.b16 %v157, %v156
  %v170 = vpack.c.b16 %v159, %v158
  %v171 = vpack.c.b16 %v161, %v160
  %v172 = vpack.c.b16 %v163, %v162
  %vm182 = vcmask 130048
  %v184 = vsel %vm182, %v105, 0
  %v187 = vsel %vm182, %v107, 0
  %v190 = vsel %vm182, %v109, 0
  %v193 = vsel %vm182, %v111, 0
  %v196 = vsel %vm182, %v113, 0
  %v199 = vsel %vm182, %v115, 0
  %v202 = vsel %vm182, %v117, 0
  %v205 = vsel %vm182, %v119, 0
  %207 = vmatprep.subr.bf16.mxu0 0
  %208 = vmatpush1.bf16.msra.mxu0 %v164
  %209 = vmatprep.subr.bf16.mxu0 0
  %210 = vmatpush1.bf16.msra.mxu0 %v165
  %211 = vmatprep.subr.bf16.mxu0 0
  %212 = vmatpush1.bf16.msra.mxu0 %v166
  %213 = vmatprep.subr.bf16.mxu0 0
  %214 = vmatpush1.bf16.msra.mxu0 %v167
  %215 = vmatprep.subr.bf16.mxu0 0
  %216 = vmatpush1.bf16.msra.mxu0 %v168
  %217 = vmatprep.subr.bf16.mxu0 0
  %218 = vmatpush1.bf16.msra.mxu0 %v169
  %219 = vmatprep.subr.bf16.mxu0 0
  %220 = vmatpush1.bf16.msra.mxu0 %v170
  %221 = vmatprep.subr.bf16.mxu0 0
  %222 = vmatpush1.bf16.msra.mxu0 %v171
  %223 = vmatprep.subr.bf16.mxu0 0
  %224 = vmatpush1.bf16.msra.mxu0 %v172
  %225 = vmatprep.subr.bf16.mxu0 0
  %226 = vmatpush1.bf16.msra.mxu0 0
  %227 = vmatprep.subr.bf16.mxu0 0
  %228 = vmatpush1.bf16.msra.mxu0 0
  %229 = vmatprep.subr.bf16.mxu0 0
  %230 = vmatpush1.bf16.msra.mxu0 0
  %231 = vmatprep.subr.bf16.mxu0 0
  %232 = vmatpush1.bf16.msra.mxu0 0
  %233 = vmatprep.subr.bf16.mxu0 0
  %234 = vmatpush1.bf16.msra.mxu0 0
  %235 = vmatprep.subr.bf16.mxu0 0
  %236 = vmatpush1.bf16.msra.mxu0 0
  %237 = vmatprep.subr.bf16.mxu0 0
  %238 = vmatpush1.bf16.msra.mxu0 0
  %239 = vmatprep.mubr.bf16.mxu0 %v184
  %240 = vmatmul.mubr.bf16.gmra.mrb[0].mxu0 %v104
  %v241 = vpop.f32.mrb[0].mxu0
  %v242 = vadd.f32 %v54, %v241
  %v243 = vpop.f32.mrb[0].mxu0
  %v244 = vpop.f32.mrb[0].mxu0
  %v245 = vadd.f32 %v54, %v244
  %v246 = vpop.f32.mrb[0].mxu0
  %247 = vmatprep.mubr.bf16.mxu0 %v187
  %248 = vmatmul.mubr.bf16.gmra.mrb[0].mxu0 %v106
  %v249 = vpop.f32.mrb[0].mxu0
  %v250 = vadd.f32 %v54, %v249
  %v251 = vpop.f32.mrb[0].mxu0
  %v252 = vpop.f32.mrb[0].mxu0
  %v253 = vadd.f32 %v54, %v252
  %v254 = vpop.f32.mrb[0].mxu0
  %255 = vmatprep.mubr.bf16.mxu0 %v190
  %256 = vmatmul.mubr.bf16.gmra.mrb[0].mxu0 %v108
  %v257 = vpop.f32.mrb[0].mxu0
  %v258 = vadd.f32 %v54, %v257
  %v259 = vpop.f32.mrb[0].mxu0
  %v260 = vpop.f32.mrb[0].mxu0
  %v261 = vadd.f32 %v54, %v260
  %v262 = vpop.f32.mrb[0].mxu0
  %263 = vmatprep.mubr.bf16.mxu0 %v193
  %264 = vmatmul.mubr.bf16.gmra.mrb[0].mxu0 %v110
  %v265 = vpop.f32.mrb[0].mxu0
  %v266 = vadd.f32 %v54, %v265
  %v267 = vpop.f32.mrb[0].mxu0
  %v268 = vpop.f32.mrb[0].mxu0
  %v269 = vadd.f32 %v54, %v268
  %v270 = vpop.f32.mrb[0].mxu0
  %271 = vmatprep.mubr.bf16.mxu0 %v196
  %272 = vmatmul.mubr.bf16.gmra.mrb[0].mxu0 %v112
  %v273 = vpop.f32.mrb[0].mxu0
  %v274 = vadd.f32 %v54, %v273
  %v275 = vpop.f32.mrb[0].mxu0
  %v276 = vpop.f32.mrb[0].mxu0
  %v277 = vadd.f32 %v54, %v276
  %v278 = vpop.f32.mrb[0].mxu0
  %279 = vmatprep.mubr.bf16.mxu0 %v199
  %280 = vmatmul.mubr.bf16.gmra.mrb[0].mxu0 %v114
  %v281 = vpop.f32.mrb[0].mxu0
  %v282 = vadd.f32 %v54, %v281
  %v283 = vpop.f32.mrb[0].mxu0
  %v284 = vpop.f32.mrb[0].mxu0
  %v285 = vadd.f32 %v54, %v284
  %v286 = vpop.f32.mrb[0].mxu0
  %287 = vmatprep.mubr.bf16.mxu0 %v202
  %288 = vmatmul.mubr.bf16.gmra.mrb[0].mxu0 %v116
  %v289 = vpop.f32.mrb[0].mxu0
  %v290 = vadd.f32 %v54, %v289
  %v291 = vpop.f32.mrb[0].mxu0
  %v292 = vpop.f32.mrb[0].mxu0
  %v293 = vadd.f32 %v54, %v292
  %v294 = vpop.f32.mrb[0].mxu0
  %295 = vmatprep.mubr.bf16.mxu0 %v205
  %296 = vmatmul.mubr.bf16.gmra.mrb[0].mxu0 %v118
  %v297 = vpop.f32.mrb[0].mxu0
  %v298 = vadd.f32 %v54, %v297
  %v299 = vpop.f32.mrb[0].mxu0
  %v300 = vpop.f32.mrb[0].mxu0
  %v301 = vadd.f32 %v54, %v300
  %v302 = vpop.f32.mrb[0].mxu0
  %303 = vdwg.mxu0
  %v304 = vpack.c.bf16 %v245, %v242
  %v305 = vpack.c.bf16 %v253, %v250
  %v306 = vpack.c.bf16 %v261, %v258
  %v307 = vpack.c.bf16 %v269, %v266
  %v308 = vpack.c.bf16 %v277, %v274
  %v309 = vpack.c.bf16 %v285, %v282
  %v310 = vpack.c.bf16 %v293, %v290
  %v311 = vpack.c.bf16 %v301, %v298
  %v320 = vunpack.c.l.b16 %v304
  %v321 = vunpack.c.h.b16 %v304
  %v322 = vunpack.c.l.b16 %v305
  %v323 = vunpack.c.h.b16 %v305
  %v324 = vunpack.c.l.b16 %v306
  %v325 = vunpack.c.h.b16 %v306
  %v326 = vunpack.c.l.b16 %v307
  %v327 = vunpack.c.h.b16 %v307
  %v328 = vunpack.c.l.b16 %v308
  %v329 = vunpack.c.h.b16 %v308
  %v330 = vunpack.c.l.b16 %v309
  %v331 = vunpack.c.h.b16 %v309
  %v332 = vunpack.c.l.b16 %v310
  %v333 = vunpack.c.h.b16 %v310
  %v334 = vunpack.c.l.b16 %v311
  %v335 = vunpack.c.h.b16 %v311
  %v336 = vpack.c.b16 %v320, %v320
  %v337 = vpack.c.b16 %v321, %v321
  %v338 = vpack.c.b16 %v322, %v322
  %v339 = vpack.c.b16 %v323, %v323
  %v340 = vpack.c.b16 %v324, %v324
  %v341 = vpack.c.b16 %v325, %v325
  %v342 = vpack.c.b16 %v326, %v326
  %v343 = vpack.c.b16 %v327, %v327
  %v344 = vpack.c.b16 %v328, %v328
  %v345 = vpack.c.b16 %v329, %v329
  %v346 = vpack.c.b16 %v330, %v330
  %v347 = vpack.c.b16 %v331, %v331
  %v348 = vpack.c.b16 %v332, %v332
  %v349 = vpack.c.b16 %v333, %v333
  %v350 = vpack.c.b16 %v334, %v334
  %v351 = vpack.c.b16 %v335, %v335
  %vm368 = vcmask 27648
  %369 = vst.msk [vmem:[%s3] sm:$0xf] %vm368, %v336
  %370 = vst.msk [vmem:[%s3 + $0x4] sm:$0xf] %vm368, %v337
  %371 = vst.msk [vmem:[%s3 + $0x8] sm:$0xf] %vm368, %v338
  %372 = vst.msk [vmem:[%s3 + $0xc] sm:$0xf] %vm368, %v339
  %373 = vst.msk [vmem:[%s3 + $0x10] sm:$0xf] %vm368, %v340
  %374 = vst.msk [vmem:[%s3 + $0x14] sm:$0xf] %vm368, %v341
  %375 = vst.msk [vmem:[%s3 + $0x18] sm:$0xf] %vm368, %v342
  %376 = vst.msk [vmem:[%s3 + $0x1c] sm:$0xf] %vm368, %v343
  %377 = vst.msk [vmem:[%s3 + $0x20] sm:$0xf] %vm368, %v344
  %378 = vst.msk [vmem:[%s3 + $0x24] sm:$0xf] %vm368, %v345
  %379 = vst.msk [vmem:[%s3 + $0x28] sm:$0xf] %vm368, %v346
  %380 = vst.msk [vmem:[%s3 + $0x2c] sm:$0xf] %vm368, %v347
  %381 = vst.msk [vmem:[%s3 + $0x30] sm:$0xf] %vm368, %v348
  %382 = vst.msk [vmem:[%s3 + $0x34] sm:$0xf] %vm368, %v349
  %383 = vst.msk [vmem:[%s3 + $0x38] sm:$0xf] %vm368, %v350
  %384 = vst.msk [vmem:[%s3 + $0x3c] sm:$0xf] %vm368, %v351
  // Predicated region
  $region14: #{model_forward.30} parent=0 // pred_check
    _
  $region15: #{model_forward.30} parent=0 // pred_check_branch
    %386 = sbr.rel (0) target = $region17
  $region16: #{model_forward.30} parent=0 // pred_region
    _
  $region17: #{model_forward.30} parent=0 // pred_fallthru
    _
  // Predicated region
  $region18: #{model_forward.30} parent=0 // pred_check
    _
  $region19: #{model_forward.30} parent=0 // pred_check_branch
    %388 = sbr.rel (0) target = $region21
  $region20: #{model_forward.30} parent=0 // pred_region
    _
  $region21: #{model_forward.30} parent=0 // pred_fallthru
    _

// kernel: model_forward.31
$region0: #{model_forward.31}
  #allocation0 [shape = 'u32[]', space=smem, size = 0x4, offset = 0x4, fixed_abs, tag = 'smem constant byte address 0x4 - core index']
  #allocation1 [shape = 'u32[144,128]{1,0:T(1,128)}', space=vmem, size = 0x12000, scoped, tag = 'internal scratch']
  %s0 = inlined_call_operand.vmem [shape: bf16[32,144], index: 0, kind: input, shape index: {}]
  %s1 = inlined_call_operand.vmem [shape: bf16[144,4], index: 1, kind: input, shape index: {}]
  %s2 = inlined_call_operand.vmem [shape: f32[1,4], index: 2, kind: input, shape index: {}]
  %s3 = inlined_call_operand.vmem [shape: bf16[32,4], index: 3, kind: output, shape index: {}]
  %s4 = sld [smem:[#allocation0]]
  $region22: #{model_forward.31} parent=0
    _
  %s6 = ssub.s32 1, %s4
  %s7 = scalar_select 0, %s6, %s4
  // Predicated region
  $region2: #{model_forward.31} parent=0 // pred_check
    _
  $region3: #{model_forward.31} parent=0 // pred_check_branch
    %9 = sbr.rel (0) target = $region5
  $region4: #{model_forward.31} parent=0 // pred_region
    _
  $region5: #{model_forward.31} parent=0 // pred_fallthru
    _
  // Predicated region
  $region6: #{model_forward.31} parent=0 // pred_check
    _
  $region7: #{model_forward.31} parent=0 // pred_check_branch
    %11 = sbr.rel (0) target = $region9
  $region8: #{model_forward.31} parent=0 // pred_region
    _
  $region9: #{model_forward.31} parent=0 // pred_fallthru
    _
  // Predicated region
  $region10: #{model_forward.31} parent=0 // pred_check
    _
  $region11: #{model_forward.31} parent=0 // pred_check_branch
    %13 = sbr.rel (0) target = $region13
  $region12: #{model_forward.31} parent=0 // pred_region
    _
  $region13: #{model_forward.31} parent=0 // pred_fallthru
    _
  %v15 = vld [vmem:[%s0] sm:$0xff]
  %v16 = vld [vmem:[%s0 + $0x8] sm:$0xff]
  %v17 = vld [vmem:[%s0 + $0x10] sm:$0xff]
  %v18 = vld [vmem:[%s0 + $0x18] sm:$0xff]
  %v19 = vld [vmem:[%s1] sm:$0xf]
  %v20 = vld [vmem:[%s1 + $0x4] sm:$0xf]
  %v21 = vld [vmem:[%s1 + $0x8] sm:$0xf]
  %v22 = vld [vmem:[%s1 + $0xc] sm:$0xf]
  %v23 = vld [vmem:[%s1 + $0x10] sm:$0xf]
  %v24 = vld [vmem:[%s1 + $0x14] sm:$0xf]
  %v25 = vld [vmem:[%s1 + $0x18] sm:$0xf]
  %v26 = vld [vmem:[%s1 + $0x1c] sm:$0xf]
  %v27 = vld [vmem:[%s1 + $0x20] sm:$0xf]
  %v28 = vld [vmem:[%s1 + $0x24] sm:$0xf]
  %v29 = vld [vmem:[%s1 + $0x28] sm:$0xf]
  %v30 = vld [vmem:[%s1 + $0x2c] sm:$0xf]
  %v31 = vld [vmem:[%s1 + $0x30] sm:$0xf]
  %v32 = vld [vmem:[%s1 + $0x34] sm:$0xf]
  %v33 = vld [vmem:[%s1 + $0x38] sm:$0xf]
  %v34 = vld [vmem:[%s1 + $0x3c] sm:$0xf]
  %v35 = vld [vmem:[%s1 + $0x40] sm:$0xf]
  %v36 = vld [vmem:[%s1 + $0x44] sm:$0xf]
  %v37 = vld [vmem:[%s2] sm:$0x1]
  %v39 = vlaneseq
  %v40 = vshrl.u32 %v39, 7
  %v41 = vsub.s32 0, %v40
  %v42 = vrot.slane %v37, %v41
  %v48 = vunpack.c.l.b16 %v15
  %v49 = vunpack.c.h.b16 %v15
  %v50 = vunpack.c.l.b16 %v16
  %v51 = vunpack.c.h.b16 %v16
  %v52 = vunpack.c.l.b16 %v17
  %v53 = vunpack.c.h.b16 %v17
  %v54 = vunpack.c.l.b16 %v18
  %v55 = vunpack.c.h.b16 %v18
  %v56 = vpack.c.b16 %v50, %v48
  %v57 = vpack.c.b16 %v51, %v49
  %v58 = vpack.c.b16 %v54, %v52
  %v59 = vpack.c.b16 %v55, %v53
  %v80 = vunpack.c.l.b16 %v19
  %v81 = vunpack.c.l.b16 %v20
  %v82 = vunpack.c.l.b16 %v21
  %v83 = vunpack.c.l.b16 %v22
  %v84 = vunpack.c.l.b16 %v23
  %v85 = vunpack.c.l.b16 %v24
  %v86 = vunpack.c.l.b16 %v25
  %v87 = vunpack.c.l.b16 %v26
  %v88 = vunpack.c.l.b16 %v27
  %v89 = vunpack.c.l.b16 %v28
  %v90 = vunpack.c.l.b16 %v29
  %v91 = vunpack.c.l.b16 %v30
  %v92 = vunpack.c.l.b16 %v31
  %v93 = vunpack.c.l.b16 %v32
  %v94 = vunpack.c.l.b16 %v33
  %v95 = vunpack.c.l.b16 %v34
  %v96 = vunpack.c.l.b16 %v35
  %v97 = vunpack.c.l.b16 %v36
  %v98 = vpack.c.b16 %v81, %v80
  %v99 = vpack.c.b16 %v83, %v82
  %v100 = vpack.c.b16 %v85, %v84
  %v101 = vpack.c.b16 %v87, %v86
  %v102 = vpack.c.b16 %v89, %v88
  %v103 = vpack.c.b16 %v91, %v90
  %v104 = vpack.c.b16 %v93, %v92
  %v105 = vpack.c.b16 %v95, %v94
  %v106 = vpack.c.b16 %v97, %v96
  %vm116 = vcmask 130048
  %v118 = vsel %vm116, %v57, 0
  %v121 = vsel %vm116, %v59, 0
  %123 = vmatprep.subr.bf16.mxu0 0
  %124 = vmatpush1.bf16.msra.mxu0 %v98
  %125 = vmatprep.subr.bf16.mxu0 0
  %126 = vmatpush1.bf16.msra.mxu0 %v99
  %127 = vmatprep.subr.bf16.mxu0 0
  %128 = vmatpush1.bf16.msra.mxu0 %v100
  %129 = vmatprep.subr.bf16.mxu0 0
  %130 = vmatpush1.bf16.msra.mxu0 %v101
  %131 = vmatprep.subr.bf16.mxu0 0
  %132 = vmatpush1.bf16.msra.mxu0 %v102
  %133 = vmatprep.subr.bf16.mxu0 0
  %134 = vmatpush1.bf16.msra.mxu0 %v103
  %135 = vmatprep.subr.bf16.mxu0 0
  %136 = vmatpush1.bf16.msra.mxu0 %v104
  %137 = vmatprep.subr.bf16.mxu0 0
  %138 = vmatpush1.bf16.msra.mxu0 %v105
  %139 = vmatprep.subr.bf16.mxu0 0
  %140 = vmatpush1.bf16.msra.mxu0 %v106
  %141 = vmatprep.subr.bf16.mxu0 0
  %142 = vmatpush1.bf16.msra.mxu0 0
  %143 = vmatprep.subr.bf16.mxu0 0
  %144 = vmatpush1.bf16.msra.mxu0 0
  %145 = vmatprep.subr.bf16.mxu0 0
  %146 = vmatpush1.bf16.msra.mxu0 0
  %147 = vmatprep.subr.bf16.mxu0 0
  %148 = vmatpush1.bf16.msra.mxu0 0
  %149 = vmatprep.subr.bf16.mxu0 0
  %150 = vmatpush1.bf16.msra.mxu0 0
  %151 = vmatprep.subr.bf16.mxu0 0
  %152 = vmatpush1.bf16.msra.mxu0 0
  %153 = vmatprep.subr.bf16.mxu0 0
  %154 = vmatpush1.bf16.msra.mxu0 0
  %155 = vmatprep.mubr.bf16.mxu0 %v118
  %156 = vmatmul.mubr.bf16.gmra.mrb[0].mxu0 %v56
  %v157 = vpop.f32.mrb[0].mxu0
  %v158 = vadd.f32 %v42, %v157
  %v159 = vpop.f32.mrb[0].mxu0
  %v160 = vpop.f32.mrb[0].mxu0
  %v161 = vadd.f32 %v42, %v160
  %v162 = vpop.f32.mrb[0].mxu0
  %163 = vmatprep.mubr.bf16.mxu0 %v121
  %164 = vmatmul.mubr.bf16.gmra.mrb[0].mxu0 %v58
  %v165 = vpop.f32.mrb[0].mxu0
  %v166 = vadd.f32 %v42, %v165
  %v167 = vpop.f32.mrb[0].mxu0
  %v168 = vpop.f32.mrb[0].mxu0
  %v169 = vadd.f32 %v42, %v168
  %v170 = vpop.f32.mrb[0].mxu0
  %171 = vdwg.mxu0
  %v172 = vpack.c.bf16 %v161, %v158
  %v173 = vpack.c.bf16 %v169, %v166
  %v176 = vunpack.c.l.b16 %v172
  %v177 = vunpack.c.h.b16 %v172
  %v178 = vunpack.c.l.b16 %v173
  %v179 = vunpack.c.h.b16 %v173
  %v180 = vpack.c.b16 %v176, %v176
  %v181 = vpack.c.b16 %v177, %v177
  %v182 = vpack.c.b16 %v178, %v178
  %v183 = vpack.c.b16 %v179, %v179
  %vm188 = vcmask 27648
  %189 = vst.msk [vmem:[%s3] sm:$0xf] %vm188, %v180
  %190 = vst.msk [vmem:[%s3 + $0x4] sm:$0xf] %vm188, %v181
  %191 = vst.msk [vmem:[%s3 + $0x8] sm:$0xf] %vm188, %v182
  %192 = vst.msk [vmem:[%s3 + $0xc] sm:$0xf] %vm188, %v183
  // Predicated region
  $region14: #{model_forward.31} parent=0 // pred_check
    _
  $region15: #{model_forward.31} parent=0 // pred_check_branch
    %194 = sbr.rel (0) target = $region17
  $region16: #{model_forward.31} parent=0 // pred_region
    _
  $region17: #{model_forward.31} parent=0 // pred_fallthru
    _
  // Predicated region
  $region18: #{model_forward.31} parent=0 // pred_check
    _
  $region19: #{model_forward.31} parent=0 // pred_check_branch
    %196 = sbr.rel (0) target = $region21
  $region20: #{model_forward.31} parent=0 // pred_region
    _
  $region21: #{model_forward.31} parent=0 // pred_fallthru
    _

// kernel: model_forward.33
$region0: #{model_forward.33}
  #allocation0 [shape = 'u32[]', space=smem, size = 0x4, offset = 0x4, fixed_abs, tag = 'smem constant byte address 0x4 - core index']
  #allocation1 [shape = 'u32[144,128]{1,0:T(1,128)}', space=vmem, size = 0x12000, scoped, tag = 'internal scratch']
  #allocation2 [shape = 'f32[1,1]{1,0:T(1,128)S(1)}', space=vmem, size = 0x200, scoped, tag = 'scoped memory for model_forward.33']
  %s0 = inlined_call_operand.vmem [shape: bf16[512,144], index: 0, kind: input, shape index: {}]
  %s1 = inlined_call_operand.vmem [shape: bf16[144,4], index: 1, kind: input, shape index: {}]
  %s2 = inlined_call_operand.vmem [shape: f32[1,4], index: 2, kind: input, shape index: {}]
  %s3 = inlined_call_operand.vmem [shape: f32[1,4], index: 3, kind: input, shape index: {}]
  %s4 = inlined_call_operand.<no memory space> [shape: f32[1,1], index: 4, kind: input, shape index: {}]
  %s5 = inlined_call_operand.vmem [shape: f32[512,1], index: 5, kind: output, shape index: {}]
  %s6 = sld [smem:[#allocation0]]
  $region30: #{model_forward.33} parent=0
    _
  %s8 = ssub.s32 1, %s6
  %s9 = scalar_select 0, %s8, %s6
  %v10 = vstv %s4
  %11 = vst [vmem:[#allocation2] sm:$0x1] %v10
  // Predicated region
  $region2: #{model_forward.33} parent=0 // pred_check
    _
  $region3: #{model_forward.33} parent=0 // pred_check_branch
    %13 = sbr.rel (0) target = $region5
  $region4: #{model_forward.33} parent=0 // pred_region
    _
  $region5: #{model_forward.33} parent=0 // pred_fallthru
    _
  // Predicated region
  $region6: #{model_forward.33} parent=0 // pred_check
    _
  $region7: #{model_forward.33} parent=0 // pred_check_branch
    %15 = sbr.rel (0) target = $region9
  $region8: #{model_forward.33} parent=0 // pred_region
    _
  $region9: #{model_forward.33} parent=0 // pred_fallthru
    _
  // Predicated region
  $region10: #{model_forward.33} parent=0 // pred_check
    _
  $region11: #{model_forward.33} parent=0 // pred_check_branch
    %17 = sbr.rel (0) target = $region13
  $region12: #{model_forward.33} parent=0 // pred_region
    _
  $region13: #{model_forward.33} parent=0 // pred_fallthru
    _
  // Predicated region
  $region14: #{model_forward.33} parent=0 // pred_check
    _
  $region15: #{model_forward.33} parent=0 // pred_check_branch
    %19 = sbr.rel (0) target = $region17
  $region16: #{model_forward.33} parent=0 // pred_region
    _
  $region17: #{model_forward.33} parent=0 // pred_fallthru
    _
  // Predicated region
  $region18: #{model_forward.33} parent=0 // pred_check
    _
  $region19: #{model_forward.33} parent=0 // pred_check_branch
    %21 = sbr.rel (0) target = $region21
  $region20: #{model_forward.33} parent=0 // pred_region
    _
  $region21: #{model_forward.33} parent=0 // pred_fallthru
    _
  %v23 = vld [vmem:[%s0] sm:$0xff]
  %v24 = vld [vmem:[%s0 + $0x8] sm:$0xff]
  %v25 = vld [vmem:[%s0 + $0x10] sm:$0xff]
  %v26 = vld [vmem:[%s0 + $0x18] sm:$0xff]
  %v27 = vld [vmem:[%s0 + $0x20] sm:$0xff]
  %v28 = vld [vmem:[%s0 + $0x28] sm:$0xff]
  %v29 = vld [vmem:[%s0 + $0x30] sm:$0xff]
  %v30 = vld [vmem:[%s0 + $0x38] sm:$0xff]
  %v31 = vld [vmem:[%s0 + $0x40] sm:$0xff]
  %v32 = vld [vmem:[%s0 + $0x48] sm:$0xff]
  %v33 = vld [vmem:[%s0 + $0x50] sm:$0xff]
  %v34 = vld [vmem:[%s0 + $0x58] sm:$0xff]
  %v35 = vld [vmem:[%s0 + $0x60] sm:$0xff]
  %v36 = vld [vmem:[%s0 + $0x68] sm:$0xff]
  %v37 = vld [vmem:[%s0 + $0x70] sm:$0xff]
  %v38 = vld [vmem:[%s0 + $0x78] sm:$0xff]
  %v39 = vld [vmem:[%s0 + $0x80] sm:$0xff]
  %v40 = vld [vmem:[%s0 + $0x88] sm:$0xff]
  %v41 = vld [vmem:[%s0 + $0x90] sm:$0xff]
  %v42 = vld [vmem:[%s0 + $0x98] sm:$0xff]
  %v43 = vld [vmem:[%s0 + $0xa0] sm:$0xff]
  %v44 = vld [vmem:[%s0 + $0xa8] sm:$0xff]
  %v45 = vld [vmem:[%s0 + $0xb0] sm:$0xff]
  %v46 = vld [vmem:[%s0 + $0xb8] sm:$0xff]
  %v47 = vld [vmem:[%s0 + $0xc0] sm:$0xff]
  %v48 = vld [vmem:[%s0 + $0xc8] sm:$0xff]
  %v49 = vld [vmem:[%s0 + $0xd0] sm:$0xff]
  %v50 = vld [vmem:[%s0 + $0xd8] sm:$0xff]
  %v51 = vld [vmem:[%s0 + $0xe0] sm:$0xff]
  %v52 = vld [vmem:[%s0 + $0xe8] sm:$0xff]
  %v53 = vld [vmem:[%s0 + $0xf0] sm:$0xff]
  %v54 = vld [vmem:[%s0 + $0xf8] sm:$0xff]
  %v55 = vld [vmem:[%s0 + $0x100] sm:$0xff]
  %v56 = vld [vmem:[%s0 + $0x108] sm:$0xff]
  %v57 = vld [vmem:[%s0 + $0x110] sm:$0xff]
  %v58 = vld [vmem:[%s0 + $0x118] sm:$0xff]
  %v59 = vld [vmem:[%s0 + $0x120] sm:$0xff]
  %v60 = vld [vmem:[%s0 + $0x128] sm:$0xff]
  %v61 = vld [vmem:[%s0 + $0x130] sm:$0xff]
  %v62 = vld [vmem:[%s0 + $0x138] sm:$0xff]
  %v63 = vld [vmem:[%s0 + $0x140] sm:$0xff]
  %v64 = vld [vmem:[%s0 + $0x148] sm:$0xff]
  %v65 = vld [vmem:[%s0 + $0x150] sm:$0xff]
  %v66 = vld [vmem:[%s0 + $0x158] sm:$0xff]
  %v67 = vld [vmem:[%s0 + $0x160] sm:$0xff]
  %v68 = vld [vmem:[%s0 + $0x168] sm:$0xff]
  %v69 = vld [vmem:[%s0 + $0x170] sm:$0xff]
  %v70 = vld [vmem:[%s0 + $0x178] sm:$0xff]
  %v71 = vld [vmem:[%s0 + $0x180] sm:$0xff]
  %v72 = vld [vmem:[%s0 + $0x188] sm:$0xff]
  %v73 = vld [vmem:[%s0 + $0x190] sm:$0xff]
  %v74 = vld [vmem:[%s0 + $0x198] sm:$0xff]
  %v75 = vld [vmem:[%s0 + $0x1a0] sm:$0xff]
  %v76 = vld [vmem:[%s0 + $0x1a8] sm:$0xff]
  %v77 = vld [vmem:[%s0 + $0x1b0] sm:$0xff]
  %v78 = vld [vmem:[%s0 + $0x1b8] sm:$0xff]
  %v79 = vld [vmem:[%s0 + $0x1c0] sm:$0xff]
  %v80 = vld [vmem:[%s0 + $0x1c8] sm:$0xff]
  %v81 = vld [vmem:[%s0 + $0x1d0] sm:$0xff]
  %v82 = vld [vmem:[%s0 + $0x1d8] sm:$0xff]
  %v83 = vld [vmem:[%s0 + $0x1e0] sm:$0xff]
  %v84 = vld [vmem:[%s0 + $0x1e8] sm:$0xff]
  %v85 = vld [vmem:[%s0 + $0x1f0] sm:$0xff]
  %v86 = vld [vmem:[%s0 + $0x1f8] sm:$0xff]
  %v87 = vld [vmem:[%s1] sm:$0xf]
  %v88 = vld [vmem:[%s1 + $0x4] sm:$0xf]
  %v89 = vld [vmem:[%s1 + $0x8] sm:$0xf]
  %v90 = vld [vmem:[%s1 + $0xc] sm:$0xf]
  %v91 = vld [vmem:[%s1 + $0x10] sm:$0xf]
  %v92 = vld [vmem:[%s1 + $0x14] sm:$0xf]
  %v93 = vld [vmem:[%s1 + $0x18] sm:$0xf]
  %v94 = vld [vmem:[%s1 + $0x1c] sm:$0xf]
  %v95 = vld [vmem:[%s1 + $0x20] sm:$0xf]
  %v96 = vld [vmem:[%s1 + $0x24] sm:$0xf]
  %v97 = vld [vmem:[%s1 + $0x28] sm:$0xf]
  %v98 = vld [vmem:[%s1 + $0x2c] sm:$0xf]
  %v99 = vld [vmem:[%s1 + $0x30] sm:$0xf]
  %v100 = vld [vmem:[%s1 + $0x34] sm:$0xf]
  %v101 = vld [vmem:[%s1 + $0x38] sm:$0xf]
  %v102 = vld [vmem:[%s1 + $0x3c] sm:$0xf]
  %v103 = vld [vmem:[%s1 + $0x40] sm:$0xf]
  %v104 = vld [vmem:[%s1 + $0x44] sm:$0xf]
  %v105 = vld [vmem:[%s2] sm:$0x1]
  %v107 = vlaneseq
  %v108 = vshrl.u32 %v107, 7
  %v109 = vsub.s32 0, %v108
  %v110 = vrot.slane %v105, %v109
  %v176 = vunpack.c.l.b16 %v23
  %v177 = vunpack.c.h.b16 %v23
  %v178 = vunpack.c.l.b16 %v24
  %v179 = vunpack.c.h.b16 %v24
  %v180 = vunpack.c.l.b16 %v25
  %v181 = vunpack.c.h.b16 %v25
  %v182 = vunpack.c.l.b16 %v26
  %v183 = vunpack.c.h.b16 %v26
  %v184 = vunpack.c.l.b16 %v27
  %v185 = vunpack.c.h.b16 %v27
  %v186 = vunpack.c.l.b16 %v28
  %v187 = vunpack.c.h.b16 %v28
  %v188 = vunpack.c.l.b16 %v29
  %v189 = vunpack.c.h.b16 %v29
  %v190 = vunpack.c.l.b16 %v30
  %v191 = vunpack.c.h.b16 %v30
  %v192 = vunpack.c.l.b16 %v31
  %v193 = vunpack.c.h.b16 %v31
  %v194 = vunpack.c.l.b16 %v32
  %v195 = vunpack.c.h.b16 %v32
  %v196 = vunpack.c.l.b16 %v33
  %v197 = vunpack.c.h.b16 %v33
  %v198 = vunpack.c.l.b16 %v34
  %v199 = vunpack.c.h.b16 %v34
  %v200 = vunpack.c.l.b16 %v35
  %v201 = vunpack.c.h.b16 %v35
  %v202 = vunpack.c.l.b16 %v36
  %v203 = vunpack.c.h.b16 %v36
  %v204 = vunpack.c.l.b16 %v37
  %v205 = vunpack.c.h.b16 %v37
  %v206 = vunpack.c.l.b16 %v38
  %v207 = vunpack.c.h.b16 %v38
  %v208 = vunpack.c.l.b16 %v39
  %v209 = vunpack.c.h.b16 %v39
  %v210 = vunpack.c.l.b16 %v40
  %v211 = vunpack.c.h.b16 %v40
  %v212 = vunpack.c.l.b16 %v41
  %v213 = vunpack.c.h.b16 %v41
  %v214 = vunpack.c.l.b16 %v42
  %v215 = vunpack.c.h.b16 %v42
  %v216 = vunpack.c.l.b16 %v43
  %v217 = vunpack.c.h.b16 %v43
  %v218 = vunpack.c.l.b16 %v44
  %v219 = vunpack.c.h.b16 %v44
  %v220 = vunpack.c.l.b16 %v45
  %v221 = vunpack.c.h.b16 %v45
  %v222 = vunpack.c.l.b16 %v46
  %v223 = vunpack.c.h.b16 %v46
  %v224 = vunpack.c.l.b16 %v47
  %v225 = vunpack.c.h.b16 %v47
  %v226 = vunpack.c.l.b16 %v48
  %v227 = vunpack.c.h.b16 %v48
  %v228 = vunpack.c.l.b16 %v49
  %v229 = vunpack.c.h.b16 %v49
  %v230 = vunpack.c.l.b16 %v50
  %v231 = vunpack.c.h.b16 %v50
  %v232 = vunpack.c.l.b16 %v51
  %v233 = vunpack.c.h.b16 %v51
  %v234 = vunpack.c.l.b16 %v52
  %v235 = vunpack.c.h.b16 %v52
  %v236 = vunpack.c.l.b16 %v53
  %v237 = vunpack.c.h.b16 %v53
  %v238 = vunpack.c.l.b16 %v54
  %v239 = vunpack.c.h.b16 %v54
  %v240 = vunpack.c.l.b16 %v55
  %v241 = vunpack.c.h.b16 %v55
  %v242 = vunpack.c.l.b16 %v56
  %v243 = vunpack.c.h.b16 %v56
  %v244 = vunpack.c.l.b16 %v57
  %v245 = vunpack.c.h.b16 %v57
  %v246 = vunpack.c.l.b16 %v58
  %v247 = vunpack.c.h.b16 %v58
  %v248 = vunpack.c.l.b16 %v59
  %v249 = vunpack.c.h.b16 %v59
  %v250 = vunpack.c.l.b16 %v60
  %v251 = vunpack.c.h.b16 %v60
  %v252 = vunpack.c.l.b16 %v61
  %v253 = vunpack.c.h.b16 %v61
  %v254 = vunpack.c.l.b16 %v62
  %v255 = vunpack.c.h.b16 %v62
  %v256 = vunpack.c.l.b16 %v63
  %v257 = vunpack.c.h.b16 %v63
  %v258 = vunpack.c.l.b16 %v64
  %v259 = vunpack.c.h.b16 %v64
  %v260 = vunpack.c.l.b16 %v65
  %v261 = vunpack.c.h.b16 %v65
  %v262 = vunpack.c.l.b16 %v66
  %v263 = vunpack.c.h.b16 %v66
  %v264 = vunpack.c.l.b16 %v67
  %v265 = vunpack.c.h.b16 %v67
  %v266 = vunpack.c.l.b16 %v68
  %v267 = vunpack.c.h.b16 %v68
  %v268 = vunpack.c.l.b16 %v69
  %v269 = vunpack.c.h.b16 %v69
  %v270 = vunpack.c.l.b16 %v70
  %v271 = vunpack.c.h.b16 %v70
  %v272 = vunpack.c.l.b16 %v71
  %v273 = vunpack.c.h.b16 %v71
  %v274 = vunpack.c.l.b16 %v72
  %v275 = vunpack.c.h.b16 %v72
  %v276 = vunpack.c.l.b16 %v73
  %v277 = vunpack.c.h.b16 %v73
  %v278 = vunpack.c.l.b16 %v74
  %v279 = vunpack.c.h.b16 %v74
  %v280 = vunpack.c.l.b16 %v75
  %v281 = vunpack.c.h.b16 %v75
  %v282 = vunpack.c.l.b16 %v76
  %v283 = vunpack.c.h.b16 %v76
  %v284 = vunpack.c.l.b16 %v77
  %v285 = vunpack.c.h.b16 %v77
  %v286 = vunpack.c.l.b16 %v78
  %v287 = vunpack.c.h.b16 %v78
  %v288 = vunpack.c.l.b16 %v79
  %v289 = vunpack.c.h.b16 %v79
  %v290 = vunpack.c.l.b16 %v80
  %v291 = vunpack.c.h.b16 %v80
  %v292 = vunpack.c.l.b16 %v81
  %v293 = vunpack.c.h.b16 %v81
  %v294 = vunpack.c.l.b16 %v82
  %v295 = vunpack.c.h.b16 %v82
  %v296 = vunpack.c.l.b16 %v83
  %v297 = vunpack.c.h.b16 %v83
  %v298 = vunpack.c.l.b16 %v84
  %v299 = vunpack.c.h.b16 %v84
  %v300 = vunpack.c.l.b16 %v85
  %v301 = vunpack.c.h.b16 %v85
  %v302 = vunpack.c.l.b16 %v86
  %v303 = vunpack.c.h.b16 %v86
  %v304 = vpack.c.b16 %v178, %v176
  %v305 = vpack.c.b16 %v179, %v177
  %v306 = vpack.c.b16 %v182, %v180
  %v307 = vpack.c.b16 %v183, %v181
  %v308 = vpack.c.b16 %v186, %v184
  %v309 = vpack.c.b16 %v187, %v185
  %v310 = vpack.c.b16 %v190, %v188
  %v311 = vpack.c.b16 %v191, %v189
  %v312 = vpack.c.b16 %v194, %v192
  %v313 = vpack.c.b16 %v195, %v193
  %v314 = vpack.c.b16 %v198, %v196
  %v315 = vpack.c.b16 %v199, %v197
  %v316 = vpack.c.b16 %v202, %v200
  %v317 = vpack.c.b16 %v203, %v201
  %v318 = vpack.c.b16 %v206, %v204
  %v319 = vpack.c.b16 %v207, %v205
  %v320 = vpack.c.b16 %v210, %v208
  %v321 = vpack.c.b16 %v211, %v209
  %v322 = vpack.c.b16 %v214, %v212
  %v323 = vpack.c.b16 %v215, %v213
  %v324 = vpack.c.b16 %v218, %v216
  %v325 = vpack.c.b16 %v219, %v217
  %v326 = vpack.c.b16 %v222, %v220
  %v327 = vpack.c.b16 %v223, %v221
  %v328 = vpack.c.b16 %v226, %v224
  %v329 = vpack.c.b16 %v227, %v225
  %v330 = vpack.c.b16 %v230, %v228
  %v331 = vpack.c.b16 %v231, %v229
  %v332 = vpack.c.b16 %v234, %v232
  %v333 = vpack.c.b16 %v235, %v233
  %v334 = vpack.c.b16 %v238, %v236
  %v335 = vpack.c.b16 %v239, %v237
  %v336 = vpack.c.b16 %v242, %v240
  %v337 = vpack.c.b16 %v243, %v241
  %v338 = vpack.c.b16 %v246, %v244
  %v339 = vpack.c.b16 %v247, %v245
  %v340 = vpack.c.b16 %v250, %v248
  %v341 = vpack.c.b16 %v251, %v249
  %v342 = vpack.c.b16 %v254, %v252
  %v343 = vpack.c.b16 %v255, %v253
  %v344 = vpack.c.b16 %v258, %v256
  %v345 = vpack.c.b16 %v259, %v257
  %v346 = vpack.c.b16 %v262, %v260
  %v347 = vpack.c.b16 %v263, %v261
  %v348 = vpack.c.b16 %v266, %v264
  %v349 = vpack.c.b16 %v267, %v265
  %v350 = vpack.c.b16 %v270, %v268
  %v351 = vpack.c.b16 %v271, %v269
  %v352 = vpack.c.b16 %v274, %v272
  %v353 = vpack.c.b16 %v275, %v273
  %v354 = vpack.c.b16 %v278, %v276
  %v355 = vpack.c.b16 %v279, %v277
  %v356 = vpack.c.b16 %v282, %v280
  %v357 = vpack.c.b16 %v283, %v281
  %v358 = vpack.c.b16 %v286, %v284
  %v359 = vpack.c.b16 %v287, %v285
  %v360 = vpack.c.b16 %v290, %v288
  %v361 = vpack.c.b16 %v291, %v289
  %v362 = vpack.c.b16 %v294, %v292
  %v363 = vpack.c.b16 %v295, %v293
  %v364 = vpack.c.b16 %v298, %v296
  %v365 = vpack.c.b16 %v299, %v297
  %v366 = vpack.c.b16 %v302, %v300
  %v367 = vpack.c.b16 %v303, %v301
  %v418 = vunpack.c.l.b16 %v87
  %v419 = vunpack.c.l.b16 %v88
  %v420 = vunpack.c.l.b16 %v89
  %v421 = vunpack.c.l.b16 %v90
  %v422 = vunpack.c.l.b16 %v91
  %v423 = vunpack.c.l.b16 %v92
  %v424 = vunpack.c.l.b16 %v93
  %v425 = vunpack.c.l.b16 %v94
  %v426 = vunpack.c.l.b16 %v95
  %v427 = vunpack.c.l.b16 %v96
  %v428 = vunpack.c.l.b16 %v97
  %v429 = vunpack.c.l.b16 %v98
  %v430 = vunpack.c.l.b16 %v99
  %v431 = vunpack.c.l.b16 %v100
  %v432 = vunpack.c.l.b16 %v101
  %v433 = vunpack.c.l.b16 %v102
  %v434 = vunpack.c.l.b16 %v103
  %v435 = vunpack.c.l.b16 %v104
  %v436 = vpack.c.b16 %v419, %v418
  %v437 = vpack.c.b16 %v421, %v420
  %v438 = vpack.c.b16 %v423, %v422
  %v439 = vpack.c.b16 %v425, %v424
  %v440 = vpack.c.b16 %v427, %v426
  %v441 = vpack.c.b16 %v429, %v428
  %v442 = vpack.c.b16 %v431, %v430
  %v443 = vpack.c.b16 %v433, %v432
  %v444 = vpack.c.b16 %v435, %v434
  %vm454 = vcmask 130048
  %v456 = vsel %vm454, %v305, 0
  %v459 = vsel %vm454, %v307, 0
  %v462 = vsel %vm454, %v309, 0
  %v465 = vsel %vm454, %v311, 0
  %v468 = vsel %vm454, %v313, 0
  %v471 = vsel %vm454, %v315, 0
  %v474 = vsel %vm454, %v317, 0
  %v477 = vsel %vm454, %v319, 0
  %v480 = vsel %vm454, %v321, 0
  %v483 = vsel %vm454, %v323, 0
  %v486 = vsel %vm454, %v325, 0
  %v489 = vsel %vm454, %v327, 0
  %v492 = vsel %vm454, %v329, 0
  %v495 = vsel %vm454, %v331, 0
  %v498 = vsel %vm454, %v333, 0
  %v501 = vsel %vm454, %v335, 0
  %v504 = vsel %vm454, %v337, 0
  %v507 = vsel %vm454, %v339, 0
  %v510 = vsel %vm454, %v341, 0
  %v513 = vsel %vm454, %v343, 0
  %v516 = vsel %vm454, %v345, 0
  %v519 = vsel %vm454, %v347, 0
  %v522 = vsel %vm454, %v349, 0
  %v525 = vsel %vm454, %v351, 0
  %v528 = vsel %vm454, %v353, 0
  %v531 = vsel %vm454, %v355, 0
  %v534 = vsel %vm454, %v357, 0
  %v537 = vsel %vm454, %v359, 0
  %v540 = vsel %vm454, %v361, 0
  %v543 = vsel %vm454, %v363, 0
  %v546 = vsel %vm454, %v365, 0
  %v549 = vsel %vm454, %v367, 0
  %551 = vmatprep.subr.bf16.mxu0 0
  %552 = vmatpush1.bf16.msra.mxu0 %v436
  %553 = vmatprep.subr.bf16.mxu0 0
  %554 = vmatpush1.bf16.msra.mxu0 %v437
  %555 = vmatprep.subr.bf16.mxu0 0
  %556 = vmatpush1.bf16.msra.mxu0 %v438
  %557 = vmatprep.subr.bf16.mxu0 0
  %558 = vmatpush1.bf16.msra.mxu0 %v439
  %559 = vmatprep.subr.bf16.mxu0 0
  %560 = vmatpush1.bf16.msra.mxu0 %v440
  %561 = vmatprep.subr.bf16.mxu0 0
  %562 = vmatpush1.bf16.msra.mxu0 %v441
  %563 = vmatprep.subr.bf16.mxu0 0
  %564 = vmatpush1.bf16.msra.mxu0 %v442
  %565 = vmatprep.subr.bf16.mxu0 0
  %566 = vmatpush1.bf16.msra.mxu0 %v443
  %567 = vmatprep.subr.bf16.mxu0 0
  %568 = vmatpush1.bf16.msra.mxu0 %v444
  %569 = vmatprep.subr.bf16.mxu0 0
  %570 = vmatpush1.bf16.msra.mxu0 0
  %571 = vmatprep.subr.bf16.mxu0 0
  %572 = vmatpush1.bf16.msra.mxu0 0
  %573 = vmatprep.subr.bf16.mxu0 0
  %574 = vmatpush1.bf16.msra.mxu0 0
  %575 = vmatprep.subr.bf16.mxu0 0
  %576 = vmatpush1.bf16.msra.mxu0 0
  %577 = vmatprep.subr.bf16.mxu0 0
  %578 = vmatpush1.bf16.msra.mxu0 0
  %579 = vmatprep.subr.bf16.mxu0 0
  %580 = vmatpush1.bf16.msra.mxu0 0
  %581 = vmatprep.subr.bf16.mxu0 0
  %582 = vmatpush1.bf16.msra.mxu0 0
  %583 = vmatprep.mubr.bf16.mxu0 %v456
  %584 = vmatmul.mubr.bf16.gmra.mrb[0].mxu0 %v304
  %v585 = vpop.f32.mrb[0].mxu0
  %v586 = vadd.f32 %v110, %v585
  %v587 = vpop.f32.mrb[0].mxu0
  %v588 = vpop.f32.mrb[0].mxu0
  %v589 = vadd.f32 %v110, %v588
  %v590 = vpop.f32.mrb[0].mxu0
  %591 = vmatprep.mubr.bf16.mxu0 %v459
  %592 = vmatmul.mubr.bf16.gmra.mrb[0].mxu0 %v306
  %v593 = vpop.f32.mrb[0].mxu0
  %v594 = vadd.f32 %v110, %v593
  %v595 = vpop.f32.mrb[0].mxu0
  %v596 = vpop.f32.mrb[0].mxu0
  %v597 = vadd.f32 %v110, %v596
  %v598 = vpop.f32.mrb[0].mxu0
  %599 = vmatprep.mubr.bf16.mxu0 %v462
  %600 = vmatmul.mubr.bf16.gmra.mrb[0].mxu0 %v308
  %v601 = vpop.f32.mrb[0].mxu0
  %v602 = vadd.f32 %v110, %v601
  %v603 = vpop.f32.mrb[0].mxu0
  %v604 = vpop.f32.mrb[0].mxu0
  %v605 = vadd.f32 %v110, %v604
  %v606 = vpop.f32.mrb[0].mxu0
  %607 = vmatprep.mubr.bf16.mxu0 %v465
  %608 = vmatmul.mubr.bf16.gmra.mrb[0].mxu0 %v310
  %v609 = vpop.f32.mrb[0].mxu0
  %v610 = vadd.f32 %v110, %v609
  %v611 = vpop.f32.mrb[0].mxu0
  %v612 = vpop.f32.mrb[0].mxu0
  %v613 = vadd.f32 %v110, %v612
  %v614 = vpop.f32.mrb[0].mxu0
  %615 = vmatprep.mubr.bf16.mxu0 %v468
  %616 = vmatmul.mubr.bf16.gmra.mrb[0].mxu0 %v312
  %v617 = vpop.f32.mrb[0].mxu0
  %v618 = vadd.f32 %v110, %v617
  %v619 = vpop.f32.mrb[0].mxu0
  %v620 = vpop.f32.mrb[0].mxu0
  %v621 = vadd.f32 %v110, %v620
  %v622 = vpop.f32.mrb[0].mxu0
  %623 = vmatprep.mubr.bf16.mxu0 %v471
  %624 = vmatmul.mubr.bf16.gmra.mrb[0].mxu0 %v314
  %v625 = vpop.f32.mrb[0].mxu0
  %v626 = vadd.f32 %v110, %v625
  %v627 = vpop.f32.mrb[0].mxu0
  %v628 = vpop.f32.mrb[0].mxu0
  %v629 = vadd.f32 %v110, %v628
  %v630 = vpop.f32.mrb[0].mxu0
  %631 = vmatprep.mubr.bf16.mxu0 %v474
  %632 = vmatmul.mubr.bf16.gmra.mrb[0].mxu0 %v316
  %v633 = vpop.f32.mrb[0].mxu0
  %v634 = vadd.f32 %v110, %v633
  %v635 = vpop.f32.mrb[0].mxu0
  %v636 = vpop.f32.mrb[0].mxu0
  %v637 = vadd.f32 %v110, %v636
  %v638 = vpop.f32.mrb[0].mxu0
  %639 = vmatprep.mubr.bf16.mxu0 %v477
  %640 = vmatmul.mubr.bf16.gmra.mrb[0].mxu0 %v318
  %v641 = vpop.f32.mrb[0].mxu0
  %v642 = vadd.f32 %v110, %v641
  %v643 = vpop.f32.mrb[0].mxu0
  %v644 = vpop.f32.mrb[0].mxu0
  %v645 = vadd.f32 %v110, %v644
  %v646 = vpop.f32.mrb[0].mxu0
  %647 = vmatprep.mubr.bf16.mxu0 %v480
  %648 = vmatmul.mubr.bf16.gmra.mrb[0].mxu0 %v320
  %v649 = vpop.f32.mrb[0].mxu0
  %v650 = vadd.f32 %v110, %v649
  %v651 = vpop.f32.mrb[0].mxu0
  %v652 = vpop.f32.mrb[0].mxu0
  %v653 = vadd.f32 %v110, %v652
  %v654 = vpop.f32.mrb[0].mxu0
  %655 = vmatprep.mubr.bf16.mxu0 %v483
  %656 = vmatmul.mubr.bf16.gmra.mrb[0].mxu0 %v322
  %v657 = vpop.f32.mrb[0].mxu0
  %v658 = vadd.f32 %v110, %v657
  %v659 = vpop.f32.mrb[0].mxu0
  %v660 = vpop.f32.mrb[0].mxu0
  %v661 = vadd.f32 %v110, %v660
  %v662 = vpop.f32.mrb[0].mxu0
  %663 = vmatprep.mubr.bf16.mxu0 %v486
  %664 = vmatmul.mubr.bf16.gmra.mrb[0].mxu0 %v324
  %v665 = vpop.f32.mrb[0].mxu0
  %v666 = vadd.f32 %v110, %v665
  %v667 = vpop.f32.mrb[0].mxu0
  %v668 = vpop.f32.mrb[0].mxu0
  %v669 = vadd.f32 %v110, %v668
  %v670 = vpop.f32.mrb[0].mxu0
  %671 = vmatprep.mubr.bf16.mxu0 %v489
  %672 = vmatmul.mubr.bf16.gmra.mrb[0].mxu0 %v326
  %v673 = vpop.f32.mrb[0].mxu0
  %v674 = vadd.f32 %v110, %v673
  %v675 = vpop.f32.mrb[0].mxu0
  %v676 = vpop.f32.mrb[0].mxu0
  %v677 = vadd.f32 %v110, %v676
  %v678 = vpop.f32.mrb[0].mxu0
  %679 = vmatprep.mubr.bf16.mxu0 %v492
  %680 = vmatmul.mubr.bf16.gmra.mrb[0].mxu0 %v328
  %v681 = vpop.f32.mrb[0].mxu0
  %v682 = vadd.f32 %v110, %v681
  %v683 = vpop.f32.mrb[0].mxu0
  %v684 = vpop.f32.mrb[0].mxu0
  %v685 = vadd.f32 %v110, %v684
  %v686 = vpop.f32.mrb[0].mxu0
  %687 = vmatprep.mubr.bf16.mxu0 %v495
  %688 = vmatmul.mubr.bf16.gmra.mrb[0].mxu0 %v330
  %v689 = vpop.f32.mrb[0].mxu0
  %v690 = vadd.f32 %v110, %v689
  %v691 = vpop.f32.mrb[0].mxu0
  %v692 = vpop.f32.mrb[0].mxu0
  %v693 = vadd.f32 %v110, %v692
  %v694 = vpop.f32.mrb[0].mxu0
  %695 = vmatprep.mubr.bf16.mxu0 %v498
  %696 = vmatmul.mubr.bf16.gmra.mrb[0].mxu0 %v332
  %v697 = vpop.f32.mrb[0].mxu0
  %v698 = vadd.f32 %v110, %v697
  %v699 = vpop.f32.mrb[0].mxu0
  %v700 = vpop.f32.mrb[0].mxu0
  %v701 = vadd.f32 %v110, %v700
  %v702 = vpop.f32.mrb[0].mxu0
  %703 = vmatprep.mubr.bf16.mxu0 %v501
  %704 = vmatmul.mubr.bf16.gmra.mrb[0].mxu0 %v334
  %v705 = vpop.f32.mrb[0].mxu0
  %v706 = vadd.f32 %v110, %v705
  %v707 = vpop.f32.mrb[0].mxu0
  %v708 = vpop.f32.mrb[0].mxu0
  %v709 = vadd.f32 %v110, %v708
  %v710 = vpop.f32.mrb[0].mxu0
  %711 = vmatprep.mubr.bf16.mxu0 %v504
  %712 = vmatmul.mubr.bf16.gmra.mrb[0].mxu0 %v336
  %v713 = vpop.f32.mrb[0].mxu0
  %v714 = vadd.f32 %v110, %v713
  %v715 = vpop.f32.mrb[0].mxu0
  %v716 = vpop.f32.mrb[0].mxu0
  %v717 = vadd.f32 %v110, %v716
  %v718 = vpop.f32.mrb[0].mxu0
  %719 = vmatprep.mubr.bf16.mxu0 %v507
  %720 = vmatmul.mubr.bf16.gmra.mrb[0].mxu0 %v338
  %v721 = vpop.f32.mrb[0].mxu0
  %v722 = vadd.f32 %v110, %v721
  %v723 = vpop.f32.mrb[0].mxu0
  %v724 = vpop.f32.mrb[0].mxu0
  %v725 = vadd.f32 %v110, %v724
  %v726 = vpop.f32.mrb[0].mxu0
  %727 = vmatprep.mubr.bf16.mxu0 %v510
  %728 = vmatmul.mubr.bf16.gmra.mrb[0].mxu0 %v340
  %v729 = vpop.f32.mrb[0].mxu0
  %v730 = vadd.f32 %v110, %v729
  %v731 = vpop.f32.mrb[0].mxu0
  %v732 = vpop.f32.mrb[0].mxu0
  %v733 = vadd.f32 %v110, %v732
  %v734 = vpop.f32.mrb[0].mxu0
  %735 = vmatprep.mubr.bf16.mxu0 %v513
  %736 = vmatmul.mubr.bf16.gmra.mrb[0].mxu0 %v342
  %v737 = vpop.f32.mrb[0].mxu0
  %v738 = vadd.f32 %v110, %v737
  %v739 = vpop.f32.mrb[0].mxu0
  %v740 = vpop.f32.mrb[0].mxu0
  %v741 = vadd.f32 %v110, %v740
  %v742 = vpop.f32.mrb[0].mxu0
  %743 = vmatprep.mubr.bf16.mxu0 %v516
  %744 = vmatmul.mubr.bf16.gmra.mrb[0].mxu0 %v344
  %v745 = vpop.f32.mrb[0].mxu0
  %v746 = vadd.f32 %v110, %v745
  %v747 = vpop.f32.mrb[0].mxu0
  %v748 = vpop.f32.mrb[0].mxu0
  %v749 = vadd.f32 %v110, %v748
  %v750 = vpop.f32.mrb[0].mxu0
  %751 = vmatprep.mubr.bf16.mxu0 %v519
  %752 = vmatmul.mubr.bf16.gmra.mrb[0].mxu0 %v346
  %v753 = vpop.f32.mrb[0].mxu0
  %v754 = vadd.f32 %v110, %v753
  %v755 = vpop.f32.mrb[0].mxu0
  %v756 = vpop.f32.mrb[0].mxu0
  %v757 = vadd.f32 %v110, %v756
  %v758 = vpop.f32.mrb[0].mxu0
  %759 = vmatprep.mubr.bf16.mxu0 %v522
  %760 = vmatmul.mubr.bf16.gmra.mrb[0].mxu0 %v348
  %v761 = vpop.f32.mrb[0].mxu0
  %v762 = vadd.f32 %v110, %v761
  %v763 = vpop.f32.mrb[0].mxu0
  %v764 = vpop.f32.mrb[0].mxu0
  %v765 = vadd.f32 %v110, %v764
  %v766 = vpop.f32.mrb[0].mxu0
  %767 = vmatprep.mubr.bf16.mxu0 %v525
  %768 = vmatmul.mubr.bf16.gmra.mrb[0].mxu0 %v350
  %v769 = vpop.f32.mrb[0].mxu0
  %v770 = vadd.f32 %v110, %v769
  %v771 = vpop.f32.mrb[0].mxu0
  %v772 = vpop.f32.mrb[0].mxu0
  %v773 = vadd.f32 %v110, %v772
  %v774 = vpop.f32.mrb[0].mxu0
  %775 = vmatprep.mubr.bf16.mxu0 %v528
  %776 = vmatmul.mubr.bf16.gmra.mrb[0].mxu0 %v352
  %v777 = vpop.f32.mrb[0].mxu0
  %v778 = vadd.f32 %v110, %v777
  %v779 = vpop.f32.mrb[0].mxu0
  %v780 = vpop.f32.mrb[0].mxu0
  %v781 = vadd.f32 %v110, %v780
  %v782 = vpop.f32.mrb[0].mxu0
  %783 = vmatprep.mubr.bf16.mxu0 %v531
  %784 = vmatmul.mubr.bf16.gmra.mrb[0].mxu0 %v354
  %v785 = vpop.f32.mrb[0].mxu0
  %v786 = vadd.f32 %v110, %v785
  %v787 = vpop.f32.mrb[0].mxu0
  %v788 = vpop.f32.mrb[0].mxu0
  %v789 = vadd.f32 %v110, %v788
  %v790 = vpop.f32.mrb[0].mxu0
  %791 = vmatprep.mubr.bf16.mxu0 %v534
  %792 = vmatmul.mubr.bf16.gmra.mrb[0].mxu0 %v356
  %v793 = vpop.f32.mrb[0].mxu0
  %v794 = vadd.f32 %v110, %v793
  %v795 = vpop.f32.mrb[0].mxu0
  %v796 = vpop.f32.mrb[0].mxu0
  %v797 = vadd.f32 %v110, %v796
  %v798 = vpop.f32.mrb[0].mxu0
  %799 = vmatprep.mubr.bf16.mxu0 %v537
  %800 = vmatmul.mubr.bf16.gmra.mrb[0].mxu0 %v358
  %v801 = vpop.f32.mrb[0].mxu0
  %v802 = vadd.f32 %v110, %v801
  %v803 = vpop.f32.mrb[0].mxu0
  %v804 = vpop.f32.mrb[0].mxu0
  %v805 = vadd.f32 %v110, %v804
  %v806 = vpop.f32.mrb[0].mxu0
  %807 = vmatprep.mubr.bf16.mxu0 %v540
  %808 = vmatmul.mubr.bf16.gmra.mrb[0].mxu0 %v360
  %v809 = vpop.f32.mrb[0].mxu0
  %v810 = vadd.f32 %v110, %v809
  %v811 = vpop.f32.mrb[0].mxu0
  %v812 = vpop.f32.mrb[0].mxu0
  %v813 = vadd.f32 %v110, %v812
  %v814 = vpop.f32.mrb[0].mxu0
  %815 = vmatprep.mubr.bf16.mxu0 %v543
  %816 = vmatmul.mubr.bf16.gmra.mrb[0].mxu0 %v362
  %v817 = vpop.f32.mrb[0].mxu0
  %v818 = vadd.f32 %v110, %v817
  %v819 = vpop.f32.mrb[0].mxu0
  %v820 = vpop.f32.mrb[0].mxu0
  %v821 = vadd.f32 %v110, %v820
  %v822 = vpop.f32.mrb[0].mxu0
  %823 = vmatprep.mubr.bf16.mxu0 %v546
  %824 = vmatmul.mubr.bf16.gmra.mrb[0].mxu0 %v364
  %v825 = vpop.f32.mrb[0].mxu0
  %v826 = vadd.f32 %v110, %v825
  %v827 = vpop.f32.mrb[0].mxu0
  %v828 = vpop.f32.mrb[0].mxu0
  %v829 = vadd.f32 %v110, %v828
  %v830 = vpop.f32.mrb[0].mxu0
  %831 = vmatprep.mubr.bf16.mxu0 %v549
  %832 = vmatmul.mubr.bf16.gmra.mrb[0].mxu0 %v366
  %v833 = vpop.f32.mrb[0].mxu0
  %v834 = vadd.f32 %v110, %v833
  %v835 = vpop.f32.mrb[0].mxu0
  %v836 = vpop.f32.mrb[0].mxu0
  %v837 = vadd.f32 %v110, %v836
  %v838 = vpop.f32.mrb[0].mxu0
  %839 = vdwg.mxu0
  %v840 = vmax.f32 %v586, 0.0
  %v841 = vmax.f32 %v589, 0.0
  %v842 = vmax.f32 %v594, 0.0
  %v843 = vmax.f32 %v597, 0.0
  %v844 = vmax.f32 %v602, 0.0
  %v845 = vmax.f32 %v605, 0.0
  %v846 = vmax.f32 %v610, 0.0
  %v847 = vmax.f32 %v613, 0.0
  %v848 = vmax.f32 %v618, 0.0
  %v849 = vmax.f32 %v621, 0.0
  %v850 = vmax.f32 %v626, 0.0
  %v851 = vmax.f32 %v629, 0.0
  %v852 = vmax.f32 %v634, 0.0
  %v853 = vmax.f32 %v637, 0.0
  %v854 = vmax.f32 %v642, 0.0
  %v855 = vmax.f32 %v645, 0.0
  %v856 = vmax.f32 %v650, 0.0
  %v857 = vmax.f32 %v653, 0.0
  %v858 = vmax.f32 %v658, 0.0
  %v859 = vmax.f32 %v661, 0.0
  %v860 = vmax.f32 %v666, 0.0
  %v861 = vmax.f32 %v669, 0.0
  %v862 = vmax.f32 %v674, 0.0
  %v863 = vmax.f32 %v677, 0.0
  %v864 = vmax.f32 %v682, 0.0
  %v865 = vmax.f32 %v685, 0.0
  %v866 = vmax.f32 %v690, 0.0
  %v867 = vmax.f32 %v693, 0.0
  %v868 = vmax.f32 %v698, 0.0
  %v869 = vmax.f32 %v701, 0.0
  %v870 = vmax.f32 %v706, 0.0
  %v871 = vmax.f32 %v709, 0.0
  %v872 = vmax.f32 %v714, 0.0
  %v873 = vmax.f32 %v717, 0.0
  %v874 = vmax.f32 %v722, 0.0
  %v875 = vmax.f32 %v725, 0.0
  %v876 = vmax.f32 %v730, 0.0
  %v877 = vmax.f32 %v733, 0.0
  %v878 = vmax.f32 %v738, 0.0
  %v879 = vmax.f32 %v741, 0.0
  %v880 = vmax.f32 %v746, 0.0
  %v881 = vmax.f32 %v749, 0.0
  %v882 = vmax.f32 %v754, 0.0
  %v883 = vmax.f32 %v757, 0.0
  %v884 = vmax.f32 %v762, 0.0
  %v885 = vmax.f32 %v765, 0.0
  %v886 = vmax.f32 %v770, 0.0
  %v887 = vmax.f32 %v773, 0.0
  %v888 = vmax.f32 %v778, 0.0
  %v889 = vmax.f32 %v781, 0.0
  %v890 = vmax.f32 %v786, 0.0
  %v891 = vmax.f32 %v789, 0.0
  %v892 = vmax.f32 %v794, 0.0
  %v893 = vmax.f32 %v797, 0.0
  %v894 = vmax.f32 %v802, 0.0
  %v895 = vmax.f32 %v805, 0.0
  %v896 = vmax.f32 %v810, 0.0
  %v897 = vmax.f32 %v813, 0.0
  %v898 = vmax.f32 %v818, 0.0
  %v899 = vmax.f32 %v821, 0.0
  %v900 = vmax.f32 %v826, 0.0
  %v901 = vmax.f32 %v829, 0.0
  %v902 = vmax.f32 %v834, 0.0
  %v903 = vmax.f32 %v837, 0.0
  %v904 = vld [vmem:[%s3] sm:$0x1]
  %v906 = vlaneseq
  %v907 = vshrl.u32 %v906, 7
  %v908 = vsub.s32 0, %v907
  %v909 = vrot.slane %v904, %v908
  %v911 = vmul.f32 %v840, %v909
  %v912 = vmul.f32 %v841, %v909
  %v913 = vmul.f32 %v842, %v909
  %v914 = vmul.f32 %v843, %v909
  %v915 = vmul.f32 %v844, %v909
  %v916 = vmul.f32 %v845, %v909
  %v917 = vmul.f32 %v846, %v909
  %v918 = vmul.f32 %v847, %v909
  %v919 = vmul.f32 %v848, %v909
  %v920 = vmul.f32 %v849, %v909
  %v921 = vmul.f32 %v850, %v909
  %v922 = vmul.f32 %v851, %v909
  %v923 = vmul.f32 %v852, %v909
  %v924 = vmul.f32 %v853, %v909
  %v925 = vmul.f32 %v854, %v909
  %v926 = vmul.f32 %v855, %v909
  %v927 = vmul.f32 %v856, %v909
  %v928 = vmul.f32 %v857, %v909
  %v929 = vmul.f32 %v858, %v909
  %v930 = vmul.f32 %v859, %v909
  %v931 = vmul.f32 %v860, %v909
  %v932 = vmul.f32 %v861, %v909
  %v933 = vmul.f32 %v862, %v909
  %v934 = vmul.f32 %v863, %v909
  %v935 = vmul.f32 %v864, %v909
  %v936 = vmul.f32 %v865, %v909
  %v937 = vmul.f32 %v866, %v909
  %v938 = vmul.f32 %v867, %v909
  %v939 = vmul.f32 %v868, %v909
  %v940 = vmul.f32 %v869, %v909
  %v941 = vmul.f32 %v870, %v909
  %v942 = vmul.f32 %v871, %v909
  %v943 = vmul.f32 %v872, %v909
  %v944 = vmul.f32 %v873, %v909
  %v945 = vmul.f32 %v874, %v909
  %v946 = vmul.f32 %v875, %v909
  %v947 = vmul.f32 %v876, %v909
  %v948 = vmul.f32 %v877, %v909
  %v949 = vmul.f32 %v878, %v909
  %v950 = vmul.f32 %v879, %v909
  %v951 = vmul.f32 %v880, %v909
  %v952 = vmul.f32 %v881, %v909
  %v953 = vmul.f32 %v882, %v909
  %v954 = vmul.f32 %v883, %v909
  %v955 = vmul.f32 %v884, %v909
  %v956 = vmul.f32 %v885, %v909
  %v957 = vmul.f32 %v886, %v909
  %v958 = vmul.f32 %v887, %v909
  %v959 = vmul.f32 %v888, %v909
  %v960 = vmul.f32 %v889, %v909
  %v961 = vmul.f32 %v890, %v909
  %v962 = vmul.f32 %v891, %v909
  %v963 = vmul.f32 %v892, %v909
  %v964 = vmul.f32 %v893, %v909
  %v965 = vmul.f32 %v894, %v909
  %v966 = vmul.f32 %v895, %v909
  %v967 = vmul.f32 %v896, %v909
  %v968 = vmul.f32 %v897, %v909
  %v969 = vmul.f32 %v898, %v909
  %v970 = vmul.f32 %v899, %v909
  %v971 = vmul.f32 %v900, %v909
  %v972 = vmul.f32 %v901, %v909
  %v973 = vmul.f32 %v902, %v909
  %v974 = vmul.f32 %v903, %v909
  %vm975 = vcmask 31744
  %v976 = vsel %vm975, %v911, 0.0
  %977 = vadd.xlane.f32.xlu0 %v976
  %v978 = vpop.xlane.xlu0 %977
  %v979 = vsel %vm975, %v912, 0.0
  %980 = vadd.xlane.f32.xlu0 %v979
  %v981 = vpop.xlane.xlu0 %980
  %v982 = vsel %vm975, %v913, 0.0
  %983 = vadd.xlane.f32.xlu0 %v982
  %v984 = vpop.xlane.xlu0 %983
  %v985 = vsel %vm975, %v914, 0.0
  %986 = vadd.xlane.f32.xlu0 %v985
  %v987 = vpop.xlane.xlu0 %986
  %v988 = vsel %vm975, %v915, 0.0
  %989 = vadd.xlane.f32.xlu0 %v988
  %v990 = vpop.xlane.xlu0 %989
  %v991 = vsel %vm975, %v916, 0.0
  %992 = vadd.xlane.f32.xlu0 %v991
  %v993 = vpop.xlane.xlu0 %992
  %v994 = vsel %vm975, %v917, 0.0
  %995 = vadd.xlane.f32.xlu0 %v994
  %v996 = vpop.xlane.xlu0 %995
  %v997 = vsel %vm975, %v918, 0.0
  %998 = vadd.xlane.f32.xlu0 %v997
  %v999 = vpop.xlane.xlu0 %998
  %v1000 = vsel %vm975, %v919, 0.0
  %1001 = vadd.xlane.f32.xlu0 %v1000
  %v1002 = vpop.xlane.xlu0 %1001
  %v1003 = vsel %vm975, %v920, 0.0
  %1004 = vadd.xlane.f32.xlu0 %v1003
  %v1005 = vpop.xlane.xlu0 %1004
  %v1006 = vsel %vm975, %v921, 0.0
  %1007 = vadd.xlane.f32.xlu0 %v1006
  %v1008 = vpop.xlane.xlu0 %1007
  %v1009 = vsel %vm975, %v922, 0.0
  %1010 = vadd.xlane.f32.xlu0 %v1009
  %v1011 = vpop.xlane.xlu0 %1010
  %v1012 = vsel %vm975, %v923, 0.0
  %1013 = vadd.xlane.f32.xlu0 %v1012
  %v1014 = vpop.xlane.xlu0 %1013
  %v1015 = vsel %vm975, %v924, 0.0
  %1016 = vadd.xlane.f32.xlu0 %v1015
  %v1017 = vpop.xlane.xlu0 %1016
  %v1018 = vsel %vm975, %v925, 0.0
  %1019 = vadd.xlane.f32.xlu0 %v1018
  %v1020 = vpop.xlane.xlu0 %1019
  %v1021 = vsel %vm975, %v926, 0.0
  %1022 = vadd.xlane.f32.xlu0 %v1021
  %v1023 = vpop.xlane.xlu0 %1022
  %v1024 = vsel %vm975, %v927, 0.0
  %1025 = vadd.xlane.f32.xlu0 %v1024
  %v1026 = vpop.xlane.xlu0 %1025
  %v1027 = vsel %vm975, %v928, 0.0
  %1028 = vadd.xlane.f32.xlu0 %v1027
  %v1029 = vpop.xlane.xlu0 %1028
  %v1030 = vsel %vm975, %v929, 0.0
  %1031 = vadd.xlane.f32.xlu0 %v1030
  %v1032 = vpop.xlane.xlu0 %1031
  %v1033 = vsel %vm975, %v930, 0.0
  %1034 = vadd.xlane.f32.xlu0 %v1033
  %v1035 = vpop.xlane.xlu0 %1034
  %v1036 = vsel %vm975, %v931, 0.0
  %1037 = vadd.xlane.f32.xlu0 %v1036
  %v1038 = vpop.xlane.xlu0 %1037
  %v1039 = vsel %vm975, %v932, 0.0
  %1040 = vadd.xlane.f32.xlu0 %v1039
  %v1041 = vpop.xlane.xlu0 %1040
  %v1042 = vsel %vm975, %v933, 0.0
  %1043 = vadd.xlane.f32.xlu0 %v1042
  %v1044 = vpop.xlane.xlu0 %1043
  %v1045 = vsel %vm975, %v934, 0.0
  %1046 = vadd.xlane.f32.xlu0 %v1045
  %v1047 = vpop.xlane.xlu0 %1046
  %v1048 = vsel %vm975, %v935, 0.0
  %1049 = vadd.xlane.f32.xlu0 %v1048
  %v1050 = vpop.xlane.xlu0 %1049
  %v1051 = vsel %vm975, %v936, 0.0
  %1052 = vadd.xlane.f32.xlu0 %v1051
  %v1053 = vpop.xlane.xlu0 %1052
  %v1054 = vsel %vm975, %v937, 0.0
  %1055 = vadd.xlane.f32.xlu0 %v1054
  %v1056 = vpop.xlane.xlu0 %1055
  %v1057 = vsel %vm975, %v938, 0.0
  %1058 = vadd.xlane.f32.xlu0 %v1057
  %v1059 = vpop.xlane.xlu0 %1058
  %v1060 = vsel %vm975, %v939, 0.0
  %1061 = vadd.xlane.f32.xlu0 %v1060
  %v1062 = vpop.xlane.xlu0 %1061
  %v1063 = vsel %vm975, %v940, 0.0
  %1064 = vadd.xlane.f32.xlu0 %v1063
  %v1065 = vpop.xlane.xlu0 %1064
  %v1066 = vsel %vm975, %v941, 0.0
  %1067 = vadd.xlane.f32.xlu0 %v1066
  %v1068 = vpop.xlane.xlu0 %1067
  %v1069 = vsel %vm975, %v942, 0.0
  %1070 = vadd.xlane.f32.xlu0 %v1069
  %v1071 = vpop.xlane.xlu0 %1070
  %v1072 = vsel %vm975, %v943, 0.0
  %1073 = vadd.xlane.f32.xlu0 %v1072
  %v1074 = vpop.xlane.xlu0 %1073
  %v1075 = vsel %vm975, %v944, 0.0
  %1076 = vadd.xlane.f32.xlu0 %v1075
  %v1077 = vpop.xlane.xlu0 %1076
  %v1078 = vsel %vm975, %v945, 0.0
  %1079 = vadd.xlane.f32.xlu0 %v1078
  %v1080 = vpop.xlane.xlu0 %1079
  %v1081 = vsel %vm975, %v946, 0.0
  %1082 = vadd.xlane.f32.xlu0 %v1081
  %v1083 = vpop.xlane.xlu0 %1082
  %v1084 = vsel %vm975, %v947, 0.0
  %1085 = vadd.xlane.f32.xlu0 %v1084
  %v1086 = vpop.xlane.xlu0 %1085
  %v1087 = vsel %vm975, %v948, 0.0
  %1088 = vadd.xlane.f32.xlu0 %v1087
  %v1089 = vpop.xlane.xlu0 %1088
  %v1090 = vsel %vm975, %v949, 0.0
  %1091 = vadd.xlane.f32.xlu0 %v1090
  %v1092 = vpop.xlane.xlu0 %1091
  %v1093 = vsel %vm975, %v950, 0.0
  %1094 = vadd.xlane.f32.xlu0 %v1093
  %v1095 = vpop.xlane.xlu0 %1094
  %v1096 = vsel %vm975, %v951, 0.0
  %1097 = vadd.xlane.f32.xlu0 %v1096
  %v1098 = vpop.xlane.xlu0 %1097
  %v1099 = vsel %vm975, %v952, 0.0
  %1100 = vadd.xlane.f32.xlu0 %v1099
  %v1101 = vpop.xlane.xlu0 %1100
  %v1102 = vsel %vm975, %v953, 0.0
  %1103 = vadd.xlane.f32.xlu0 %v1102
  %v1104 = vpop.xlane.xlu0 %1103
  %v1105 = vsel %vm975, %v954, 0.0
  %1106 = vadd.xlane.f32.xlu0 %v1105
  %v1107 = vpop.xlane.xlu0 %1106
  %v1108 = vsel %vm975, %v955, 0.0
  %1109 = vadd.xlane.f32.xlu0 %v1108
  %v1110 = vpop.xlane.xlu0 %1109
  %v1111 = vsel %vm975, %v956, 0.0
  %1112 = vadd.xlane.f32.xlu0 %v1111
  %v1113 = vpop.xlane.xlu0 %1112
  %v1114 = vsel %vm975, %v957, 0.0
  %1115 = vadd.xlane.f32.xlu0 %v1114
  %v1116 = vpop.xlane.xlu0 %1115
  %v1117 = vsel %vm975, %v958, 0.0
  %1118 = vadd.xlane.f32.xlu0 %v1117
  %v1119 = vpop.xlane.xlu0 %1118
  %v1120 = vsel %vm975, %v959, 0.0
  %1121 = vadd.xlane.f32.xlu0 %v1120
  %v1122 = vpop.xlane.xlu0 %1121
  %v1123 = vsel %vm975, %v960, 0.0
  %1124 = vadd.xlane.f32.xlu0 %v1123
  %v1125 = vpop.xlane.xlu0 %1124
  %v1126 = vsel %vm975, %v961, 0.0
  %1127 = vadd.xlane.f32.xlu0 %v1126
  %v1128 = vpop.xlane.xlu0 %1127
  %v1129 = vsel %vm975, %v962, 0.0
  %1130 = vadd.xlane.f32.xlu0 %v1129
  %v1131 = vpop.xlane.xlu0 %1130
  %v1132 = vsel %vm975, %v963, 0.0
  %1133 = vadd.xlane.f32.xlu0 %v1132
  %v1134 = vpop.xlane.xlu0 %1133
  %v1135 = vsel %vm975, %v964, 0.0
  %1136 = vadd.xlane.f32.xlu0 %v1135
  %v1137 = vpop.xlane.xlu0 %1136
  %v1138 = vsel %vm975, %v965, 0.0
  %1139 = vadd.xlane.f32.xlu0 %v1138
  %v1140 = vpop.xlane.xlu0 %1139
  %v1141 = vsel %vm975, %v966, 0.0
  %1142 = vadd.xlane.f32.xlu0 %v1141
  %v1143 = vpop.xlane.xlu0 %1142
  %v1144 = vsel %vm975, %v967, 0.0
  %1145 = vadd.xlane.f32.xlu0 %v1144
  %v1146 = vpop.xlane.xlu0 %1145
  %v1147 = vsel %vm975, %v968, 0.0
  %1148 = vadd.xlane.f32.xlu0 %v1147
  %v1149 = vpop.xlane.xlu0 %1148
  %v1150 = vsel %vm975, %v969, 0.0
  %1151 = vadd.xlane.f32.xlu0 %v1150
  %v1152 = vpop.xlane.xlu0 %1151
  %v1153 = vsel %vm975, %v970, 0.0
  %1154 = vadd.xlane.f32.xlu0 %v1153
  %v1155 = vpop.xlane.xlu0 %1154
  %v1156 = vsel %vm975, %v971, 0.0
  %1157 = vadd.xlane.f32.xlu0 %v1156
  %v1158 = vpop.xlane.xlu0 %1157
  %v1159 = vsel %vm975, %v972, 0.0
  %1160 = vadd.xlane.f32.xlu0 %v1159
  %v1161 = vpop.xlane.xlu0 %1160
  %v1162 = vsel %vm975, %v973, 0.0
  %1163 = vadd.xlane.f32.xlu0 %v1162
  %v1164 = vpop.xlane.xlu0 %1163
  %v1165 = vsel %vm975, %v974, 0.0
  %1166 = vadd.xlane.f32.xlu0 %v1165
  %v1167 = vpop.xlane.xlu0 %1166
  %v1168 = vld [vmem:[#allocation2] sm:$0x1]
  %v1170 = vlaneseq
  %v1171 = vshrl.u32 %v1170, 7
  %v1172 = vsub.s32 0, %v1171
  %v1173 = vrot.slane %v1168, %v1172
  %v1175 = vadd.f32 %v978, %v1173
  %v1176 = vadd.f32 %v981, %v1173
  %v1177 = vadd.f32 %v984, %v1173
  %v1178 = vadd.f32 %v987, %v1173
  %v1179 = vadd.f32 %v990, %v1173
  %v1180 = vadd.f32 %v993, %v1173
  %v1181 = vadd.f32 %v996, %v1173
  %v1182 = vadd.f32 %v999, %v1173
  %v1183 = vadd.f32 %v1002, %v1173
  %v1184 = vadd.f32 %v1005, %v1173
  %v1185 = vadd.f32 %v1008, %v1173
  %v1186 = vadd.f32 %v1011, %v1173
  %v1187 = vadd.f32 %v1014, %v1173
  %v1188 = vadd.f32 %v1017, %v1173
  %v1189 = vadd.f32 %v1020, %v1173
  %v1190 = vadd.f32 %v1023, %v1173
  %v1191 = vadd.f32 %v1026, %v1173
  %v1192 = vadd.f32 %v1029, %v1173
  %v1193 = vadd.f32 %v1032, %v1173
  %v1194 = vadd.f32 %v1035, %v1173
  %v1195 = vadd.f32 %v1038, %v1173
  %v1196 = vadd.f32 %v1041, %v1173
  %v1197 = vadd.f32 %v1044, %v1173
  %v1198 = vadd.f32 %v1047, %v1173
  %v1199 = vadd.f32 %v1050, %v1173
  %v1200 = vadd.f32 %v1053, %v1173
  %v1201 = vadd.f32 %v1056, %v1173
  %v1202 = vadd.f32 %v1059, %v1173
  %v1203 = vadd.f32 %v1062, %v1173
  %v1204 = vadd.f32 %v1065, %v1173
  %v1205 = vadd.f32 %v1068, %v1173
  %v1206 = vadd.f32 %v1071, %v1173
  %v1207 = vadd.f32 %v1074, %v1173
  %v1208 = vadd.f32 %v1077, %v1173
  %v1209 = vadd.f32 %v1080, %v1173
  %v1210 = vadd.f32 %v1083, %v1173
  %v1211 = vadd.f32 %v1086, %v1173
  %v1212 = vadd.f32 %v1089, %v1173
  %v1213 = vadd.f32 %v1092, %v1173
  %v1214 = vadd.f32 %v1095, %v1173
  %v1215 = vadd.f32 %v1098, %v1173
  %v1216 = vadd.f32 %v1101, %v1173
  %v1217 = vadd.f32 %v1104, %v1173
  %v1218 = vadd.f32 %v1107, %v1173
  %v1219 = vadd.f32 %v1110, %v1173
  %v1220 = vadd.f32 %v1113, %v1173
  %v1221 = vadd.f32 %v1116, %v1173
  %v1222 = vadd.f32 %v1119, %v1173
  %v1223 = vadd.f32 %v1122, %v1173
  %v1224 = vadd.f32 %v1125, %v1173
  %v1225 = vadd.f32 %v1128, %v1173
  %v1226 = vadd.f32 %v1131, %v1173
  %v1227 = vadd.f32 %v1134, %v1173
  %v1228 = vadd.f32 %v1137, %v1173
  %v1229 = vadd.f32 %v1140, %v1173
  %v1230 = vadd.f32 %v1143, %v1173
  %v1231 = vadd.f32 %v1146, %v1173
  %v1232 = vadd.f32 %v1149, %v1173
  %v1233 = vadd.f32 %v1152, %v1173
  %v1234 = vadd.f32 %v1155, %v1173
  %v1235 = vadd.f32 %v1158, %v1173
  %v1236 = vadd.f32 %v1161, %v1173
  %v1237 = vadd.f32 %v1164, %v1173
  %v1238 = vadd.f32 %v1167, %v1173
  %v1239 = vmul.f32 %v1175, 0.5
  %v1240 = vmul.f32 %v1176, 0.5
  %v1241 = vmul.f32 %v1177, 0.5
  %v1242 = vmul.f32 %v1178, 0.5
  %v1243 = vmul.f32 %v1179, 0.5
  %v1244 = vmul.f32 %v1180, 0.5
  %v1245 = vmul.f32 %v1181, 0.5
  %v1246 = vmul.f32 %v1182, 0.5
  %v1247 = vmul.f32 %v1183, 0.5
  %v1248 = vmul.f32 %v1184, 0.5
  %v1249 = vmul.f32 %v1185, 0.5
  %v1250 = vmul.f32 %v1186, 0.5
  %v1251 = vmul.f32 %v1187, 0.5
  %v1252 = vmul.f32 %v1188, 0.5
  %v1253 = vmul.f32 %v1189, 0.5
  %v1254 = vmul.f32 %v1190, 0.5
  %v1255 = vmul.f32 %v1191, 0.5
  %v1256 = vmul.f32 %v1192, 0.5
  %v1257 = vmul.f32 %v1193, 0.5
  %v1258 = vmul.f32 %v1194, 0.5
  %v1259 = vmul.f32 %v1195, 0.5
  %v1260 = vmul.f32 %v1196, 0.5
  %v1261 = vmul.f32 %v1197, 0.5
  %v1262 = vmul.f32 %v1198, 0.5
  %v1263 = vmul.f32 %v1199, 0.5
  %v1264 = vmul.f32 %v1200, 0.5
  %v1265 = vmul.f32 %v1201, 0.5
  %v1266 = vmul.f32 %v1202, 0.5
  %v1267 = vmul.f32 %v1203, 0.5
  %v1268 = vmul.f32 %v1204, 0.5
  %v1269 = vmul.f32 %v1205, 0.5
  %v1270 = vmul.f32 %v1206, 0.5
  %v1271 = vmul.f32 %v1207, 0.5
  %v1272 = vmul.f32 %v1208, 0.5
  %v1273 = vmul.f32 %v1209, 0.5
  %v1274 = vmul.f32 %v1210, 0.5
  %v1275 = vmul.f32 %v1211, 0.5
  %v1276 = vmul.f32 %v1212, 0.5
  %v1277 = vmul.f32 %v1213, 0.5
  %v1278 = vmul.f32 %v1214, 0.5
  %v1279 = vmul.f32 %v1215, 0.5
  %v1280 = vmul.f32 %v1216, 0.5
  %v1281 = vmul.f32 %v1217, 0.5
  %v1282 = vmul.f32 %v1218, 0.5
  %v1283 = vmul.f32 %v1219, 0.5
  %v1284 = vmul.f32 %v1220, 0.5
  %v1285 = vmul.f32 %v1221, 0.5
  %v1286 = vmul.f32 %v1222, 0.5
  %v1287 = vmul.f32 %v1223, 0.5
  %v1288 = vmul.f32 %v1224, 0.5
  %v1289 = vmul.f32 %v1225, 0.5
  %v1290 = vmul.f32 %v1226, 0.5
  %v1291 = vmul.f32 %v1227, 0.5
  %v1292 = vmul.f32 %v1228, 0.5
  %v1293 = vmul.f32 %v1229, 0.5
  %v1294 = vmul.f32 %v1230, 0.5
  %v1295 = vmul.f32 %v1231, 0.5
  %v1296 = vmul.f32 %v1232, 0.5
  %v1297 = vmul.f32 %v1233, 0.5
  %v1298 = vmul.f32 %v1234, 0.5
  %v1299 = vmul.f32 %v1235, 0.5
  %v1300 = vmul.f32 %v1236, 0.5
  %v1301 = vmul.f32 %v1237, 0.5
  %v1302 = vmul.f32 %v1238, 0.5
  %v1303 = vtanh.pop %v1239
  %v1304 = vtanh.pop %v1240
  %v1305 = vtanh.pop %v1241
  %v1306 = vtanh.pop %v1242
  %v1307 = vtanh.pop %v1243
  %v1308 = vtanh.pop %v1244
  %v1309 = vtanh.pop %v1245
  %v1310 = vtanh.pop %v1246
  %v1311 = vtanh.pop %v1247
  %v1312 = vtanh.pop %v1248
  %v1313 = vtanh.pop %v1249
  %v1314 = vtanh.pop %v1250
  %v1315 = vtanh.pop %v1251
  %v1316 = vtanh.pop %v1252
  %v1317 = vtanh.pop %v1253
  %v1318 = vtanh.pop %v1254
  %v1319 = vtanh.pop %v1255
  %v1320 = vtanh.pop %v1256
  %v1321 = vtanh.pop %v1257
  %v1322 = vtanh.pop %v1258
  %v1323 = vtanh.pop %v1259
  %v1324 = vtanh.pop %v1260
  %v1325 = vtanh.pop %v1261
  %v1326 = vtanh.pop %v1262
  %v1327 = vtanh.pop %v1263
  %v1328 = vtanh.pop %v1264
  %v1329 = vtanh.pop %v1265
  %v1330 = vtanh.pop %v1266
  %v1331 = vtanh.pop %v1267
  %v1332 = vtanh.pop %v1268
  %v1333 = vtanh.pop %v1269
  %v1334 = vtanh.pop %v1270
  %v1335 = vtanh.pop %v1271
  %v1336 = vtanh.pop %v1272
  %v1337 = vtanh.pop %v1273
  %v1338 = vtanh.pop %v1274
  %v1339 = vtanh.pop %v1275
  %v1340 = vtanh.pop %v1276
  %v1341 = vtanh.pop %v1277
  %v1342 = vtanh.pop %v1278
  %v1343 = vtanh.pop %v1279
  %v1344 = vtanh.pop %v1280
  %v1345 = vtanh.pop %v1281
  %v1346 = vtanh.pop %v1282
  %v1347 = vtanh.pop %v1283
  %v1348 = vtanh.pop %v1284
  %v1349 = vtanh.pop %v1285
  %v1350 = vtanh.pop %v1286
  %v1351 = vtanh.pop %v1287
  %v1352 = vtanh.pop %v1288
  %v1353 = vtanh.pop %v1289
  %v1354 = vtanh.pop %v1290
  %v1355 = vtanh.pop %v1291
  %v1356 = vtanh.pop %v1292
  %v1357 = vtanh.pop %v1293
  %v1358 = vtanh.pop %v1294
  %v1359 = vtanh.pop %v1295
  %v1360 = vtanh.pop %v1296
  %v1361 = vtanh.pop %v1297
  %v1362 = vtanh.pop %v1298
  %v1363 = vtanh.pop %v1299
  %v1364 = vtanh.pop %v1300
  %v1365 = vtanh.pop %v1301
  %v1366 = vtanh.pop %v1302
  %v1367 = vadd.f32 %v1303, 1.0
  %v1368 = vadd.f32 %v1304, 1.0
  %v1369 = vadd.f32 %v1305, 1.0
  %v1370 = vadd.f32 %v1306, 1.0
  %v1371 = vadd.f32 %v1307, 1.0
  %v1372 = vadd.f32 %v1308, 1.0
  %v1373 = vadd.f32 %v1309, 1.0
  %v1374 = vadd.f32 %v1310, 1.0
  %v1375 = vadd.f32 %v1311, 1.0
  %v1376 = vadd.f32 %v1312, 1.0
  %v1377 = vadd.f32 %v1313, 1.0
  %v1378 = vadd.f32 %v1314, 1.0
  %v1379 = vadd.f32 %v1315, 1.0
  %v1380 = vadd.f32 %v1316, 1.0
  %v1381 = vadd.f32 %v1317, 1.0
  %v1382 = vadd.f32 %v1318, 1.0
  %v1383 = vadd.f32 %v1319, 1.0
  %v1384 = vadd.f32 %v1320, 1.0
  %v1385 = vadd.f32 %v1321, 1.0
  %v1386 = vadd.f32 %v1322, 1.0
  %v1387 = vadd.f32 %v1323, 1.0
  %v1388 = vadd.f32 %v1324, 1.0
  %v1389 = vadd.f32 %v1325, 1.0
  %v1390 = vadd.f32 %v1326, 1.0
  %v1391 = vadd.f32 %v1327, 1.0
  %v1392 = vadd.f32 %v1328, 1.0
  %v1393 = vadd.f32 %v1329, 1.0
  %v1394 = vadd.f32 %v1330, 1.0
  %v1395 = vadd.f32 %v1331, 1.0
  %v1396 = vadd.f32 %v1332, 1.0
  %v1397 = vadd.f32 %v1333, 1.0
  %v1398 = vadd.f32 %v1334, 1.0
  %v1399 = vadd.f32 %v1335, 1.0
  %v1400 = vadd.f32 %v1336, 1.0
  %v1401 = vadd.f32 %v1337, 1.0
  %v1402 = vadd.f32 %v1338, 1.0
  %v1403 = vadd.f32 %v1339, 1.0
  %v1404 = vadd.f32 %v1340, 1.0
  %v1405 = vadd.f32 %v1341, 1.0
  %v1406 = vadd.f32 %v1342, 1.0
  %v1407 = vadd.f32 %v1343, 1.0
  %v1408 = vadd.f32 %v1344, 1.0
  %v1409 = vadd.f32 %v1345, 1.0
  %v1410 = vadd.f32 %v1346, 1.0
  %v1411 = vadd.f32 %v1347, 1.0
  %v1412 = vadd.f32 %v1348, 1.0
  %v1413 = vadd.f32 %v1349, 1.0
  %v1414 = vadd.f32 %v1350, 1.0
  %v1415 = vadd.f32 %v1351, 1.0
  %v1416 = vadd.f32 %v1352, 1.0
  %v1417 = vadd.f32 %v1353, 1.0
  %v1418 = vadd.f32 %v1354, 1.0
  %v1419 = vadd.f32 %v1355, 1.0
  %v1420 = vadd.f32 %v1356, 1.0
  %v1421 = vadd.f32 %v1357, 1.0
  %v1422 = vadd.f32 %v1358, 1.0
  %v1423 = vadd.f32 %v1359, 1.0
  %v1424 = vadd.f32 %v1360, 1.0
  %v1425 = vadd.f32 %v1361, 1.0
  %v1426 = vadd.f32 %v1362, 1.0
  %v1427 = vadd.f32 %v1363, 1.0
  %v1428 = vadd.f32 %v1364, 1.0
  %v1429 = vadd.f32 %v1365, 1.0
  %v1430 = vadd.f32 %v1366, 1.0
  %v1431 = vmul.f32 %v1367, 0.5
  %v1432 = vmul.f32 %v1368, 0.5
  %v1433 = vmul.f32 %v1369, 0.5
  %v1434 = vmul.f32 %v1370, 0.5
  %v1435 = vmul.f32 %v1371, 0.5
  %v1436 = vmul.f32 %v1372, 0.5
  %v1437 = vmul.f32 %v1373, 0.5
  %v1438 = vmul.f32 %v1374, 0.5
  %v1439 = vmul.f32 %v1375, 0.5
  %v1440 = vmul.f32 %v1376, 0.5
  %v1441 = vmul.f32 %v1377, 0.5
  %v1442 = vmul.f32 %v1378, 0.5
  %v1443 = vmul.f32 %v1379, 0.5
  %v1444 = vmul.f32 %v1380, 0.5
  %v1445 = vmul.f32 %v1381, 0.5
  %v1446 = vmul.f32 %v1382, 0.5
  %v1447 = vmul.f32 %v1383, 0.5
  %v1448 = vmul.f32 %v1384, 0.5
  %v1449 = vmul.f32 %v1385, 0.5
  %v1450 = vmul.f32 %v1386, 0.5
  %v1451 = vmul.f32 %v1387, 0.5
  %v1452 = vmul.f32 %v1388, 0.5
  %v1453 = vmul.f32 %v1389, 0.5
  %v1454 = vmul.f32 %v1390, 0.5
  %v1455 = vmul.f32 %v1391, 0.5
  %v1456 = vmul.f32 %v1392, 0.5
  %v1457 = vmul.f32 %v1393, 0.5
  %v1458 = vmul.f32 %v1394, 0.5
  %v1459 = vmul.f32 %v1395, 0.5
  %v1460 = vmul.f32 %v1396, 0.5
  %v1461 = vmul.f32 %v1397, 0.5
  %v1462 = vmul.f32 %v1398, 0.5
  %v1463 = vmul.f32 %v1399, 0.5
  %v1464 = vmul.f32 %v1400, 0.5
  %v1465 = vmul.f32 %v1401, 0.5
  %v1466 = vmul.f32 %v1402, 0.5
  %v1467 = vmul.f32 %v1403, 0.5
  %v1468 = vmul.f32 %v1404, 0.5
  %v1469 = vmul.f32 %v1405, 0.5
  %v1470 = vmul.f32 %v1406, 0.5
  %v1471 = vmul.f32 %v1407, 0.5
  %v1472 = vmul.f32 %v1408, 0.5
  %v1473 = vmul.f32 %v1409, 0.5
  %v1474 = vmul.f32 %v1410, 0.5
  %v1475 = vmul.f32 %v1411, 0.5
  %v1476 = vmul.f32 %v1412, 0.5
  %v1477 = vmul.f32 %v1413, 0.5
  %v1478 = vmul.f32 %v1414, 0.5
  %v1479 = vmul.f32 %v1415, 0.5
  %v1480 = vmul.f32 %v1416, 0.5
  %v1481 = vmul.f32 %v1417, 0.5
  %v1482 = vmul.f32 %v1418, 0.5
  %v1483 = vmul.f32 %v1419, 0.5
  %v1484 = vmul.f32 %v1420, 0.5
  %v1485 = vmul.f32 %v1421, 0.5
  %v1486 = vmul.f32 %v1422, 0.5
  %v1487 = vmul.f32 %v1423, 0.5
  %v1488 = vmul.f32 %v1424, 0.5
  %v1489 = vmul.f32 %v1425, 0.5
  %v1490 = vmul.f32 %v1426, 0.5
  %v1491 = vmul.f32 %v1427, 0.5
  %v1492 = vmul.f32 %v1428, 0.5
  %v1493 = vmul.f32 %v1429, 0.5
  %v1494 = vmul.f32 %v1430, 0.5
  %vm1495 = vcmask 7168
  %1496 = vst.msk [vmem:[%s5] sm:$0xff] %vm1495, %v1431
  %1497 = vst.msk [vmem:[%s5 + $0x8] sm:$0xff] %vm1495, %v1432
  %1498 = vst.msk [vmem:[%s5 + $0x10] sm:$0xff] %vm1495, %v1433
  %1499 = vst.msk [vmem:[%s5 + $0x18] sm:$0xff] %vm1495, %v1434
  %1500 = vst.msk [vmem:[%s5 + $0x20] sm:$0xff] %vm1495, %v1435
  %1501 = vst.msk [vmem:[%s5 + $0x28] sm:$0xff] %vm1495, %v1436
  %1502 = vst.msk [vmem:[%s5 + $0x30] sm:$0xff] %vm1495, %v1437
  %1503 = vst.msk [vmem:[%s5 + $0x38] sm:$0xff] %vm1495, %v1438
  %1504 = vst.msk [vmem:[%s5 + $0x40] sm:$0xff] %vm1495, %v1439
  %1505 = vst.msk [vmem:[%s5 + $0x48] sm:$0xff] %vm1495, %v1440
  %1506 = vst.msk [vmem:[%s5 + $0x50] sm:$0xff] %vm1495, %v1441
  %1507 = vst.msk [vmem:[%s5 + $0x58] sm:$0xff] %vm1495, %v1442
  %1508 = vst.msk [vmem:[%s5 + $0x60] sm:$0xff] %vm1495, %v1443
  %1509 = vst.msk [vmem:[%s5 + $0x68] sm:$0xff] %vm1495, %v1444
  %1510 = vst.msk [vmem:[%s5 + $0x70] sm:$0xff] %vm1495, %v1445
  %1511 = vst.msk [vmem:[%s5 + $0x78] sm:$0xff] %vm1495, %v1446
  %1512 = vst.msk [vmem:[%s5 + $0x80] sm:$0xff] %vm1495, %v1447
  %1513 = vst.msk [vmem:[%s5 + $0x88] sm:$0xff] %vm1495, %v1448
  %1514 = vst.msk [vmem:[%s5 + $0x90] sm:$0xff] %vm1495, %v1449
  %1515 = vst.msk [vmem:[%s5 + $0x98] sm:$0xff] %vm1495, %v1450
  %1516 = vst.msk [vmem:[%s5 + $0xa0] sm:$0xff] %vm1495, %v1451
  %1517 = vst.msk [vmem:[%s5 + $0xa8] sm:$0xff] %vm1495, %v1452
  %1518 = vst.msk [vmem:[%s5 + $0xb0] sm:$0xff] %vm1495, %v1453
  %1519 = vst.msk [vmem:[%s5 + $0xb8] sm:$0xff] %vm1495, %v1454
  %1520 = vst.msk [vmem:[%s5 + $0xc0] sm:$0xff] %vm1495, %v1455
  %1521 = vst.msk [vmem:[%s5 + $0xc8] sm:$0xff] %vm1495, %v1456
  %1522 = vst.msk [vmem:[%s5 + $0xd0] sm:$0xff] %vm1495, %v1457
  %1523 = vst.msk [vmem:[%s5 + $0xd8] sm:$0xff] %vm1495, %v1458
  %1524 = vst.msk [vmem:[%s5 + $0xe0] sm:$0xff] %vm1495, %v1459
  %1525 = vst.msk [vmem:[%s5 + $0xe8] sm:$0xff] %vm1495, %v1460
  %1526 = vst.msk [vmem:[%s5 + $0xf0] sm:$0xff] %vm1495, %v1461
  %1527 = vst.msk [vmem:[%s5 + $0xf8] sm:$0xff] %vm1495, %v1462
  %1528 = vst.msk [vmem:[%s5 + $0x100] sm:$0xff] %vm1495, %v1463
  %1529 = vst.msk [vmem:[%s5 + $0x108] sm:$0xff] %vm1495, %v1464
  %1530 = vst.msk [vmem:[%s5 + $0x110] sm:$0xff] %vm1495, %v1465
  %1531 = vst.msk [vmem:[%s5 + $0x118] sm:$0xff] %vm1495, %v1466
  %1532 = vst.msk [vmem:[%s5 + $0x120] sm:$0xff] %vm1495, %v1467
  %1533 = vst.msk [vmem:[%s5 + $0x128] sm:$0xff] %vm1495, %v1468
  %1534 = vst.msk [vmem:[%s5 + $0x130] sm:$0xff] %vm1495, %v1469
  %1535 = vst.msk [vmem:[%s5 + $0x138] sm:$0xff] %vm1495, %v1470
  %1536 = vst.msk [vmem:[%s5 + $0x140] sm:$0xff] %vm1495, %v1471
  %1537 = vst.msk [vmem:[%s5 + $0x148] sm:$0xff] %vm1495, %v1472
  %1538 = vst.msk [vmem:[%s5 + $0x150] sm:$0xff] %vm1495, %v1473
  %1539 = vst.msk [vmem:[%s5 + $0x158] sm:$0xff] %vm1495, %v1474
  %1540 = vst.msk [vmem:[%s5 + $0x160] sm:$0xff] %vm1495, %v1475
  %1541 = vst.msk [vmem:[%s5 + $0x168] sm:$0xff] %vm1495, %v1476
  %1542 = vst.msk [vmem:[%s5 + $0x170] sm:$0xff] %vm1495, %v1477
  %1543 = vst.msk [vmem:[%s5 + $0x178] sm:$0xff] %vm1495, %v1478
  %1544 = vst.msk [vmem:[%s5 + $0x180] sm:$0xff] %vm1495, %v1479
  %1545 = vst.msk [vmem:[%s5 + $0x188] sm:$0xff] %vm1495, %v1480
  %1546 = vst.msk [vmem:[%s5 + $0x190] sm:$0xff] %vm1495, %v1481
  %1547 = vst.msk [vmem:[%s5 + $0x198] sm:$0xff] %vm1495, %v1482
  %1548 = vst.msk [vmem:[%s5 + $0x1a0] sm:$0xff] %vm1495, %v1483
  %1549 = vst.msk [vmem:[%s5 + $0x1a8] sm:$0xff] %vm1495, %v1484
  %1550 = vst.msk [vmem:[%s5 + $0x1b0] sm:$0xff] %vm1495, %v1485
  %1551 = vst.msk [vmem:[%s5 + $0x1b8] sm:$0xff] %vm1495, %v1486
  %1552 = vst.msk [vmem:[%s5 + $0x1c0] sm:$0xff] %vm1495, %v1487
  %1553 = vst.msk [vmem:[%s5 + $0x1c8] sm:$0xff] %vm1495, %v1488
  %1554 = vst.msk [vmem:[%s5 + $0x1d0] sm:$0xff] %vm1495, %v1489
  %1555 = vst.msk [vmem:[%s5 + $0x1d8] sm:$0xff] %vm1495, %v1490
  %1556 = vst.msk [vmem:[%s5 + $0x1e0] sm:$0xff] %vm1495, %v1491
  %1557 = vst.msk [vmem:[%s5 + $0x1e8] sm:$0xff] %vm1495, %v1492
  %1558 = vst.msk [vmem:[%s5 + $0x1f0] sm:$0xff] %vm1495, %v1493
  %1559 = vst.msk [vmem:[%s5 + $0x1f8] sm:$0xff] %vm1495, %v1494
  // Predicated region
  $region22: #{model_forward.33} parent=0 // pred_check
    _
  $region23: #{model_forward.33} parent=0 // pred_check_branch
    %1561 = sbr.rel (0) target = $region25
  $region24: #{model_forward.33} parent=0 // pred_region
    _
  $region25: #{model_forward.33} parent=0 // pred_fallthru
    _
  // Predicated region
  $region26: #{model_forward.33} parent=0 // pred_check
    _
  $region27: #{model_forward.33} parent=0 // pred_check_branch
    %1563 = sbr.rel (0) target = $region29
  $region28: #{model_forward.33} parent=0 // pred_region
    _
  $region29: #{model_forward.33} parent=0 // pred_fallthru
    _

// kernel: model_forward.34
$region0: #{model_forward.34}
  #allocation0 [shape = 'u32[]', space=smem, size = 0x4, offset = 0x4, fixed_abs, tag = 'smem constant byte address 0x4 - core index']
  #allocation1 [shape = 'u32[144,128]{1,0:T(1,128)}', space=vmem, size = 0x12000, scoped, tag = 'internal scratch']
  %s0 = inlined_call_operand.vmem [shape: f32[32,16], index: 0, kind: input, shape index: {}]
  %s1 = inlined_call_operand.vmem [shape: f32[16,32], index: 1, kind: input, shape index: {}]
  %s2 = inlined_call_operand.vmem [shape: f32[32,32], index: 2, kind: output, shape index: {}]
  %s3 = sld [smem:[#allocation0]]
  $region18: #{model_forward.34} parent=0
    _
  %s5 = ssub.s32 1, %s3
  %s6 = scalar_select 0, %s5, %s3
  // Predicated region
  $region2: #{model_forward.34} parent=0 // pred_check
    _
  $region3: #{model_forward.34} parent=0 // pred_check_branch
    %8 = sbr.rel (0) target = $region5
  $region4: #{model_forward.34} parent=0 // pred_region
    _
  $region5: #{model_forward.34} parent=0 // pred_fallthru
    _
  // Predicated region
  $region6: #{model_forward.34} parent=0 // pred_check
    _
  $region7: #{model_forward.34} parent=0 // pred_check_branch
    %10 = sbr.rel (0) target = $region9
  $region8: #{model_forward.34} parent=0 // pred_region
    _
  $region9: #{model_forward.34} parent=0 // pred_fallthru
    _
  %v11 = vld [vmem:[%s0] sm:$0xff]
  %v12 = vld [vmem:[%s0 + $0x8] sm:$0xff]
  %v13 = vld [vmem:[%s0 + $0x10] sm:$0xff]
  %v14 = vld [vmem:[%s0 + $0x18] sm:$0xff]
  %v15 = vld [vmem:[%s1] sm:$0xff]
  %v16 = vld [vmem:[%s1 + $0x8] sm:$0xff]
  %vm17 = vcmask 130048
  %v19 = vsel %vm17, %v11, 0
  %v22 = vsel %vm17, %v12, 0
  %v25 = vsel %vm17, %v13, 0
  %v28 = vsel %vm17, %v14, 0
  %30 = vmatprep.subr.mxu0 0.0
  %31 = vmatpush1.msra.mxu0 %v15
  %32 = vmatprep.subr.mxu0 0.0
  %33 = vmatpush1.msra.mxu0 %v16
  %34 = vmatprep.subr.mxu0 0.0
  %35 = vmatpush1.msra.mxu0 0.0
  %36 = vmatprep.subr.mxu0 0.0
  %37 = vmatpush1.msra.mxu0 0.0
  %38 = vmatprep.subr.mxu0 0.0
  %39 = vmatpush1.msra.mxu0 0.0
  %40 = vmatprep.subr.mxu0 0.0
  %41 = vmatpush1.msra.mxu0 0.0
  %42 = vmatprep.subr.mxu0 0.0
  %43 = vmatpush1.msra.mxu0 0.0
  %44 = vmatprep.subr.mxu0 0.0
  %45 = vmatpush1.msra.mxu0 0.0
  %46 = vmatprep.subr.mxu0 0.0
  %47 = vmatpush1.msra.mxu0 0.0
  %48 = vmatprep.subr.mxu0 0.0
  %49 = vmatpush1.msra.mxu0 0.0
  %50 = vmatprep.subr.mxu0 0.0
  %51 = vmatpush1.msra.mxu0 0.0
  %52 = vmatprep.subr.mxu0 0.0
  %53 = vmatpush1.msra.mxu0 0.0
  %54 = vmatprep.subr.mxu0 0.0
  %55 = vmatpush1.msra.mxu0 0.0
  %56 = vmatprep.subr.mxu0 0.0
  %57 = vmatpush1.msra.mxu0 0.0
  %58 = vmatprep.subr.mxu0 0.0
  %59 = vmatpush1.msra.mxu0 0.0
  %60 = vmatprep.subr.mxu0 0.0
  %61 = vmatpush1.msra.mxu0 0.0
  %62 = vmatprep.subr.mxu0 0.0
  %63 = vmatpush1.msra.mxu0 0.0
  %64 = vmatprep.subr.mxu0 0.0
  %65 = vmatpush1.msra.mxu0 0.0
  %66 = vmatprep.subr.mxu0 0.0
  %67 = vmatpush1.msra.mxu0 0.0
  %68 = vmatprep.subr.mxu0 0.0
  %69 = vmatpush1.msra.mxu0 0.0
  %70 = vmatprep.subr.mxu0 0.0
  %71 = vmatpush1.msra.mxu0 0.0
  %72 = vmatprep.subr.mxu0 0.0
  %73 = vmatpush1.msra.mxu0 0.0
  %74 = vmatprep.subr.mxu0 0.0
  %75 = vmatpush1.msra.mxu0 0.0
  %76 = vmatprep.subr.mxu0 0.0
  %77 = vmatpush1.msra.mxu0 0.0
  %78 = vmatprep.subr.mxu0 0.0
  %79 = vmatpush1.msra.mxu0 0.0
  %80 = vmatprep.subr.mxu0 0.0
  %81 = vmatpush1.msra.mxu0 0.0
  %82 = vmatprep.subr.mxu0 0.0
  %83 = vmatpush1.msra.mxu0 0.0
  %84 = vmatprep.subr.mxu0 0.0
  %85 = vmatpush1.msra.mxu0 0.0
  %86 = vmatprep.subr.mxu0 0.0
  %87 = vmatpush1.msra.mxu0 0.0
  %88 = vmatprep.subr.mxu0 0.0
  %89 = vmatpush1.msra.mxu0 0.0
  %90 = vmatprep.subr.mxu0 0.0
  %91 = vmatpush1.msra.mxu0 0.0
  %92 = vmatprep.subr.mxu0 0.0
  %93 = vmatpush1.msra.mxu0 0.0
  %94 = vmatprep.mubr.f32.mxu0 0.0
  %95 = vmatmul.mubr.f32.gmra.mrb[0].mxu0 %v19
  %v96 = vpop.f32.mrb[0].mxu0
  %v97 = vadd.f32 0.0, %v96
  %v98 = vpop.f32.mrb[0].mxu0
  %99 = vmatprep.mubr.f32.mxu0 0.0
  %100 = vmatmul.mubr.f32.gmra.mrb[0].mxu0 %v22
  %v101 = vpop.f32.mrb[0].mxu0
  %v102 = vadd.f32 0.0, %v101
  %v103 = vpop.f32.mrb[0].mxu0
  %104 = vmatprep.mubr.f32.mxu0 0.0
  %105 = vmatmul.mubr.f32.gmra.mrb[0].mxu0 %v25
  %v106 = vpop.f32.mrb[0].mxu0
  %v107 = vadd.f32 0.0, %v106
  %v108 = vpop.f32.mrb[0].mxu0
  %109 = vmatprep.mubr.f32.mxu0 0.0
  %110 = vmatmul.mubr.f32.gmra.mrb[0].mxu0 %v28
  %v111 = vpop.f32.mrb[0].mxu0
  %v112 = vadd.f32 0.0, %v111
  %v113 = vpop.f32.mrb[0].mxu0
  %114 = vdwg.mxu0
  %vm115 = vcmask 261120
  %116 = vst.msk [vmem:[%s2] sm:$0xff] %vm115, %v97
  %117 = vst.msk [vmem:[%s2 + $0x8] sm:$0xff] %vm115, %v102
  %118 = vst.msk [vmem:[%s2 + $0x10] sm:$0xff] %vm115, %v107
  %119 = vst.msk [vmem:[%s2 + $0x18] sm:$0xff] %vm115, %v112
  // Predicated region
  $region10: #{model_forward.34} parent=0 // pred_check
    _
  $region11: #{model_forward.34} parent=0 // pred_check_branch
    %121 = sbr.rel (0) target = $region13
  $region12: #{model_forward.34} parent=0 // pred_region
    _
  $region13: #{model_forward.34} parent=0 // pred_fallthru
    _
  // Predicated region
  $region14: #{model_forward.34} parent=0 // pred_check
    _
  $region15: #{model_forward.34} parent=0 // pred_check_branch
    %123 = sbr.rel (0) target = $region17
  $region16: #{model_forward.34} parent=0 // pred_region
    _
  $region17: #{model_forward.34} parent=0 // pred_fallthru
    _

// kernel: model_forward.35
$region0: #{model_forward.35}
  #allocation0 [shape = 'u32[]', space=smem, size = 0x4, offset = 0x4, fixed_abs, tag = 'smem constant byte address 0x4 - core index']
  #allocation1 [shape = 'u32[144,128]{1,0:T(1,128)}', space=vmem, size = 0x12000, scoped, tag = 'internal scratch']
  %s0 = inlined_call_operand.vmem [shape: f32[64,16], index: 0, kind: input, shape index: {}]
  %s1 = inlined_call_operand.vmem [shape: f32[16,32], index: 1, kind: input, shape index: {}]
  %s2 = inlined_call_operand.hbm [shape: f32[64,32], index: 2, kind: output, shape index: {}]
  %s3 = sld [smem:[#allocation0]]
  $region18: #{model_forward.35} parent=0
    _
  %s5 = ssub.s32 1, %s3
  %s6 = scalar_select 0, %s5, %s3
  $region1: #{model_forward.35} parent=0
    #allocation2 [shape = 'u8[32768]{0}', space=vmem, size = 0x8000, scoped, tag = 'output window, operand 0, single buffered']
    #allocation3 [shape = 's32[1]{0}', space=sflag, size = 0x4, scoped, tag = 'scoped memory for model_forward.35']
    %7 = vsyncpa [#allocation3], 0
    // Predicated region
    $region2: #{model_forward.35} parent=1 // pred_check
      _
    $region3: #{model_forward.35} parent=1 // pred_check_branch
      %9 = sbr.rel (0) target = $region5
    $region4: #{model_forward.35} parent=1 // pred_region
      _
    $region5: #{model_forward.35} parent=1 // pred_fallthru
      _
    // Predicated region
    $region6: #{model_forward.35} parent=1 // pred_check
      _
    $region7: #{model_forward.35} parent=1 // pred_check_branch
      %11 = sbr.rel (0) target = $region9
    $region8: #{model_forward.35} parent=1 // pred_region
      _
    $region9: #{model_forward.35} parent=1 // pred_fallthru
      _
    %v12 = vld [vmem:[%s0] sm:$0xff]
    %v13 = vld [vmem:[%s0 + $0x8] sm:$0xff]
    %v14 = vld [vmem:[%s0 + $0x10] sm:$0xff]
    %v15 = vld [vmem:[%s0 + $0x18] sm:$0xff]
    %v16 = vld [vmem:[%s0 + $0x20] sm:$0xff]
    %v17 = vld [vmem:[%s0 + $0x28] sm:$0xff]
    %v18 = vld [vmem:[%s0 + $0x30] sm:$0xff]
    %v19 = vld [vmem:[%s0 + $0x38] sm:$0xff]
    %v20 = vld [vmem:[%s1] sm:$0xff]
    %v21 = vld [vmem:[%s1 + $0x8] sm:$0xff]
    %vm22 = vcmask 130048
    %v24 = vsel %vm22, %v12, 0
    %v27 = vsel %vm22, %v13, 0
    %v30 = vsel %vm22, %v14, 0
    %v33 = vsel %vm22, %v15, 0
    %v36 = vsel %vm22, %v16, 0
    %v39 = vsel %vm22, %v17, 0
    %v42 = vsel %vm22, %v18, 0
    %v45 = vsel %vm22, %v19, 0
    %47 = vmatprep.subr.mxu0 0.0
    %48 = vmatpush1.msra.mxu0 %v20
    %49 = vmatprep.subr.mxu0 0.0
    %50 = vmatpush1.msra.mxu0 %v21
    %51 = vmatprep.subr.mxu0 0.0
    %52 = vmatpush1.msra.mxu0 0.0
    %53 = vmatprep.subr.mxu0 0.0
    %54 = vmatpush1.msra.mxu0 0.0
    %55 = vmatprep.subr.mxu0 0.0
    %56 = vmatpush1.msra.mxu0 0.0
    %57 = vmatprep.subr.mxu0 0.0
    %58 = vmatpush1.msra.mxu0 0.0
    %59 = vmatprep.subr.mxu0 0.0
    %60 = vmatpush1.msra.mxu0 0.0
    %61 = vmatprep.subr.mxu0 0.0
    %62 = vmatpush1.msra.mxu0 0.0
    %63 = vmatprep.subr.mxu0 0.0
    %64 = vmatpush1.msra.mxu0 0.0
    %65 = vmatprep.subr.mxu0 0.0
    %66 = vmatpush1.msra.mxu0 0.0
    %67 = vmatprep.subr.mxu0 0.0
    %68 = vmatpush1.msra.mxu0 0.0
    %69 = vmatprep.subr.mxu0 0.0
    %70 = vmatpush1.msra.mxu0 0.0
    %71 = vmatprep.subr.mxu0 0.0
    %72 = vmatpush1.msra.mxu0 0.0
    %73 = vmatprep.subr.mxu0 0.0
    %74 = vmatpush1.msra.mxu0 0.0
    %75 = vmatprep.subr.mxu0 0.0
    %76 = vmatpush1.msra.mxu0 0.0
    %77 = vmatprep.subr.mxu0 0.0
    %78 = vmatpush1.msra.mxu0 0.0
    %79 = vmatprep.subr.mxu0 0.0
    %80 = vmatpush1.msra.mxu0 0.0
    %81 = vmatprep.subr.mxu0 0.0
    %82 = vmatpush1.msra.mxu0 0.0
    %83 = vmatprep.subr.mxu0 0.0
    %84 = vmatpush1.msra.mxu0 0.0
    %85 = vmatprep.subr.mxu0 0.0
    %86 = vmatpush1.msra.mxu0 0.0
    %87 = vmatprep.subr.mxu0 0.0
    %88 = vmatpush1.msra.mxu0 0.0
    %89 = vmatprep.subr.mxu0 0.0
    %90 = vmatpush1.msra.mxu0 0.0
    %91 = vmatprep.subr.mxu0 0.0
    %92 = vmatpush1.msra.mxu0 0.0
    %93 = vmatprep.subr.mxu0 0.0
    %94 = vmatpush1.msra.mxu0 0.0
    %95 = vmatprep.subr.mxu0 0.0
    %96 = vmatpush1.msra.mxu0 0.0
    %97 = vmatprep.subr.mxu0 0.0
    %98 = vmatpush1.msra.mxu0 0.0
    %99 = vmatprep.subr.mxu0 0.0
    %100 = vmatpush1.msra.mxu0 0.0
    %101 = vmatprep.subr.mxu0 0.0
    %102 = vmatpush1.msra.mxu0 0.0
    %103 = vmatprep.subr.mxu0 0.0
    %104 = vmatpush1.msra.mxu0 0.0
    %105 = vmatprep.subr.mxu0 0.0
    %106 = vmatpush1.msra.mxu0 0.0
    %107 = vmatprep.subr.mxu0 0.0
    %108 = vmatpush1.msra.mxu0 0.0
    %109 = vmatprep.subr.mxu0 0.0
    %110 = vmatpush1.msra.mxu0 0.0
    %111 = vmatprep.mubr.f32.mxu0 0.0
    %112 = vmatmul.mubr.f32.gmra.mrb[0].mxu0 %v24
    %v113 = vpop.f32.mrb[0].mxu0
    %v114 = vadd.f32 0.0, %v113
    %v115 = vpop.f32.mrb[0].mxu0
    %116 = vmatprep.mubr.f32.mxu0 0.0
    %117 = vmatmul.mubr.f32.gmra.mrb[0].mxu0 %v27
    %v118 = vpop.f32.mrb[0].mxu0
    %v119 = vadd.f32 0.0, %v118
    %v120 = vpop.f32.mrb[0].mxu0
    %121 = vmatprep.mubr.f32.mxu0 0.0
    %122 = vmatmul.mubr.f32.gmra.mrb[0].mxu0 %v30
    %v123 = vpop.f32.mrb[0].mxu0
    %v124 = vadd.f32 0.0, %v123
    %v125 = vpop.f32.mrb[0].mxu0
    %126 = vmatprep.mubr.f32.mxu0 0.0
    %127 = vmatmul.mubr.f32.gmra.mrb[0].mxu0 %v33
    %v128 = vpop.f32.mrb[0].mxu0
    %v129 = vadd.f32 0.0, %v128
    %v130 = vpop.f32.mrb[0].mxu0
    %131 = vmatprep.mubr.f32.mxu0 0.0
    %132 = vmatmul.mubr.f32.gmra.mrb[0].mxu0 %v36
    %v133 = vpop.f32.mrb[0].mxu0
    %v134 = vadd.f32 0.0, %v133
    %v135 = vpop.f32.mrb[0].mxu0
    %136 = vmatprep.mubr.f32.mxu0 0.0
    %137 = vmatmul.mubr.f32.gmra.mrb[0].mxu0 %v39
    %v138 = vpop.f32.mrb[0].mxu0
    %v139 = vadd.f32 0.0, %v138
    %v140 = vpop.f32.mrb[0].mxu0
    %141 = vmatprep.mubr.f32.mxu0 0.0
    %142 = vmatmul.mubr.f32.gmra.mrb[0].mxu0 %v42
    %v143 = vpop.f32.mrb[0].mxu0
    %v144 = vadd.f32 0.0, %v143
    %v145 = vpop.f32.mrb[0].mxu0
    %146 = vmatprep.mubr.f32.mxu0 0.0
    %147 = vmatmul.mubr.f32.gmra.mrb[0].mxu0 %v45
    %v148 = vpop.f32.mrb[0].mxu0
    %v149 = vadd.f32 0.0, %v148
    %v150 = vpop.f32.mrb[0].mxu0
    %151 = vdwg.mxu0
    %vm152 = vcmask 261120
    %153 = vst.msk [vmem:[#allocation2] sm:$0xff] %vm152, %v114
    %154 = vst.msk [vmem:[#allocation2 + $0x8] sm:$0xff] %vm152, %v119
    %155 = vst.msk [vmem:[#allocation2 + $0x10] sm:$0xff] %vm152, %v124
    %156 = vst.msk [vmem:[#allocation2 + $0x18] sm:$0xff] %vm152, %v129
    %157 = vst.msk [vmem:[#allocation2 + $0x20] sm:$0xff] %vm152, %v134
    %158 = vst.msk [vmem:[#allocation2 + $0x28] sm:$0xff] %vm152, %v139
    %159 = vst.msk [vmem:[#allocation2 + $0x30] sm:$0xff] %vm152, %v144
    %160 = vst.msk [vmem:[#allocation2 + $0x38] sm:$0xff] %vm152, %v149
    // Predicated region
    $region10: #{model_forward.35} parent=1 // pred_check
      _
    $region11: #{model_forward.35} parent=1 // pred_check_branch
      %162 = sbr.rel (0) target = $region13
    $region12: #{model_forward.35} parent=1 // pred_region
      %s164 = ssub.s32 1024, 1024
      %165 = vsyncadd [#allocation3], %s164
      %s166 = sshll.u32 [#allocation2], 4
      %s167 = int_to_ptr.vmem [resolvable:$true] %s166
      %172 = dma.vmem_to_hbm [thread:$0]  %s167, 1024, %s2, [#allocation3], 128, 128, 8
    $region13: #{model_forward.35} parent=1 // pred_fallthru
      _
    // Predicated region
    $region14: #{model_forward.35} parent=1 // pred_check
      _
    $region15: #{model_forward.35} parent=1 // pred_check_branch
      %174 = sbr.rel (0) target = $region17
    $region16: #{model_forward.35} parent=1 // pred_region
      %175 = dma.done [#allocation3], 1024
    $region17: #{model_forward.35} parent=1 // pred_fallthru
      _
    %176 = vsyncpa [#allocation3], 1

</llo_original>
